<compile_context>
chip_gen: v7x
topology: tpu7x:2x2x1
jax: 0.10.0
libtpu: 0.0.40
codegen_flags: <defaults>
</compile_context>

<pallas_src>
import functools

import jax
import jax.numpy as jnp
from jax.experimental import pallas as pl
from jax.experimental.pallas import tpu as pltpu

EPS = 1e-5


# --------------------------------------------------------------------------
# helpers
# --------------------------------------------------------------------------
def _padded_bytes(shape, dtype):
    """Approximate VMEM footprint of one block, accounting for (sublane, lane) tiling."""
    itemsize = jnp.dtype(dtype).itemsize
    dims = list(shape)
    sub = 8 * (4 // itemsize) if itemsize < 4 else 8
    dims[-1] = -(-dims[-1] // 128) * 128
    if len(dims) >= 2:
        dims[-2] = -(-dims[-2] // sub) * sub
    n = 1
    for d in dims:
        n *= d
    return n * itemsize


def _compiler_params(block_bytes):
    # double-buffered blocks + headroom; stays well under v7x's 64 MiB physical VMEM
    limit = int(max(2 * block_bytes + (4 << 20), 8 << 20))
    return pltpu.CompilerParams(dimension_semantics=("parallel",),
                                vmem_limit_bytes=limit)


def _write_stats(st_ref, acc2d, cout):
    """Write per-tile [sum, sum_of_squares] (shape (1, 2, C)) for BN stats."""
    st_ref[:, 0:1, :] = jnp.sum(acc2d, axis=0, keepdims=True).reshape(1, 1, cout)
    st_ref[:, 1:2, :] = jnp.sum(acc2d * acc2d, axis=0, keepdims=True).reshape(1, 1, cout)


def _finalize_bn(stats, count, gamma, beta, eps=EPS):
    """stats: (N_tiles, 2, C) partial [sum, sumsq]. Returns per-channel scale/shift."""
    s = jnp.sum(stats[:, 0, :], axis=0)
    sq = jnp.sum(stats[:, 1, :], axis=0)
    mu = s / count
    var = jnp.maximum(sq / count - mu * mu, 0.0)         # one-pass var, clamped
    scale = gamma.reshape(-1) * jax.lax.rsqrt(var + eps)
    shift = beta.reshape(-1) - mu * scale
    c = scale.shape[0]
    return scale.reshape(1, c).astype(jnp.float32), shift.reshape(1, c).astype(jnp.float32)


# --------------------------------------------------------------------------
# pass 1: conv1 (stride-aware) + optional 1x1 projection, per-batch tile,
#         emitting raw outputs + per-tile BN partial statistics
# --------------------------------------------------------------------------
def _make_conv1_kernel(H, W, Cin, Cout, stride, has_proj):
    Ho = (H + 2 - 3) // stride + 1
    Wo = (W + 2 - 3) // stride + 1
    Hp, Wp = H + 2, W + 2

    def kernel(*refs):
        if has_proj:
            (x_ref, w1_ref, ws_ref,
             y1_ref, st1_ref, sc_ref, sts_ref, pad_ref) = refs
        else:
            (x_ref, w1_ref, y1_ref, st1_ref, pad_ref) = refs

        # ---- in-kernel halo padding: zero ONLY the 1-wide border strips, then
        #      write this image's bf16 copy straight into the interior ----
        zrow = jnp.zeros((1, 1, Wp, Cin), jnp.bfloat16)
        zcol = jnp.zeros((1, Hp, 1, Cin), jnp.bfloat16)
        pad_ref[:, 0:1, :, :] = zrow
        pad_ref[:, Hp - 1:Hp, :, :] = zrow
        pad_ref[:, :, 0:1, :] = zcol
        pad_ref[:, :, Wp - 1:Wp, :] = zcol

        x = x_ref[...]                                     # (1, H, W, Cin) f32
        pad_ref[:, 1:H + 1, 1:W + 1, :] = x.astype(jnp.bfloat16)
        xpad = pad_ref[...]                                # (1, Hp, Wp, Cin) bf16

        # ---- conv1: 9 shifted bf16 MXU matmuls, f32 accumulation.
        #      Stride applied inside the window slice (no wasted FLOPs). ----
        span_h = (Ho - 1) * stride + 1
        span_w = (Wo - 1) * stride + 1
        acc = jnp.zeros((Ho * Wo, Cout), jnp.float32)
        for kh in range(3):
            for kw in range(3):
                if stride == 1:
                    win = xpad[0, kh:kh + Ho, kw:kw + Wo, :]
                else:
                    win = xpad[0, kh:kh + span_h:stride, kw:kw + span_w:stride, :]
                acc = acc + jnp.dot(win.reshape(Ho * Wo, Cin), w1_ref[kh, kw],
                                    preferred_element_type=jnp.float32)
        # conv bias b1 omitted: cancelled exactly by batch-statistic BN.
        y1_ref[...] = acc.reshape(1, Ho, Wo, Cout)
        _write_stats(st1_ref, acc, Cout)

        # ---- fused 1x1 projection shortcut (raw, pre-BN) ----
        if has_proj:
            if stride == 1:
                xc = x[0]
            else:
                xc = x[0, ::stride, ::stride, :]
            sc = jnp.dot(xc.reshape(Ho * Wo, Cin).astype(jnp.bfloat16),
                         ws_ref[...], preferred_element_type=jnp.float32)
            sc_ref[...] = sc.reshape(1, Ho, Wo, Cout)
            _write_stats(sts_ref, sc, Cout)

    return kernel, Ho, Wo


# --------------------------------------------------------------------------
# pass 2: apply BN1 (precomputed scale/shift) + ReLU directly into padded
#         scratch, then conv2; emit raw conv2 + per-tile BN2 partial stats
# --------------------------------------------------------------------------
def _make_conv2_kernel(Ho, Wo, Cout):
    Hp, Wp = Ho + 2, Wo + 2

    def kernel(y1_ref, s1_ref, t1_ref, w2_ref, y2_ref, st2_ref, pad_ref):
        zrow = jnp.zeros((1, 1, Wp, Cout), jnp.bfloat16)
        zcol = jnp.zeros((1, Hp, 1, Cout), jnp.bfloat16)
        pad_ref[:, 0:1, :, :] = zrow
        pad_ref[:, Hp - 1:Hp, :, :] = zrow
        pad_ref[:, :, 0:1, :] = zcol
        pad_ref[:, :, Wp - 1:Wp, :] = zcol

        s1 = s1_ref[...].reshape(1, 1, 1, Cout)
        t1 = t1_ref[...].reshape(1, 1, 1, Cout)
        a1 = jnp.maximum(y1_ref[...] * s1 + t1, 0.0)       # BN1 as one FMA + ReLU
        pad_ref[:, 1:Ho + 1, 1:Wo + 1, :] = a1.astype(jnp.bfloat16)
        ypad = pad_ref[...]                                 # (1, Hp, Wp, Cout) bf16

        acc = jnp.zeros((Ho * Wo, Cout), jnp.float32)
        for kh in range(3):
            for kw in range(3):
                win = ypad[0, kh:kh + Ho, kw:kw + Wo, :]
                acc = acc + jnp.dot(win.reshape(Ho * Wo, Cout), w2_ref[kh, kw],
                                    preferred_element_type=jnp.float32)
        # conv bias b2 omitted: cancelled exactly by batch-statistic BN.
        y2_ref[...] = acc.reshape(1, Ho, Wo, Cout)
        _write_stats(st2_ref, acc, Cout)

    return kernel


# --------------------------------------------------------------------------
# pass 3: final elementwise fuse: relu(BN2(conv2) + BN_s(shortcut))
# --------------------------------------------------------------------------
def _make_fuse_kernel(Cout, has_proj):
    def kernel(*refs):
        if has_proj:
            (y2_ref, sc_ref, s2_ref, t2_ref, ss_ref, ts_ref, o_ref) = refs
            sc = (sc_ref[...] * ss_ref[...].reshape(1, 1, 1, Cout)
                  + ts_ref[...].reshape(1, 1, 1, Cout))
        else:
            (y2_ref, sc_ref, s2_ref, t2_ref, o_ref) = refs
            sc = sc_ref[...]                     # identity shortcut (original x)
        out = (y2_ref[...] * s2_ref[...].reshape(1, 1, 1, Cout)
               + t2_ref[...].reshape(1, 1, 1, Cout) + sc)
        o_ref[...] = jnp.maximum(out, 0.0)

    return kernel


# --------------------------------------------------------------------------
# public wrapper
# --------------------------------------------------------------------------
def residual_block_pallas(x_nchw, params, stride=1):
    """x_nchw: (N, Cin, H, W) float32. Returns (N, Cout, Ho, Wo) float32."""
    N, Cin, H, W = x_nchw.shape
    Cout = params["w1"].shape[-1]
    has_proj = (stride != 1) or (Cin != Cout)

    x_nhwc = jnp.transpose(x_nchw, (0, 2, 3, 1)).astype(jnp.float32)
    w1 = params["w1"].astype(jnp.bfloat16)
    w2 = params["w2"].astype(jnp.bfloat16)

    # ---------------- pass 1 ----------------
    k1, Ho, Wo = _make_conv1_kernel(H, W, Cin, Cout, stride, has_proj)
    in_specs1 = [pl.BlockSpec((1, H, W, Cin), lambda n: (n, 0, 0, 0)),
                 pl.BlockSpec((3, 3, Cin, Cout), lambda n: (0, 0, 0, 0))]
    args1 = [x_nhwc, w1]
    out_shapes1 = [jax.ShapeDtypeStruct((N, Ho, Wo, Cout), jnp.float32),
                   jax.ShapeDtypeStruct((N, 2, Cout), jnp.float32)]
    out_specs1 = [pl.BlockSpec((1, Ho, Wo, Cout), lambda n: (n, 0, 0, 0)),
                  pl.BlockSpec((1, 2, Cout), lambda n: (n, 0, 0))]
    blk1 = (_padded_bytes((1, H, W, Cin), jnp.float32)
            + _padded_bytes((3, 3, Cin, Cout), jnp.bfloat16)
            + _padded_bytes((1, Ho, Wo, Cout), jnp.float32)
            + _padded_bytes((1, 2, Cout), jnp.float32)
            + _padded_bytes((1, H + 2, W + 2, Cin), jnp.bfloat16))
    if has_proj:
        ws = params["ws"].astype(jnp.bfloat16)
        in_specs1.append(pl.BlockSpec((Cin, Cout), lambda n: (0, 0)))
        args1.append(ws)
        out_shapes1 += [jax.ShapeDtypeStruct((N, Ho, Wo, Cout), jnp.float32),
                        jax.ShapeDtypeStruct((N, 2, Cout), jnp.float32)]
        out_specs1 += [pl.BlockSpec((1, Ho, Wo, Cout), lambda n: (n, 0, 0, 0)),
                       pl.BlockSpec((1, 2, Cout), lambda n: (n, 0, 0))]
        blk1 += (_padded_bytes((Cin, Cout), jnp.bfloat16)
                 + _padded_bytes((1, Ho, Wo, Cout), jnp.float32)
                 + _padded_bytes((1, 2, Cout), jnp.float32))

    res1 = pl.pallas_call(
        k1, grid=(N,),
        out_shape=tuple(out_shapes1),
        in_specs=in_specs1, out_specs=tuple(out_specs1),
        scratch_shapes=[pltpu.VMEM((1, H + 2, W + 2, Cin), jnp.bfloat16)],
        compiler_params=_compiler_params(blk1),
    )(*args1)
    if has_proj:
        y1, st1, sc_raw, sts = res1
    else:
        y1, st1 = res1

    count = float(N * Ho * Wo)
    s1, t1 = _finalize_bn(st1, count, params["g1"], params["be1"])

    # ---------------- pass 2 ----------------
    k2 = _make_conv2_kernel(Ho, Wo, Cout)
    blk2 = (2 * _padded_bytes((1, Ho, Wo, Cout), jnp.float32)
            + 2 * _padded_bytes((1, Cout), jnp.float32)
            + _padded_bytes((3, 3, Cout, Cout), jnp.bfloat16)
            + _padded_bytes((1, 2, Cout), jnp.float32)
            + _padded_bytes((1, Ho + 2, Wo + 2, Cout), jnp.bfloat16))
    y2, st2 = pl.pallas_call(
        k2, grid=(N,),
        out_shape=(jax.ShapeDtypeStruct((N, Ho, Wo, Cout), jnp.float32),
                   jax.ShapeDtypeStruct((N, 2, Cout), jnp.float32)),
        in_specs=[pl.BlockSpec((1, Ho, Wo, Cout), lambda n: (n, 0, 0, 0)),
                  pl.BlockSpec((1, Cout), lambda n: (0, 0)),
                  pl.BlockSpec((1, Cout), lambda n: (0, 0)),
                  pl.BlockSpec((3, 3, Cout, Cout), lambda n: (0, 0, 0, 0))],
        out_specs=(pl.BlockSpec((1, Ho, Wo, Cout), lambda n: (n, 0, 0, 0)),
                   pl.BlockSpec((1, 2, Cout), lambda n: (n, 0, 0))),
        scratch_shapes=[pltpu.VMEM((1, Ho + 2, Wo + 2, Cout), jnp.bfloat16)],
        compiler_params=_compiler_params(blk2),
    )(y1, s1, t1, w2)

    s2, t2 = _finalize_bn(st2, count, params["g2"], params["be2"])

    # ---------------- pass 3 ----------------
    k3 = _make_fuse_kernel(Cout, has_proj)
    if has_proj:
        ss, ts = _finalize_bn(sts, count, params["gs"], params["bes"])
        args3 = [y2, sc_raw, s2, t2, ss, ts]
        in_specs3 = [pl.BlockSpec((1, Ho, Wo, Cout), lambda n: (n, 0, 0, 0)),
                     pl.BlockSpec((1, Ho, Wo, Cout), lambda n: (n, 0, 0, 0)),
                     pl.BlockSpec((1, Cout), lambda n: (0, 0)),
                     pl.BlockSpec((1, Cout), lambda n: (0, 0)),
                     pl.BlockSpec((1, Cout), lambda n: (0, 0)),
                     pl.BlockSpec((1, Cout), lambda n: (0, 0))]
    else:
        args3 = [y2, x_nhwc, s2, t2]     # identity: Cin == Cout, stride == 1
        in_specs3 = [pl.BlockSpec((1, Ho, Wo, Cout), lambda n: (n, 0, 0, 0)),
                     pl.BlockSpec((1, H, W, Cin), lambda n: (n, 0, 0, 0)),
                     pl.BlockSpec((1, Cout), lambda n: (0, 0)),
                     pl.BlockSpec((1, Cout), lambda n: (0, 0))]
    blk3 = 3 * _padded_bytes((1, Ho, Wo, Cout), jnp.float32) + 4 * _padded_bytes((1, Cout), jnp.float32)
    out = pl.pallas_call(
        k3, grid=(N,),
        out_shape=jax.ShapeDtypeStruct((N, Ho, Wo, Cout), jnp.float32),
        in_specs=in_specs3,
        out_specs=pl.BlockSpec((1, Ho, Wo, Cout), lambda n: (n, 0, 0, 0)),
        compiler_params=_compiler_params(blk3),
    )(*args3)

    return jnp.transpose(out, (0, 3, 1, 2))  # back to NCHW


# -------------------- pure-JAX reference (bf16 MXU-matched) --------------------
def residual_block_ref(x_nchw, params, stride=1, eps=EPS):
    x = jnp.transpose(x_nchw, (0, 2, 3, 1)).astype(jnp.float32)
    Cin = x.shape[-1]
    Cout = params["w1"].shape[-1]
    has_proj = (stride != 1) or (Cin != Cout)

    def conv(a, w, s, pad):
        # same precision policy as the kernel: bf16 inputs, f32 accumulation
        return jax.lax.conv_general_dilated(
            a.astype(jnp.bfloat16), w.astype(jnp.bfloat16),
            window_strides=(s, s), padding=pad,
            dimension_numbers=("NHWC", "HWIO", "NHWC"),
            preferred_element_type=jnp.float32)

    def bn(a, g, b):
        mu = a.mean(axis=(0, 1, 2), keepdims=True)
        var = ((a - mu) ** 2).mean(axis=(0, 1, 2), keepdims=True)
        return (a - mu) * jax.lax.rsqrt(var + eps) * g + b

    out = conv(x, params["w1"], stride, ((1, 1), (1, 1))) + params["b1"]
    out = jax.nn.relu(bn(out, params["g1"], params["be1"]))
    out = conv(out, params["w2"], 1, ((1, 1), (1, 1))) + params["b2"]
    out = bn(out, params["g2"], params["be2"])
    if has_proj:
        sc = conv(x, params["ws"].reshape(1, 1, Cin, Cout), stride, ((0, 0), (0, 0)))
        sc = bn(sc, params["gs"], params["bes"])
    else:
        sc = x
    return jnp.transpose(jax.nn.relu(out + sc), (0, 3, 1, 2))


# -------------------- deterministic parameter init --------------------
def init_params(key, Cin, Cout):
    ks = jax.random.split(key, 6)
    return {
        "w1": 0.1 * jax.random.normal(ks[0], (3, 3, Cin, Cout), jnp.float32),
        "b1": 0.1 * jax.random.normal(ks[1], (1, Cout), jnp.float32),
        "g1": jnp.ones((1, Cout), jnp.float32),
        "be1": jnp.zeros((1, Cout), jnp.float32),
        "w2": 0.1 * jax.random.normal(ks[2], (3, 3, Cout, Cout), jnp.float32),
        "b2": 0.1 * jax.random.normal(ks[3], (1, Cout), jnp.float32),
        "g2": jnp.ones((1, Cout), jnp.float32),
        "be2": jnp.zeros((1, Cout), jnp.float32),
        "ws": 0.1 * jax.random.normal(ks[4], (Cin, Cout), jnp.float32),
        "gs": jnp.ones((1, Cout), jnp.float32),
        "bes": jnp.zeros((1, Cout), jnp.float32),
    }


if __name__ == "__main__":
    import numpy as np

    key = jax.random.PRNGKey(0)
    configs = [
        (2, 4, 8, 16, 16, 1),   # projection shortcut (Cin != Cout)
        (2, 8, 8, 16, 16, 1),   # identity shortcut
    ]
    for (N, Cin, Cout, H, W, stride) in configs:
        kx, kp, key = jax.random.split(key, 3)
        x = jax.random.normal(kx, (N, Cin, H, W), jnp.float32)
        params = init_params(kp, Cin, Cout)

        run = jax.jit(functools.partial(residual_block_pallas, stride=stride))
        out = jax.block_until_ready(run(x, params))

        ref = residual_block_ref(x, params, stride=stride)
        assert out.shape == ref.shape, (out.shape, ref.shape)
        np.testing.assert_allclose(np.asarray(out), np.asarray(ref),
                                   rtol=2e-3, atol=2e-3)
    print("KERNEL_OK")
</pallas_src>

<mosaic_0001>
module attributes {stable_mosaic.version = 11 : i64} {
  func.func @kernel(%arg0: i32, %arg1: memref<1x16x16x4xf32, #tpu.memory_space<vmem>>, %arg2: memref<3x3x4x8xbf16, #tpu.memory_space<vmem>>, %arg3: memref<4x8xbf16, #tpu.memory_space<vmem>>, %arg4: memref<1x16x16x8xf32, #tpu.memory_space<vmem>>, %arg5: memref<1x2x8xf32, #tpu.memory_space<vmem>>, %arg6: memref<1x16x16x8xf32, #tpu.memory_space<vmem>>, %arg7: memref<1x2x8xf32, #tpu.memory_space<vmem>>, %arg8: memref<1x18x18x4xbf16, #tpu.memory_space<vmem>>) attributes {dimension_semantics = [#tpu.dimension_semantics<parallel>], iteration_bounds = array<i64: 2>, scalar_prefetch = 0 : i64, scratch_operands = 1 : i64, tpu.core_type = #tpu.core_type<tc>, window_params = [{transform_indices = @transform_0, window_bounds = array<i64: 1, 16, 16, 4>}, {pipeline_mode = #tpu.pipeline_mode<synchronous>, transform_indices = @transform_1, window_bounds = array<i64: 3, 3, 4, 8>}, {pipeline_mode = #tpu.pipeline_mode<synchronous>, transform_indices = @transform_2, window_bounds = array<i64: 4, 8>}, {transform_indices = @transform_3, window_bounds = array<i64: 1, 16, 16, 8>}, {transform_indices = @transform_4, window_bounds = array<i64: 1, 2, 8>}, {transform_indices = @transform_5, window_bounds = array<i64: 1, 16, 16, 8>}, {transform_indices = @transform_6, window_bounds = array<i64: 1, 2, 8>}]} {
    %cst = arith.constant 0.000000e+00 : bf16
    %0 = vector.broadcast %cst : bf16 to vector<1x1x18x4xbf16>
    %cst_0 = arith.constant 0.000000e+00 : bf16
    %1 = vector.broadcast %cst_0 : bf16 to vector<1x18x1x4xbf16>
    %c0 = arith.constant 0 : index
    %c0_1 = arith.constant 0 : index
    %c0_2 = arith.constant 0 : index
    %c0_3 = arith.constant 0 : index
    %2 = vector.load %arg8[%c0, %c0_1, %c0_2, %c0_3] : memref<1x18x18x4xbf16, #tpu.memory_space<vmem>>, vector<1x1x18x4xbf16>
    tpu.vector_store %arg8[%c0, %c0_1, %c0_2, %c0_3], %0 {strides = array<i32>} : memref<1x18x18x4xbf16, #tpu.memory_space<vmem>>, vector<1x1x18x4xbf16>,
    %c0_4 = arith.constant 0 : index
    %c17 = arith.constant 17 : index
    %c0_5 = arith.constant 0 : index
    %c0_6 = arith.constant 0 : index
    %3 = vector.load %arg8[%c0_4, %c17, %c0_5, %c0_6] : memref<1x18x18x4xbf16, #tpu.memory_space<vmem>>, vector<1x1x18x4xbf16>
    tpu.vector_store %arg8[%c0_4, %c17, %c0_5, %c0_6], %0 {strides = array<i32>} : memref<1x18x18x4xbf16, #tpu.memory_space<vmem>>, vector<1x1x18x4xbf16>,
    %c0_7 = arith.constant 0 : index
    %c0_8 = arith.constant 0 : index
    %c0_9 = arith.constant 0 : index
    %c0_10 = arith.constant 0 : index
    %4 = vector.load %arg8[%c0_7, %c0_8, %c0_9, %c0_10] : memref<1x18x18x4xbf16, #tpu.memory_space<vmem>>, vector<1x18x1x4xbf16>
    tpu.vector_store %arg8[%c0_7, %c0_8, %c0_9, %c0_10], %1 {strides = array<i32>} : memref<1x18x18x4xbf16, #tpu.memory_space<vmem>>, vector<1x18x1x4xbf16>,
    %c0_11 = arith.constant 0 : index
    %c0_12 = arith.constant 0 : index
    %c17_13 = arith.constant 17 : index
    %c0_14 = arith.constant 0 : index
    %5 = vector.load %arg8[%c0_11, %c0_12, %c17_13, %c0_14] : memref<1x18x18x4xbf16, #tpu.memory_space<vmem>>, vector<1x18x1x4xbf16>
    tpu.vector_store %arg8[%c0_11, %c0_12, %c17_13, %c0_14], %1 {strides = array<i32>} : memref<1x18x18x4xbf16, #tpu.memory_space<vmem>>, vector<1x18x1x4xbf16>,
    %c0_15 = arith.constant 0 : index
    %c0_16 = arith.constant 0 : index
    %c0_17 = arith.constant 0 : index
    %c0_18 = arith.constant 0 : index
    %6 = vector.load %arg1[%c0_15, %c0_16, %c0_17, %c0_18] : memref<1x16x16x4xf32, #tpu.memory_space<vmem>>, vector<1x16x16x4xf32>
    %7 = arith.truncf %6 : vector<1x16x16x4xf32> to vector<1x16x16x4xbf16>
    %c0_19 = arith.constant 0 : index
    %c1 = arith.constant 1 : index
    %c1_20 = arith.constant 1 : index
    %c0_21 = arith.constant 0 : index
    %8 = vector.load %arg8[%c0_19, %c1, %c1_20, %c0_21] : memref<1x18x18x4xbf16, #tpu.memory_space<vmem>>, vector<1x16x16x4xbf16>
    tpu.vector_store %arg8[%c0_19, %c1, %c1_20, %c0_21], %7 {strides = array<i32>} : memref<1x18x18x4xbf16, #tpu.memory_space<vmem>>, vector<1x16x16x4xbf16>,
    %c0_22 = arith.constant 0 : index
    %c0_23 = arith.constant 0 : index
    %c0_24 = arith.constant 0 : index
    %c0_25 = arith.constant 0 : index
    %9 = vector.load %arg8[%c0_22, %c0_23, %c0_24, %c0_25] : memref<1x18x18x4xbf16, #tpu.memory_space<vmem>>, vector<1x18x18x4xbf16>
    %cst_26 = arith.constant 0.000000e+00 : f32
    %10 = vector.broadcast %cst_26 : f32 to vector<256x8xf32>
    %11 = vector.extract_strided_slice %9 {offsets = [0, 0, 0, 0], sizes = [1, 16, 16, 4], strides = [1, 1, 1, 1]} : vector<1x18x18x4xbf16> to vector<1x16x16x4xbf16>
    %12 = vector.shape_cast %11 : vector<1x16x16x4xbf16> to vector<16x16x4xbf16>
    %13 = vector.shape_cast %12 : vector<16x16x4xbf16> to vector<256x4xbf16>
    %c0_27 = arith.constant 0 : index
    %c0_28 = arith.constant 0 : index
    %c0_29 = arith.constant 0 : index
    %c0_30 = arith.constant 0 : index
    %14 = vector.load %arg2[%c0_27, %c0_28, %c0_29, %c0_30] : memref<3x3x4x8xbf16, #tpu.memory_space<vmem>>, vector<1x1x4x8xbf16>
    %15 = vector.shape_cast %14 : vector<1x1x4x8xbf16> to vector<4x8xbf16>
    %cst_31 = arith.constant dense<0.000000e+00> : vector<256x8xf32>
    %16 = tpu.matmul %13, %15, %cst_31 {dimension_numbers = #tpu.dot_dimension_numbers<[1], [0], [0], [1], [0, 0, 1, 1], [], []>} : vector<256x4xbf16>, vector<4x8xbf16>, vector<256x8xf32> -> vector<256x8xf32>
    %17 = arith.addf %10, %16 : vector<256x8xf32>
    %18 = vector.extract_strided_slice %9 {offsets = [0, 0, 1, 0], sizes = [1, 16, 16, 4], strides = [1, 1, 1, 1]} : vector<1x18x18x4xbf16> to vector<1x16x16x4xbf16>
    %19 = vector.shape_cast %18 : vector<1x16x16x4xbf16> to vector<16x16x4xbf16>
    %20 = vector.shape_cast %19 : vector<16x16x4xbf16> to vector<256x4xbf16>
    %c0_32 = arith.constant 0 : index
    %c1_33 = arith.constant 1 : index
    %c0_34 = arith.constant 0 : index
    %c0_35 = arith.constant 0 : index
    %21 = vector.load %arg2[%c0_32, %c1_33, %c0_34, %c0_35] : memref<3x3x4x8xbf16, #tpu.memory_space<vmem>>, vector<1x1x4x8xbf16>
    %22 = vector.shape_cast %21 : vector<1x1x4x8xbf16> to vector<4x8xbf16>
    %cst_36 = arith.constant dense<0.000000e+00> : vector<256x8xf32>
    %23 = tpu.matmul %20, %22, %cst_36 {dimension_numbers = #tpu.dot_dimension_numbers<[1], [0], [0], [1], [0, 0, 1, 1], [], []>} : vector<256x4xbf16>, vector<4x8xbf16>, vector<256x8xf32> -> vector<256x8xf32>
    %24 = arith.addf %17, %23 : vector<256x8xf32>
    %25 = vector.extract_strided_slice %9 {offsets = [0, 0, 2, 0], sizes = [1, 16, 16, 4], strides = [1, 1, 1, 1]} : vector<1x18x18x4xbf16> to vector<1x16x16x4xbf16>
    %26 = vector.shape_cast %25 : vector<1x16x16x4xbf16> to vector<16x16x4xbf16>
    %27 = vector.shape_cast %26 : vector<16x16x4xbf16> to vector<256x4xbf16>
    %c0_37 = arith.constant 0 : index
    %c2 = arith.constant 2 : index
    %c0_38 = arith.constant 0 : index
    %c0_39 = arith.constant 0 : index
    %28 = vector.load %arg2[%c0_37, %c2, %c0_38, %c0_39] : memref<3x3x4x8xbf16, #tpu.memory_space<vmem>>, vector<1x1x4x8xbf16>
    %29 = vector.shape_cast %28 : vector<1x1x4x8xbf16> to vector<4x8xbf16>
    %cst_40 = arith.constant dense<0.000000e+00> : vector<256x8xf32>
    %30 = tpu.matmul %27, %29, %cst_40 {dimension_numbers = #tpu.dot_dimension_numbers<[1], [0], [0], [1], [0, 0, 1, 1], [], []>} : vector<256x4xbf16>, vector<4x8xbf16>, vector<256x8xf32> -> vector<256x8xf32>
    %31 = arith.addf %24, %30 : vector<256x8xf32>
    %32 = vector.extract_strided_slice %9 {offsets = [0, 1, 0, 0], sizes = [1, 16, 16, 4], strides = [1, 1, 1, 1]} : vector<1x18x18x4xbf16> to vector<1x16x16x4xbf16>
    %33 = vector.shape_cast %32 : vector<1x16x16x4xbf16> to vector<16x16x4xbf16>
    %34 = vector.shape_cast %33 : vector<16x16x4xbf16> to vector<256x4xbf16>
    %c1_41 = arith.constant 1 : index
    %c0_42 = arith.constant 0 : index
    %c0_43 = arith.constant 0 : index
    %c0_44 = arith.constant 0 : index
    %35 = vector.load %arg2[%c1_41, %c0_42, %c0_43, %c0_44] : memref<3x3x4x8xbf16, #tpu.memory_space<vmem>>, vector<1x1x4x8xbf16>
    %36 = vector.shape_cast %35 : vector<1x1x4x8xbf16> to vector<4x8xbf16>
    %cst_45 = arith.constant dense<0.000000e+00> : vector<256x8xf32>
    %37 = tpu.matmul %34, %36, %cst_45 {dimension_numbers = #tpu.dot_dimension_numbers<[1], [0], [0], [1], [0, 0, 1, 1], [], []>} : vector<256x4xbf16>, vector<4x8xbf16>, vector<256x8xf32> -> vector<256x8xf32>
    %38 = arith.addf %31, %37 : vector<256x8xf32>
    %39 = vector.extract_strided_slice %9 {offsets = [0, 1, 1, 0], sizes = [1, 16, 16, 4], strides = [1, 1, 1, 1]} : vector<1x18x18x4xbf16> to vector<1x16x16x4xbf16>
    %40 = vector.shape_cast %39 : vector<1x16x16x4xbf16> to vector<16x16x4xbf16>
    %41 = vector.shape_cast %40 : vector<16x16x4xbf16> to vector<256x4xbf16>
    %c1_46 = arith.constant 1 : index
    %c1_47 = arith.constant 1 : index
    %c0_48 = arith.constant 0 : index
    %c0_49 = arith.constant 0 : index
    %42 = vector.load %arg2[%c1_46, %c1_47, %c0_48, %c0_49] : memref<3x3x4x8xbf16, #tpu.memory_space<vmem>>, vector<1x1x4x8xbf16>
    %43 = vector.shape_cast %42 : vector<1x1x4x8xbf16> to vector<4x8xbf16>
    %cst_50 = arith.constant dense<0.000000e+00> : vector<256x8xf32>
    %44 = tpu.matmul %41, %43, %cst_50 {dimension_numbers = #tpu.dot_dimension_numbers<[1], [0], [0], [1], [0, 0, 1, 1], [], []>} : vector<256x4xbf16>, vector<4x8xbf16>, vector<256x8xf32> -> vector<256x8xf32>
    %45 = arith.addf %38, %44 : vector<256x8xf32>
    %46 = vector.extract_strided_slice %9 {offsets = [0, 1, 2, 0], sizes = [1, 16, 16, 4], strides = [1, 1, 1, 1]} : vector<1x18x18x4xbf16> to vector<1x16x16x4xbf16>
    %47 = vector.shape_cast %46 : vector<1x16x16x4xbf16> to vector<16x16x4xbf16>
    %48 = vector.shape_cast %47 : vector<16x16x4xbf16> to vector<256x4xbf16>
    %c1_51 = arith.constant 1 : index
    %c2_52 = arith.constant 2 : index
    %c0_53 = arith.constant 0 : index
    %c0_54 = arith.constant 0 : index
    %49 = vector.load %arg2[%c1_51, %c2_52, %c0_53, %c0_54] : memref<3x3x4x8xbf16, #tpu.memory_space<vmem>>, vector<1x1x4x8xbf16>
    %50 = vector.shape_cast %49 : vector<1x1x4x8xbf16> to vector<4x8xbf16>
    %cst_55 = arith.constant dense<0.000000e+00> : vector<256x8xf32>
    %51 = tpu.matmul %48, %50, %cst_55 {dimension_numbers = #tpu.dot_dimension_numbers<[1], [0], [0], [1], [0, 0, 1, 1], [], []>} : vector<256x4xbf16>, vector<4x8xbf16>, vector<256x8xf32> -> vector<256x8xf32>
    %52 = arith.addf %45, %51 : vector<256x8xf32>
    %53 = vector.extract_strided_slice %9 {offsets = [0, 2, 0, 0], sizes = [1, 16, 16, 4], strides = [1, 1, 1, 1]} : vector<1x18x18x4xbf16> to vector<1x16x16x4xbf16>
    %54 = vector.shape_cast %53 : vector<1x16x16x4xbf16> to vector<16x16x4xbf16>
    %55 = vector.shape_cast %54 : vector<16x16x4xbf16> to vector<256x4xbf16>
    %c2_56 = arith.constant 2 : index
    %c0_57 = arith.constant 0 : index
    %c0_58 = arith.constant 0 : index
    %c0_59 = arith.constant 0 : index
    %56 = vector.load %arg2[%c2_56, %c0_57, %c0_58, %c0_59] : memref<3x3x4x8xbf16, #tpu.memory_space<vmem>>, vector<1x1x4x8xbf16>
    %57 = vector.shape_cast %56 : vector<1x1x4x8xbf16> to vector<4x8xbf16>
    %cst_60 = arith.constant dense<0.000000e+00> : vector<256x8xf32>
    %58 = tpu.matmul %55, %57, %cst_60 {dimension_numbers = #tpu.dot_dimension_numbers<[1], [0], [0], [1], [0, 0, 1, 1], [], []>} : vector<256x4xbf16>, vector<4x8xbf16>, vector<256x8xf32> -> vector<256x8xf32>
    %59 = arith.addf %52, %58 : vector<256x8xf32>
    %60 = vector.extract_strided_slice %9 {offsets = [0, 2, 1, 0], sizes = [1, 16, 16, 4], strides = [1, 1, 1, 1]} : vector<1x18x18x4xbf16> to vector<1x16x16x4xbf16>
    %61 = vector.shape_cast %60 : vector<1x16x16x4xbf16> to vector<16x16x4xbf16>
    %62 = vector.shape_cast %61 : vector<16x16x4xbf16> to vector<256x4xbf16>
    %c2_61 = arith.constant 2 : index
    %c1_62 = arith.constant 1 : index
    %c0_63 = arith.constant 0 : index
    %c0_64 = arith.constant 0 : index
    %63 = vector.load %arg2[%c2_61, %c1_62, %c0_63, %c0_64] : memref<3x3x4x8xbf16, #tpu.memory_space<vmem>>, vector<1x1x4x8xbf16>
    %64 = vector.shape_cast %63 : vector<1x1x4x8xbf16> to vector<4x8xbf16>
    %cst_65 = arith.constant dense<0.000000e+00> : vector<256x8xf32>
    %65 = tpu.matmul %62, %64, %cst_65 {dimension_numbers = #tpu.dot_dimension_numbers<[1], [0], [0], [1], [0, 0, 1, 1], [], []>} : vector<256x4xbf16>, vector<4x8xbf16>, vector<256x8xf32> -> vector<256x8xf32>
    %66 = arith.addf %59, %65 : vector<256x8xf32>
    %67 = vector.extract_strided_slice %9 {offsets = [0, 2, 2, 0], sizes = [1, 16, 16, 4], strides = [1, 1, 1, 1]} : vector<1x18x18x4xbf16> to vector<1x16x16x4xbf16>
    %68 = vector.shape_cast %67 : vector<1x16x16x4xbf16> to vector<16x16x4xbf16>
    %69 = vector.shape_cast %68 : vector<16x16x4xbf16> to vector<256x4xbf16>
    %c2_66 = arith.constant 2 : index
    %c2_67 = arith.constant 2 : index
    %c0_68 = arith.constant 0 : index
    %c0_69 = arith.constant 0 : index
    %70 = vector.load %arg2[%c2_66, %c2_67, %c0_68, %c0_69] : memref<3x3x4x8xbf16, #tpu.memory_space<vmem>>, vector<1x1x4x8xbf16>
    %71 = vector.shape_cast %70 : vector<1x1x4x8xbf16> to vector<4x8xbf16>
    %cst_70 = arith.constant dense<0.000000e+00> : vector<256x8xf32>
    %72 = tpu.matmul %69, %71, %cst_70 {dimension_numbers = #tpu.dot_dimension_numbers<[1], [0], [0], [1], [0, 0, 1, 1], [], []>} : vector<256x4xbf16>, vector<4x8xbf16>, vector<256x8xf32> -> vector<256x8xf32>
    %73 = arith.addf %66, %72 : vector<256x8xf32>
    %74 = vector.shape_cast %73 : vector<256x8xf32> to vector<1x16x16x8xf32>
    %c0_71 = arith.constant 0 : index
    %c0_72 = arith.constant 0 : index
    %c0_73 = arith.constant 0 : index
    %c0_74 = arith.constant 0 : index
    %75 = vector.load %arg4[%c0_71, %c0_72, %c0_73, %c0_74] : memref<1x16x16x8xf32, #tpu.memory_space<vmem>>, vector<1x16x16x8xf32>
    tpu.vector_store %arg4[%c0_71, %c0_72, %c0_73, %c0_74], %74 {strides = array<i32>} : memref<1x16x16x8xf32, #tpu.memory_space<vmem>>, vector<1x16x16x8xf32>,
    %cst_75 = arith.constant dense<0.000000e+00> : vector<8xf32>
    %76 = vector.multi_reduction <add>, %73, %cst_75 [0] : vector<256x8xf32> to vector<8xf32>
    %77 = vector.shape_cast %76 : vector<8xf32> to vector<1x8xf32>
    %78 = vector.shape_cast %77 : vector<1x8xf32> to vector<1x1x8xf32>
    %c0_76 = arith.constant 0 : index
    %c0_77 = arith.constant 0 : index
    %c0_78 = arith.constant 0 : index
    %79 = vector.load %arg5[%c0_76, %c0_77, %c0_78] : memref<1x2x8xf32, #tpu.memory_space<vmem>>, vector<1x1x8xf32>
    tpu.vector_store %arg5[%c0_76, %c0_77, %c0_78], %78 {strides = array<i32>} : memref<1x2x8xf32, #tpu.memory_space<vmem>>, vector<1x1x8xf32>,
    %80 = arith.mulf %73, %73 : vector<256x8xf32>
    %cst_79 = arith.constant dense<0.000000e+00> : vector<8xf32>
    %81 = vector.multi_reduction <add>, %80, %cst_79 [0] : vector<256x8xf32> to vector<8xf32>
    %82 = vector.shape_cast %81 : vector<8xf32> to vector<1x8xf32>
    %83 = vector.shape_cast %82 : vector<1x8xf32> to vector<1x1x8xf32>
    %c0_80 = arith.constant 0 : index
    %c1_81 = arith.constant 1 : index
    %c0_82 = arith.constant 0 : index
    %84 = vector.load %arg5[%c0_80, %c1_81, %c0_82] : memref<1x2x8xf32, #tpu.memory_space<vmem>>, vector<1x1x8xf32>
    tpu.vector_store %arg5[%c0_80, %c1_81, %c0_82], %83 {strides = array<i32>} : memref<1x2x8xf32, #tpu.memory_space<vmem>>, vector<1x1x8xf32>,
    %85 = vector.shape_cast %6 : vector<1x16x16x4xf32> to vector<16x16x4xf32>
    %86 = vector.shape_cast %85 : vector<16x16x4xf32> to vector<256x4xf32>
    %87 = arith.truncf %86 : vector<256x4xf32> to vector<256x4xbf16>
    %c0_83 = arith.constant 0 : index
    %c0_84 = arith.constant 0 : index
    %88 = vector.load %arg3[%c0_83, %c0_84] : memref<4x8xbf16, #tpu.memory_space<vmem>>, vector<4x8xbf16>
    %cst_85 = arith.constant dense<0.000000e+00> : vector<256x8xf32>
    %89 = tpu.matmul %87, %88, %cst_85 {dimension_numbers = #tpu.dot_dimension_numbers<[1], [0], [0], [1], [0, 0, 1, 1], [], []>} : vector<256x4xbf16>, vector<4x8xbf16>, vector<256x8xf32> -> vector<256x8xf32>
    %90 = vector.shape_cast %89 : vector<256x8xf32> to vector<1x16x16x8xf32>
    %c0_86 = arith.constant 0 : index
    %c0_87 = arith.constant 0 : index
    %c0_88 = arith.constant 0 : index
    %c0_89 = arith.constant 0 : index
    %91 = vector.load %arg6[%c0_86, %c0_87, %c0_88, %c0_89] : memref<1x16x16x8xf32, #tpu.memory_space<vmem>>, vector<1x16x16x8xf32>
    tpu.vector_store %arg6[%c0_86, %c0_87, %c0_88, %c0_89], %90 {strides = array<i32>} : memref<1x16x16x8xf32, #tpu.memory_space<vmem>>, vector<1x16x16x8xf32>,
    %cst_90 = arith.constant dense<0.000000e+00> : vector<8xf32>
    %92 = vector.multi_reduction <add>, %89, %cst_90 [0] : vector<256x8xf32> to vector<8xf32>
    %93 = vector.shape_cast %92 : vector<8xf32> to vector<1x8xf32>
    %94 = vector.shape_cast %93 : vector<1x8xf32> to vector<1x1x8xf32>
    %c0_91 = arith.constant 0 : index
    %c0_92 = arith.constant 0 : index
    %c0_93 = arith.constant 0 : index
    %95 = vector.load %arg7[%c0_91, %c0_92, %c0_93] : memref<1x2x8xf32, #tpu.memory_space<vmem>>, vector<1x1x8xf32>
    tpu.vector_store %arg7[%c0_91, %c0_92, %c0_93], %94 {strides = array<i32>} : memref<1x2x8xf32, #tpu.memory_space<vmem>>, vector<1x1x8xf32>,
    %96 = arith.mulf %89, %89 : vector<256x8xf32>
    %cst_94 = arith.constant dense<0.000000e+00> : vector<8xf32>
    %97 = vector.multi_reduction <add>, %96, %cst_94 [0] : vector<256x8xf32> to vector<8xf32>
    %98 = vector.shape_cast %97 : vector<8xf32> to vector<1x8xf32>
    %99 = vector.shape_cast %98 : vector<1x8xf32> to vector<1x1x8xf32>
    %c0_95 = arith.constant 0 : index
    %c1_96 = arith.constant 1 : index
    %c0_97 = arith.constant 0 : index
    %100 = vector.load %arg7[%c0_95, %c1_96, %c0_97] : memref<1x2x8xf32, #tpu.memory_space<vmem>>, vector<1x1x8xf32>
    tpu.vector_store %arg7[%c0_95, %c1_96, %c0_97], %99 {strides = array<i32>} : memref<1x2x8xf32, #tpu.memory_space<vmem>>, vector<1x1x8xf32>,
    return
  }
  func.func @transform_0(%arg0: i32) -> (i32, i32, i32, i32) {
    %c0_i32 = arith.constant 0 : i32
    %c0_i32_0 = arith.constant 0 : i32
    %c0_i32_1 = arith.constant 0 : i32
    %c0_i32_2 = arith.constant 0 : i32
    return %arg0, %c0_i32, %c0_i32_0, %c0_i32_1 : i32, i32, i32, i32
  }
  func.func @transform_1(%arg0: i32) -> (i32, i32, i32, i32) {
    %c0_i32 = arith.constant 0 : i32
    %c0_i32_0 = arith.constant 0 : i32
    %c0_i32_1 = arith.constant 0 : i32
    %c0_i32_2 = arith.constant 0 : i32
    %c0_i32_3 = arith.constant 0 : i32
    return %c0_i32, %c0_i32_0, %c0_i32_1, %c0_i32_2 : i32, i32, i32, i32
  }
  func.func @transform_2(%arg0: i32) -> (i32, i32) {
    %c0_i32 = arith.constant 0 : i32
    %c0_i32_0 = arith.constant 0 : i32
    %c0_i32_1 = arith.constant 0 : i32
    return %c0_i32, %c0_i32_0 : i32, i32
  }
  func.func @transform_3(%arg0: i32) -> (i32, i32, i32, i32) {
    %c0_i32 = arith.constant 0 : i32
    %c0_i32_0 = arith.constant 0 : i32
    %c0_i32_1 = arith.constant 0 : i32
    %c0_i32_2 = arith.constant 0 : i32
    return %arg0, %c0_i32, %c0_i32_0, %c0_i32_1 : i32, i32, i32, i32
  }
  func.func @transform_4(%arg0: i32) -> (i32, i32, i32) {
    %c0_i32 = arith.constant 0 : i32
    %c0_i32_0 = arith.constant 0 : i32
    %c0_i32_1 = arith.constant 0 : i32
    return %arg0, %c0_i32, %c0_i32_0 : i32, i32, i32
  }
  func.func @transform_5(%arg0: i32) -> (i32, i32, i32, i32) {
    %c0_i32 = arith.constant 0 : i32
    %c0_i32_0 = arith.constant 0 : i32
    %c0_i32_1 = arith.constant 0 : i32
    %c0_i32_2 = arith.constant 0 : i32
    return %arg0, %c0_i32, %c0_i32_0, %c0_i32_1 : i32, i32, i32, i32
  }
  func.func @transform_6(%arg0: i32) -> (i32, i32, i32) {
    %c0_i32 = arith.constant 0 : i32
    %c0_i32_0 = arith.constant 0 : i32
    %c0_i32_1 = arith.constant 0 : i32
    return %arg0, %c0_i32, %c0_i32_0 : i32, i32, i32
  }
}

module attributes {stable_mosaic.version = 11 : i64} {
  func.func @kernel(%arg0: i32, %arg1: memref<1x16x16x8xf32, #tpu.memory_space<vmem>>, %arg2: memref<1x16x16x8xf32, #tpu.memory_space<vmem>>, %arg3: memref<1x8xf32, #tpu.memory_space<vmem>>, %arg4: memref<1x8xf32, #tpu.memory_space<vmem>>, %arg5: memref<1x8xf32, #tpu.memory_space<vmem>>, %arg6: memref<1x8xf32, #tpu.memory_space<vmem>>, %arg7: memref<1x16x16x8xf32, #tpu.memory_space<vmem>>) attributes {dimension_semantics = [#tpu.dimension_semantics<parallel>], iteration_bounds = array<i64: 2>, scalar_prefetch = 0 : i64, scratch_operands = 0 : i64, tpu.core_type = #tpu.core_type<tc>, window_params = [{transform_indices = @transform_0, window_bounds = array<i64: 1, 16, 16, 8>}, {transform_indices = @transform_1, window_bounds = array<i64: 1, 16, 16, 8>}, {pipeline_mode = #tpu.pipeline_mode<synchronous>, transform_indices = @transform_2, window_bounds = array<i64: 1, 8>}, {pipeline_mode = #tpu.pipeline_mode<synchronous>, transform_indices = @transform_3, window_bounds = array<i64: 1, 8>}, {pipeline_mode = #tpu.pipeline_mode<synchronous>, transform_indices = @transform_4, window_bounds = array<i64: 1, 8>}, {pipeline_mode = #tpu.pipeline_mode<synchronous>, transform_indices = @transform_5, window_bounds = array<i64: 1, 8>}, {transform_indices = @transform_6, window_bounds = array<i64: 1, 16, 16, 8>}]} {
    %c0 = arith.constant 0 : index
    %c0_0 = arith.constant 0 : index
    %c0_1 = arith.constant 0 : index
    %c0_2 = arith.constant 0 : index
    %0 = vector.load %arg2[%c0, %c0_0, %c0_1, %c0_2] : memref<1x16x16x8xf32, #tpu.memory_space<vmem>>, vector<1x16x16x8xf32>
    %c0_3 = arith.constant 0 : index
    %c0_4 = arith.constant 0 : index
    %1 = vector.load %arg5[%c0_3, %c0_4] : memref<1x8xf32, #tpu.memory_space<vmem>>, vector<1x8xf32>
    %2 = vector.shape_cast %1 : vector<1x8xf32> to vector<1x1x1x8xf32>
    %3 = vector.broadcast %2 : vector<1x1x1x8xf32> to vector<1x16x16x8xf32>
    %4 = arith.mulf %0, %3 : vector<1x16x16x8xf32>
    %c0_5 = arith.constant 0 : index
    %c0_6 = arith.constant 0 : index
    %5 = vector.load %arg6[%c0_5, %c0_6] : memref<1x8xf32, #tpu.memory_space<vmem>>, vector<1x8xf32>
    %6 = vector.shape_cast %5 : vector<1x8xf32> to vector<1x1x1x8xf32>
    %7 = vector.broadcast %6 : vector<1x1x1x8xf32> to vector<1x16x16x8xf32>
    %8 = arith.addf %4, %7 : vector<1x16x16x8xf32>
    %c0_7 = arith.constant 0 : index
    %c0_8 = arith.constant 0 : index
    %c0_9 = arith.constant 0 : index
    %c0_10 = arith.constant 0 : index
    %9 = vector.load %arg1[%c0_7, %c0_8, %c0_9, %c0_10] : memref<1x16x16x8xf32, #tpu.memory_space<vmem>>, vector<1x16x16x8xf32>
    %c0_11 = arith.constant 0 : index
    %c0_12 = arith.constant 0 : index
    %10 = vector.load %arg3[%c0_11, %c0_12] : memref<1x8xf32, #tpu.memory_space<vmem>>, vector<1x8xf32>
    %11 = vector.shape_cast %10 : vector<1x8xf32> to vector<1x1x1x8xf32>
    %12 = vector.broadcast %11 : vector<1x1x1x8xf32> to vector<1x16x16x8xf32>
    %13 = arith.mulf %9, %12 : vector<1x16x16x8xf32>
    %c0_13 = arith.constant 0 : index
    %c0_14 = arith.constant 0 : index
    %14 = vector.load %arg4[%c0_13, %c0_14] : memref<1x8xf32, #tpu.memory_space<vmem>>, vector<1x8xf32>
    %15 = vector.shape_cast %14 : vector<1x8xf32> to vector<1x1x1x8xf32>
    %16 = vector.broadcast %15 : vector<1x1x1x8xf32> to vector<1x16x16x8xf32>
    %17 = arith.addf %13, %16 : vector<1x16x16x8xf32>
    %18 = arith.addf %17, %8 : vector<1x16x16x8xf32>
    %cst = arith.constant 0.000000e+00 : f32
    %19 = vector.broadcast %cst : f32 to vector<1x16x16x8xf32>
    %20 = arith.maximumf %18, %19 : vector<1x16x16x8xf32>
    %c0_15 = arith.constant 0 : index
    %c0_16 = arith.constant 0 : index
    %c0_17 = arith.constant 0 : index
    %c0_18 = arith.constant 0 : index
    %21 = vector.load %arg7[%c0_15, %c0_16, %c0_17, %c0_18] : memref<1x16x16x8xf32, #tpu.memory_space<vmem>>, vector<1x16x16x8xf32>
    tpu.vector_store %arg7[%c0_15, %c0_16, %c0_17, %c0_18], %20 {strides = array<i32>} : memref<1x16x16x8xf32, #tpu.memory_space<vmem>>, vector<1x16x16x8xf32>,
    return
  }
  func.func @transform_0(%arg0: i32) -> (i32, i32, i32, i32) {
    %c0_i32 = arith.constant 0 : i32
    %c0_i32_0 = arith.constant 0 : i32
    %c0_i32_1 = arith.constant 0 : i32
    %c0_i32_2 = arith.constant 0 : i32
    return %arg0, %c0_i32, %c0_i32_0, %c0_i32_1 : i32, i32, i32, i32
  }
  func.func @transform_1(%arg0: i32) -> (i32, i32, i32, i32) {
    %c0_i32 = arith.constant 0 : i32
    %c0_i32_0 = arith.constant 0 : i32
    %c0_i32_1 = arith.constant 0 : i32
    %c0_i32_2 = arith.constant 0 : i32
    return %arg0, %c0_i32, %c0_i32_0, %c0_i32_1 : i32, i32, i32, i32
  }
  func.func @transform_2(%arg0: i32) -> (i32, i32) {
    %c0_i32 = arith.constant 0 : i32
    %c0_i32_0 = arith.constant 0 : i32
    %c0_i32_1 = arith.constant 0 : i32
    return %c0_i32, %c0_i32_0 : i32, i32
  }
  func.func @transform_3(%arg0: i32) -> (i32, i32) {
    %c0_i32 = arith.constant 0 : i32
    %c0_i32_0 = arith.constant 0 : i32
    %c0_i32_1 = arith.constant 0 : i32
    return %c0_i32, %c0_i32_0 : i32, i32
  }
  func.func @transform_4(%arg0: i32) -> (i32, i32) {
    %c0_i32 = arith.constant 0 : i32
    %c0_i32_0 = arith.constant 0 : i32
    %c0_i32_1 = arith.constant 0 : i32
    return %c0_i32, %c0_i32_0 : i32, i32
  }
  func.func @transform_5(%arg0: i32) -> (i32, i32) {
    %c0_i32 = arith.constant 0 : i32
    %c0_i32_0 = arith.constant 0 : i32
    %c0_i32_1 = arith.constant 0 : i32
    return %c0_i32, %c0_i32_0 : i32, i32
  }
  func.func @transform_6(%arg0: i32) -> (i32, i32, i32, i32) {
    %c0_i32 = arith.constant 0 : i32
    %c0_i32_0 = arith.constant 0 : i32
    %c0_i32_1 = arith.constant 0 : i32
    %c0_i32_2 = arith.constant 0 : i32
    return %arg0, %c0_i32, %c0_i32_0, %c0_i32_1 : i32, i32, i32, i32
  }
}

module attributes {stable_mosaic.version = 11 : i64} {
  func.func @kernel(%arg0: i32, %arg1: memref<1x16x16x8xf32, #tpu.memory_space<vmem>>, %arg2: memref<1x8xf32, #tpu.memory_space<vmem>>, %arg3: memref<1x8xf32, #tpu.memory_space<vmem>>, %arg4: memref<3x3x8x8xbf16, #tpu.memory_space<vmem>>, %arg5: memref<1x16x16x8xf32, #tpu.memory_space<vmem>>, %arg6: memref<1x2x8xf32, #tpu.memory_space<vmem>>, %arg7: memref<1x18x18x8xbf16, #tpu.memory_space<vmem>>) attributes {dimension_semantics = [#tpu.dimension_semantics<parallel>], iteration_bounds = array<i64: 2>, scalar_prefetch = 0 : i64, scratch_operands = 1 : i64, tpu.core_type = #tpu.core_type<tc>, window_params = [{transform_indices = @transform_0, window_bounds = array<i64: 1, 16, 16, 8>}, {pipeline_mode = #tpu.pipeline_mode<synchronous>, transform_indices = @transform_1, window_bounds = array<i64: 1, 8>}, {pipeline_mode = #tpu.pipeline_mode<synchronous>, transform_indices = @transform_2, window_bounds = array<i64: 1, 8>}, {pipeline_mode = #tpu.pipeline_mode<synchronous>, transform_indices = @transform_3, window_bounds = array<i64: 3, 3, 8, 8>}, {transform_indices = @transform_4, window_bounds = array<i64: 1, 16, 16, 8>}, {transform_indices = @transform_5, window_bounds = array<i64: 1, 2, 8>}]} {
    %cst = arith.constant 0.000000e+00 : bf16
    %0 = vector.broadcast %cst : bf16 to vector<1x1x18x8xbf16>
    %cst_0 = arith.constant 0.000000e+00 : bf16
    %1 = vector.broadcast %cst_0 : bf16 to vector<1x18x1x8xbf16>
    %c0 = arith.constant 0 : index
    %c0_1 = arith.constant 0 : index
    %c0_2 = arith.constant 0 : index
    %c0_3 = arith.constant 0 : index
    %2 = vector.load %arg7[%c0, %c0_1, %c0_2, %c0_3] : memref<1x18x18x8xbf16, #tpu.memory_space<vmem>>, vector<1x1x18x8xbf16>
    tpu.vector_store %arg7[%c0, %c0_1, %c0_2, %c0_3], %0 {strides = array<i32>} : memref<1x18x18x8xbf16, #tpu.memory_space<vmem>>, vector<1x1x18x8xbf16>,
    %c0_4 = arith.constant 0 : index
    %c17 = arith.constant 17 : index
    %c0_5 = arith.constant 0 : index
    %c0_6 = arith.constant 0 : index
    %3 = vector.load %arg7[%c0_4, %c17, %c0_5, %c0_6] : memref<1x18x18x8xbf16, #tpu.memory_space<vmem>>, vector<1x1x18x8xbf16>
    tpu.vector_store %arg7[%c0_4, %c17, %c0_5, %c0_6], %0 {strides = array<i32>} : memref<1x18x18x8xbf16, #tpu.memory_space<vmem>>, vector<1x1x18x8xbf16>,
    %c0_7 = arith.constant 0 : index
    %c0_8 = arith.constant 0 : index
    %c0_9 = arith.constant 0 : index
    %c0_10 = arith.constant 0 : index
    %4 = vector.load %arg7[%c0_7, %c0_8, %c0_9, %c0_10] : memref<1x18x18x8xbf16, #tpu.memory_space<vmem>>, vector<1x18x1x8xbf16>
    tpu.vector_store %arg7[%c0_7, %c0_8, %c0_9, %c0_10], %1 {strides = array<i32>} : memref<1x18x18x8xbf16, #tpu.memory_space<vmem>>, vector<1x18x1x8xbf16>,
    %c0_11 = arith.constant 0 : index
    %c0_12 = arith.constant 0 : index
    %c17_13 = arith.constant 17 : index
    %c0_14 = arith.constant 0 : index
    %5 = vector.load %arg7[%c0_11, %c0_12, %c17_13, %c0_14] : memref<1x18x18x8xbf16, #tpu.memory_space<vmem>>, vector<1x18x1x8xbf16>
    tpu.vector_store %arg7[%c0_11, %c0_12, %c17_13, %c0_14], %1 {strides = array<i32>} : memref<1x18x18x8xbf16, #tpu.memory_space<vmem>>, vector<1x18x1x8xbf16>,
    %c0_15 = arith.constant 0 : index
    %c0_16 = arith.constant 0 : index
    %6 = vector.load %arg2[%c0_15, %c0_16] : memref<1x8xf32, #tpu.memory_space<vmem>>, vector<1x8xf32>
    %7 = vector.shape_cast %6 : vector<1x8xf32> to vector<1x1x1x8xf32>
    %c0_17 = arith.constant 0 : index
    %c0_18 = arith.constant 0 : index
    %8 = vector.load %arg3[%c0_17, %c0_18] : memref<1x8xf32, #tpu.memory_space<vmem>>, vector<1x8xf32>
    %9 = vector.shape_cast %8 : vector<1x8xf32> to vector<1x1x1x8xf32>
    %c0_19 = arith.constant 0 : index
    %c0_20 = arith.constant 0 : index
    %c0_21 = arith.constant 0 : index
    %c0_22 = arith.constant 0 : index
    %10 = vector.load %arg1[%c0_19, %c0_20, %c0_21, %c0_22] : memref<1x16x16x8xf32, #tpu.memory_space<vmem>>, vector<1x16x16x8xf32>
    %11 = vector.broadcast %7 : vector<1x1x1x8xf32> to vector<1x16x16x8xf32>
    %12 = arith.mulf %10, %11 : vector<1x16x16x8xf32>
    %13 = vector.broadcast %9 : vector<1x1x1x8xf32> to vector<1x16x16x8xf32>
    %14 = arith.addf %12, %13 : vector<1x16x16x8xf32>
    %cst_23 = arith.constant 0.000000e+00 : f32
    %15 = vector.broadcast %cst_23 : f32 to vector<1x16x16x8xf32>
    %16 = arith.maximumf %14, %15 : vector<1x16x16x8xf32>
    %17 = arith.truncf %16 : vector<1x16x16x8xf32> to vector<1x16x16x8xbf16>
    %c0_24 = arith.constant 0 : index
    %c1 = arith.constant 1 : index
    %c1_25 = arith.constant 1 : index
    %c0_26 = arith.constant 0 : index
    %18 = vector.load %arg7[%c0_24, %c1, %c1_25, %c0_26] : memref<1x18x18x8xbf16, #tpu.memory_space<vmem>>, vector<1x16x16x8xbf16>
    tpu.vector_store %arg7[%c0_24, %c1, %c1_25, %c0_26], %17 {strides = array<i32>} : memref<1x18x18x8xbf16, #tpu.memory_space<vmem>>, vector<1x16x16x8xbf16>,
    %c0_27 = arith.constant 0 : index
    %c0_28 = arith.constant 0 : index
    %c0_29 = arith.constant 0 : index
    %c0_30 = arith.constant 0 : index
    %19 = vector.load %arg7[%c0_27, %c0_28, %c0_29, %c0_30] : memref<1x18x18x8xbf16, #tpu.memory_space<vmem>>, vector<1x18x18x8xbf16>
    %cst_31 = arith.constant 0.000000e+00 : f32
    %20 = vector.broadcast %cst_31 : f32 to vector<256x8xf32>
    %21 = vector.extract_strided_slice %19 {offsets = [0, 0, 0, 0], sizes = [1, 16, 16, 8], strides = [1, 1, 1, 1]} : vector<1x18x18x8xbf16> to vector<1x16x16x8xbf16>
    %22 = vector.shape_cast %21 : vector<1x16x16x8xbf16> to vector<16x16x8xbf16>
    %23 = vector.shape_cast %22 : vector<16x16x8xbf16> to vector<256x8xbf16>
    %c0_32 = arith.constant 0 : index
    %c0_33 = arith.constant 0 : index
    %c0_34 = arith.constant 0 : index
    %c0_35 = arith.constant 0 : index
    %24 = vector.load %arg4[%c0_32, %c0_33, %c0_34, %c0_35] : memref<3x3x8x8xbf16, #tpu.memory_space<vmem>>, vector<1x1x8x8xbf16>
    %25 = vector.shape_cast %24 : vector<1x1x8x8xbf16> to vector<8x8xbf16>
    %cst_36 = arith.constant dense<0.000000e+00> : vector<256x8xf32>
    %26 = tpu.matmul %23, %25, %cst_36 {dimension_numbers = #tpu.dot_dimension_numbers<[1], [0], [0], [1], [0, 0, 1, 1], [], []>} : vector<256x8xbf16>, vector<8x8xbf16>, vector<256x8xf32> -> vector<256x8xf32>
    %27 = arith.addf %20, %26 : vector<256x8xf32>
    %28 = vector.extract_strided_slice %19 {offsets = [0, 0, 1, 0], sizes = [1, 16, 16, 8], strides = [1, 1, 1, 1]} : vector<1x18x18x8xbf16> to vector<1x16x16x8xbf16>
    %29 = vector.shape_cast %28 : vector<1x16x16x8xbf16> to vector<16x16x8xbf16>
    %30 = vector.shape_cast %29 : vector<16x16x8xbf16> to vector<256x8xbf16>
    %c0_37 = arith.constant 0 : index
    %c1_38 = arith.constant 1 : index
    %c0_39 = arith.constant 0 : index
    %c0_40 = arith.constant 0 : index
    %31 = vector.load %arg4[%c0_37, %c1_38, %c0_39, %c0_40] : memref<3x3x8x8xbf16, #tpu.memory_space<vmem>>, vector<1x1x8x8xbf16>
    %32 = vector.shape_cast %31 : vector<1x1x8x8xbf16> to vector<8x8xbf16>
    %cst_41 = arith.constant dense<0.000000e+00> : vector<256x8xf32>
    %33 = tpu.matmul %30, %32, %cst_41 {dimension_numbers = #tpu.dot_dimension_numbers<[1], [0], [0], [1], [0, 0, 1, 1], [], []>} : vector<256x8xbf16>, vector<8x8xbf16>, vector<256x8xf32> -> vector<256x8xf32>
    %34 = arith.addf %27, %33 : vector<256x8xf32>
    %35 = vector.extract_strided_slice %19 {offsets = [0, 0, 2, 0], sizes = [1, 16, 16, 8], strides = [1, 1, 1, 1]} : vector<1x18x18x8xbf16> to vector<1x16x16x8xbf16>
    %36 = vector.shape_cast %35 : vector<1x16x16x8xbf16> to vector<16x16x8xbf16>
    %37 = vector.shape_cast %36 : vector<16x16x8xbf16> to vector<256x8xbf16>
    %c0_42 = arith.constant 0 : index
    %c2 = arith.constant 2 : index
    %c0_43 = arith.constant 0 : index
    %c0_44 = arith.constant 0 : index
    %38 = vector.load %arg4[%c0_42, %c2, %c0_43, %c0_44] : memref<3x3x8x8xbf16, #tpu.memory_space<vmem>>, vector<1x1x8x8xbf16>
    %39 = vector.shape_cast %38 : vector<1x1x8x8xbf16> to vector<8x8xbf16>
    %cst_45 = arith.constant dense<0.000000e+00> : vector<256x8xf32>
    %40 = tpu.matmul %37, %39, %cst_45 {dimension_numbers = #tpu.dot_dimension_numbers<[1], [0], [0], [1], [0, 0, 1, 1], [], []>} : vector<256x8xbf16>, vector<8x8xbf16>, vector<256x8xf32> -> vector<256x8xf32>
    %41 = arith.addf %34, %40 : vector<256x8xf32>
    %42 = vector.extract_strided_slice %19 {offsets = [0, 1, 0, 0], sizes = [1, 16, 16, 8], strides = [1, 1, 1, 1]} : vector<1x18x18x8xbf16> to vector<1x16x16x8xbf16>
    %43 = vector.shape_cast %42 : vector<1x16x16x8xbf16> to vector<16x16x8xbf16>
    %44 = vector.shape_cast %43 : vector<16x16x8xbf16> to vector<256x8xbf16>
    %c1_46 = arith.constant 1 : index
    %c0_47 = arith.constant 0 : index
    %c0_48 = arith.constant 0 : index
    %c0_49 = arith.constant 0 : index
    %45 = vector.load %arg4[%c1_46, %c0_47, %c0_48, %c0_49] : memref<3x3x8x8xbf16, #tpu.memory_space<vmem>>, vector<1x1x8x8xbf16>
    %46 = vector.shape_cast %45 : vector<1x1x8x8xbf16> to vector<8x8xbf16>
    %cst_50 = arith.constant dense<0.000000e+00> : vector<256x8xf32>
    %47 = tpu.matmul %44, %46, %cst_50 {dimension_numbers = #tpu.dot_dimension_numbers<[1], [0], [0], [1], [0, 0, 1, 1], [], []>} : vector<256x8xbf16>, vector<8x8xbf16>, vector<256x8xf32> -> vector<256x8xf32>
    %48 = arith.addf %41, %47 : vector<256x8xf32>
    %49 = vector.extract_strided_slice %19 {offsets = [0, 1, 1, 0], sizes = [1, 16, 16, 8], strides = [1, 1, 1, 1]} : vector<1x18x18x8xbf16> to vector<1x16x16x8xbf16>
    %50 = vector.shape_cast %49 : vector<1x16x16x8xbf16> to vector<16x16x8xbf16>
    %51 = vector.shape_cast %50 : vector<16x16x8xbf16> to vector<256x8xbf16>
    %c1_51 = arith.constant 1 : index
    %c1_52 = arith.constant 1 : index
    %c0_53 = arith.constant 0 : index
    %c0_54 = arith.constant 0 : index
    %52 = vector.load %arg4[%c1_51, %c1_52, %c0_53, %c0_54] : memref<3x3x8x8xbf16, #tpu.memory_space<vmem>>, vector<1x1x8x8xbf16>
    %53 = vector.shape_cast %52 : vector<1x1x8x8xbf16> to vector<8x8xbf16>
    %cst_55 = arith.constant dense<0.000000e+00> : vector<256x8xf32>
    %54 = tpu.matmul %51, %53, %cst_55 {dimension_numbers = #tpu.dot_dimension_numbers<[1], [0], [0], [1], [0, 0, 1, 1], [], []>} : vector<256x8xbf16>, vector<8x8xbf16>, vector<256x8xf32> -> vector<256x8xf32>
    %55 = arith.addf %48, %54 : vector<256x8xf32>
    %56 = vector.extract_strided_slice %19 {offsets = [0, 1, 2, 0], sizes = [1, 16, 16, 8], strides = [1, 1, 1, 1]} : vector<1x18x18x8xbf16> to vector<1x16x16x8xbf16>
    %57 = vector.shape_cast %56 : vector<1x16x16x8xbf16> to vector<16x16x8xbf16>
    %58 = vector.shape_cast %57 : vector<16x16x8xbf16> to vector<256x8xbf16>
    %c1_56 = arith.constant 1 : index
    %c2_57 = arith.constant 2 : index
    %c0_58 = arith.constant 0 : index
    %c0_59 = arith.constant 0 : index
    %59 = vector.load %arg4[%c1_56, %c2_57, %c0_58, %c0_59] : memref<3x3x8x8xbf16, #tpu.memory_space<vmem>>, vector<1x1x8x8xbf16>
    %60 = vector.shape_cast %59 : vector<1x1x8x8xbf16> to vector<8x8xbf16>
    %cst_60 = arith.constant dense<0.000000e+00> : vector<256x8xf32>
    %61 = tpu.matmul %58, %60, %cst_60 {dimension_numbers = #tpu.dot_dimension_numbers<[1], [0], [0], [1], [0, 0, 1, 1], [], []>} : vector<256x8xbf16>, vector<8x8xbf16>, vector<256x8xf32> -> vector<256x8xf32>
    %62 = arith.addf %55, %61 : vector<256x8xf32>
    %63 = vector.extract_strided_slice %19 {offsets = [0, 2, 0, 0], sizes = [1, 16, 16, 8], strides = [1, 1, 1, 1]} : vector<1x18x18x8xbf16> to vector<1x16x16x8xbf16>
    %64 = vector.shape_cast %63 : vector<1x16x16x8xbf16> to vector<16x16x8xbf16>
    %65 = vector.shape_cast %64 : vector<16x16x8xbf16> to vector<256x8xbf16>
    %c2_61 = arith.constant 2 : index
    %c0_62 = arith.constant 0 : index
    %c0_63 = arith.constant 0 : index
    %c0_64 = arith.constant 0 : index
    %66 = vector.load %arg4[%c2_61, %c0_62, %c0_63, %c0_64] : memref<3x3x8x8xbf16, #tpu.memory_space<vmem>>, vector<1x1x8x8xbf16>
    %67 = vector.shape_cast %66 : vector<1x1x8x8xbf16> to vector<8x8xbf16>
    %cst_65 = arith.constant dense<0.000000e+00> : vector<256x8xf32>
    %68 = tpu.matmul %65, %67, %cst_65 {dimension_numbers = #tpu.dot_dimension_numbers<[1], [0], [0], [1], [0, 0, 1, 1], [], []>} : vector<256x8xbf16>, vector<8x8xbf16>, vector<256x8xf32> -> vector<256x8xf32>
    %69 = arith.addf %62, %68 : vector<256x8xf32>
    %70 = vector.extract_strided_slice %19 {offsets = [0, 2, 1, 0], sizes = [1, 16, 16, 8], strides = [1, 1, 1, 1]} : vector<1x18x18x8xbf16> to vector<1x16x16x8xbf16>
    %71 = vector.shape_cast %70 : vector<1x16x16x8xbf16> to vector<16x16x8xbf16>
    %72 = vector.shape_cast %71 : vector<16x16x8xbf16> to vector<256x8xbf16>
    %c2_66 = arith.constant 2 : index
    %c1_67 = arith.constant 1 : index
    %c0_68 = arith.constant 0 : index
    %c0_69 = arith.constant 0 : index
    %73 = vector.load %arg4[%c2_66, %c1_67, %c0_68, %c0_69] : memref<3x3x8x8xbf16, #tpu.memory_space<vmem>>, vector<1x1x8x8xbf16>
    %74 = vector.shape_cast %73 : vector<1x1x8x8xbf16> to vector<8x8xbf16>
    %cst_70 = arith.constant dense<0.000000e+00> : vector<256x8xf32>
    %75 = tpu.matmul %72, %74, %cst_70 {dimension_numbers = #tpu.dot_dimension_numbers<[1], [0], [0], [1], [0, 0, 1, 1], [], []>} : vector<256x8xbf16>, vector<8x8xbf16>, vector<256x8xf32> -> vector<256x8xf32>
    %76 = arith.addf %69, %75 : vector<256x8xf32>
    %77 = vector.extract_strided_slice %19 {offsets = [0, 2, 2, 0], sizes = [1, 16, 16, 8], strides = [1, 1, 1, 1]} : vector<1x18x18x8xbf16> to vector<1x16x16x8xbf16>
    %78 = vector.shape_cast %77 : vector<1x16x16x8xbf16> to vector<16x16x8xbf16>
    %79 = vector.shape_cast %78 : vector<16x16x8xbf16> to vector<256x8xbf16>
    %c2_71 = arith.constant 2 : index
    %c2_72 = arith.constant 2 : index
    %c0_73 = arith.constant 0 : index
    %c0_74 = arith.constant 0 : index
    %80 = vector.load %arg4[%c2_71, %c2_72, %c0_73, %c0_74] : memref<3x3x8x8xbf16, #tpu.memory_space<vmem>>, vector<1x1x8x8xbf16>
    %81 = vector.shape_cast %80 : vector<1x1x8x8xbf16> to vector<8x8xbf16>
    %cst_75 = arith.constant dense<0.000000e+00> : vector<256x8xf32>
    %82 = tpu.matmul %79, %81, %cst_75 {dimension_numbers = #tpu.dot_dimension_numbers<[1], [0], [0], [1], [0, 0, 1, 1], [], []>} : vector<256x8xbf16>, vector<8x8xbf16>, vector<256x8xf32> -> vector<256x8xf32>
    %83 = arith.addf %76, %82 : vector<256x8xf32>
    %84 = vector.shape_cast %83 : vector<256x8xf32> to vector<1x16x16x8xf32>
    %c0_76 = arith.constant 0 : index
    %c0_77 = arith.constant 0 : index
    %c0_78 = arith.constant 0 : index
    %c0_79 = arith.constant 0 : index
    %85 = vector.load %arg5[%c0_76, %c0_77, %c0_78, %c0_79] : memref<1x16x16x8xf32, #tpu.memory_space<vmem>>, vector<1x16x16x8xf32>
    tpu.vector_store %arg5[%c0_76, %c0_77, %c0_78, %c0_79], %84 {strides = array<i32>} : memref<1x16x16x8xf32, #tpu.memory_space<vmem>>, vector<1x16x16x8xf32>,
    %cst_80 = arith.constant dense<0.000000e+00> : vector<8xf32>
    %86 = vector.multi_reduction <add>, %83, %cst_80 [0] : vector<256x8xf32> to vector<8xf32>
    %87 = vector.shape_cast %86 : vector<8xf32> to vector<1x8xf32>
    %88 = vector.shape_cast %87 : vector<1x8xf32> to vector<1x1x8xf32>
    %c0_81 = arith.constant 0 : index
    %c0_82 = arith.constant 0 : index
    %c0_83 = arith.constant 0 : index
    %89 = vector.load %arg6[%c0_81, %c0_82, %c0_83] : memref<1x2x8xf32, #tpu.memory_space<vmem>>, vector<1x1x8xf32>
    tpu.vector_store %arg6[%c0_81, %c0_82, %c0_83], %88 {strides = array<i32>} : memref<1x2x8xf32, #tpu.memory_space<vmem>>, vector<1x1x8xf32>,
    %90 = arith.mulf %83, %83 : vector<256x8xf32>
    %cst_84 = arith.constant dense<0.000000e+00> : vector<8xf32>
    %91 = vector.multi_reduction <add>, %90, %cst_84 [0] : vector<256x8xf32> to vector<8xf32>
    %92 = vector.shape_cast %91 : vector<8xf32> to vector<1x8xf32>
    %93 = vector.shape_cast %92 : vector<1x8xf32> to vector<1x1x8xf32>
    %c0_85 = arith.constant 0 : index
    %c1_86 = arith.constant 1 : index
    %c0_87 = arith.constant 0 : index
    %94 = vector.load %arg6[%c0_85, %c1_86, %c0_87] : memref<1x2x8xf32, #tpu.memory_space<vmem>>, vector<1x1x8xf32>
    tpu.vector_store %arg6[%c0_85, %c1_86, %c0_87], %93 {strides = array<i32>} : memref<1x2x8xf32, #tpu.memory_space<vmem>>, vector<1x1x8xf32>,
    return
  }
  func.func @transform_0(%arg0: i32) -> (i32, i32, i32, i32) {
    %c0_i32 = arith.constant 0 : i32
    %c0_i32_0 = arith.constant 0 : i32
    %c0_i32_1 = arith.constant 0 : i32
    %c0_i32_2 = arith.constant 0 : i32
    return %arg0, %c0_i32, %c0_i32_0, %c0_i32_1 : i32, i32, i32, i32
  }
  func.func @transform_1(%arg0: i32) -> (i32, i32) {
    %c0_i32 = arith.constant 0 : i32
    %c0_i32_0 = arith.constant 0 : i32
    %c0_i32_1 = arith.constant 0 : i32
    return %c0_i32, %c0_i32_0 : i32, i32
  }
  func.func @transform_2(%arg0: i32) -> (i32, i32) {
    %c0_i32 = arith.constant 0 : i32
    %c0_i32_0 = arith.constant 0 : i32
    %c0_i32_1 = arith.constant 0 : i32
    return %c0_i32, %c0_i32_0 : i32, i32
  }
  func.func @transform_3(%arg0: i32) -> (i32, i32, i32, i32) {
    %c0_i32 = arith.constant 0 : i32
    %c0_i32_0 = arith.constant 0 : i32
    %c0_i32_1 = arith.constant 0 : i32
    %c0_i32_2 = arith.constant 0 : i32
    %c0_i32_3 = arith.constant 0 : i32
    return %c0_i32, %c0_i32_0, %c0_i32_1, %c0_i32_2 : i32, i32, i32, i32
  }
  func.func @transform_4(%arg0: i32) -> (i32, i32, i32, i32) {
    %c0_i32 = arith.constant 0 : i32
    %c0_i32_0 = arith.constant 0 : i32
    %c0_i32_1 = arith.constant 0 : i32
    %c0_i32_2 = arith.constant 0 : i32
    return %arg0, %c0_i32, %c0_i32_0, %c0_i32_1 : i32, i32, i32, i32
  }
  func.func @transform_5(%arg0: i32) -> (i32, i32, i32) {
    %c0_i32 = arith.constant 0 : i32
    %c0_i32_0 = arith.constant 0 : i32
    %c0_i32_1 = arith.constant 0 : i32
    return %arg0, %c0_i32, %c0_i32_0 : i32, i32, i32
  }
}

</mosaic_0001>

<llo_original>
// kernel: residual_block_pallas.5
$region0: #{residual_block_pallas.5}
  #allocation0 [shape = 'u32[]', space=smem, size = 0x4, offset = 0x4, fixed_abs, tag = 'smem constant byte address 0x4 - core index']
  #allocation1 [shape = 'u32[144,128]{1,0:T(1,128)}', space=vmem, size = 0x12000, scoped, tag = 'internal scratch']
  %s0 = inlined_call_operand.vmem [shape: f32[2,16,16,8], index: 0, kind: input, shape index: {}]
  %s1 = inlined_call_operand.vmem [shape: f32[2,16,16,8], index: 1, kind: input, shape index: {}]
  %s2 = inlined_call_operand.vmem [shape: f32[1,8], index: 2, kind: input, shape index: {}]
  %s3 = inlined_call_operand.vmem [shape: f32[1,8], index: 3, kind: input, shape index: {}]
  %s4 = inlined_call_operand.vmem [shape: f32[1,8], index: 4, kind: input, shape index: {}]
  %s5 = inlined_call_operand.vmem [shape: f32[1,8], index: 5, kind: input, shape index: {}]
  %s6 = inlined_call_operand.vmem [shape: f32[2,16,16,8], index: 6, kind: output, shape index: {}]
  %s7 = sld [smem:[#allocation0]]
  $region57: #{residual_block_pallas.5} parent=0
    _
  %s9 = ssub.s32 1, %s7
  %s10 = scalar_select 0, %s9, %s7
  loop: start=0, step=1, limit=4
  $region2: #{residual_block_pallas.5} parent=0 // loop_pre_header
    _
  $region3: #{residual_block_pallas.5} parent=0 // loop_header
    %s12 = sphi 0, %s16
    %p13 = scmp.ge.s32.totalorder %s12, 4
    %s22 = sphi 0, %s24
    %s25 = sphi 0, %s22
    %s26 = sphi 0, %s25
    %s42 = sphi 0, %s26
    %s48 = sphi 0, %s50
    %s51 = sphi 0, %s48
    %s52 = sphi 0, %s51
    %s68 = sphi 0, %s52
    %s72 = sphi 0, %s72
    %s74 = sphi 0, %s72
    %s75 = sphi 0, %s74
    %s89 = sphi 0, %s75
    %s93 = sphi 0, %s93
    %s95 = sphi 0, %s93
    %s96 = sphi 0, %s95
    %s110 = sphi 0, %s96
    %s114 = sphi 0, %s114
    %s116 = sphi 0, %s114
    %s117 = sphi 0, %s116
    %s131 = sphi 0, %s117
    %s135 = sphi 0, %s135
    %s137 = sphi 0, %s135
    %s138 = sphi 0, %s137
    %s152 = sphi 0, %s138
    %s158 = sphi 0, %s160
    %s161 = sphi 0, %s158
    %s162 = sphi 0, %s161
    %s178 = sphi 0, %s162
  $region4: #{residual_block_pallas.5} parent=0 // loop_header_branch
    %15 = sbr.rel (%p13) target = $region8
  $region5: #{residual_block_pallas.5} parent=0 // loop_body
    %s17 = ssub.s32 %s12, 1
    %s18 = ssub.s32 %s12, 2
    %s19 = sadd.s32 %s12, 1
    %s20 = ssub.s32 %s12, %s19
    %p21 = scmp.eq.s32.totalorder %s20, 0
    %s23 = sadd.s32 %s22, 1
    %s24 = scalar_select %p21, %s22, %s23
    %p27 = pneg %p21
    %p28 = scmp.eq.s32.totalorder %s12, 1
    %p29 = por %p27, %p28
    %p30 = scmp.ne.s32.totalorder %s22, %s25
    %p31 = scmp.eq.s32.totalorder %s12, 0
    %p32 = por %p30, %p31
    %p33 = scmp.ne.s32.totalorder %s22, %s25
    %p34 = scmp.eq.s32.totalorder %s17, 1
    %p35 = por %p33, %p34
    %p36 = scmp.ne.s32.totalorder %s25, %s26
    %p37 = scmp.eq.s32.totalorder %s17, 0
    %p38 = por %p36, %p37
    %p39 = scmp.ne.s32.totalorder %s25, %s26
    %p40 = scmp.eq.s32.totalorder %s18, 1
    %p41 = por %p39, %p40
    %p43 = scmp.ne.s32.totalorder %s26, %s42
    %p44 = scmp.eq.s32.totalorder %s18, 0
    %p45 = por %p43, %p44
    %s46 = ssub.s32 %s12, %s19
    %p47 = scmp.eq.s32.totalorder %s46, 0
    %s49 = sadd.s32 %s48, 1
    %s50 = scalar_select %p47, %s48, %s49
    %p53 = pneg %p47
    %p54 = scmp.eq.s32.totalorder %s12, 1
    %p55 = por %p53, %p54
    %p56 = scmp.ne.s32.totalorder %s48, %s51
    %p57 = scmp.eq.s32.totalorder %s12, 0
    %p58 = por %p56, %p57
    %p59 = scmp.ne.s32.totalorder %s48, %s51
    %p60 = scmp.eq.s32.totalorder %s17, 1
    %p61 = por %p59, %p60
    %p62 = scmp.ne.s32.totalorder %s51, %s52
    %p63 = scmp.eq.s32.totalorder %s17, 0
    %p64 = por %p62, %p63
    %p65 = scmp.ne.s32.totalorder %s51, %s52
    %p66 = scmp.eq.s32.totalorder %s18, 1
    %p67 = por %p65, %p66
    %p69 = scmp.ne.s32.totalorder %s52, %s68
    %p70 = scmp.eq.s32.totalorder %s18, 0
    %p71 = por %p69, %p70
    %s73 = sadd.s32 %s72, 1
    %p76 = scmp.eq.s32.totalorder %s12, 1
    %p77 = scmp.ne.s32.totalorder %s72, %s74
    %p78 = scmp.eq.s32.totalorder %s12, 0
    %p79 = por %p77, %p78
    %p80 = scmp.ne.s32.totalorder %s72, %s74
    %p81 = scmp.eq.s32.totalorder %s17, 1
    %p82 = por %p80, %p81
    %p83 = scmp.ne.s32.totalorder %s74, %s75
    %p84 = scmp.eq.s32.totalorder %s17, 0
    %p85 = por %p83, %p84
    %p86 = scmp.ne.s32.totalorder %s74, %s75
    %p87 = scmp.eq.s32.totalorder %s18, 1
    %p88 = por %p86, %p87
    %p90 = scmp.ne.s32.totalorder %s75, %s89
    %p91 = scmp.eq.s32.totalorder %s18, 0
    %p92 = por %p90, %p91
    %s94 = sadd.s32 %s93, 1
    %p97 = scmp.eq.s32.totalorder %s12, 1
    %p98 = scmp.ne.s32.totalorder %s93, %s95
    %p99 = scmp.eq.s32.totalorder %s12, 0
    %p100 = por %p98, %p99
    %p101 = scmp.ne.s32.totalorder %s93, %s95
    %p102 = scmp.eq.s32.totalorder %s17, 1
    %p103 = por %p101, %p102
    %p104 = scmp.ne.s32.totalorder %s95, %s96
    %p105 = scmp.eq.s32.totalorder %s17, 0
    %p106 = por %p104, %p105
    %p107 = scmp.ne.s32.totalorder %s95, %s96
    %p108 = scmp.eq.s32.totalorder %s18, 1
    %p109 = por %p107, %p108
    %p111 = scmp.ne.s32.totalorder %s96, %s110
    %p112 = scmp.eq.s32.totalorder %s18, 0
    %p113 = por %p111, %p112
    %s115 = sadd.s32 %s114, 1
    %p118 = scmp.eq.s32.totalorder %s12, 1
    %p119 = scmp.ne.s32.totalorder %s114, %s116
    %p120 = scmp.eq.s32.totalorder %s12, 0
    %p121 = por %p119, %p120
    %p122 = scmp.ne.s32.totalorder %s114, %s116
    %p123 = scmp.eq.s32.totalorder %s17, 1
    %p124 = por %p122, %p123
    %p125 = scmp.ne.s32.totalorder %s116, %s117
    %p126 = scmp.eq.s32.totalorder %s17, 0
    %p127 = por %p125, %p126
    %p128 = scmp.ne.s32.totalorder %s116, %s117
    %p129 = scmp.eq.s32.totalorder %s18, 1
    %p130 = por %p128, %p129
    %p132 = scmp.ne.s32.totalorder %s117, %s131
    %p133 = scmp.eq.s32.totalorder %s18, 0
    %p134 = por %p132, %p133
    %s136 = sadd.s32 %s135, 1
    %p139 = scmp.eq.s32.totalorder %s12, 1
    %p140 = scmp.ne.s32.totalorder %s135, %s137
    %p141 = scmp.eq.s32.totalorder %s12, 0
    %p142 = por %p140, %p141
    %p143 = scmp.ne.s32.totalorder %s135, %s137
    %p144 = scmp.eq.s32.totalorder %s17, 1
    %p145 = por %p143, %p144
    %p146 = scmp.ne.s32.totalorder %s137, %s138
    %p147 = scmp.eq.s32.totalorder %s17, 0
    %p148 = por %p146, %p147
    %p149 = scmp.ne.s32.totalorder %s137, %s138
    %p150 = scmp.eq.s32.totalorder %s18, 1
    %p151 = por %p149, %p150
    %p153 = scmp.ne.s32.totalorder %s138, %s152
    %p154 = scmp.eq.s32.totalorder %s18, 0
    %p155 = por %p153, %p154
    %s156 = ssub.s32 %s12, %s19
    %p157 = scmp.eq.s32.totalorder %s156, 0
    %s159 = sadd.s32 %s158, 1
    %s160 = scalar_select %p157, %s158, %s159
    %p163 = pneg %p157
    %p164 = scmp.eq.s32.totalorder %s12, 1
    %p165 = por %p163, %p164
    %p166 = scmp.ne.s32.totalorder %s158, %s161
    %p167 = scmp.eq.s32.totalorder %s12, 0
    %p168 = por %p166, %p167
    %p169 = scmp.ne.s32.totalorder %s158, %s161
    %p170 = scmp.eq.s32.totalorder %s17, 1
    %p171 = por %p169, %p170
    %p172 = scmp.ne.s32.totalorder %s161, %s162
    %p173 = scmp.eq.s32.totalorder %s17, 0
    %p174 = por %p172, %p173
    %p175 = scmp.ne.s32.totalorder %s161, %s162
    %p176 = scmp.eq.s32.totalorder %s18, 1
    %p177 = por %p175, %p176
    %p179 = scmp.ne.s32.totalorder %s162, %s178
    %p180 = scmp.eq.s32.totalorder %s18, 0
    %p181 = por %p179, %p180
    %p182 = scmp.le.s32.totalorder 1, %s12
    %p183 = scmp.lt.s32.totalorder %s12, 3
    %p184 = pnand %p182, %p183
    %p185 = pneg %p184
    // Predicated region
    $region9: #{residual_block_pallas.5} parent=5 // pred_check
      _
    $region10: #{residual_block_pallas.5} parent=5 // pred_check_branch
      %187 = sbr.rel (%p184) target = $region12
    $region11: #{residual_block_pallas.5} parent=5 // pred_region
      %s188 = ssub.s32 %s12, 1
      // Predicated region
      $region13: #{residual_block_pallas.5} parent=11 // pred_check
        %p189 = pneg %p85
      $region14: #{residual_block_pallas.5} parent=11 // pred_check_branch
        %191 = sbr.rel (%p189) target = $region16
      $region15: #{residual_block_pallas.5} parent=11 // pred_region
        _
      $region16: #{residual_block_pallas.5} parent=11 // pred_fallthru
        _
      // Predicated region
      $region17: #{residual_block_pallas.5} parent=11 // pred_check
        %p192 = pneg %p106
      $region18: #{residual_block_pallas.5} parent=11 // pred_check_branch
        %194 = sbr.rel (%p192) target = $region20
      $region19: #{residual_block_pallas.5} parent=11 // pred_region
        _
      $region20: #{residual_block_pallas.5} parent=11 // pred_fallthru
        _
      // Predicated region
      $region21: #{residual_block_pallas.5} parent=11 // pred_check
        %p195 = pneg %p127
      $region22: #{residual_block_pallas.5} parent=11 // pred_check_branch
        %197 = sbr.rel (%p195) target = $region24
      $region23: #{residual_block_pallas.5} parent=11 // pred_region
        _
      $region24: #{residual_block_pallas.5} parent=11 // pred_fallthru
        _
      // Predicated region
      $region25: #{residual_block_pallas.5} parent=11 // pred_check
        %p198 = pneg %p148
      $region26: #{residual_block_pallas.5} parent=11 // pred_check_branch
        %200 = sbr.rel (%p198) target = $region28
      $region27: #{residual_block_pallas.5} parent=11 // pred_region
        _
      $region28: #{residual_block_pallas.5} parent=11 // pred_fallthru
        _
    $region12: #{residual_block_pallas.5} parent=5 // pred_fallthru
      _
    %p201 = scmp.lt.s32.totalorder %s12, 2
    // Predicated region
    $region29: #{residual_block_pallas.5} parent=5 // pred_check
      %p202 = pneg %p201
    $region30: #{residual_block_pallas.5} parent=5 // pred_check_branch
      %204 = sbr.rel (%p202) target = $region32
    $region31: #{residual_block_pallas.5} parent=5 // pred_region
      // Predicated region
      $region33: #{residual_block_pallas.5} parent=31 // pred_check
        %p205 = pneg %p32
      $region34: #{residual_block_pallas.5} parent=31 // pred_check_branch
        %207 = sbr.rel (%p205) target = $region36
      $region35: #{residual_block_pallas.5} parent=31 // pred_region
        %p208 = scmp.lt.s32.totalorder %s12, 1
        %s209 = scalar_select %p208, %s12, 1
        %s210 = smul.addr %s209, 32
        %s211 = smul.addr %s210, 8
        %s212 = scalar_lea.vmem %s0, %s211
      $region36: #{residual_block_pallas.5} parent=31 // pred_fallthru
        _
      // Predicated region
      $region37: #{residual_block_pallas.5} parent=31 // pred_check
        %p213 = pneg %p58
      $region38: #{residual_block_pallas.5} parent=31 // pred_check_branch
        %215 = sbr.rel (%p213) target = $region40
      $region39: #{residual_block_pallas.5} parent=31 // pred_region
        %p216 = scmp.lt.s32.totalorder %s12, 1
        %s217 = scalar_select %p216, %s12, 1
        %s218 = smul.addr %s217, 32
        %s219 = smul.addr %s218, 8
        %s220 = scalar_lea.vmem %s1, %s219
      $region40: #{residual_block_pallas.5} parent=31 // pred_fallthru
        _
    $region32: #{residual_block_pallas.5} parent=5 // pred_fallthru
      _
    %p221 = scmp.le.s32.totalorder 1, %s12
    %p222 = scmp.lt.s32.totalorder %s12, 3
    %p223 = pnand %p221, %p222
    %p224 = pneg %p223
    // Predicated region
    $region41: #{residual_block_pallas.5} parent=5 // pred_check
      _
    $region42: #{residual_block_pallas.5} parent=5 // pred_check_branch
      %226 = sbr.rel (%p223) target = $region44
    $region43: #{residual_block_pallas.5} parent=5 // pred_region
      %s227 = ssub.s32 %s12, 1
      %p228 = scmp.lt.s32.totalorder %s17, 1
      %s229 = scalar_select %p228, %s17, 1
      %s230 = smul.addr %s229, 32
      %s231 = smul.addr %s230, 8
      %s232 = scalar_lea.vmem %s0, %s231
      %p233 = pneg %p38
      %p234 = pneg %p35
      %p235 = scmp.lt.s32.totalorder %s17, 1
      %s236 = scalar_select %p235, %s17, 1
      %s237 = smul.addr %s236, 32
      %s238 = smul.addr %s237, 8
      %s239 = scalar_lea.vmem %s1, %s238
      %p240 = pneg %p64
      %p241 = pneg %p61
      %p242 = pneg %p85
      %p243 = pneg %p82
      %p244 = pneg %p106
      %p245 = pneg %p103
      %p246 = pneg %p127
      %p247 = pneg %p124
      %p248 = pneg %p148
      %p249 = pneg %p145
      %p250 = pneg %p174
      %p251 = pneg %p171
      %p252 = scmp.lt.s32.totalorder %s17, 1
      %s253 = scalar_select %p252, %s17, 1
      %s254 = smul.addr %s253, 32
      %s255 = smul.addr %s254, 8
      %s256 = scalar_lea.vmem %s6, %s255
      %p257 = scmp.lt.s32.totalorder %s17, 1
      %s258 = scalar_select %p257, %s17, 1
      %s259 = smul.addr %s258, 32
      %s260 = smul.addr %s259, 8
      %s261 = scalar_lea.vmem %s0, %s260
      %p262 = scmp.lt.s32.totalorder %s17, 1
      %s263 = scalar_select %p262, %s17, 1
      %s264 = smul.addr %s263, 32
      %s265 = smul.addr %s264, 8
      %s266 = scalar_lea.vmem %s1, %s265
      %p267 = scmp.lt.s32.totalorder %s17, 1
      %s268 = scalar_select %p267, %s17, 1
      %s269 = smul.addr %s268, 32
      %s270 = smul.addr %s269, 8
      %s271 = scalar_lea.vmem %s6, %s270
      %v272 = vld [vmem:[%s266] sm:$0xff]
      %v273 = vld [vmem:[%s266 + $0x8] sm:$0xff]
      %v274 = vld [vmem:[%s266 + $0x10] sm:$0xff]
      %v275 = vld [vmem:[%s266 + $0x18] sm:$0xff]
      %v276 = vld [vmem:[%s266 + $0x20] sm:$0xff]
      %v277 = vld [vmem:[%s266 + $0x28] sm:$0xff]
      %v278 = vld [vmem:[%s266 + $0x30] sm:$0xff]
      %v279 = vld [vmem:[%s266 + $0x38] sm:$0xff]
      %v280 = vld [vmem:[%s266 + $0x40] sm:$0xff]
      %v281 = vld [vmem:[%s266 + $0x48] sm:$0xff]
      %v282 = vld [vmem:[%s266 + $0x50] sm:$0xff]
      %v283 = vld [vmem:[%s266 + $0x58] sm:$0xff]
      %v284 = vld [vmem:[%s266 + $0x60] sm:$0xff]
      %v285 = vld [vmem:[%s266 + $0x68] sm:$0xff]
      %v286 = vld [vmem:[%s266 + $0x70] sm:$0xff]
      %v287 = vld [vmem:[%s266 + $0x78] sm:$0xff]
      %v288 = vld [vmem:[%s266 + $0x80] sm:$0xff]
      %v289 = vld [vmem:[%s266 + $0x88] sm:$0xff]
      %v290 = vld [vmem:[%s266 + $0x90] sm:$0xff]
      %v291 = vld [vmem:[%s266 + $0x98] sm:$0xff]
      %v292 = vld [vmem:[%s266 + $0xa0] sm:$0xff]
      %v293 = vld [vmem:[%s266 + $0xa8] sm:$0xff]
      %v294 = vld [vmem:[%s266 + $0xb0] sm:$0xff]
      %v295 = vld [vmem:[%s266 + $0xb8] sm:$0xff]
      %v296 = vld [vmem:[%s266 + $0xc0] sm:$0xff]
      %v297 = vld [vmem:[%s266 + $0xc8] sm:$0xff]
      %v298 = vld [vmem:[%s266 + $0xd0] sm:$0xff]
      %v299 = vld [vmem:[%s266 + $0xd8] sm:$0xff]
      %v300 = vld [vmem:[%s266 + $0xe0] sm:$0xff]
      %v301 = vld [vmem:[%s266 + $0xe8] sm:$0xff]
      %v302 = vld [vmem:[%s266 + $0xf0] sm:$0xff]
      %v303 = vld [vmem:[%s266 + $0xf8] sm:$0xff]
      %v304 = vld [vmem:[%s4] sm:$0x1]
      %v306 = vlaneseq
      %v307 = vshrl.u32 %v306, 7
      %v308 = vsub.s32 0, %v307
      %v309 = vrot.slane %v304, %v308
      %v311 = vmul.f32 %v272, %v309
      %v312 = vmul.f32 %v273, %v309
      %v313 = vmul.f32 %v274, %v309
      %v314 = vmul.f32 %v275, %v309
      %v315 = vmul.f32 %v276, %v309
      %v316 = vmul.f32 %v277, %v309
      %v317 = vmul.f32 %v278, %v309
      %v318 = vmul.f32 %v279, %v309
      %v319 = vmul.f32 %v280, %v309
      %v320 = vmul.f32 %v281, %v309
      %v321 = vmul.f32 %v282, %v309
      %v322 = vmul.f32 %v283, %v309
      %v323 = vmul.f32 %v284, %v309
      %v324 = vmul.f32 %v285, %v309
      %v325 = vmul.f32 %v286, %v309
      %v326 = vmul.f32 %v287, %v309
      %v327 = vmul.f32 %v288, %v309
      %v328 = vmul.f32 %v289, %v309
      %v329 = vmul.f32 %v290, %v309
      %v330 = vmul.f32 %v291, %v309
      %v331 = vmul.f32 %v292, %v309
      %v332 = vmul.f32 %v293, %v309
      %v333 = vmul.f32 %v294, %v309
      %v334 = vmul.f32 %v295, %v309
      %v335 = vmul.f32 %v296, %v309
      %v336 = vmul.f32 %v297, %v309
      %v337 = vmul.f32 %v298, %v309
      %v338 = vmul.f32 %v299, %v309
      %v339 = vmul.f32 %v300, %v309
      %v340 = vmul.f32 %v301, %v309
      %v341 = vmul.f32 %v302, %v309
      %v342 = vmul.f32 %v303, %v309
      %v343 = vld [vmem:[%s5] sm:$0x1]
      %v345 = vlaneseq
      %v346 = vshrl.u32 %v345, 7
      %v347 = vsub.s32 0, %v346
      %v348 = vrot.slane %v343, %v347
      %v350 = vadd.f32 %v311, %v348
      %v351 = vadd.f32 %v312, %v348
      %v352 = vadd.f32 %v313, %v348
      %v353 = vadd.f32 %v314, %v348
      %v354 = vadd.f32 %v315, %v348
      %v355 = vadd.f32 %v316, %v348
      %v356 = vadd.f32 %v317, %v348
      %v357 = vadd.f32 %v318, %v348
      %v358 = vadd.f32 %v319, %v348
      %v359 = vadd.f32 %v320, %v348
      %v360 = vadd.f32 %v321, %v348
      %v361 = vadd.f32 %v322, %v348
      %v362 = vadd.f32 %v323, %v348
      %v363 = vadd.f32 %v324, %v348
      %v364 = vadd.f32 %v325, %v348
      %v365 = vadd.f32 %v326, %v348
      %v366 = vadd.f32 %v327, %v348
      %v367 = vadd.f32 %v328, %v348
      %v368 = vadd.f32 %v329, %v348
      %v369 = vadd.f32 %v330, %v348
      %v370 = vadd.f32 %v331, %v348
      %v371 = vadd.f32 %v332, %v348
      %v372 = vadd.f32 %v333, %v348
      %v373 = vadd.f32 %v334, %v348
      %v374 = vadd.f32 %v335, %v348
      %v375 = vadd.f32 %v336, %v348
      %v376 = vadd.f32 %v337, %v348
      %v377 = vadd.f32 %v338, %v348
      %v378 = vadd.f32 %v339, %v348
      %v379 = vadd.f32 %v340, %v348
      %v380 = vadd.f32 %v341, %v348
      %v381 = vadd.f32 %v342, %v348
      %v382 = vld [vmem:[%s261] sm:$0xff]
      %v383 = vld [vmem:[%s261 + $0x8] sm:$0xff]
      %v384 = vld [vmem:[%s261 + $0x10] sm:$0xff]
      %v385 = vld [vmem:[%s261 + $0x18] sm:$0xff]
      %v386 = vld [vmem:[%s261 + $0x20] sm:$0xff]
      %v387 = vld [vmem:[%s261 + $0x28] sm:$0xff]
      %v388 = vld [vmem:[%s261 + $0x30] sm:$0xff]
      %v389 = vld [vmem:[%s261 + $0x38] sm:$0xff]
      %v390 = vld [vmem:[%s261 + $0x40] sm:$0xff]
      %v391 = vld [vmem:[%s261 + $0x48] sm:$0xff]
      %v392 = vld [vmem:[%s261 + $0x50] sm:$0xff]
      %v393 = vld [vmem:[%s261 + $0x58] sm:$0xff]
      %v394 = vld [vmem:[%s261 + $0x60] sm:$0xff]
      %v395 = vld [vmem:[%s261 + $0x68] sm:$0xff]
      %v396 = vld [vmem:[%s261 + $0x70] sm:$0xff]
      %v397 = vld [vmem:[%s261 + $0x78] sm:$0xff]
      %v398 = vld [vmem:[%s261 + $0x80] sm:$0xff]
      %v399 = vld [vmem:[%s261 + $0x88] sm:$0xff]
      %v400 = vld [vmem:[%s261 + $0x90] sm:$0xff]
      %v401 = vld [vmem:[%s261 + $0x98] sm:$0xff]
      %v402 = vld [vmem:[%s261 + $0xa0] sm:$0xff]
      %v403 = vld [vmem:[%s261 + $0xa8] sm:$0xff]
      %v404 = vld [vmem:[%s261 + $0xb0] sm:$0xff]
      %v405 = vld [vmem:[%s261 + $0xb8] sm:$0xff]
      %v406 = vld [vmem:[%s261 + $0xc0] sm:$0xff]
      %v407 = vld [vmem:[%s261 + $0xc8] sm:$0xff]
      %v408 = vld [vmem:[%s261 + $0xd0] sm:$0xff]
      %v409 = vld [vmem:[%s261 + $0xd8] sm:$0xff]
      %v410 = vld [vmem:[%s261 + $0xe0] sm:$0xff]
      %v411 = vld [vmem:[%s261 + $0xe8] sm:$0xff]
      %v412 = vld [vmem:[%s261 + $0xf0] sm:$0xff]
      %v413 = vld [vmem:[%s261 + $0xf8] sm:$0xff]
      %v414 = vld [vmem:[%s2] sm:$0x1]
      %v416 = vlaneseq
      %v417 = vshrl.u32 %v416, 7
      %v418 = vsub.s32 0, %v417
      %v419 = vrot.slane %v414, %v418
      %v421 = vmul.f32 %v382, %v419
      %v422 = vmul.f32 %v383, %v419
      %v423 = vmul.f32 %v384, %v419
      %v424 = vmul.f32 %v385, %v419
      %v425 = vmul.f32 %v386, %v419
      %v426 = vmul.f32 %v387, %v419
      %v427 = vmul.f32 %v388, %v419
      %v428 = vmul.f32 %v389, %v419
      %v429 = vmul.f32 %v390, %v419
      %v430 = vmul.f32 %v391, %v419
      %v431 = vmul.f32 %v392, %v419
      %v432 = vmul.f32 %v393, %v419
      %v433 = vmul.f32 %v394, %v419
      %v434 = vmul.f32 %v395, %v419
      %v435 = vmul.f32 %v396, %v419
      %v436 = vmul.f32 %v397, %v419
      %v437 = vmul.f32 %v398, %v419
      %v438 = vmul.f32 %v399, %v419
      %v439 = vmul.f32 %v400, %v419
      %v440 = vmul.f32 %v401, %v419
      %v441 = vmul.f32 %v402, %v419
      %v442 = vmul.f32 %v403, %v419
      %v443 = vmul.f32 %v404, %v419
      %v444 = vmul.f32 %v405, %v419
      %v445 = vmul.f32 %v406, %v419
      %v446 = vmul.f32 %v407, %v419
      %v447 = vmul.f32 %v408, %v419
      %v448 = vmul.f32 %v409, %v419
      %v449 = vmul.f32 %v410, %v419
      %v450 = vmul.f32 %v411, %v419
      %v451 = vmul.f32 %v412, %v419
      %v452 = vmul.f32 %v413, %v419
      %v453 = vld [vmem:[%s3] sm:$0x1]
      %v455 = vlaneseq
      %v456 = vshrl.u32 %v455, 7
      %v457 = vsub.s32 0, %v456
      %v458 = vrot.slane %v453, %v457
      %v460 = vadd.f32 %v421, %v458
      %v461 = vadd.f32 %v422, %v458
      %v462 = vadd.f32 %v423, %v458
      %v463 = vadd.f32 %v424, %v458
      %v464 = vadd.f32 %v425, %v458
      %v465 = vadd.f32 %v426, %v458
      %v466 = vadd.f32 %v427, %v458
      %v467 = vadd.f32 %v428, %v458
      %v468 = vadd.f32 %v429, %v458
      %v469 = vadd.f32 %v430, %v458
      %v470 = vadd.f32 %v431, %v458
      %v471 = vadd.f32 %v432, %v458
      %v472 = vadd.f32 %v433, %v458
      %v473 = vadd.f32 %v434, %v458
      %v474 = vadd.f32 %v435, %v458
      %v475 = vadd.f32 %v436, %v458
      %v476 = vadd.f32 %v437, %v458
      %v477 = vadd.f32 %v438, %v458
      %v478 = vadd.f32 %v439, %v458
      %v479 = vadd.f32 %v440, %v458
      %v480 = vadd.f32 %v441, %v458
      %v481 = vadd.f32 %v442, %v458
      %v482 = vadd.f32 %v443, %v458
      %v483 = vadd.f32 %v444, %v458
      %v484 = vadd.f32 %v445, %v458
      %v485 = vadd.f32 %v446, %v458
      %v486 = vadd.f32 %v447, %v458
      %v487 = vadd.f32 %v448, %v458
      %v488 = vadd.f32 %v449, %v458
      %v489 = vadd.f32 %v450, %v458
      %v490 = vadd.f32 %v451, %v458
      %v491 = vadd.f32 %v452, %v458
      %v492 = vadd.f32 %v460, %v350
      %v493 = vadd.f32 %v461, %v351
      %v494 = vadd.f32 %v462, %v352
      %v495 = vadd.f32 %v463, %v353
      %v496 = vadd.f32 %v464, %v354
      %v497 = vadd.f32 %v465, %v355
      %v498 = vadd.f32 %v466, %v356
      %v499 = vadd.f32 %v467, %v357
      %v500 = vadd.f32 %v468, %v358
      %v501 = vadd.f32 %v469, %v359
      %v502 = vadd.f32 %v470, %v360
      %v503 = vadd.f32 %v471, %v361
      %v504 = vadd.f32 %v472, %v362
      %v505 = vadd.f32 %v473, %v363
      %v506 = vadd.f32 %v474, %v364
      %v507 = vadd.f32 %v475, %v365
      %v508 = vadd.f32 %v476, %v366
      %v509 = vadd.f32 %v477, %v367
      %v510 = vadd.f32 %v478, %v368
      %v511 = vadd.f32 %v479, %v369
      %v512 = vadd.f32 %v480, %v370
      %v513 = vadd.f32 %v481, %v371
      %v514 = vadd.f32 %v482, %v372
      %v515 = vadd.f32 %v483, %v373
      %v516 = vadd.f32 %v484, %v374
      %v517 = vadd.f32 %v485, %v375
      %v518 = vadd.f32 %v486, %v376
      %v519 = vadd.f32 %v487, %v377
      %v520 = vadd.f32 %v488, %v378
      %v521 = vadd.f32 %v489, %v379
      %v522 = vadd.f32 %v490, %v380
      %v523 = vadd.f32 %v491, %v381
      %v524 = vmax.f32 %v492, 0.0
      %v525 = vmax.f32 %v493, 0.0
      %v526 = vmax.f32 %v494, 0.0
      %v527 = vmax.f32 %v495, 0.0
      %v528 = vmax.f32 %v496, 0.0
      %v529 = vmax.f32 %v497, 0.0
      %v530 = vmax.f32 %v498, 0.0
      %v531 = vmax.f32 %v499, 0.0
      %v532 = vmax.f32 %v500, 0.0
      %v533 = vmax.f32 %v501, 0.0
      %v534 = vmax.f32 %v502, 0.0
      %v535 = vmax.f32 %v503, 0.0
      %v536 = vmax.f32 %v504, 0.0
      %v537 = vmax.f32 %v505, 0.0
      %v538 = vmax.f32 %v506, 0.0
      %v539 = vmax.f32 %v507, 0.0
      %v540 = vmax.f32 %v508, 0.0
      %v541 = vmax.f32 %v509, 0.0
      %v542 = vmax.f32 %v510, 0.0
      %v543 = vmax.f32 %v511, 0.0
      %v544 = vmax.f32 %v512, 0.0
      %v545 = vmax.f32 %v513, 0.0
      %v546 = vmax.f32 %v514, 0.0
      %v547 = vmax.f32 %v515, 0.0
      %v548 = vmax.f32 %v516, 0.0
      %v549 = vmax.f32 %v517, 0.0
      %v550 = vmax.f32 %v518, 0.0
      %v551 = vmax.f32 %v519, 0.0
      %v552 = vmax.f32 %v520, 0.0
      %v553 = vmax.f32 %v521, 0.0
      %v554 = vmax.f32 %v522, 0.0
      %v555 = vmax.f32 %v523, 0.0
      %vm556 = vcmask 64512
      %557 = vst.msk [vmem:[%s271] sm:$0xff] %vm556, %v524
      %558 = vst.msk [vmem:[%s271 + $0x8] sm:$0xff] %vm556, %v525
      %559 = vst.msk [vmem:[%s271 + $0x10] sm:$0xff] %vm556, %v526
      %560 = vst.msk [vmem:[%s271 + $0x18] sm:$0xff] %vm556, %v527
      %561 = vst.msk [vmem:[%s271 + $0x20] sm:$0xff] %vm556, %v528
      %562 = vst.msk [vmem:[%s271 + $0x28] sm:$0xff] %vm556, %v529
      %563 = vst.msk [vmem:[%s271 + $0x30] sm:$0xff] %vm556, %v530
      %564 = vst.msk [vmem:[%s271 + $0x38] sm:$0xff] %vm556, %v531
      %565 = vst.msk [vmem:[%s271 + $0x40] sm:$0xff] %vm556, %v532
      %566 = vst.msk [vmem:[%s271 + $0x48] sm:$0xff] %vm556, %v533
      %567 = vst.msk [vmem:[%s271 + $0x50] sm:$0xff] %vm556, %v534
      %568 = vst.msk [vmem:[%s271 + $0x58] sm:$0xff] %vm556, %v535
      %569 = vst.msk [vmem:[%s271 + $0x60] sm:$0xff] %vm556, %v536
      %570 = vst.msk [vmem:[%s271 + $0x68] sm:$0xff] %vm556, %v537
      %571 = vst.msk [vmem:[%s271 + $0x70] sm:$0xff] %vm556, %v538
      %572 = vst.msk [vmem:[%s271 + $0x78] sm:$0xff] %vm556, %v539
      %573 = vst.msk [vmem:[%s271 + $0x80] sm:$0xff] %vm556, %v540
      %574 = vst.msk [vmem:[%s271 + $0x88] sm:$0xff] %vm556, %v541
      %575 = vst.msk [vmem:[%s271 + $0x90] sm:$0xff] %vm556, %v542
      %576 = vst.msk [vmem:[%s271 + $0x98] sm:$0xff] %vm556, %v543
      %577 = vst.msk [vmem:[%s271 + $0xa0] sm:$0xff] %vm556, %v544
      %578 = vst.msk [vmem:[%s271 + $0xa8] sm:$0xff] %vm556, %v545
      %579 = vst.msk [vmem:[%s271 + $0xb0] sm:$0xff] %vm556, %v546
      %580 = vst.msk [vmem:[%s271 + $0xb8] sm:$0xff] %vm556, %v547
      %581 = vst.msk [vmem:[%s271 + $0xc0] sm:$0xff] %vm556, %v548
      %582 = vst.msk [vmem:[%s271 + $0xc8] sm:$0xff] %vm556, %v549
      %583 = vst.msk [vmem:[%s271 + $0xd0] sm:$0xff] %vm556, %v550
      %584 = vst.msk [vmem:[%s271 + $0xd8] sm:$0xff] %vm556, %v551
      %585 = vst.msk [vmem:[%s271 + $0xe0] sm:$0xff] %vm556, %v552
      %586 = vst.msk [vmem:[%s271 + $0xe8] sm:$0xff] %vm556, %v553
      %587 = vst.msk [vmem:[%s271 + $0xf0] sm:$0xff] %vm556, %v554
      %588 = vst.msk [vmem:[%s271 + $0xf8] sm:$0xff] %vm556, %v555
      %p589 = scmp.lt.s32.totalorder %s17, 1
      %s590 = scalar_select %p589, %s17, 1
      %s591 = smul.addr %s590, 32
      %s592 = smul.addr %s591, 8
      %s593 = scalar_lea.vmem %s6, %s592
      // Predicated region
      $region45: #{residual_block_pallas.5} parent=43 // pred_check
        %p594 = pneg %p171
      $region46: #{residual_block_pallas.5} parent=43 // pred_check_branch
        %596 = sbr.rel (%p594) target = $region48
      $region47: #{residual_block_pallas.5} parent=43 // pred_region
        _
      $region48: #{residual_block_pallas.5} parent=43 // pred_fallthru
        _
    $region44: #{residual_block_pallas.5} parent=5 // pred_fallthru
      _
    %p597 = scmp.le.s32.totalorder 2, %s12
    // Predicated region
    $region49: #{residual_block_pallas.5} parent=5 // pred_check
      %p598 = pneg %p597
    $region50: #{residual_block_pallas.5} parent=5 // pred_check_branch
      %600 = sbr.rel (%p598) target = $region52
    $region51: #{residual_block_pallas.5} parent=5 // pred_region
      %s601 = ssub.s32 %s12, 2
      // Predicated region
      $region53: #{residual_block_pallas.5} parent=51 // pred_check
        %p602 = pneg %p177
      $region54: #{residual_block_pallas.5} parent=51 // pred_check_branch
        %604 = sbr.rel (%p602) target = $region56
      $region55: #{residual_block_pallas.5} parent=51 // pred_region
        %p605 = scmp.lt.s32.totalorder %s18, 1
        %s606 = scalar_select %p605, %s18, 1
        %s607 = smul.addr %s606, 32
        %s608 = smul.addr %s607, 8
        %s609 = scalar_lea.vmem %s6, %s608
      $region56: #{residual_block_pallas.5} parent=51 // pred_fallthru
        _
    $region52: #{residual_block_pallas.5} parent=5 // pred_fallthru
      _
  $region6: #{residual_block_pallas.5} parent=0 // loop_footer
    %s16 = sadd.s32 1, %s12
  $region7: #{residual_block_pallas.5} parent=0 // loop_footer_branch
    %11 = sbr.rel target = $region3
  $region8: #{residual_block_pallas.5} parent=0 // loop_exit
    _

// kernel: residual_block_pallas.4
$region0: #{residual_block_pallas.4}
  #allocation0 [shape = 'u32[]', space=smem, size = 0x4, offset = 0x4, fixed_abs, tag = 'smem constant byte address 0x4 - core index']
  #allocation1 [shape = 'u32[144,128]{1,0:T(1,128)}', space=vmem, size = 0x12000, scoped, tag = 'internal scratch']
  #allocation2 [shape = 'bf16[1,18,18,8]{3,2,1,0:T(8,128)(2,1)}', space=vmem, size = 0x1b000, scoped, tag = 'scratch operand']
  %s0 = inlined_call_operand.vmem [shape: f32[2,16,16,8], index: 0, kind: input, shape index: {}]
  %s1 = inlined_call_operand.vmem [shape: f32[1,8], index: 1, kind: input, shape index: {}]
  %s2 = inlined_call_operand.vmem [shape: f32[1,8], index: 2, kind: input, shape index: {}]
  %s3 = inlined_call_operand.vmem [shape: bf16[3,3,8,8], index: 3, kind: input, shape index: {}]
  %s4 = inlined_call_operand.vmem [shape: f32[2,16,16,8], index: 4, kind: output, shape index: {0}]
  %s5 = inlined_call_operand.vmem [shape: f32[2,2,8], index: 5, kind: output, shape index: {1}]
  %6 = xla_tuple %s4, %s5
  %s7 = sld [smem:[#allocation0]]
  $region57: #{residual_block_pallas.4} parent=0
    _
  %s9 = ssub.s32 1, %s7
  %s10 = scalar_select 0, %s9, %s7
  loop: start=0, step=1, limit=4
  $region2: #{residual_block_pallas.4} parent=0 // loop_pre_header
    _
  $region3: #{residual_block_pallas.4} parent=0 // loop_header
    %s12 = sphi 0, %s16
    %p13 = scmp.ge.s32.totalorder %s12, 4
    %s22 = sphi 0, %s24
    %s25 = sphi 0, %s22
    %s26 = sphi 0, %s25
    %s42 = sphi 0, %s26
    %s46 = sphi 0, %s46
    %s48 = sphi 0, %s46
    %s49 = sphi 0, %s48
    %s63 = sphi 0, %s49
    %s67 = sphi 0, %s67
    %s69 = sphi 0, %s67
    %s70 = sphi 0, %s69
    %s84 = sphi 0, %s70
    %s88 = sphi 0, %s88
    %s90 = sphi 0, %s88
    %s91 = sphi 0, %s90
    %s105 = sphi 0, %s91
    %s111 = sphi 0, %s113
    %s114 = sphi 0, %s111
    %s115 = sphi 0, %s114
    %s131 = sphi 0, %s115
    %s137 = sphi 0, %s139
    %s140 = sphi 0, %s137
    %s141 = sphi 0, %s140
    %s157 = sphi 0, %s141
  $region4: #{residual_block_pallas.4} parent=0 // loop_header_branch
    %15 = sbr.rel (%p13) target = $region8
  $region5: #{residual_block_pallas.4} parent=0 // loop_body
    %s17 = ssub.s32 %s12, 1
    %s18 = ssub.s32 %s12, 2
    %s19 = sadd.s32 %s12, 1
    %s20 = ssub.s32 %s12, %s19
    %p21 = scmp.eq.s32.totalorder %s20, 0
    %s23 = sadd.s32 %s22, 1
    %s24 = scalar_select %p21, %s22, %s23
    %p27 = pneg %p21
    %p28 = scmp.eq.s32.totalorder %s12, 1
    %p29 = por %p27, %p28
    %p30 = scmp.ne.s32.totalorder %s22, %s25
    %p31 = scmp.eq.s32.totalorder %s12, 0
    %p32 = por %p30, %p31
    %p33 = scmp.ne.s32.totalorder %s22, %s25
    %p34 = scmp.eq.s32.totalorder %s17, 1
    %p35 = por %p33, %p34
    %p36 = scmp.ne.s32.totalorder %s25, %s26
    %p37 = scmp.eq.s32.totalorder %s17, 0
    %p38 = por %p36, %p37
    %p39 = scmp.ne.s32.totalorder %s25, %s26
    %p40 = scmp.eq.s32.totalorder %s18, 1
    %p41 = por %p39, %p40
    %p43 = scmp.ne.s32.totalorder %s26, %s42
    %p44 = scmp.eq.s32.totalorder %s18, 0
    %p45 = por %p43, %p44
    %s47 = sadd.s32 %s46, 1
    %p50 = scmp.eq.s32.totalorder %s12, 1
    %p51 = scmp.ne.s32.totalorder %s46, %s48
    %p52 = scmp.eq.s32.totalorder %s12, 0
    %p53 = por %p51, %p52
    %p54 = scmp.ne.s32.totalorder %s46, %s48
    %p55 = scmp.eq.s32.totalorder %s17, 1
    %p56 = por %p54, %p55
    %p57 = scmp.ne.s32.totalorder %s48, %s49
    %p58 = scmp.eq.s32.totalorder %s17, 0
    %p59 = por %p57, %p58
    %p60 = scmp.ne.s32.totalorder %s48, %s49
    %p61 = scmp.eq.s32.totalorder %s18, 1
    %p62 = por %p60, %p61
    %p64 = scmp.ne.s32.totalorder %s49, %s63
    %p65 = scmp.eq.s32.totalorder %s18, 0
    %p66 = por %p64, %p65
    %s68 = sadd.s32 %s67, 1
    %p71 = scmp.eq.s32.totalorder %s12, 1
    %p72 = scmp.ne.s32.totalorder %s67, %s69
    %p73 = scmp.eq.s32.totalorder %s12, 0
    %p74 = por %p72, %p73
    %p75 = scmp.ne.s32.totalorder %s67, %s69
    %p76 = scmp.eq.s32.totalorder %s17, 1
    %p77 = por %p75, %p76
    %p78 = scmp.ne.s32.totalorder %s69, %s70
    %p79 = scmp.eq.s32.totalorder %s17, 0
    %p80 = por %p78, %p79
    %p81 = scmp.ne.s32.totalorder %s69, %s70
    %p82 = scmp.eq.s32.totalorder %s18, 1
    %p83 = por %p81, %p82
    %p85 = scmp.ne.s32.totalorder %s70, %s84
    %p86 = scmp.eq.s32.totalorder %s18, 0
    %p87 = por %p85, %p86
    %s89 = sadd.s32 %s88, 1
    %p92 = scmp.eq.s32.totalorder %s12, 1
    %p93 = scmp.ne.s32.totalorder %s88, %s90
    %p94 = scmp.eq.s32.totalorder %s12, 0
    %p95 = por %p93, %p94
    %p96 = scmp.ne.s32.totalorder %s88, %s90
    %p97 = scmp.eq.s32.totalorder %s17, 1
    %p98 = por %p96, %p97
    %p99 = scmp.ne.s32.totalorder %s90, %s91
    %p100 = scmp.eq.s32.totalorder %s17, 0
    %p101 = por %p99, %p100
    %p102 = scmp.ne.s32.totalorder %s90, %s91
    %p103 = scmp.eq.s32.totalorder %s18, 1
    %p104 = por %p102, %p103
    %p106 = scmp.ne.s32.totalorder %s91, %s105
    %p107 = scmp.eq.s32.totalorder %s18, 0
    %p108 = por %p106, %p107
    %s109 = ssub.s32 %s12, %s19
    %p110 = scmp.eq.s32.totalorder %s109, 0
    %s112 = sadd.s32 %s111, 1
    %s113 = scalar_select %p110, %s111, %s112
    %p116 = pneg %p110
    %p117 = scmp.eq.s32.totalorder %s12, 1
    %p118 = por %p116, %p117
    %p119 = scmp.ne.s32.totalorder %s111, %s114
    %p120 = scmp.eq.s32.totalorder %s12, 0
    %p121 = por %p119, %p120
    %p122 = scmp.ne.s32.totalorder %s111, %s114
    %p123 = scmp.eq.s32.totalorder %s17, 1
    %p124 = por %p122, %p123
    %p125 = scmp.ne.s32.totalorder %s114, %s115
    %p126 = scmp.eq.s32.totalorder %s17, 0
    %p127 = por %p125, %p126
    %p128 = scmp.ne.s32.totalorder %s114, %s115
    %p129 = scmp.eq.s32.totalorder %s18, 1
    %p130 = por %p128, %p129
    %p132 = scmp.ne.s32.totalorder %s115, %s131
    %p133 = scmp.eq.s32.totalorder %s18, 0
    %p134 = por %p132, %p133
    %s135 = ssub.s32 %s12, %s19
    %p136 = scmp.eq.s32.totalorder %s135, 0
    %s138 = sadd.s32 %s137, 1
    %s139 = scalar_select %p136, %s137, %s138
    %p142 = pneg %p136
    %p143 = scmp.eq.s32.totalorder %s12, 1
    %p144 = por %p142, %p143
    %p145 = scmp.ne.s32.totalorder %s137, %s140
    %p146 = scmp.eq.s32.totalorder %s12, 0
    %p147 = por %p145, %p146
    %p148 = scmp.ne.s32.totalorder %s137, %s140
    %p149 = scmp.eq.s32.totalorder %s17, 1
    %p150 = por %p148, %p149
    %p151 = scmp.ne.s32.totalorder %s140, %s141
    %p152 = scmp.eq.s32.totalorder %s17, 0
    %p153 = por %p151, %p152
    %p154 = scmp.ne.s32.totalorder %s140, %s141
    %p155 = scmp.eq.s32.totalorder %s18, 1
    %p156 = por %p154, %p155
    %p158 = scmp.ne.s32.totalorder %s141, %s157
    %p159 = scmp.eq.s32.totalorder %s18, 0
    %p160 = por %p158, %p159
    %p161 = scmp.le.s32.totalorder 1, %s12
    %p162 = scmp.lt.s32.totalorder %s12, 3
    %p163 = pnand %p161, %p162
    %p164 = pneg %p163
    // Predicated region
    $region9: #{residual_block_pallas.4} parent=5 // pred_check
      _
    $region10: #{residual_block_pallas.4} parent=5 // pred_check_branch
      %166 = sbr.rel (%p163) target = $region12
    $region11: #{residual_block_pallas.4} parent=5 // pred_region
      %s167 = ssub.s32 %s12, 1
      // Predicated region
      $region13: #{residual_block_pallas.4} parent=11 // pred_check
        %p168 = pneg %p59
      $region14: #{residual_block_pallas.4} parent=11 // pred_check_branch
        %170 = sbr.rel (%p168) target = $region16
      $region15: #{residual_block_pallas.4} parent=11 // pred_region
        _
      $region16: #{residual_block_pallas.4} parent=11 // pred_fallthru
        _
      // Predicated region
      $region17: #{residual_block_pallas.4} parent=11 // pred_check
        %p171 = pneg %p80
      $region18: #{residual_block_pallas.4} parent=11 // pred_check_branch
        %173 = sbr.rel (%p171) target = $region20
      $region19: #{residual_block_pallas.4} parent=11 // pred_region
        _
      $region20: #{residual_block_pallas.4} parent=11 // pred_fallthru
        _
      // Predicated region
      $region21: #{residual_block_pallas.4} parent=11 // pred_check
        %p174 = pneg %p101
      $region22: #{residual_block_pallas.4} parent=11 // pred_check_branch
        %176 = sbr.rel (%p174) target = $region24
      $region23: #{residual_block_pallas.4} parent=11 // pred_region
        _
      $region24: #{residual_block_pallas.4} parent=11 // pred_fallthru
        _
    $region12: #{residual_block_pallas.4} parent=5 // pred_fallthru
      _
    %p177 = scmp.lt.s32.totalorder %s12, 2
    // Predicated region
    $region25: #{residual_block_pallas.4} parent=5 // pred_check
      %p178 = pneg %p177
    $region26: #{residual_block_pallas.4} parent=5 // pred_check_branch
      %180 = sbr.rel (%p178) target = $region28
    $region27: #{residual_block_pallas.4} parent=5 // pred_region
      // Predicated region
      $region29: #{residual_block_pallas.4} parent=27 // pred_check
        %p181 = pneg %p32
      $region30: #{residual_block_pallas.4} parent=27 // pred_check_branch
        %183 = sbr.rel (%p181) target = $region32
      $region31: #{residual_block_pallas.4} parent=27 // pred_region
        %p184 = scmp.lt.s32.totalorder %s12, 1
        %s185 = scalar_select %p184, %s12, 1
        %s186 = smul.addr %s185, 32
        %s187 = smul.addr %s186, 8
        %s188 = scalar_lea.vmem %s0, %s187
      $region32: #{residual_block_pallas.4} parent=27 // pred_fallthru
        _
    $region28: #{residual_block_pallas.4} parent=5 // pred_fallthru
      _
    %p189 = scmp.le.s32.totalorder 1, %s12
    %p190 = scmp.lt.s32.totalorder %s12, 3
    %p191 = pnand %p189, %p190
    %p192 = pneg %p191
    // Predicated region
    $region33: #{residual_block_pallas.4} parent=5 // pred_check
      _
    $region34: #{residual_block_pallas.4} parent=5 // pred_check_branch
      %194 = sbr.rel (%p191) target = $region36
    $region35: #{residual_block_pallas.4} parent=5 // pred_region
      %s195 = ssub.s32 %s12, 1
      %p196 = scmp.lt.s32.totalorder %s17, 1
      %s197 = scalar_select %p196, %s17, 1
      %s198 = smul.addr %s197, 32
      %s199 = smul.addr %s198, 8
      %s200 = scalar_lea.vmem %s0, %s199
      %p201 = pneg %p38
      %p202 = pneg %p35
      %p203 = pneg %p59
      %p204 = pneg %p56
      %p205 = pneg %p80
      %p206 = pneg %p77
      %p207 = pneg %p101
      %p208 = pneg %p98
      %p209 = pneg %p127
      %p210 = pneg %p124
      %p211 = scmp.lt.s32.totalorder %s17, 1
      %s212 = scalar_select %p211, %s17, 1
      %s213 = smul.addr %s212, 32
      %s214 = smul.addr %s213, 8
      %s215 = scalar_lea.vmem %s4, %s214
      %p216 = pneg %p153
      %p217 = pneg %p150
      %p218 = scmp.lt.s32.totalorder %s17, 1
      %s219 = scalar_select %p218, %s17, 1
      %s220 = smul.addr %s219, 2
      %s221 = scalar_lea.vmem %s5, %s220
      %p222 = scmp.lt.s32.totalorder %s17, 1
      %s223 = scalar_select %p222, %s17, 1
      %s224 = smul.addr %s223, 32
      %s225 = smul.addr %s224, 8
      %s226 = scalar_lea.vmem %s0, %s225
      %p227 = scmp.lt.s32.totalorder %s17, 1
      %s228 = scalar_select %p227, %s17, 1
      %s229 = smul.addr %s228, 32
      %s230 = smul.addr %s229, 8
      %s231 = scalar_lea.vmem %s4, %s230
      %p232 = scmp.lt.s32.totalorder %s17, 1
      %s233 = scalar_select %p232, %s17, 1
      %s234 = smul.addr %s233, 2
      %s235 = scalar_lea.vmem %s5, %s234
      %vm237 = vcmask 60416
      %238 = vst.msk [vmem:[#allocation2] sm:$0xf] %vm237, 0
      %239 = vst.msk [vmem:[#allocation2 + $0x4] sm:$0xf] %vm237, 0
      %vm240 = vcmask 57344
      %241 = vst.msk [vmem:[#allocation2 + $0x8] sm:$0x1] %vm240, 0
      %s242 = scalar_lea.vmem [#allocation2], 204
      %243 = vst.msk [vmem:[%s242] sm:$0xf] %vm237, 0
      %244 = vst.msk [vmem:[%s242 + $0x4] sm:$0xf] %vm237, 0
      %245 = vst.msk [vmem:[%s242 + $0x8] sm:$0x1] %vm240, 0
      %vm246 = vcmask 57344
      %vm247 = vsmask.f32 256
      %vm248 = vmand %vm246, %vm247
      %v249 = vld [vmem:[#allocation2] sm:$0x1]
      %v250 = vsel %vm248, 0, %v249
      %251 = vst [vmem:[#allocation2] sm:$0x1] %v250
      %v252 = vld [vmem:[#allocation2 + $0xc] sm:$0x1]
      %v253 = vsel %vm248, 0, %v252
      %254 = vst [vmem:[#allocation2 + $0xc] sm:$0x1] %v253
      %v255 = vld [vmem:[#allocation2 + $0x18] sm:$0x1]
      %v256 = vsel %vm248, 0, %v255
      %257 = vst [vmem:[#allocation2 + $0x18] sm:$0x1] %v256
      %v258 = vld [vmem:[#allocation2 + $0x24] sm:$0x1]
      %v259 = vsel %vm248, 0, %v258
      %260 = vst [vmem:[#allocation2 + $0x24] sm:$0x1] %v259
      %v261 = vld [vmem:[#allocation2 + $0x30] sm:$0x1]
      %v262 = vsel %vm248, 0, %v261
      %263 = vst [vmem:[#allocation2 + $0x30] sm:$0x1] %v262
      %v264 = vld [vmem:[#allocation2 + $0x3c] sm:$0x1]
      %v265 = vsel %vm248, 0, %v264
      %266 = vst [vmem:[#allocation2 + $0x3c] sm:$0x1] %v265
      %v267 = vld [vmem:[#allocation2 + $0x48] sm:$0x1]
      %v268 = vsel %vm248, 0, %v267
      %269 = vst [vmem:[#allocation2 + $0x48] sm:$0x1] %v268
      %v270 = vld [vmem:[#allocation2 + $0x54] sm:$0x1]
      %v271 = vsel %vm248, 0, %v270
      %272 = vst [vmem:[#allocation2 + $0x54] sm:$0x1] %v271
      %v273 = vld [vmem:[#allocation2 + $0x60] sm:$0x1]
      %v274 = vsel %vm248, 0, %v273
      %275 = vst [vmem:[#allocation2 + $0x60] sm:$0x1] %v274
      %v276 = vld [vmem:[#allocation2 + $0x6c] sm:$0x1]
      %v277 = vsel %vm248, 0, %v276
      %278 = vst [vmem:[#allocation2 + $0x6c] sm:$0x1] %v277
      %v279 = vld [vmem:[#allocation2 + $0x78] sm:$0x1]
      %v280 = vsel %vm248, 0, %v279
      %281 = vst [vmem:[#allocation2 + $0x78] sm:$0x1] %v280
      %v282 = vld [vmem:[#allocation2 + $0x84] sm:$0x1]
      %v283 = vsel %vm248, 0, %v282
      %284 = vst [vmem:[#allocation2 + $0x84] sm:$0x1] %v283
      %v285 = vld [vmem:[#allocation2 + $0x90] sm:$0x1]
      %v286 = vsel %vm248, 0, %v285
      %287 = vst [vmem:[#allocation2 + $0x90] sm:$0x1] %v286
      %v288 = vld [vmem:[#allocation2 + $0x9c] sm:$0x1]
      %v289 = vsel %vm248, 0, %v288
      %290 = vst [vmem:[#allocation2 + $0x9c] sm:$0x1] %v289
      %v291 = vld [vmem:[#allocation2 + $0xa8] sm:$0x1]
      %v292 = vsel %vm248, 0, %v291
      %293 = vst [vmem:[#allocation2 + $0xa8] sm:$0x1] %v292
      %v294 = vld [vmem:[#allocation2 + $0xb4] sm:$0x1]
      %v295 = vsel %vm248, 0, %v294
      %296 = vst [vmem:[#allocation2 + $0xb4] sm:$0x1] %v295
      %v297 = vld [vmem:[#allocation2 + $0xc0] sm:$0x1]
      %v298 = vsel %vm248, 0, %v297
      %299 = vst [vmem:[#allocation2 + $0xc0] sm:$0x1] %v298
      %v300 = vld [vmem:[#allocation2 + $0xcc] sm:$0x1]
      %v301 = vsel %vm248, 0, %v300
      %302 = vst [vmem:[#allocation2 + $0xcc] sm:$0x1] %v301
      %vm303 = vsmask.f32 7938
      %vm304 = vmand %vm246, %vm303
      %v305 = vld [vmem:[#allocation2 + $0x8] sm:$0x1]
      %v306 = vsel %vm304, 0, %v305
      %307 = vst [vmem:[#allocation2 + $0x8] sm:$0x1] %v306
      %v308 = vld [vmem:[#allocation2 + $0x14] sm:$0x1]
      %v309 = vsel %vm304, 0, %v308
      %310 = vst [vmem:[#allocation2 + $0x14] sm:$0x1] %v309
      %v311 = vld [vmem:[#allocation2 + $0x20] sm:$0x1]
      %v312 = vsel %vm304, 0, %v311
      %313 = vst [vmem:[#allocation2 + $0x20] sm:$0x1] %v312
      %v314 = vld [vmem:[#allocation2 + $0x2c] sm:$0x1]
      %v315 = vsel %vm304, 0, %v314
      %316 = vst [vmem:[#allocation2 + $0x2c] sm:$0x1] %v315
      %v317 = vld [vmem:[#allocation2 + $0x38] sm:$0x1]
      %v318 = vsel %vm304, 0, %v317
      %319 = vst [vmem:[#allocation2 + $0x38] sm:$0x1] %v318
      %v320 = vld [vmem:[#allocation2 + $0x44] sm:$0x1]
      %v321 = vsel %vm304, 0, %v320
      %322 = vst [vmem:[#allocation2 + $0x44] sm:$0x1] %v321
      %v323 = vld [vmem:[#allocation2 + $0x50] sm:$0x1]
      %v324 = vsel %vm304, 0, %v323
      %325 = vst [vmem:[#allocation2 + $0x50] sm:$0x1] %v324
      %v326 = vld [vmem:[#allocation2 + $0x5c] sm:$0x1]
      %v327 = vsel %vm304, 0, %v326
      %328 = vst [vmem:[#allocation2 + $0x5c] sm:$0x1] %v327
      %v329 = vld [vmem:[#allocation2 + $0x68] sm:$0x1]
      %v330 = vsel %vm304, 0, %v329
      %331 = vst [vmem:[#allocation2 + $0x68] sm:$0x1] %v330
      %v332 = vld [vmem:[#allocation2 + $0x74] sm:$0x1]
      %v333 = vsel %vm304, 0, %v332
      %334 = vst [vmem:[#allocation2 + $0x74] sm:$0x1] %v333
      %v335 = vld [vmem:[#allocation2 + $0x80] sm:$0x1]
      %v336 = vsel %vm304, 0, %v335
      %337 = vst [vmem:[#allocation2 + $0x80] sm:$0x1] %v336
      %v338 = vld [vmem:[#allocation2 + $0x8c] sm:$0x1]
      %v339 = vsel %vm304, 0, %v338
      %340 = vst [vmem:[#allocation2 + $0x8c] sm:$0x1] %v339
      %v341 = vld [vmem:[#allocation2 + $0x98] sm:$0x1]
      %v342 = vsel %vm304, 0, %v341
      %343 = vst [vmem:[#allocation2 + $0x98] sm:$0x1] %v342
      %v344 = vld [vmem:[#allocation2 + $0xa4] sm:$0x1]
      %v345 = vsel %vm304, 0, %v344
      %346 = vst [vmem:[#allocation2 + $0xa4] sm:$0x1] %v345
      %v347 = vld [vmem:[#allocation2 + $0xb0] sm:$0x1]
      %v348 = vsel %vm304, 0, %v347
      %349 = vst [vmem:[#allocation2 + $0xb0] sm:$0x1] %v348
      %v350 = vld [vmem:[#allocation2 + $0xbc] sm:$0x1]
      %v351 = vsel %vm304, 0, %v350
      %352 = vst [vmem:[#allocation2 + $0xbc] sm:$0x1] %v351
      %v353 = vld [vmem:[#allocation2 + $0xc8] sm:$0x1]
      %v354 = vsel %vm304, 0, %v353
      %355 = vst [vmem:[#allocation2 + $0xc8] sm:$0x1] %v354
      %v356 = vld [vmem:[#allocation2 + $0xd4] sm:$0x1]
      %v357 = vsel %vm304, 0, %v356
      %358 = vst [vmem:[#allocation2 + $0xd4] sm:$0x1] %v357
      %v359 = vld [vmem:[%s1] sm:$0x1]
      %v360 = vld [vmem:[%s2] sm:$0x1]
      %v361 = vld [vmem:[%s226] sm:$0xff]
      %v362 = vld [vmem:[%s226 + $0x8] sm:$0xff]
      %v363 = vld [vmem:[%s226 + $0x10] sm:$0xff]
      %v364 = vld [vmem:[%s226 + $0x18] sm:$0xff]
      %v365 = vld [vmem:[%s226 + $0x20] sm:$0xff]
      %v366 = vld [vmem:[%s226 + $0x28] sm:$0xff]
      %v367 = vld [vmem:[%s226 + $0x30] sm:$0xff]
      %v368 = vld [vmem:[%s226 + $0x38] sm:$0xff]
      %v369 = vld [vmem:[%s226 + $0x40] sm:$0xff]
      %v370 = vld [vmem:[%s226 + $0x48] sm:$0xff]
      %v371 = vld [vmem:[%s226 + $0x50] sm:$0xff]
      %v372 = vld [vmem:[%s226 + $0x58] sm:$0xff]
      %v373 = vld [vmem:[%s226 + $0x60] sm:$0xff]
      %v374 = vld [vmem:[%s226 + $0x68] sm:$0xff]
      %v375 = vld [vmem:[%s226 + $0x70] sm:$0xff]
      %v376 = vld [vmem:[%s226 + $0x78] sm:$0xff]
      %v377 = vld [vmem:[%s226 + $0x80] sm:$0xff]
      %v378 = vld [vmem:[%s226 + $0x88] sm:$0xff]
      %v379 = vld [vmem:[%s226 + $0x90] sm:$0xff]
      %v380 = vld [vmem:[%s226 + $0x98] sm:$0xff]
      %v381 = vld [vmem:[%s226 + $0xa0] sm:$0xff]
      %v382 = vld [vmem:[%s226 + $0xa8] sm:$0xff]
      %v383 = vld [vmem:[%s226 + $0xb0] sm:$0xff]
      %v384 = vld [vmem:[%s226 + $0xb8] sm:$0xff]
      %v385 = vld [vmem:[%s226 + $0xc0] sm:$0xff]
      %v386 = vld [vmem:[%s226 + $0xc8] sm:$0xff]
      %v387 = vld [vmem:[%s226 + $0xd0] sm:$0xff]
      %v388 = vld [vmem:[%s226 + $0xd8] sm:$0xff]
      %v389 = vld [vmem:[%s226 + $0xe0] sm:$0xff]
      %v390 = vld [vmem:[%s226 + $0xe8] sm:$0xff]
      %v391 = vld [vmem:[%s226 + $0xf0] sm:$0xff]
      %v392 = vld [vmem:[%s226 + $0xf8] sm:$0xff]
      %v394 = vlaneseq
      %v395 = vshrl.u32 %v394, 7
      %v396 = vsub.s32 0, %v395
      %v397 = vrot.slane %v359, %v396
      %v399 = vmul.f32 %v361, %v397
      %v400 = vmul.f32 %v362, %v397
      %v401 = vmul.f32 %v363, %v397
      %v402 = vmul.f32 %v364, %v397
      %v403 = vmul.f32 %v365, %v397
      %v404 = vmul.f32 %v366, %v397
      %v405 = vmul.f32 %v367, %v397
      %v406 = vmul.f32 %v368, %v397
      %v407 = vmul.f32 %v369, %v397
      %v408 = vmul.f32 %v370, %v397
      %v409 = vmul.f32 %v371, %v397
      %v410 = vmul.f32 %v372, %v397
      %v411 = vmul.f32 %v373, %v397
      %v412 = vmul.f32 %v374, %v397
      %v413 = vmul.f32 %v375, %v397
      %v414 = vmul.f32 %v376, %v397
      %v415 = vmul.f32 %v377, %v397
      %v416 = vmul.f32 %v378, %v397
      %v417 = vmul.f32 %v379, %v397
      %v418 = vmul.f32 %v380, %v397
      %v419 = vmul.f32 %v381, %v397
      %v420 = vmul.f32 %v382, %v397
      %v421 = vmul.f32 %v383, %v397
      %v422 = vmul.f32 %v384, %v397
      %v423 = vmul.f32 %v385, %v397
      %v424 = vmul.f32 %v386, %v397
      %v425 = vmul.f32 %v387, %v397
      %v426 = vmul.f32 %v388, %v397
      %v427 = vmul.f32 %v389, %v397
      %v428 = vmul.f32 %v390, %v397
      %v429 = vmul.f32 %v391, %v397
      %v430 = vmul.f32 %v392, %v397
      %v432 = vlaneseq
      %v433 = vshrl.u32 %v432, 7
      %v434 = vsub.s32 0, %v433
      %v435 = vrot.slane %v360, %v434
      %v437 = vadd.f32 %v399, %v435
      %v438 = vadd.f32 %v400, %v435
      %v439 = vadd.f32 %v401, %v435
      %v440 = vadd.f32 %v402, %v435
      %v441 = vadd.f32 %v403, %v435
      %v442 = vadd.f32 %v404, %v435
      %v443 = vadd.f32 %v405, %v435
      %v444 = vadd.f32 %v406, %v435
      %v445 = vadd.f32 %v407, %v435
      %v446 = vadd.f32 %v408, %v435
      %v447 = vadd.f32 %v409, %v435
      %v448 = vadd.f32 %v410, %v435
      %v449 = vadd.f32 %v411, %v435
      %v450 = vadd.f32 %v412, %v435
      %v451 = vadd.f32 %v413, %v435
      %v452 = vadd.f32 %v414, %v435
      %v453 = vadd.f32 %v415, %v435
      %v454 = vadd.f32 %v416, %v435
      %v455 = vadd.f32 %v417, %v435
      %v456 = vadd.f32 %v418, %v435
      %v457 = vadd.f32 %v419, %v435
      %v458 = vadd.f32 %v420, %v435
      %v459 = vadd.f32 %v421, %v435
      %v460 = vadd.f32 %v422, %v435
      %v461 = vadd.f32 %v423, %v435
      %v462 = vadd.f32 %v424, %v435
      %v463 = vadd.f32 %v425, %v435
      %v464 = vadd.f32 %v426, %v435
      %v465 = vadd.f32 %v427, %v435
      %v466 = vadd.f32 %v428, %v435
      %v467 = vadd.f32 %v429, %v435
      %v468 = vadd.f32 %v430, %v435
      %v469 = vmax.f32 %v437, 0.0
      %v470 = vmax.f32 %v438, 0.0
      %v471 = vmax.f32 %v439, 0.0
      %v472 = vmax.f32 %v440, 0.0
      %v473 = vmax.f32 %v441, 0.0
      %v474 = vmax.f32 %v442, 0.0
      %v475 = vmax.f32 %v443, 0.0
      %v476 = vmax.f32 %v444, 0.0
      %v477 = vmax.f32 %v445, 0.0
      %v478 = vmax.f32 %v446, 0.0
      %v479 = vmax.f32 %v447, 0.0
      %v480 = vmax.f32 %v448, 0.0
      %v481 = vmax.f32 %v449, 0.0
      %v482 = vmax.f32 %v450, 0.0
      %v483 = vmax.f32 %v451, 0.0
      %v484 = vmax.f32 %v452, 0.0
      %v485 = vmax.f32 %v453, 0.0
      %v486 = vmax.f32 %v454, 0.0
      %v487 = vmax.f32 %v455, 0.0
      %v488 = vmax.f32 %v456, 0.0
      %v489 = vmax.f32 %v457, 0.0
      %v490 = vmax.f32 %v458, 0.0
      %v491 = vmax.f32 %v459, 0.0
      %v492 = vmax.f32 %v460, 0.0
      %v493 = vmax.f32 %v461, 0.0
      %v494 = vmax.f32 %v462, 0.0
      %v495 = vmax.f32 %v463, 0.0
      %v496 = vmax.f32 %v464, 0.0
      %v497 = vmax.f32 %v465, 0.0
      %v498 = vmax.f32 %v466, 0.0
      %v499 = vmax.f32 %v467, 0.0
      %v500 = vmax.f32 %v468, 0.0
      %v501 = vpack.c.bf16 %v470, %v469
      %v502 = vpack.c.bf16 %v472, %v471
      %v503 = vpack.c.bf16 %v474, %v473
      %v504 = vpack.c.bf16 %v476, %v475
      %v505 = vpack.c.bf16 %v478, %v477
      %v506 = vpack.c.bf16 %v480, %v479
      %v507 = vpack.c.bf16 %v482, %v481
      %v508 = vpack.c.bf16 %v484, %v483
      %v509 = vpack.c.bf16 %v486, %v485
      %v510 = vpack.c.bf16 %v488, %v487
      %v511 = vpack.c.bf16 %v490, %v489
      %v512 = vpack.c.bf16 %v492, %v491
      %v513 = vpack.c.bf16 %v494, %v493
      %v514 = vpack.c.bf16 %v496, %v495
      %v515 = vpack.c.bf16 %v498, %v497
      %v516 = vpack.c.bf16 %v500, %v499
      %v533 = vunpack.c.l.b16 %v501
      %v534 = vunpack.c.h.b16 %v501
      %v535 = vunpack.c.l.b16 %v502
      %v536 = vunpack.c.h.b16 %v502
      %v537 = vunpack.c.l.b16 %v503
      %v538 = vunpack.c.h.b16 %v503
      %v539 = vunpack.c.l.b16 %v504
      %v540 = vunpack.c.h.b16 %v504
      %v541 = vunpack.c.l.b16 %v505
      %v542 = vunpack.c.h.b16 %v505
      %v543 = vunpack.c.l.b16 %v506
      %v544 = vunpack.c.h.b16 %v506
      %v545 = vunpack.c.l.b16 %v507
      %v546 = vunpack.c.h.b16 %v507
      %v547 = vunpack.c.l.b16 %v508
      %v548 = vunpack.c.h.b16 %v508
      %v549 = vunpack.c.l.b16 %v509
      %v550 = vunpack.c.h.b16 %v509
      %v551 = vunpack.c.l.b16 %v510
      %v552 = vunpack.c.h.b16 %v510
      %v553 = vunpack.c.l.b16 %v511
      %v554 = vunpack.c.h.b16 %v511
      %v555 = vunpack.c.l.b16 %v512
      %v556 = vunpack.c.h.b16 %v512
      %v557 = vunpack.c.l.b16 %v513
      %v558 = vunpack.c.h.b16 %v513
      %v559 = vunpack.c.l.b16 %v514
      %v560 = vunpack.c.h.b16 %v514
      %v561 = vunpack.c.l.b16 %v515
      %v562 = vunpack.c.h.b16 %v515
      %v563 = vunpack.c.l.b16 %v516
      %v564 = vunpack.c.h.b16 %v516
      %v565 = vpack.c.b16 %v533, %v533
      %v566 = vpack.c.b16 %v534, %v534
      %v567 = vpack.c.b16 %v535, %v535
      %v568 = vpack.c.b16 %v536, %v536
      %v569 = vpack.c.b16 %v537, %v537
      %v570 = vpack.c.b16 %v538, %v538
      %v571 = vpack.c.b16 %v539, %v539
      %v572 = vpack.c.b16 %v540, %v540
      %v573 = vpack.c.b16 %v541, %v541
      %v574 = vpack.c.b16 %v542, %v542
      %v575 = vpack.c.b16 %v543, %v543
      %v576 = vpack.c.b16 %v544, %v544
      %v577 = vpack.c.b16 %v545, %v545
      %v578 = vpack.c.b16 %v546, %v546
      %v579 = vpack.c.b16 %v547, %v547
      %v580 = vpack.c.b16 %v548, %v548
      %v581 = vpack.c.b16 %v549, %v549
      %v582 = vpack.c.b16 %v550, %v550
      %v583 = vpack.c.b16 %v551, %v551
      %v584 = vpack.c.b16 %v552, %v552
      %v585 = vpack.c.b16 %v553, %v553
      %v586 = vpack.c.b16 %v554, %v554
      %v587 = vpack.c.b16 %v555, %v555
      %v588 = vpack.c.b16 %v556, %v556
      %v589 = vpack.c.b16 %v557, %v557
      %v590 = vpack.c.b16 %v558, %v558
      %v591 = vpack.c.b16 %v559, %v559
      %v592 = vpack.c.b16 %v560, %v560
      %v593 = vpack.c.b16 %v561, %v561
      %v594 = vpack.c.b16 %v562, %v562
      %v595 = vpack.c.b16 %v563, %v563
      %v596 = vpack.c.b16 %v564, %v564
      %vm597 = vsmask.f32 4368
      %vm598 = vmor %vm247, %vm597
      %v600 = vshrl.u32 %v565, 16
      %v602 = vrot.slane %v600, 7
      %v603 = vshll.u32 %v565, 16
      %v605 = vor.u32 %v602, %v603
      %v606 = vrot.slane %v602, 4
      %v608 = vshrl.u32 %v566, 16
      %v610 = vrot.slane %v608, 7
      %v611 = vshll.u32 %v566, 16
      %v613 = vor.u32 %v610, %v611
      %v614 = vsel %vm598, %v606, %v613
      %v615 = vrot.slane %v610, 4
      %v617 = vshrl.u32 %v567, 16
      %v619 = vrot.slane %v617, 7
      %v620 = vshll.u32 %v567, 16
      %v622 = vor.u32 %v619, %v620
      %v623 = vrot.slane %v619, 4
      %v625 = vshrl.u32 %v568, 16
      %v627 = vrot.slane %v625, 7
      %v628 = vshll.u32 %v568, 16
      %v630 = vor.u32 %v627, %v628
      %v631 = vsel %vm598, %v623, %v630
      %v632 = vrot.slane %v627, 4
      %v634 = vshrl.u32 %v569, 16
      %v636 = vrot.slane %v634, 7
      %v637 = vshll.u32 %v569, 16
      %v639 = vor.u32 %v636, %v637
      %v640 = vrot.slane %v636, 4
      %v642 = vshrl.u32 %v570, 16
      %v644 = vrot.slane %v642, 7
      %v645 = vshll.u32 %v570, 16
      %v647 = vor.u32 %v644, %v645
      %v648 = vsel %vm598, %v640, %v647
      %v649 = vrot.slane %v644, 4
      %v651 = vshrl.u32 %v571, 16
      %v653 = vrot.slane %v651, 7
      %v654 = vshll.u32 %v571, 16
      %v656 = vor.u32 %v653, %v654
      %v657 = vrot.slane %v653, 4
      %v659 = vshrl.u32 %v572, 16
      %v661 = vrot.slane %v659, 7
      %v662 = vshll.u32 %v572, 16
      %v664 = vor.u32 %v661, %v662
      %v665 = vsel %vm598, %v657, %v664
      %v666 = vrot.slane %v661, 4
      %v668 = vshrl.u32 %v573, 16
      %v670 = vrot.slane %v668, 7
      %v671 = vshll.u32 %v573, 16
      %v673 = vor.u32 %v670, %v671
      %v674 = vrot.slane %v670, 4
      %v676 = vshrl.u32 %v574, 16
      %v678 = vrot.slane %v676, 7
      %v679 = vshll.u32 %v574, 16
      %v681 = vor.u32 %v678, %v679
      %v682 = vsel %vm598, %v674, %v681
      %v683 = vrot.slane %v678, 4
      %v685 = vshrl.u32 %v575, 16
      %v687 = vrot.slane %v685, 7
      %v688 = vshll.u32 %v575, 16
      %v690 = vor.u32 %v687, %v688
      %v691 = vrot.slane %v687, 4
      %v693 = vshrl.u32 %v576, 16
      %v695 = vrot.slane %v693, 7
      %v696 = vshll.u32 %v576, 16
      %v698 = vor.u32 %v695, %v696
      %v699 = vsel %vm598, %v691, %v698
      %v700 = vrot.slane %v695, 4
      %v702 = vshrl.u32 %v577, 16
      %v704 = vrot.slane %v702, 7
      %v705 = vshll.u32 %v577, 16
      %v707 = vor.u32 %v704, %v705
      %v708 = vrot.slane %v704, 4
      %v710 = vshrl.u32 %v578, 16
      %v712 = vrot.slane %v710, 7
      %v713 = vshll.u32 %v578, 16
      %v715 = vor.u32 %v712, %v713
      %v716 = vsel %vm598, %v708, %v715
      %v717 = vrot.slane %v712, 4
      %v719 = vshrl.u32 %v579, 16
      %v721 = vrot.slane %v719, 7
      %v722 = vshll.u32 %v579, 16
      %v724 = vor.u32 %v721, %v722
      %v725 = vrot.slane %v721, 4
      %v727 = vshrl.u32 %v580, 16
      %v729 = vrot.slane %v727, 7
      %v730 = vshll.u32 %v580, 16
      %v732 = vor.u32 %v729, %v730
      %v733 = vsel %vm598, %v725, %v732
      %v734 = vrot.slane %v729, 4
      %v736 = vshrl.u32 %v581, 16
      %v738 = vrot.slane %v736, 7
      %v739 = vshll.u32 %v581, 16
      %v741 = vor.u32 %v738, %v739
      %v742 = vrot.slane %v738, 4
      %v744 = vshrl.u32 %v582, 16
      %v746 = vrot.slane %v744, 7
      %v747 = vshll.u32 %v582, 16
      %v749 = vor.u32 %v746, %v747
      %v750 = vsel %vm598, %v742, %v749
      %v751 = vrot.slane %v746, 4
      %v753 = vshrl.u32 %v583, 16
      %v755 = vrot.slane %v753, 7
      %v756 = vshll.u32 %v583, 16
      %v758 = vor.u32 %v755, %v756
      %v759 = vrot.slane %v755, 4
      %v761 = vshrl.u32 %v584, 16
      %v763 = vrot.slane %v761, 7
      %v764 = vshll.u32 %v584, 16
      %v766 = vor.u32 %v763, %v764
      %v767 = vsel %vm598, %v759, %v766
      %v768 = vrot.slane %v763, 4
      %v770 = vshrl.u32 %v585, 16
      %v772 = vrot.slane %v770, 7
      %v773 = vshll.u32 %v585, 16
      %v775 = vor.u32 %v772, %v773
      %v776 = vrot.slane %v772, 4
      %v778 = vshrl.u32 %v586, 16
      %v780 = vrot.slane %v778, 7
      %v781 = vshll.u32 %v586, 16
      %v783 = vor.u32 %v780, %v781
      %v784 = vsel %vm598, %v776, %v783
      %v785 = vrot.slane %v780, 4
      %v787 = vshrl.u32 %v587, 16
      %v789 = vrot.slane %v787, 7
      %v790 = vshll.u32 %v587, 16
      %v792 = vor.u32 %v789, %v790
      %v793 = vrot.slane %v789, 4
      %v795 = vshrl.u32 %v588, 16
      %v797 = vrot.slane %v795, 7
      %v798 = vshll.u32 %v588, 16
      %v800 = vor.u32 %v797, %v798
      %v801 = vsel %vm598, %v793, %v800
      %v802 = vrot.slane %v797, 4
      %v804 = vshrl.u32 %v589, 16
      %v806 = vrot.slane %v804, 7
      %v807 = vshll.u32 %v589, 16
      %v809 = vor.u32 %v806, %v807
      %v810 = vrot.slane %v806, 4
      %v812 = vshrl.u32 %v590, 16
      %v814 = vrot.slane %v812, 7
      %v815 = vshll.u32 %v590, 16
      %v817 = vor.u32 %v814, %v815
      %v818 = vsel %vm598, %v810, %v817
      %v819 = vrot.slane %v814, 4
      %v821 = vshrl.u32 %v591, 16
      %v823 = vrot.slane %v821, 7
      %v824 = vshll.u32 %v591, 16
      %v826 = vor.u32 %v823, %v824
      %v827 = vrot.slane %v823, 4
      %v829 = vshrl.u32 %v592, 16
      %v831 = vrot.slane %v829, 7
      %v832 = vshll.u32 %v592, 16
      %v834 = vor.u32 %v831, %v832
      %v835 = vsel %vm598, %v827, %v834
      %v836 = vrot.slane %v831, 4
      %v838 = vshrl.u32 %v593, 16
      %v840 = vrot.slane %v838, 7
      %v841 = vshll.u32 %v593, 16
      %v843 = vor.u32 %v840, %v841
      %v844 = vrot.slane %v840, 4
      %v846 = vshrl.u32 %v594, 16
      %v848 = vrot.slane %v846, 7
      %v849 = vshll.u32 %v594, 16
      %v851 = vor.u32 %v848, %v849
      %v852 = vsel %vm598, %v844, %v851
      %v853 = vrot.slane %v848, 4
      %v855 = vshrl.u32 %v595, 16
      %v857 = vrot.slane %v855, 7
      %v858 = vshll.u32 %v595, 16
      %v860 = vor.u32 %v857, %v858
      %v861 = vrot.slane %v857, 4
      %v863 = vshrl.u32 %v596, 16
      %v865 = vrot.slane %v863, 7
      %v866 = vshll.u32 %v596, 16
      %v868 = vor.u32 %v865, %v866
      %v869 = vsel %vm598, %v861, %v868
      %v870 = vrot.slane %v865, 4
      %s919 = scalar_lea.vmem [#allocation2], 12
      %vm920 = vcmask 60416
      %vm921 = vmand %vm920, %vm303
      %v922 = vld [vmem:[%s919] sm:$0xf]
      %v923 = vsel %vm921, %v605, %v922
      %924 = vst [vmem:[%s919] sm:$0xf] %v923
      %925 = vst.msk [vmem:[%s919 + $0x4] sm:$0xf] %vm237, %v614
      %v926 = vld [vmem:[%s919 + $0x8] sm:$0x1]
      %v927 = vsel %vm248, %v615, %v926
      %928 = vst [vmem:[%s919 + $0x8] sm:$0x1] %v927
      %v929 = vld [vmem:[%s919 + $0xc] sm:$0xf]
      %v930 = vsel %vm921, %v622, %v929
      %931 = vst [vmem:[%s919 + $0xc] sm:$0xf] %v930
      %932 = vst.msk [vmem:[%s919 + $0x10] sm:$0xf] %vm237, %v631
      %v933 = vld [vmem:[%s919 + $0x14] sm:$0x1]
      %v934 = vsel %vm248, %v632, %v933
      %935 = vst [vmem:[%s919 + $0x14] sm:$0x1] %v934
      %v936 = vld [vmem:[%s919 + $0x18] sm:$0xf]
      %v937 = vsel %vm921, %v639, %v936
      %938 = vst [vmem:[%s919 + $0x18] sm:$0xf] %v937
      %939 = vst.msk [vmem:[%s919 + $0x1c] sm:$0xf] %vm237, %v648
      %v940 = vld [vmem:[%s919 + $0x20] sm:$0x1]
      %v941 = vsel %vm248, %v649, %v940
      %942 = vst [vmem:[%s919 + $0x20] sm:$0x1] %v941
      %v943 = vld [vmem:[%s919 + $0x24] sm:$0xf]
      %v944 = vsel %vm921, %v656, %v943
      %945 = vst [vmem:[%s919 + $0x24] sm:$0xf] %v944
      %946 = vst.msk [vmem:[%s919 + $0x28] sm:$0xf] %vm237, %v665
      %v947 = vld [vmem:[%s919 + $0x2c] sm:$0x1]
      %v948 = vsel %vm248, %v666, %v947
      %949 = vst [vmem:[%s919 + $0x2c] sm:$0x1] %v948
      %v950 = vld [vmem:[%s919 + $0x30] sm:$0xf]
      %v951 = vsel %vm921, %v673, %v950
      %952 = vst [vmem:[%s919 + $0x30] sm:$0xf] %v951
      %953 = vst.msk [vmem:[%s919 + $0x34] sm:$0xf] %vm237, %v682
      %v954 = vld [vmem:[%s919 + $0x38] sm:$0x1]
      %v955 = vsel %vm248, %v683, %v954
      %956 = vst [vmem:[%s919 + $0x38] sm:$0x1] %v955
      %v957 = vld [vmem:[%s919 + $0x3c] sm:$0xf]
      %v958 = vsel %vm921, %v690, %v957
      %959 = vst [vmem:[%s919 + $0x3c] sm:$0xf] %v958
      %960 = vst.msk [vmem:[%s919 + $0x40] sm:$0xf] %vm237, %v699
      %v961 = vld [vmem:[%s919 + $0x44] sm:$0x1]
      %v962 = vsel %vm248, %v700, %v961
      %963 = vst [vmem:[%s919 + $0x44] sm:$0x1] %v962
      %v964 = vld [vmem:[%s919 + $0x48] sm:$0xf]
      %v965 = vsel %vm921, %v707, %v964
      %966 = vst [vmem:[%s919 + $0x48] sm:$0xf] %v965
      %967 = vst.msk [vmem:[%s919 + $0x4c] sm:$0xf] %vm237, %v716
      %v968 = vld [vmem:[%s919 + $0x50] sm:$0x1]
      %v969 = vsel %vm248, %v717, %v968
      %970 = vst [vmem:[%s919 + $0x50] sm:$0x1] %v969
      %v971 = vld [vmem:[%s919 + $0x54] sm:$0xf]
      %v972 = vsel %vm921, %v724, %v971
      %973 = vst [vmem:[%s919 + $0x54] sm:$0xf] %v972
      %974 = vst.msk [vmem:[%s919 + $0x58] sm:$0xf] %vm237, %v733
      %v975 = vld [vmem:[%s919 + $0x5c] sm:$0x1]
      %v976 = vsel %vm248, %v734, %v975
      %977 = vst [vmem:[%s919 + $0x5c] sm:$0x1] %v976
      %v978 = vld [vmem:[%s919 + $0x60] sm:$0xf]
      %v979 = vsel %vm921, %v741, %v978
      %980 = vst [vmem:[%s919 + $0x60] sm:$0xf] %v979
      %981 = vst.msk [vmem:[%s919 + $0x64] sm:$0xf] %vm237, %v750
      %v982 = vld [vmem:[%s919 + $0x68] sm:$0x1]
      %v983 = vsel %vm248, %v751, %v982
      %984 = vst [vmem:[%s919 + $0x68] sm:$0x1] %v983
      %v985 = vld [vmem:[%s919 + $0x6c] sm:$0xf]
      %v986 = vsel %vm921, %v758, %v985
      %987 = vst [vmem:[%s919 + $0x6c] sm:$0xf] %v986
      %988 = vst.msk [vmem:[%s919 + $0x70] sm:$0xf] %vm237, %v767
      %v989 = vld [vmem:[%s919 + $0x74] sm:$0x1]
      %v990 = vsel %vm248, %v768, %v989
      %991 = vst [vmem:[%s919 + $0x74] sm:$0x1] %v990
      %v992 = vld [vmem:[%s919 + $0x78] sm:$0xf]
      %v993 = vsel %vm921, %v775, %v992
      %994 = vst [vmem:[%s919 + $0x78] sm:$0xf] %v993
      %995 = vst.msk [vmem:[%s919 + $0x7c] sm:$0xf] %vm237, %v784
      %v996 = vld [vmem:[%s919 + $0x80] sm:$0x1]
      %v997 = vsel %vm248, %v785, %v996
      %998 = vst [vmem:[%s919 + $0x80] sm:$0x1] %v997
      %v999 = vld [vmem:[%s919 + $0x84] sm:$0xf]
      %v1000 = vsel %vm921, %v792, %v999
      %1001 = vst [vmem:[%s919 + $0x84] sm:$0xf] %v1000
      %1002 = vst.msk [vmem:[%s919 + $0x88] sm:$0xf] %vm237, %v801
      %v1003 = vld [vmem:[%s919 + $0x8c] sm:$0x1]
      %v1004 = vsel %vm248, %v802, %v1003
      %1005 = vst [vmem:[%s919 + $0x8c] sm:$0x1] %v1004
      %v1006 = vld [vmem:[%s919 + $0x90] sm:$0xf]
      %v1007 = vsel %vm921, %v809, %v1006
      %1008 = vst [vmem:[%s919 + $0x90] sm:$0xf] %v1007
      %1009 = vst.msk [vmem:[%s919 + $0x94] sm:$0xf] %vm237, %v818
      %v1010 = vld [vmem:[%s919 + $0x98] sm:$0x1]
      %v1011 = vsel %vm248, %v819, %v1010
      %1012 = vst [vmem:[%s919 + $0x98] sm:$0x1] %v1011
      %v1013 = vld [vmem:[%s919 + $0x9c] sm:$0xf]
      %v1014 = vsel %vm921, %v826, %v1013
      %1015 = vst [vmem:[%s919 + $0x9c] sm:$0xf] %v1014
      %1016 = vst.msk [vmem:[%s919 + $0xa0] sm:$0xf] %vm237, %v835
      %v1017 = vld [vmem:[%s919 + $0xa4] sm:$0x1]
      %v1018 = vsel %vm248, %v836, %v1017
      %1019 = vst [vmem:[%s919 + $0xa4] sm:$0x1] %v1018
      %v1020 = vld [vmem:[%s919 + $0xa8] sm:$0xf]
      %v1021 = vsel %vm921, %v843, %v1020
      %1022 = vst [vmem:[%s919 + $0xa8] sm:$0xf] %v1021
      %1023 = vst.msk [vmem:[%s919 + $0xac] sm:$0xf] %vm237, %v852
      %v1024 = vld [vmem:[%s919 + $0xb0] sm:$0x1]
      %v1025 = vsel %vm248, %v853, %v1024
      %1026 = vst [vmem:[%s919 + $0xb0] sm:$0x1] %v1025
      %v1027 = vld [vmem:[%s919 + $0xb4] sm:$0xf]
      %v1028 = vsel %vm921, %v860, %v1027
      %1029 = vst [vmem:[%s919 + $0xb4] sm:$0xf] %v1028
      %1030 = vst.msk [vmem:[%s919 + $0xb8] sm:$0xf] %vm237, %v869
      %v1031 = vld [vmem:[%s919 + $0xbc] sm:$0x1]
      %v1032 = vsel %vm248, %v870, %v1031
      %1033 = vst [vmem:[%s919 + $0xbc] sm:$0x1] %v1032
      %v1034 = vld [vmem:[#allocation2] sm:$0xf]
      %v1035 = vld [vmem:[#allocation2 + $0x4] sm:$0xf]
      %v1036 = vld [vmem:[#allocation2 + $0x8] sm:$0x1]
      %v1037 = vld [vmem:[#allocation2 + $0xc] sm:$0xf]
      %v1038 = vld [vmem:[#allocation2 + $0x10] sm:$0xf]
      %v1039 = vld [vmem:[#allocation2 + $0x14] sm:$0x1]
      %v1040 = vld [vmem:[#allocation2 + $0x18] sm:$0xf]
      %v1041 = vld [vmem:[#allocation2 + $0x1c] sm:$0xf]
      %v1042 = vld [vmem:[#allocation2 + $0x20] sm:$0x1]
      %v1043 = vld [vmem:[#allocation2 + $0x24] sm:$0xf]
      %v1044 = vld [vmem:[#allocation2 + $0x28] sm:$0xf]
      %v1045 = vld [vmem:[#allocation2 + $0x2c] sm:$0x1]
      %v1046 = vld [vmem:[#allocation2 + $0x30] sm:$0xf]
      %v1047 = vld [vmem:[#allocation2 + $0x34] sm:$0xf]
      %v1048 = vld [vmem:[#allocation2 + $0x38] sm:$0x1]
      %v1049 = vld [vmem:[#allocation2 + $0x3c] sm:$0xf]
      %v1050 = vld [vmem:[#allocation2 + $0x40] sm:$0xf]
      %v1051 = vld [vmem:[#allocation2 + $0x44] sm:$0x1]
      %v1052 = vld [vmem:[#allocation2 + $0x48] sm:$0xf]
      %v1053 = vld [vmem:[#allocation2 + $0x4c] sm:$0xf]
      %v1054 = vld [vmem:[#allocation2 + $0x50] sm:$0x1]
      %v1055 = vld [vmem:[#allocation2 + $0x54] sm:$0xf]
      %v1056 = vld [vmem:[#allocation2 + $0x58] sm:$0xf]
      %v1057 = vld [vmem:[#allocation2 + $0x5c] sm:$0x1]
      %v1058 = vld [vmem:[#allocation2 + $0x60] sm:$0xf]
      %v1059 = vld [vmem:[#allocation2 + $0x64] sm:$0xf]
      %v1060 = vld [vmem:[#allocation2 + $0x68] sm:$0x1]
      %v1061 = vld [vmem:[#allocation2 + $0x6c] sm:$0xf]
      %v1062 = vld [vmem:[#allocation2 + $0x70] sm:$0xf]
      %v1063 = vld [vmem:[#allocation2 + $0x74] sm:$0x1]
      %v1064 = vld [vmem:[#allocation2 + $0x78] sm:$0xf]
      %v1065 = vld [vmem:[#allocation2 + $0x7c] sm:$0xf]
      %v1066 = vld [vmem:[#allocation2 + $0x80] sm:$0x1]
      %v1067 = vld [vmem:[#allocation2 + $0x84] sm:$0xf]
      %v1068 = vld [vmem:[#allocation2 + $0x88] sm:$0xf]
      %v1069 = vld [vmem:[#allocation2 + $0x8c] sm:$0x1]
      %v1070 = vld [vmem:[#allocation2 + $0x90] sm:$0xf]
      %v1071 = vld [vmem:[#allocation2 + $0x94] sm:$0xf]
      %v1072 = vld [vmem:[#allocation2 + $0x98] sm:$0x1]
      %v1073 = vld [vmem:[#allocation2 + $0x9c] sm:$0xf]
      %v1074 = vld [vmem:[#allocation2 + $0xa0] sm:$0xf]
      %v1075 = vld [vmem:[#allocation2 + $0xa4] sm:$0x1]
      %v1076 = vld [vmem:[#allocation2 + $0xa8] sm:$0xf]
      %v1077 = vld [vmem:[#allocation2 + $0xac] sm:$0xf]
      %v1078 = vld [vmem:[#allocation2 + $0xb0] sm:$0x1]
      %v1079 = vld [vmem:[#allocation2 + $0xb4] sm:$0xf]
      %v1080 = vld [vmem:[#allocation2 + $0xb8] sm:$0xf]
      %v1081 = vld [vmem:[#allocation2 + $0xbc] sm:$0x1]
      %v1082 = vld [vmem:[#allocation2 + $0xc0] sm:$0xf]
      %v1083 = vld [vmem:[#allocation2 + $0xc4] sm:$0xf]
      %v1084 = vld [vmem:[#allocation2 + $0xc8] sm:$0x1]
      %v1085 = vld [vmem:[#allocation2 + $0xcc] sm:$0xf]
      %v1086 = vld [vmem:[#allocation2 + $0xd0] sm:$0xf]
      %v1087 = vld [vmem:[#allocation2 + $0xd4] sm:$0x1]
      %v1088 = vld [vmem:[%s3] sm:$0xf]
      %vm1089 = vsmask.f32 3328
      %vm1090 = vsmask.f32 7440
      %vm1091 = vmor %vm1089, %vm1090
      %v1093 = vshrl.u32 %v1034, 16
      %v1095 = vrot.slane %v1093, 4
      %v1096 = vshll.u32 %v1034, 16
      %v1098 = vrot.slane %v1096, 5
      %v1099 = vor.u32 %v1095, %v1098
      %v1100 = vrot.slane %v1099, 4
      %v1102 = vshll.u32 %v1035, 16
      %v1104 = vrot.slane %v1102, 5
      %v1105 = vsel %vm1091, %v1100, %v1104
      %v1106 = vshrl.u32 %v1035, 16
      %v1108 = vrot.slane %v1106, 4
      %v1109 = vor.u32 %v1108, %v1104
      %v1110 = vrot.slane %v1109, 4
      %v1112 = vshll.u32 %v1036, 16
      %v1114 = vrot.slane %v1112, 5
      %v1115 = vsel %vm1091, %v1110, %v1114
      %v1117 = vshrl.u32 %v1037, 16
      %v1119 = vrot.slane %v1117, 4
      %v1120 = vshll.u32 %v1037, 16
      %v1122 = vrot.slane %v1120, 5
      %v1123 = vor.u32 %v1119, %v1122
      %v1124 = vrot.slane %v1123, 4
      %v1126 = vshll.u32 %v1038, 16
      %v1128 = vrot.slane %v1126, 5
      %v1129 = vsel %vm1091, %v1124, %v1128
      %v1130 = vshrl.u32 %v1038, 16
      %v1132 = vrot.slane %v1130, 4
      %v1133 = vor.u32 %v1132, %v1128
      %v1134 = vrot.slane %v1133, 4
      %v1136 = vshll.u32 %v1039, 16
      %v1138 = vrot.slane %v1136, 5
      %v1139 = vsel %vm1091, %v1134, %v1138
      %v1141 = vshrl.u32 %v1040, 16
      %v1143 = vrot.slane %v1141, 4
      %v1144 = vshll.u32 %v1040, 16
      %v1146 = vrot.slane %v1144, 5
      %v1147 = vor.u32 %v1143, %v1146
      %v1148 = vrot.slane %v1147, 4
      %v1150 = vshll.u32 %v1041, 16
      %v1152 = vrot.slane %v1150, 5
      %v1153 = vsel %vm1091, %v1148, %v1152
      %v1154 = vshrl.u32 %v1041, 16
      %v1156 = vrot.slane %v1154, 4
      %v1157 = vor.u32 %v1156, %v1152
      %v1158 = vrot.slane %v1157, 4
      %v1160 = vshll.u32 %v1042, 16
      %v1162 = vrot.slane %v1160, 5
      %v1163 = vsel %vm1091, %v1158, %v1162
      %v1165 = vshrl.u32 %v1043, 16
      %v1167 = vrot.slane %v1165, 4
      %v1168 = vshll.u32 %v1043, 16
      %v1170 = vrot.slane %v1168, 5
      %v1171 = vor.u32 %v1167, %v1170
      %v1172 = vrot.slane %v1171, 4
      %v1174 = vshll.u32 %v1044, 16
      %v1176 = vrot.slane %v1174, 5
      %v1177 = vsel %vm1091, %v1172, %v1176
      %v1178 = vshrl.u32 %v1044, 16
      %v1180 = vrot.slane %v1178, 4
      %v1181 = vor.u32 %v1180, %v1176
      %v1182 = vrot.slane %v1181, 4
      %v1184 = vshll.u32 %v1045, 16
      %v1186 = vrot.slane %v1184, 5
      %v1187 = vsel %vm1091, %v1182, %v1186
      %v1189 = vshrl.u32 %v1046, 16
      %v1191 = vrot.slane %v1189, 4
      %v1192 = vshll.u32 %v1046, 16
      %v1194 = vrot.slane %v1192, 5
      %v1195 = vor.u32 %v1191, %v1194
      %v1196 = vrot.slane %v1195, 4
      %v1198 = vshll.u32 %v1047, 16
      %v1200 = vrot.slane %v1198, 5
      %v1201 = vsel %vm1091, %v1196, %v1200
      %v1202 = vshrl.u32 %v1047, 16
      %v1204 = vrot.slane %v1202, 4
      %v1205 = vor.u32 %v1204, %v1200
      %v1206 = vrot.slane %v1205, 4
      %v1208 = vshll.u32 %v1048, 16
      %v1210 = vrot.slane %v1208, 5
      %v1211 = vsel %vm1091, %v1206, %v1210
      %v1213 = vshrl.u32 %v1049, 16
      %v1215 = vrot.slane %v1213, 4
      %v1216 = vshll.u32 %v1049, 16
      %v1218 = vrot.slane %v1216, 5
      %v1219 = vor.u32 %v1215, %v1218
      %v1220 = vrot.slane %v1219, 4
      %v1222 = vshll.u32 %v1050, 16
      %v1224 = vrot.slane %v1222, 5
      %v1225 = vsel %vm1091, %v1220, %v1224
      %v1226 = vshrl.u32 %v1050, 16
      %v1228 = vrot.slane %v1226, 4
      %v1229 = vor.u32 %v1228, %v1224
      %v1230 = vrot.slane %v1229, 4
      %v1232 = vshll.u32 %v1051, 16
      %v1234 = vrot.slane %v1232, 5
      %v1235 = vsel %vm1091, %v1230, %v1234
      %v1237 = vshrl.u32 %v1052, 16
      %v1239 = vrot.slane %v1237, 4
      %v1240 = vshll.u32 %v1052, 16
      %v1242 = vrot.slane %v1240, 5
      %v1243 = vor.u32 %v1239, %v1242
      %v1244 = vrot.slane %v1243, 4
      %v1246 = vshll.u32 %v1053, 16
      %v1248 = vrot.slane %v1246, 5
      %v1249 = vsel %vm1091, %v1244, %v1248
      %v1250 = vshrl.u32 %v1053, 16
      %v1252 = vrot.slane %v1250, 4
      %v1253 = vor.u32 %v1252, %v1248
      %v1254 = vrot.slane %v1253, 4
      %v1256 = vshll.u32 %v1054, 16
      %v1258 = vrot.slane %v1256, 5
      %v1259 = vsel %vm1091, %v1254, %v1258
      %v1261 = vshrl.u32 %v1055, 16
      %v1263 = vrot.slane %v1261, 4
      %v1264 = vshll.u32 %v1055, 16
      %v1266 = vrot.slane %v1264, 5
      %v1267 = vor.u32 %v1263, %v1266
      %v1268 = vrot.slane %v1267, 4
      %v1270 = vshll.u32 %v1056, 16
      %v1272 = vrot.slane %v1270, 5
      %v1273 = vsel %vm1091, %v1268, %v1272
      %v1274 = vshrl.u32 %v1056, 16
      %v1276 = vrot.slane %v1274, 4
      %v1277 = vor.u32 %v1276, %v1272
      %v1278 = vrot.slane %v1277, 4
      %v1280 = vshll.u32 %v1057, 16
      %v1282 = vrot.slane %v1280, 5
      %v1283 = vsel %vm1091, %v1278, %v1282
      %v1285 = vshrl.u32 %v1058, 16
      %v1287 = vrot.slane %v1285, 4
      %v1288 = vshll.u32 %v1058, 16
      %v1290 = vrot.slane %v1288, 5
      %v1291 = vor.u32 %v1287, %v1290
      %v1292 = vrot.slane %v1291, 4
      %v1294 = vshll.u32 %v1059, 16
      %v1296 = vrot.slane %v1294, 5
      %v1297 = vsel %vm1091, %v1292, %v1296
      %v1298 = vshrl.u32 %v1059, 16
      %v1300 = vrot.slane %v1298, 4
      %v1301 = vor.u32 %v1300, %v1296
      %v1302 = vrot.slane %v1301, 4
      %v1304 = vshll.u32 %v1060, 16
      %v1306 = vrot.slane %v1304, 5
      %v1307 = vsel %vm1091, %v1302, %v1306
      %v1309 = vshrl.u32 %v1061, 16
      %v1311 = vrot.slane %v1309, 4
      %v1312 = vshll.u32 %v1061, 16
      %v1314 = vrot.slane %v1312, 5
      %v1315 = vor.u32 %v1311, %v1314
      %v1316 = vrot.slane %v1315, 4
      %v1318 = vshll.u32 %v1062, 16
      %v1320 = vrot.slane %v1318, 5
      %v1321 = vsel %vm1091, %v1316, %v1320
      %v1322 = vshrl.u32 %v1062, 16
      %v1324 = vrot.slane %v1322, 4
      %v1325 = vor.u32 %v1324, %v1320
      %v1326 = vrot.slane %v1325, 4
      %v1328 = vshll.u32 %v1063, 16
      %v1330 = vrot.slane %v1328, 5
      %v1331 = vsel %vm1091, %v1326, %v1330
      %v1333 = vshrl.u32 %v1064, 16
      %v1335 = vrot.slane %v1333, 4
      %v1336 = vshll.u32 %v1064, 16
      %v1338 = vrot.slane %v1336, 5
      %v1339 = vor.u32 %v1335, %v1338
      %v1340 = vrot.slane %v1339, 4
      %v1342 = vshll.u32 %v1065, 16
      %v1344 = vrot.slane %v1342, 5
      %v1345 = vsel %vm1091, %v1340, %v1344
      %v1346 = vshrl.u32 %v1065, 16
      %v1348 = vrot.slane %v1346, 4
      %v1349 = vor.u32 %v1348, %v1344
      %v1350 = vrot.slane %v1349, 4
      %v1352 = vshll.u32 %v1066, 16
      %v1354 = vrot.slane %v1352, 5
      %v1355 = vsel %vm1091, %v1350, %v1354
      %v1357 = vshrl.u32 %v1067, 16
      %v1359 = vrot.slane %v1357, 4
      %v1360 = vshll.u32 %v1067, 16
      %v1362 = vrot.slane %v1360, 5
      %v1363 = vor.u32 %v1359, %v1362
      %v1364 = vrot.slane %v1363, 4
      %v1366 = vshll.u32 %v1068, 16
      %v1368 = vrot.slane %v1366, 5
      %v1369 = vsel %vm1091, %v1364, %v1368
      %v1370 = vshrl.u32 %v1068, 16
      %v1372 = vrot.slane %v1370, 4
      %v1373 = vor.u32 %v1372, %v1368
      %v1374 = vrot.slane %v1373, 4
      %v1376 = vshll.u32 %v1069, 16
      %v1378 = vrot.slane %v1376, 5
      %v1379 = vsel %vm1091, %v1374, %v1378
      %v1381 = vshrl.u32 %v1070, 16
      %v1383 = vrot.slane %v1381, 4
      %v1384 = vshll.u32 %v1070, 16
      %v1386 = vrot.slane %v1384, 5
      %v1387 = vor.u32 %v1383, %v1386
      %v1388 = vrot.slane %v1387, 4
      %v1390 = vshll.u32 %v1071, 16
      %v1392 = vrot.slane %v1390, 5
      %v1393 = vsel %vm1091, %v1388, %v1392
      %v1394 = vshrl.u32 %v1071, 16
      %v1396 = vrot.slane %v1394, 4
      %v1397 = vor.u32 %v1396, %v1392
      %v1398 = vrot.slane %v1397, 4
      %v1400 = vshll.u32 %v1072, 16
      %v1402 = vrot.slane %v1400, 5
      %v1403 = vsel %vm1091, %v1398, %v1402
      %v1405 = vshrl.u32 %v1073, 16
      %v1407 = vrot.slane %v1405, 4
      %v1408 = vshll.u32 %v1073, 16
      %v1410 = vrot.slane %v1408, 5
      %v1411 = vor.u32 %v1407, %v1410
      %v1412 = vrot.slane %v1411, 4
      %v1414 = vshll.u32 %v1074, 16
      %v1416 = vrot.slane %v1414, 5
      %v1417 = vsel %vm1091, %v1412, %v1416
      %v1418 = vshrl.u32 %v1074, 16
      %v1420 = vrot.slane %v1418, 4
      %v1421 = vor.u32 %v1420, %v1416
      %v1422 = vrot.slane %v1421, 4
      %v1424 = vshll.u32 %v1075, 16
      %v1426 = vrot.slane %v1424, 5
      %v1427 = vsel %vm1091, %v1422, %v1426
      %v1429 = vshrl.u32 %v1076, 16
      %v1431 = vrot.slane %v1429, 4
      %v1432 = vshll.u32 %v1076, 16
      %v1434 = vrot.slane %v1432, 5
      %v1435 = vor.u32 %v1431, %v1434
      %v1436 = vrot.slane %v1435, 4
      %v1438 = vshll.u32 %v1077, 16
      %v1440 = vrot.slane %v1438, 5
      %v1441 = vsel %vm1091, %v1436, %v1440
      %v1442 = vshrl.u32 %v1077, 16
      %v1444 = vrot.slane %v1442, 4
      %v1445 = vor.u32 %v1444, %v1440
      %v1446 = vrot.slane %v1445, 4
      %v1448 = vshll.u32 %v1078, 16
      %v1450 = vrot.slane %v1448, 5
      %v1451 = vsel %vm1091, %v1446, %v1450
      %v1453 = vshrl.u32 %v1079, 16
      %v1455 = vrot.slane %v1453, 4
      %v1456 = vshll.u32 %v1079, 16
      %v1458 = vrot.slane %v1456, 5
      %v1459 = vor.u32 %v1455, %v1458
      %v1460 = vrot.slane %v1459, 4
      %v1462 = vshll.u32 %v1080, 16
      %v1464 = vrot.slane %v1462, 5
      %v1465 = vsel %vm1091, %v1460, %v1464
      %v1466 = vshrl.u32 %v1080, 16
      %v1468 = vrot.slane %v1466, 4
      %v1469 = vor.u32 %v1468, %v1464
      %v1470 = vrot.slane %v1469, 4
      %v1472 = vshll.u32 %v1081, 16
      %v1474 = vrot.slane %v1472, 5
      %v1475 = vsel %vm1091, %v1470, %v1474
      %s1476 = scalar_lea.vmem %s3, 4
      %v1477 = vld [vmem:[%s1476] sm:$0xf]
      %v1478 = vunpack.c.l.b16 %v1105
      %v1479 = vunpack.c.l.b16 %v1115
      %v1480 = vunpack.c.l.b16 %v1129
      %v1481 = vunpack.c.l.b16 %v1139
      %v1482 = vunpack.c.l.b16 %v1153
      %v1483 = vunpack.c.l.b16 %v1163
      %v1484 = vunpack.c.l.b16 %v1177
      %v1485 = vunpack.c.l.b16 %v1187
      %v1486 = vunpack.c.l.b16 %v1201
      %v1487 = vunpack.c.l.b16 %v1211
      %v1488 = vunpack.c.l.b16 %v1225
      %v1489 = vunpack.c.l.b16 %v1235
      %v1490 = vunpack.c.l.b16 %v1249
      %v1491 = vunpack.c.l.b16 %v1259
      %v1492 = vunpack.c.l.b16 %v1273
      %v1493 = vunpack.c.l.b16 %v1283
      %v1494 = vunpack.c.l.b16 %v1297
      %v1495 = vunpack.c.l.b16 %v1307
      %v1496 = vunpack.c.l.b16 %v1321
      %v1497 = vunpack.c.l.b16 %v1331
      %v1498 = vunpack.c.l.b16 %v1345
      %v1499 = vunpack.c.l.b16 %v1355
      %v1500 = vunpack.c.l.b16 %v1369
      %v1501 = vunpack.c.l.b16 %v1379
      %v1502 = vunpack.c.l.b16 %v1393
      %v1503 = vunpack.c.l.b16 %v1403
      %v1504 = vunpack.c.l.b16 %v1417
      %v1505 = vunpack.c.l.b16 %v1427
      %v1506 = vunpack.c.l.b16 %v1441
      %v1507 = vunpack.c.l.b16 %v1451
      %v1508 = vunpack.c.l.b16 %v1465
      %v1509 = vunpack.c.l.b16 %v1475
      %v1510 = vpack.c.b16 %v1479, %v1478
      %v1511 = vpack.c.b16 %v1481, %v1480
      %v1512 = vpack.c.b16 %v1483, %v1482
      %v1513 = vpack.c.b16 %v1485, %v1484
      %v1514 = vpack.c.b16 %v1487, %v1486
      %v1515 = vpack.c.b16 %v1489, %v1488
      %v1516 = vpack.c.b16 %v1491, %v1490
      %v1517 = vpack.c.b16 %v1493, %v1492
      %v1518 = vpack.c.b16 %v1495, %v1494
      %v1519 = vpack.c.b16 %v1497, %v1496
      %v1520 = vpack.c.b16 %v1499, %v1498
      %v1521 = vpack.c.b16 %v1501, %v1500
      %v1522 = vpack.c.b16 %v1503, %v1502
      %v1523 = vpack.c.b16 %v1505, %v1504
      %v1524 = vpack.c.b16 %v1507, %v1506
      %v1525 = vpack.c.b16 %v1509, %v1508
      %vm1526 = vcmask 64512
      %v1528 = vsel %vm1526, %v1510, 0
      %v1531 = vsel %vm1526, %v1511, 0
      %v1534 = vsel %vm1526, %v1512, 0
      %v1537 = vsel %vm1526, %v1513, 0
      %v1540 = vsel %vm1526, %v1514, 0
      %v1543 = vsel %vm1526, %v1515, 0
      %v1546 = vsel %vm1526, %v1516, 0
      %v1549 = vsel %vm1526, %v1517, 0
      %v1552 = vsel %vm1526, %v1518, 0
      %v1555 = vsel %vm1526, %v1519, 0
      %v1558 = vsel %vm1526, %v1520, 0
      %v1561 = vsel %vm1526, %v1521, 0
      %v1564 = vsel %vm1526, %v1522, 0
      %v1567 = vsel %vm1526, %v1523, 0
      %v1570 = vsel %vm1526, %v1524, 0
      %v1573 = vsel %vm1526, %v1525, 0
      %vm1575 = vcmask 1043456
      %v1577 = vsel %vm1575, %v1477, 0
      %1579 = vmatprep.subr.bf16.mxu0 0
      %1580 = vmatpush1.bf16.msra.mxu0 %v1577
      %1581 = vmatprep.subr.bf16.mxu0 0
      %1582 = vmatpush1.bf16.msra.mxu0 0
      %1583 = vmatprep.subr.bf16.mxu0 0
      %1584 = vmatpush1.bf16.msra.mxu0 0
      %1585 = vmatprep.subr.bf16.mxu0 0
      %1586 = vmatpush1.bf16.msra.mxu0 0
      %1587 = vmatprep.subr.bf16.mxu0 0
      %1588 = vmatpush1.bf16.msra.mxu0 0
      %1589 = vmatprep.subr.bf16.mxu0 0
      %1590 = vmatpush1.bf16.msra.mxu0 0
      %1591 = vmatprep.subr.bf16.mxu0 0
      %1592 = vmatpush1.bf16.msra.mxu0 0
      %1593 = vmatprep.subr.bf16.mxu0 0
      %1594 = vmatpush1.bf16.msra.mxu0 0
      %1595 = vmatprep.subr.bf16.mxu0 0
      %1596 = vmatpush1.bf16.msra.mxu0 0
      %1597 = vmatprep.subr.bf16.mxu0 0
      %1598 = vmatpush1.bf16.msra.mxu0 0
      %1599 = vmatprep.subr.bf16.mxu0 0
      %1600 = vmatpush1.bf16.msra.mxu0 0
      %1601 = vmatprep.subr.bf16.mxu0 0
      %1602 = vmatpush1.bf16.msra.mxu0 0
      %1603 = vmatprep.subr.bf16.mxu0 0
      %1604 = vmatpush1.bf16.msra.mxu0 0
      %1605 = vmatprep.subr.bf16.mxu0 0
      %1606 = vmatpush1.bf16.msra.mxu0 0
      %1607 = vmatprep.subr.bf16.mxu0 0
      %1608 = vmatpush1.bf16.msra.mxu0 0
      %1609 = vmatprep.subr.bf16.mxu0 0
      %1610 = vmatpush1.bf16.msra.mxu0 0
      %1611 = vmatprep.mubr.bf16.mxu0 0
      %1612 = vmatmul.mubr.bf16.gmra.mrb[0].mxu0 %v1528
      %v1613 = vpop.f32.mrb[0].mxu0
      %v1614 = vadd.f32 0.0, %v1613
      %v1615 = vpop.f32.mrb[0].mxu0
      %v1616 = vpop.f32.mrb[0].mxu0
      %v1617 = vadd.f32 0.0, %v1616
      %v1618 = vpop.f32.mrb[0].mxu0
      %1619 = vmatprep.mubr.bf16.mxu0 0
      %1620 = vmatmul.mubr.bf16.gmra.mrb[0].mxu0 %v1531
      %v1621 = vpop.f32.mrb[0].mxu0
      %v1622 = vadd.f32 0.0, %v1621
      %v1623 = vpop.f32.mrb[0].mxu0
      %v1624 = vpop.f32.mrb[0].mxu0
      %v1625 = vadd.f32 0.0, %v1624
      %v1626 = vpop.f32.mrb[0].mxu0
      %1627 = vmatprep.mubr.bf16.mxu0 0
      %1628 = vmatmul.mubr.bf16.gmra.mrb[0].mxu0 %v1534
      %v1629 = vpop.f32.mrb[0].mxu0
      %v1630 = vadd.f32 0.0, %v1629
      %v1631 = vpop.f32.mrb[0].mxu0
      %v1632 = vpop.f32.mrb[0].mxu0
      %v1633 = vadd.f32 0.0, %v1632
      %v1634 = vpop.f32.mrb[0].mxu0
      %1635 = vmatprep.mubr.bf16.mxu0 0
      %1636 = vmatmul.mubr.bf16.gmra.mrb[0].mxu0 %v1537
      %v1637 = vpop.f32.mrb[0].mxu0
      %v1638 = vadd.f32 0.0, %v1637
      %v1639 = vpop.f32.mrb[0].mxu0
      %v1640 = vpop.f32.mrb[0].mxu0
      %v1641 = vadd.f32 0.0, %v1640
      %v1642 = vpop.f32.mrb[0].mxu0
      %1643 = vmatprep.mubr.bf16.mxu0 0
      %1644 = vmatmul.mubr.bf16.gmra.mrb[0].mxu0 %v1540
      %v1645 = vpop.f32.mrb[0].mxu0
      %v1646 = vadd.f32 0.0, %v1645
      %v1647 = vpop.f32.mrb[0].mxu0
      %v1648 = vpop.f32.mrb[0].mxu0
      %v1649 = vadd.f32 0.0, %v1648
      %v1650 = vpop.f32.mrb[0].mxu0
      %1651 = vmatprep.mubr.bf16.mxu0 0
      %1652 = vmatmul.mubr.bf16.gmra.mrb[0].mxu0 %v1543
      %v1653 = vpop.f32.mrb[0].mxu0
      %v1654 = vadd.f32 0.0, %v1653
      %v1655 = vpop.f32.mrb[0].mxu0
      %v1656 = vpop.f32.mrb[0].mxu0
      %v1657 = vadd.f32 0.0, %v1656
      %v1658 = vpop.f32.mrb[0].mxu0
      %1659 = vmatprep.mubr.bf16.mxu0 0
      %1660 = vmatmul.mubr.bf16.gmra.mrb[0].mxu0 %v1546
      %v1661 = vpop.f32.mrb[0].mxu0
      %v1662 = vadd.f32 0.0, %v1661
      %v1663 = vpop.f32.mrb[0].mxu0
      %v1664 = vpop.f32.mrb[0].mxu0
      %v1665 = vadd.f32 0.0, %v1664
      %v1666 = vpop.f32.mrb[0].mxu0
      %1667 = vmatprep.mubr.bf16.mxu0 0
      %1668 = vmatmul.mubr.bf16.gmra.mrb[0].mxu0 %v1549
      %v1669 = vpop.f32.mrb[0].mxu0
      %v1670 = vadd.f32 0.0, %v1669
      %v1671 = vpop.f32.mrb[0].mxu0
      %v1672 = vpop.f32.mrb[0].mxu0
      %v1673 = vadd.f32 0.0, %v1672
      %v1674 = vpop.f32.mrb[0].mxu0
      %1675 = vmatprep.mubr.bf16.mxu0 0
      %1676 = vmatmul.mubr.bf16.gmra.mrb[0].mxu0 %v1552
      %v1677 = vpop.f32.mrb[0].mxu0
      %v1678 = vadd.f32 0.0, %v1677
      %v1679 = vpop.f32.mrb[0].mxu0
      %v1680 = vpop.f32.mrb[0].mxu0
      %v1681 = vadd.f32 0.0, %v1680
      %v1682 = vpop.f32.mrb[0].mxu0
      %1683 = vmatprep.mubr.bf16.mxu0 0
      %1684 = vmatmul.mubr.bf16.gmra.mrb[0].mxu0 %v1555
      %v1685 = vpop.f32.mrb[0].mxu0
      %v1686 = vadd.f32 0.0, %v1685
      %v1687 = vpop.f32.mrb[0].mxu0
      %v1688 = vpop.f32.mrb[0].mxu0
      %v1689 = vadd.f32 0.0, %v1688
      %v1690 = vpop.f32.mrb[0].mxu0
      %1691 = vmatprep.mubr.bf16.mxu0 0
      %1692 = vmatmul.mubr.bf16.gmra.mrb[0].mxu0 %v1558
      %v1693 = vpop.f32.mrb[0].mxu0
      %v1694 = vadd.f32 0.0, %v1693
      %v1695 = vpop.f32.mrb[0].mxu0
      %v1696 = vpop.f32.mrb[0].mxu0
      %v1697 = vadd.f32 0.0, %v1696
      %v1698 = vpop.f32.mrb[0].mxu0
      %1699 = vmatprep.mubr.bf16.mxu0 0
      %1700 = vmatmul.mubr.bf16.gmra.mrb[0].mxu0 %v1561
      %v1701 = vpop.f32.mrb[0].mxu0
      %v1702 = vadd.f32 0.0, %v1701
      %v1703 = vpop.f32.mrb[0].mxu0
      %v1704 = vpop.f32.mrb[0].mxu0
      %v1705 = vadd.f32 0.0, %v1704
      %v1706 = vpop.f32.mrb[0].mxu0
      %1707 = vmatprep.mubr.bf16.mxu0 0
      %1708 = vmatmul.mubr.bf16.gmra.mrb[0].mxu0 %v1564
      %v1709 = vpop.f32.mrb[0].mxu0
      %v1710 = vadd.f32 0.0, %v1709
      %v1711 = vpop.f32.mrb[0].mxu0
      %v1712 = vpop.f32.mrb[0].mxu0
      %v1713 = vadd.f32 0.0, %v1712
      %v1714 = vpop.f32.mrb[0].mxu0
      %1715 = vmatprep.mubr.bf16.mxu0 0
      %1716 = vmatmul.mubr.bf16.gmra.mrb[0].mxu0 %v1567
      %v1717 = vpop.f32.mrb[0].mxu0
      %v1718 = vadd.f32 0.0, %v1717
      %v1719 = vpop.f32.mrb[0].mxu0
      %v1720 = vpop.f32.mrb[0].mxu0
      %v1721 = vadd.f32 0.0, %v1720
      %v1722 = vpop.f32.mrb[0].mxu0
      %1723 = vmatprep.mubr.bf16.mxu0 0
      %1724 = vmatmul.mubr.bf16.gmra.mrb[0].mxu0 %v1570
      %v1725 = vpop.f32.mrb[0].mxu0
      %v1726 = vadd.f32 0.0, %v1725
      %v1727 = vpop.f32.mrb[0].mxu0
      %v1728 = vpop.f32.mrb[0].mxu0
      %v1729 = vadd.f32 0.0, %v1728
      %v1730 = vpop.f32.mrb[0].mxu0
      %1731 = vmatprep.mubr.bf16.mxu0 0
      %1732 = vmatmul.mubr.bf16.gmra.mrb[0].mxu0 %v1573
      %v1733 = vpop.f32.mrb[0].mxu0
      %v1734 = vadd.f32 0.0, %v1733
      %v1735 = vpop.f32.mrb[0].mxu0
      %v1736 = vpop.f32.mrb[0].mxu0
      %v1737 = vadd.f32 0.0, %v1736
      %v1738 = vpop.f32.mrb[0].mxu0
      %1739 = vdwg.mxu0
      %v1772 = vunpack.c.l.b16 %v1034
      %v1773 = vunpack.c.l.b16 %v1035
      %v1774 = vunpack.c.l.b16 %v1037
      %v1775 = vunpack.c.l.b16 %v1038
      %v1776 = vunpack.c.l.b16 %v1040
      %v1777 = vunpack.c.l.b16 %v1041
      %v1778 = vunpack.c.l.b16 %v1043
      %v1779 = vunpack.c.l.b16 %v1044
      %v1780 = vunpack.c.l.b16 %v1046
      %v1781 = vunpack.c.l.b16 %v1047
      %v1782 = vunpack.c.l.b16 %v1049
      %v1783 = vunpack.c.l.b16 %v1050
      %v1784 = vunpack.c.l.b16 %v1052
      %v1785 = vunpack.c.l.b16 %v1053
      %v1786 = vunpack.c.l.b16 %v1055
      %v1787 = vunpack.c.l.b16 %v1056
      %v1788 = vunpack.c.l.b16 %v1058
      %v1789 = vunpack.c.l.b16 %v1059
      %v1790 = vunpack.c.l.b16 %v1061
      %v1791 = vunpack.c.l.b16 %v1062
      %v1792 = vunpack.c.l.b16 %v1064
      %v1793 = vunpack.c.l.b16 %v1065
      %v1794 = vunpack.c.l.b16 %v1067
      %v1795 = vunpack.c.l.b16 %v1068
      %v1796 = vunpack.c.l.b16 %v1070
      %v1797 = vunpack.c.l.b16 %v1071
      %v1798 = vunpack.c.l.b16 %v1073
      %v1799 = vunpack.c.l.b16 %v1074
      %v1800 = vunpack.c.l.b16 %v1076
      %v1801 = vunpack.c.l.b16 %v1077
      %v1802 = vunpack.c.l.b16 %v1079
      %v1803 = vunpack.c.l.b16 %v1080
      %v1804 = vpack.c.b16 %v1773, %v1772
      %v1805 = vpack.c.b16 %v1775, %v1774
      %v1806 = vpack.c.b16 %v1777, %v1776
      %v1807 = vpack.c.b16 %v1779, %v1778
      %v1808 = vpack.c.b16 %v1781, %v1780
      %v1809 = vpack.c.b16 %v1783, %v1782
      %v1810 = vpack.c.b16 %v1785, %v1784
      %v1811 = vpack.c.b16 %v1787, %v1786
      %v1812 = vpack.c.b16 %v1789, %v1788
      %v1813 = vpack.c.b16 %v1791, %v1790
      %v1814 = vpack.c.b16 %v1793, %v1792
      %v1815 = vpack.c.b16 %v1795, %v1794
      %v1816 = vpack.c.b16 %v1797, %v1796
      %v1817 = vpack.c.b16 %v1799, %v1798
      %v1818 = vpack.c.b16 %v1801, %v1800
      %v1819 = vpack.c.b16 %v1803, %v1802
      %v1821 = vsel %vm1526, %v1804, 0
      %v1824 = vsel %vm1526, %v1805, 0
      %v1827 = vsel %vm1526, %v1806, 0
      %v1830 = vsel %vm1526, %v1807, 0
      %v1833 = vsel %vm1526, %v1808, 0
      %v1836 = vsel %vm1526, %v1809, 0
      %v1839 = vsel %vm1526, %v1810, 0
      %v1842 = vsel %vm1526, %v1811, 0
      %v1845 = vsel %vm1526, %v1812, 0
      %v1848 = vsel %vm1526, %v1813, 0
      %v1851 = vsel %vm1526, %v1814, 0
      %v1854 = vsel %vm1526, %v1815, 0
      %v1857 = vsel %vm1526, %v1816, 0
      %v1860 = vsel %vm1526, %v1817, 0
      %v1863 = vsel %vm1526, %v1818, 0
      %v1866 = vsel %vm1526, %v1819, 0
      %v1869 = vsel %vm1575, %v1088, 0
      %1871 = vmatprep.subr.bf16.mxu0 0
      %1872 = vmatpush1.bf16.msra.mxu0 %v1869
      %1873 = vmatprep.subr.bf16.mxu0 0
      %1874 = vmatpush1.bf16.msra.mxu0 0
      %1875 = vmatprep.subr.bf16.mxu0 0
      %1876 = vmatpush1.bf16.msra.mxu0 0
      %1877 = vmatprep.subr.bf16.mxu0 0
      %1878 = vmatpush1.bf16.msra.mxu0 0
      %1879 = vmatprep.subr.bf16.mxu0 0
      %1880 = vmatpush1.bf16.msra.mxu0 0
      %1881 = vmatprep.subr.bf16.mxu0 0
      %1882 = vmatpush1.bf16.msra.mxu0 0
      %1883 = vmatprep.subr.bf16.mxu0 0
      %1884 = vmatpush1.bf16.msra.mxu0 0
      %1885 = vmatprep.subr.bf16.mxu0 0
      %1886 = vmatpush1.bf16.msra.mxu0 0
      %1887 = vmatprep.subr.bf16.mxu0 0
      %1888 = vmatpush1.bf16.msra.mxu0 0
      %1889 = vmatprep.subr.bf16.mxu0 0
      %1890 = vmatpush1.bf16.msra.mxu0 0
      %1891 = vmatprep.subr.bf16.mxu0 0
      %1892 = vmatpush1.bf16.msra.mxu0 0
      %1893 = vmatprep.subr.bf16.mxu0 0
      %1894 = vmatpush1.bf16.msra.mxu0 0
      %1895 = vmatprep.subr.bf16.mxu0 0
      %1896 = vmatpush1.bf16.msra.mxu0 0
      %1897 = vmatprep.subr.bf16.mxu0 0
      %1898 = vmatpush1.bf16.msra.mxu0 0
      %1899 = vmatprep.subr.bf16.mxu0 0
      %1900 = vmatpush1.bf16.msra.mxu0 0
      %1901 = vmatprep.subr.bf16.mxu0 0
      %1902 = vmatpush1.bf16.msra.mxu0 0
      %1903 = vmatprep.mubr.bf16.mxu0 0
      %1904 = vmatmul.mubr.bf16.gmra.mrb[0].mxu0 %v1821
      %v1905 = vpop.f32.mrb[0].mxu0
      %v1906 = vadd.f32 %v1614, %v1905
      %v1907 = vpop.f32.mrb[0].mxu0
      %v1908 = vpop.f32.mrb[0].mxu0
      %v1909 = vadd.f32 %v1617, %v1908
      %v1910 = vpop.f32.mrb[0].mxu0
      %1911 = vmatprep.mubr.bf16.mxu0 0
      %1912 = vmatmul.mubr.bf16.gmra.mrb[0].mxu0 %v1824
      %v1913 = vpop.f32.mrb[0].mxu0
      %v1914 = vadd.f32 %v1622, %v1913
      %v1915 = vpop.f32.mrb[0].mxu0
      %v1916 = vpop.f32.mrb[0].mxu0
      %v1917 = vadd.f32 %v1625, %v1916
      %v1918 = vpop.f32.mrb[0].mxu0
      %1919 = vmatprep.mubr.bf16.mxu0 0
      %1920 = vmatmul.mubr.bf16.gmra.mrb[0].mxu0 %v1827
      %v1921 = vpop.f32.mrb[0].mxu0
      %v1922 = vadd.f32 %v1630, %v1921
      %v1923 = vpop.f32.mrb[0].mxu0
      %v1924 = vpop.f32.mrb[0].mxu0
      %v1925 = vadd.f32 %v1633, %v1924
      %v1926 = vpop.f32.mrb[0].mxu0
      %1927 = vmatprep.mubr.bf16.mxu0 0
      %1928 = vmatmul.mubr.bf16.gmra.mrb[0].mxu0 %v1830
      %v1929 = vpop.f32.mrb[0].mxu0
      %v1930 = vadd.f32 %v1638, %v1929
      %v1931 = vpop.f32.mrb[0].mxu0
      %v1932 = vpop.f32.mrb[0].mxu0
      %v1933 = vadd.f32 %v1641, %v1932
      %v1934 = vpop.f32.mrb[0].mxu0
      %1935 = vmatprep.mubr.bf16.mxu0 0
      %1936 = vmatmul.mubr.bf16.gmra.mrb[0].mxu0 %v1833
      %v1937 = vpop.f32.mrb[0].mxu0
      %v1938 = vadd.f32 %v1646, %v1937
      %v1939 = vpop.f32.mrb[0].mxu0
      %v1940 = vpop.f32.mrb[0].mxu0
      %v1941 = vadd.f32 %v1649, %v1940
      %v1942 = vpop.f32.mrb[0].mxu0
      %1943 = vmatprep.mubr.bf16.mxu0 0
      %1944 = vmatmul.mubr.bf16.gmra.mrb[0].mxu0 %v1836
      %v1945 = vpop.f32.mrb[0].mxu0
      %v1946 = vadd.f32 %v1654, %v1945
      %v1947 = vpop.f32.mrb[0].mxu0
      %v1948 = vpop.f32.mrb[0].mxu0
      %v1949 = vadd.f32 %v1657, %v1948
      %v1950 = vpop.f32.mrb[0].mxu0
      %1951 = vmatprep.mubr.bf16.mxu0 0
      %1952 = vmatmul.mubr.bf16.gmra.mrb[0].mxu0 %v1839
      %v1953 = vpop.f32.mrb[0].mxu0
      %v1954 = vadd.f32 %v1662, %v1953
      %v1955 = vpop.f32.mrb[0].mxu0
      %v1956 = vpop.f32.mrb[0].mxu0
      %v1957 = vadd.f32 %v1665, %v1956
      %v1958 = vpop.f32.mrb[0].mxu0
      %1959 = vmatprep.mubr.bf16.mxu0 0
      %1960 = vmatmul.mubr.bf16.gmra.mrb[0].mxu0 %v1842
      %v1961 = vpop.f32.mrb[0].mxu0
      %v1962 = vadd.f32 %v1670, %v1961
      %v1963 = vpop.f32.mrb[0].mxu0
      %v1964 = vpop.f32.mrb[0].mxu0
      %v1965 = vadd.f32 %v1673, %v1964
      %v1966 = vpop.f32.mrb[0].mxu0
      %1967 = vmatprep.mubr.bf16.mxu0 0
      %1968 = vmatmul.mubr.bf16.gmra.mrb[0].mxu0 %v1845
      %v1969 = vpop.f32.mrb[0].mxu0
      %v1970 = vadd.f32 %v1678, %v1969
      %v1971 = vpop.f32.mrb[0].mxu0
      %v1972 = vpop.f32.mrb[0].mxu0
      %v1973 = vadd.f32 %v1681, %v1972
      %v1974 = vpop.f32.mrb[0].mxu0
      %1975 = vmatprep.mubr.bf16.mxu0 0
      %1976 = vmatmul.mubr.bf16.gmra.mrb[0].mxu0 %v1848
      %v1977 = vpop.f32.mrb[0].mxu0
      %v1978 = vadd.f32 %v1686, %v1977
      %v1979 = vpop.f32.mrb[0].mxu0
      %v1980 = vpop.f32.mrb[0].mxu0
      %v1981 = vadd.f32 %v1689, %v1980
      %v1982 = vpop.f32.mrb[0].mxu0
      %1983 = vmatprep.mubr.bf16.mxu0 0
      %1984 = vmatmul.mubr.bf16.gmra.mrb[0].mxu0 %v1851
      %v1985 = vpop.f32.mrb[0].mxu0
      %v1986 = vadd.f32 %v1694, %v1985
      %v1987 = vpop.f32.mrb[0].mxu0
      %v1988 = vpop.f32.mrb[0].mxu0
      %v1989 = vadd.f32 %v1697, %v1988
      %v1990 = vpop.f32.mrb[0].mxu0
      %1991 = vmatprep.mubr.bf16.mxu0 0
      %1992 = vmatmul.mubr.bf16.gmra.mrb[0].mxu0 %v1854
      %v1993 = vpop.f32.mrb[0].mxu0
      %v1994 = vadd.f32 %v1702, %v1993
      %v1995 = vpop.f32.mrb[0].mxu0
      %v1996 = vpop.f32.mrb[0].mxu0
      %v1997 = vadd.f32 %v1705, %v1996
      %v1998 = vpop.f32.mrb[0].mxu0
      %1999 = vmatprep.mubr.bf16.mxu0 0
      %2000 = vmatmul.mubr.bf16.gmra.mrb[0].mxu0 %v1857
      %v2001 = vpop.f32.mrb[0].mxu0
      %v2002 = vadd.f32 %v1710, %v2001
      %v2003 = vpop.f32.mrb[0].mxu0
      %v2004 = vpop.f32.mrb[0].mxu0
      %v2005 = vadd.f32 %v1713, %v2004
      %v2006 = vpop.f32.mrb[0].mxu0
      %2007 = vmatprep.mubr.bf16.mxu0 0
      %2008 = vmatmul.mubr.bf16.gmra.mrb[0].mxu0 %v1860
      %v2009 = vpop.f32.mrb[0].mxu0
      %v2010 = vadd.f32 %v1718, %v2009
      %v2011 = vpop.f32.mrb[0].mxu0
      %v2012 = vpop.f32.mrb[0].mxu0
      %v2013 = vadd.f32 %v1721, %v2012
      %v2014 = vpop.f32.mrb[0].mxu0
      %2015 = vmatprep.mubr.bf16.mxu0 0
      %2016 = vmatmul.mubr.bf16.gmra.mrb[0].mxu0 %v1863
      %v2017 = vpop.f32.mrb[0].mxu0
      %v2018 = vadd.f32 %v1726, %v2017
      %v2019 = vpop.f32.mrb[0].mxu0
      %v2020 = vpop.f32.mrb[0].mxu0
      %v2021 = vadd.f32 %v1729, %v2020
      %v2022 = vpop.f32.mrb[0].mxu0
      %2023 = vmatprep.mubr.bf16.mxu0 0
      %2024 = vmatmul.mubr.bf16.gmra.mrb[0].mxu0 %v1866
      %v2025 = vpop.f32.mrb[0].mxu0
      %v2026 = vadd.f32 %v1734, %v2025
      %v2027 = vpop.f32.mrb[0].mxu0
      %v2028 = vpop.f32.mrb[0].mxu0
      %v2029 = vadd.f32 %v1737, %v2028
      %v2030 = vpop.f32.mrb[0].mxu0
      %2031 = vdwg.mxu0
      %vm2048 = vcmask 1042432
      %vm2049 = vcmask 1046532
      %vm2050 = vmor %vm2048, %vm2049
      %v2051 = vrot.slane %v1034, 5
      %v2052 = vrot.slane %v2051, 4
      %v2053 = vrot.slane %v1035, 5
      %v2054 = vsel %vm2050, %v2052, %v2053
      %v2055 = vrot.slane %v2053, 4
      %v2056 = vrot.slane %v1036, 5
      %v2057 = vsel %vm2050, %v2055, %v2056
      %v2058 = vrot.slane %v1037, 5
      %v2059 = vrot.slane %v2058, 4
      %v2060 = vrot.slane %v1038, 5
      %v2061 = vsel %vm2050, %v2059, %v2060
      %v2062 = vrot.slane %v2060, 4
      %v2063 = vrot.slane %v1039, 5
      %v2064 = vsel %vm2050, %v2062, %v2063
      %v2065 = vrot.slane %v1040, 5
      %v2066 = vrot.slane %v2065, 4
      %v2067 = vrot.slane %v1041, 5
      %v2068 = vsel %vm2050, %v2066, %v2067
      %v2069 = vrot.slane %v2067, 4
      %v2070 = vrot.slane %v1042, 5
      %v2071 = vsel %vm2050, %v2069, %v2070
      %v2072 = vrot.slane %v1043, 5
      %v2073 = vrot.slane %v2072, 4
      %v2074 = vrot.slane %v1044, 5
      %v2075 = vsel %vm2050, %v2073, %v2074
      %v2076 = vrot.slane %v2074, 4
      %v2077 = vrot.slane %v1045, 5
      %v2078 = vsel %vm2050, %v2076, %v2077
      %v2079 = vrot.slane %v1046, 5
      %v2080 = vrot.slane %v2079, 4
      %v2081 = vrot.slane %v1047, 5
      %v2082 = vsel %vm2050, %v2080, %v2081
      %v2083 = vrot.slane %v2081, 4
      %v2084 = vrot.slane %v1048, 5
      %v2085 = vsel %vm2050, %v2083, %v2084
      %v2086 = vrot.slane %v1049, 5
      %v2087 = vrot.slane %v2086, 4
      %v2088 = vrot.slane %v1050, 5
      %v2089 = vsel %vm2050, %v2087, %v2088
      %v2090 = vrot.slane %v2088, 4
      %v2091 = vrot.slane %v1051, 5
      %v2092 = vsel %vm2050, %v2090, %v2091
      %v2093 = vrot.slane %v1052, 5
      %v2094 = vrot.slane %v2093, 4
      %v2095 = vrot.slane %v1053, 5
      %v2096 = vsel %vm2050, %v2094, %v2095
      %v2097 = vrot.slane %v2095, 4
      %v2098 = vrot.slane %v1054, 5
      %v2099 = vsel %vm2050, %v2097, %v2098
      %v2100 = vrot.slane %v1055, 5
      %v2101 = vrot.slane %v2100, 4
      %v2102 = vrot.slane %v1056, 5
      %v2103 = vsel %vm2050, %v2101, %v2102
      %v2104 = vrot.slane %v2102, 4
      %v2105 = vrot.slane %v1057, 5
      %v2106 = vsel %vm2050, %v2104, %v2105
      %v2107 = vrot.slane %v1058, 5
      %v2108 = vrot.slane %v2107, 4
      %v2109 = vrot.slane %v1059, 5
      %v2110 = vsel %vm2050, %v2108, %v2109
      %v2111 = vrot.slane %v2109, 4
      %v2112 = vrot.slane %v1060, 5
      %v2113 = vsel %vm2050, %v2111, %v2112
      %v2114 = vrot.slane %v1061, 5
      %v2115 = vrot.slane %v2114, 4
      %v2116 = vrot.slane %v1062, 5
      %v2117 = vsel %vm2050, %v2115, %v2116
      %v2118 = vrot.slane %v2116, 4
      %v2119 = vrot.slane %v1063, 5
      %v2120 = vsel %vm2050, %v2118, %v2119
      %v2121 = vrot.slane %v1064, 5
      %v2122 = vrot.slane %v2121, 4
      %v2123 = vrot.slane %v1065, 5
      %v2124 = vsel %vm2050, %v2122, %v2123
      %v2125 = vrot.slane %v2123, 4
      %v2126 = vrot.slane %v1066, 5
      %v2127 = vsel %vm2050, %v2125, %v2126
      %v2128 = vrot.slane %v1067, 5
      %v2129 = vrot.slane %v2128, 4
      %v2130 = vrot.slane %v1068, 5
      %v2131 = vsel %vm2050, %v2129, %v2130
      %v2132 = vrot.slane %v2130, 4
      %v2133 = vrot.slane %v1069, 5
      %v2134 = vsel %vm2050, %v2132, %v2133
      %v2135 = vrot.slane %v1070, 5
      %v2136 = vrot.slane %v2135, 4
      %v2137 = vrot.slane %v1071, 5
      %v2138 = vsel %vm2050, %v2136, %v2137
      %v2139 = vrot.slane %v2137, 4
      %v2140 = vrot.slane %v1072, 5
      %v2141 = vsel %vm2050, %v2139, %v2140
      %v2142 = vrot.slane %v1073, 5
      %v2143 = vrot.slane %v2142, 4
      %v2144 = vrot.slane %v1074, 5
      %v2145 = vsel %vm2050, %v2143, %v2144
      %v2146 = vrot.slane %v2144, 4
      %v2147 = vrot.slane %v1075, 5
      %v2148 = vsel %vm2050, %v2146, %v2147
      %v2149 = vrot.slane %v1076, 5
      %v2150 = vrot.slane %v2149, 4
      %v2151 = vrot.slane %v1077, 5
      %v2152 = vsel %vm2050, %v2150, %v2151
      %v2153 = vrot.slane %v2151, 4
      %v2154 = vrot.slane %v1078, 5
      %v2155 = vsel %vm2050, %v2153, %v2154
      %v2156 = vrot.slane %v1079, 5
      %v2157 = vrot.slane %v2156, 4
      %v2158 = vrot.slane %v1080, 5
      %v2159 = vsel %vm2050, %v2157, %v2158
      %v2160 = vrot.slane %v2158, 4
      %v2161 = vrot.slane %v1081, 5
      %v2162 = vsel %vm2050, %v2160, %v2161
      %s2163 = scalar_lea.vmem %s3, 8
      %v2164 = vld [vmem:[%s2163] sm:$0xf]
      %v2165 = vunpack.c.l.b16 %v2054
      %v2166 = vunpack.c.l.b16 %v2057
      %v2167 = vunpack.c.l.b16 %v2061
      %v2168 = vunpack.c.l.b16 %v2064
      %v2169 = vunpack.c.l.b16 %v2068
      %v2170 = vunpack.c.l.b16 %v2071
      %v2171 = vunpack.c.l.b16 %v2075
      %v2172 = vunpack.c.l.b16 %v2078
      %v2173 = vunpack.c.l.b16 %v2082
      %v2174 = vunpack.c.l.b16 %v2085
      %v2175 = vunpack.c.l.b16 %v2089
      %v2176 = vunpack.c.l.b16 %v2092
      %v2177 = vunpack.c.l.b16 %v2096
      %v2178 = vunpack.c.l.b16 %v2099
      %v2179 = vunpack.c.l.b16 %v2103
      %v2180 = vunpack.c.l.b16 %v2106
      %v2181 = vunpack.c.l.b16 %v2110
      %v2182 = vunpack.c.l.b16 %v2113
      %v2183 = vunpack.c.l.b16 %v2117
      %v2184 = vunpack.c.l.b16 %v2120
      %v2185 = vunpack.c.l.b16 %v2124
      %v2186 = vunpack.c.l.b16 %v2127
      %v2187 = vunpack.c.l.b16 %v2131
      %v2188 = vunpack.c.l.b16 %v2134
      %v2189 = vunpack.c.l.b16 %v2138
      %v2190 = vunpack.c.l.b16 %v2141
      %v2191 = vunpack.c.l.b16 %v2145
      %v2192 = vunpack.c.l.b16 %v2148
      %v2193 = vunpack.c.l.b16 %v2152
      %v2194 = vunpack.c.l.b16 %v2155
      %v2195 = vunpack.c.l.b16 %v2159
      %v2196 = vunpack.c.l.b16 %v2162
      %v2197 = vpack.c.b16 %v2166, %v2165
      %v2198 = vpack.c.b16 %v2168, %v2167
      %v2199 = vpack.c.b16 %v2170, %v2169
      %v2200 = vpack.c.b16 %v2172, %v2171
      %v2201 = vpack.c.b16 %v2174, %v2173
      %v2202 = vpack.c.b16 %v2176, %v2175
      %v2203 = vpack.c.b16 %v2178, %v2177
      %v2204 = vpack.c.b16 %v2180, %v2179
      %v2205 = vpack.c.b16 %v2182, %v2181
      %v2206 = vpack.c.b16 %v2184, %v2183
      %v2207 = vpack.c.b16 %v2186, %v2185
      %v2208 = vpack.c.b16 %v2188, %v2187
      %v2209 = vpack.c.b16 %v2190, %v2189
      %v2210 = vpack.c.b16 %v2192, %v2191
      %v2211 = vpack.c.b16 %v2194, %v2193
      %v2212 = vpack.c.b16 %v2196, %v2195
      %v2214 = vsel %vm1526, %v2197, 0
      %v2217 = vsel %vm1526, %v2198, 0
      %v2220 = vsel %vm1526, %v2199, 0
      %v2223 = vsel %vm1526, %v2200, 0
      %v2226 = vsel %vm1526, %v2201, 0
      %v2229 = vsel %vm1526, %v2202, 0
      %v2232 = vsel %vm1526, %v2203, 0
      %v2235 = vsel %vm1526, %v2204, 0
      %v2238 = vsel %vm1526, %v2205, 0
      %v2241 = vsel %vm1526, %v2206, 0
      %v2244 = vsel %vm1526, %v2207, 0
      %v2247 = vsel %vm1526, %v2208, 0
      %v2250 = vsel %vm1526, %v2209, 0
      %v2253 = vsel %vm1526, %v2210, 0
      %v2256 = vsel %vm1526, %v2211, 0
      %v2259 = vsel %vm1526, %v2212, 0
      %v2262 = vsel %vm1575, %v2164, 0
      %2264 = vmatprep.subr.bf16.mxu0 0
      %2265 = vmatpush1.bf16.msra.mxu0 %v2262
      %2266 = vmatprep.subr.bf16.mxu0 0
      %2267 = vmatpush1.bf16.msra.mxu0 0
      %2268 = vmatprep.subr.bf16.mxu0 0
      %2269 = vmatpush1.bf16.msra.mxu0 0
      %2270 = vmatprep.subr.bf16.mxu0 0
      %2271 = vmatpush1.bf16.msra.mxu0 0
      %2272 = vmatprep.subr.bf16.mxu0 0
      %2273 = vmatpush1.bf16.msra.mxu0 0
      %2274 = vmatprep.subr.bf16.mxu0 0
      %2275 = vmatpush1.bf16.msra.mxu0 0
      %2276 = vmatprep.subr.bf16.mxu0 0
      %2277 = vmatpush1.bf16.msra.mxu0 0
      %2278 = vmatprep.subr.bf16.mxu0 0
      %2279 = vmatpush1.bf16.msra.mxu0 0
      %2280 = vmatprep.subr.bf16.mxu0 0
      %2281 = vmatpush1.bf16.msra.mxu0 0
      %2282 = vmatprep.subr.bf16.mxu0 0
      %2283 = vmatpush1.bf16.msra.mxu0 0
      %2284 = vmatprep.subr.bf16.mxu0 0
      %2285 = vmatpush1.bf16.msra.mxu0 0
      %2286 = vmatprep.subr.bf16.mxu0 0
      %2287 = vmatpush1.bf16.msra.mxu0 0
      %2288 = vmatprep.subr.bf16.mxu0 0
      %2289 = vmatpush1.bf16.msra.mxu0 0
      %2290 = vmatprep.subr.bf16.mxu0 0
      %2291 = vmatpush1.bf16.msra.mxu0 0
      %2292 = vmatprep.subr.bf16.mxu0 0
      %2293 = vmatpush1.bf16.msra.mxu0 0
      %2294 = vmatprep.subr.bf16.mxu0 0
      %2295 = vmatpush1.bf16.msra.mxu0 0
      %2296 = vmatprep.mubr.bf16.mxu0 0
      %2297 = vmatmul.mubr.bf16.gmra.mrb[0].mxu0 %v2214
      %v2298 = vpop.f32.mrb[0].mxu0
      %v2299 = vadd.f32 0.0, %v2298
      %v2300 = vpop.f32.mrb[0].mxu0
      %v2301 = vpop.f32.mrb[0].mxu0
      %v2302 = vadd.f32 0.0, %v2301
      %v2303 = vpop.f32.mrb[0].mxu0
      %2304 = vmatprep.mubr.bf16.mxu0 0
      %2305 = vmatmul.mubr.bf16.gmra.mrb[0].mxu0 %v2217
      %v2306 = vpop.f32.mrb[0].mxu0
      %v2307 = vadd.f32 0.0, %v2306
      %v2308 = vpop.f32.mrb[0].mxu0
      %v2309 = vpop.f32.mrb[0].mxu0
      %v2310 = vadd.f32 0.0, %v2309
      %v2311 = vpop.f32.mrb[0].mxu0
      %2312 = vmatprep.mubr.bf16.mxu0 0
      %2313 = vmatmul.mubr.bf16.gmra.mrb[0].mxu0 %v2220
      %v2314 = vpop.f32.mrb[0].mxu0
      %v2315 = vadd.f32 0.0, %v2314
      %v2316 = vpop.f32.mrb[0].mxu0
      %v2317 = vpop.f32.mrb[0].mxu0
      %v2318 = vadd.f32 0.0, %v2317
      %v2319 = vpop.f32.mrb[0].mxu0
      %2320 = vmatprep.mubr.bf16.mxu0 0
      %2321 = vmatmul.mubr.bf16.gmra.mrb[0].mxu0 %v2223
      %v2322 = vpop.f32.mrb[0].mxu0
      %v2323 = vadd.f32 0.0, %v2322
      %v2324 = vpop.f32.mrb[0].mxu0
      %v2325 = vpop.f32.mrb[0].mxu0
      %v2326 = vadd.f32 0.0, %v2325
      %v2327 = vpop.f32.mrb[0].mxu0
      %2328 = vmatprep.mubr.bf16.mxu0 0
      %2329 = vmatmul.mubr.bf16.gmra.mrb[0].mxu0 %v2226
      %v2330 = vpop.f32.mrb[0].mxu0
      %v2331 = vadd.f32 0.0, %v2330
      %v2332 = vpop.f32.mrb[0].mxu0
      %v2333 = vpop.f32.mrb[0].mxu0
      %v2334 = vadd.f32 0.0, %v2333
      %v2335 = vpop.f32.mrb[0].mxu0
      %2336 = vmatprep.mubr.bf16.mxu0 0
      %2337 = vmatmul.mubr.bf16.gmra.mrb[0].mxu0 %v2229
      %v2338 = vpop.f32.mrb[0].mxu0
      %v2339 = vadd.f32 0.0, %v2338
      %v2340 = vpop.f32.mrb[0].mxu0
      %v2341 = vpop.f32.mrb[0].mxu0
      %v2342 = vadd.f32 0.0, %v2341
      %v2343 = vpop.f32.mrb[0].mxu0
      %2344 = vmatprep.mubr.bf16.mxu0 0
      %2345 = vmatmul.mubr.bf16.gmra.mrb[0].mxu0 %v2232
      %v2346 = vpop.f32.mrb[0].mxu0
      %v2347 = vadd.f32 0.0, %v2346
      %v2348 = vpop.f32.mrb[0].mxu0
      %v2349 = vpop.f32.mrb[0].mxu0
      %v2350 = vadd.f32 0.0, %v2349
      %v2351 = vpop.f32.mrb[0].mxu0
      %2352 = vmatprep.mubr.bf16.mxu0 0
      %2353 = vmatmul.mubr.bf16.gmra.mrb[0].mxu0 %v2235
      %v2354 = vpop.f32.mrb[0].mxu0
      %v2355 = vadd.f32 0.0, %v2354
      %v2356 = vpop.f32.mrb[0].mxu0
      %v2357 = vpop.f32.mrb[0].mxu0
      %v2358 = vadd.f32 0.0, %v2357
      %v2359 = vpop.f32.mrb[0].mxu0
      %2360 = vmatprep.mubr.bf16.mxu0 0
      %2361 = vmatmul.mubr.bf16.gmra.mrb[0].mxu0 %v2238
      %v2362 = vpop.f32.mrb[0].mxu0
      %v2363 = vadd.f32 0.0, %v2362
      %v2364 = vpop.f32.mrb[0].mxu0
      %v2365 = vpop.f32.mrb[0].mxu0
      %v2366 = vadd.f32 0.0, %v2365
      %v2367 = vpop.f32.mrb[0].mxu0
      %2368 = vmatprep.mubr.bf16.mxu0 0
      %2369 = vmatmul.mubr.bf16.gmra.mrb[0].mxu0 %v2241
      %v2370 = vpop.f32.mrb[0].mxu0
      %v2371 = vadd.f32 0.0, %v2370
      %v2372 = vpop.f32.mrb[0].mxu0
      %v2373 = vpop.f32.mrb[0].mxu0
      %v2374 = vadd.f32 0.0, %v2373
      %v2375 = vpop.f32.mrb[0].mxu0
      %2376 = vmatprep.mubr.bf16.mxu0 0
      %2377 = vmatmul.mubr.bf16.gmra.mrb[0].mxu0 %v2244
      %v2378 = vpop.f32.mrb[0].mxu0
      %v2379 = vadd.f32 0.0, %v2378
      %v2380 = vpop.f32.mrb[0].mxu0
      %v2381 = vpop.f32.mrb[0].mxu0
      %v2382 = vadd.f32 0.0, %v2381
      %v2383 = vpop.f32.mrb[0].mxu0
      %2384 = vmatprep.mubr.bf16.mxu0 0
      %2385 = vmatmul.mubr.bf16.gmra.mrb[0].mxu0 %v2247
      %v2386 = vpop.f32.mrb[0].mxu0
      %v2387 = vadd.f32 0.0, %v2386
      %v2388 = vpop.f32.mrb[0].mxu0
      %v2389 = vpop.f32.mrb[0].mxu0
      %v2390 = vadd.f32 0.0, %v2389
      %v2391 = vpop.f32.mrb[0].mxu0
      %2392 = vmatprep.mubr.bf16.mxu0 0
      %2393 = vmatmul.mubr.bf16.gmra.mrb[0].mxu0 %v2250
      %v2394 = vpop.f32.mrb[0].mxu0
      %v2395 = vadd.f32 0.0, %v2394
      %v2396 = vpop.f32.mrb[0].mxu0
      %v2397 = vpop.f32.mrb[0].mxu0
      %v2398 = vadd.f32 0.0, %v2397
      %v2399 = vpop.f32.mrb[0].mxu0
      %2400 = vmatprep.mubr.bf16.mxu0 0
      %2401 = vmatmul.mubr.bf16.gmra.mrb[0].mxu0 %v2253
      %v2402 = vpop.f32.mrb[0].mxu0
      %v2403 = vadd.f32 0.0, %v2402
      %v2404 = vpop.f32.mrb[0].mxu0
      %v2405 = vpop.f32.mrb[0].mxu0
      %v2406 = vadd.f32 0.0, %v2405
      %v2407 = vpop.f32.mrb[0].mxu0
      %2408 = vmatprep.mubr.bf16.mxu0 0
      %2409 = vmatmul.mubr.bf16.gmra.mrb[0].mxu0 %v2256
      %v2410 = vpop.f32.mrb[0].mxu0
      %v2411 = vadd.f32 0.0, %v2410
      %v2412 = vpop.f32.mrb[0].mxu0
      %v2413 = vpop.f32.mrb[0].mxu0
      %v2414 = vadd.f32 0.0, %v2413
      %v2415 = vpop.f32.mrb[0].mxu0
      %2416 = vmatprep.mubr.bf16.mxu0 0
      %2417 = vmatmul.mubr.bf16.gmra.mrb[0].mxu0 %v2259
      %v2418 = vpop.f32.mrb[0].mxu0
      %v2419 = vadd.f32 0.0, %v2418
      %v2420 = vpop.f32.mrb[0].mxu0
      %v2421 = vpop.f32.mrb[0].mxu0
      %v2422 = vadd.f32 0.0, %v2421
      %v2423 = vpop.f32.mrb[0].mxu0
      %2424 = vdwg.mxu0
      %v2425 = vadd.f32 %v1906, %v2299
      %v2426 = vadd.f32 %v1909, %v2302
      %v2427 = vadd.f32 %v1914, %v2307
      %v2428 = vadd.f32 %v1917, %v2310
      %v2429 = vadd.f32 %v1922, %v2315
      %v2430 = vadd.f32 %v1925, %v2318
      %v2431 = vadd.f32 %v1930, %v2323
      %v2432 = vadd.f32 %v1933, %v2326
      %v2433 = vadd.f32 %v1938, %v2331
      %v2434 = vadd.f32 %v1941, %v2334
      %v2435 = vadd.f32 %v1946, %v2339
      %v2436 = vadd.f32 %v1949, %v2342
      %v2437 = vadd.f32 %v1954, %v2347
      %v2438 = vadd.f32 %v1957, %v2350
      %v2439 = vadd.f32 %v1962, %v2355
      %v2440 = vadd.f32 %v1965, %v2358
      %v2441 = vadd.f32 %v1970, %v2363
      %v2442 = vadd.f32 %v1973, %v2366
      %v2443 = vadd.f32 %v1978, %v2371
      %v2444 = vadd.f32 %v1981, %v2374
      %v2445 = vadd.f32 %v1986, %v2379
      %v2446 = vadd.f32 %v1989, %v2382
      %v2447 = vadd.f32 %v1994, %v2387
      %v2448 = vadd.f32 %v1997, %v2390
      %v2449 = vadd.f32 %v2002, %v2395
      %v2450 = vadd.f32 %v2005, %v2398
      %v2451 = vadd.f32 %v2010, %v2403
      %v2452 = vadd.f32 %v2013, %v2406
      %v2453 = vadd.f32 %v2018, %v2411
      %v2454 = vadd.f32 %v2021, %v2414
      %v2455 = vadd.f32 %v2026, %v2419
      %v2456 = vadd.f32 %v2029, %v2422
      %s2457 = scalar_lea.vmem %s3, 12
      %v2458 = vld [vmem:[%s2457] sm:$0xf]
      %v2461 = vunpack.c.l.b16 %v1082
      %v2462 = vunpack.c.l.b16 %v1083
      %v2463 = vpack.c.b16 %v2462, %v2461
      %v2465 = vsel %vm1526, %v2463, 0
      %v2468 = vsel %vm1575, %v2458, 0
      %2470 = vmatprep.subr.bf16.mxu0 0
      %2471 = vmatpush1.bf16.msra.mxu0 %v2468
      %2472 = vmatprep.subr.bf16.mxu0 0
      %2473 = vmatpush1.bf16.msra.mxu0 0
      %2474 = vmatprep.subr.bf16.mxu0 0
      %2475 = vmatpush1.bf16.msra.mxu0 0
      %2476 = vmatprep.subr.bf16.mxu0 0
      %2477 = vmatpush1.bf16.msra.mxu0 0
      %2478 = vmatprep.subr.bf16.mxu0 0
      %2479 = vmatpush1.bf16.msra.mxu0 0
      %2480 = vmatprep.subr.bf16.mxu0 0
      %2481 = vmatpush1.bf16.msra.mxu0 0
      %2482 = vmatprep.subr.bf16.mxu0 0
      %2483 = vmatpush1.bf16.msra.mxu0 0
      %2484 = vmatprep.subr.bf16.mxu0 0
      %2485 = vmatpush1.bf16.msra.mxu0 0
      %2486 = vmatprep.subr.bf16.mxu0 0
      %2487 = vmatpush1.bf16.msra.mxu0 0
      %2488 = vmatprep.subr.bf16.mxu0 0
      %2489 = vmatpush1.bf16.msra.mxu0 0
      %2490 = vmatprep.subr.bf16.mxu0 0
      %2491 = vmatpush1.bf16.msra.mxu0 0
      %2492 = vmatprep.subr.bf16.mxu0 0
      %2493 = vmatpush1.bf16.msra.mxu0 0
      %2494 = vmatprep.subr.bf16.mxu0 0
      %2495 = vmatpush1.bf16.msra.mxu0 0
      %2496 = vmatprep.subr.bf16.mxu0 0
      %2497 = vmatpush1.bf16.msra.mxu0 0
      %2498 = vmatprep.subr.bf16.mxu0 0
      %2499 = vmatpush1.bf16.msra.mxu0 0
      %2500 = vmatprep.subr.bf16.mxu0 0
      %2501 = vmatpush1.bf16.msra.mxu0 0
      %2502 = vmatprep.mubr.bf16.mxu0 0
      %2503 = vmatmul.mubr.bf16.gmra.mrb[0].mxu0 %v1824
      %v2504 = vpop.f32.mrb[0].mxu0
      %v2505 = vadd.f32 0.0, %v2504
      %v2506 = vpop.f32.mrb[0].mxu0
      %v2507 = vpop.f32.mrb[0].mxu0
      %v2508 = vadd.f32 0.0, %v2507
      %v2509 = vpop.f32.mrb[0].mxu0
      %2510 = vmatprep.mubr.bf16.mxu0 0
      %2511 = vmatmul.mubr.bf16.gmra.mrb[0].mxu0 %v1827
      %v2512 = vpop.f32.mrb[0].mxu0
      %v2513 = vadd.f32 0.0, %v2512
      %v2514 = vpop.f32.mrb[0].mxu0
      %v2515 = vpop.f32.mrb[0].mxu0
      %v2516 = vadd.f32 0.0, %v2515
      %v2517 = vpop.f32.mrb[0].mxu0
      %2518 = vmatprep.mubr.bf16.mxu0 0
      %2519 = vmatmul.mubr.bf16.gmra.mrb[0].mxu0 %v1830
      %v2520 = vpop.f32.mrb[0].mxu0
      %v2521 = vadd.f32 0.0, %v2520
      %v2522 = vpop.f32.mrb[0].mxu0
      %v2523 = vpop.f32.mrb[0].mxu0
      %v2524 = vadd.f32 0.0, %v2523
      %v2525 = vpop.f32.mrb[0].mxu0
      %2526 = vmatprep.mubr.bf16.mxu0 0
      %2527 = vmatmul.mubr.bf16.gmra.mrb[0].mxu0 %v1833
      %v2528 = vpop.f32.mrb[0].mxu0
      %v2529 = vadd.f32 0.0, %v2528
      %v2530 = vpop.f32.mrb[0].mxu0
      %v2531 = vpop.f32.mrb[0].mxu0
      %v2532 = vadd.f32 0.0, %v2531
      %v2533 = vpop.f32.mrb[0].mxu0
      %2534 = vmatprep.mubr.bf16.mxu0 0
      %2535 = vmatmul.mubr.bf16.gmra.mrb[0].mxu0 %v1836
      %v2536 = vpop.f32.mrb[0].mxu0
      %v2537 = vadd.f32 0.0, %v2536
      %v2538 = vpop.f32.mrb[0].mxu0
      %v2539 = vpop.f32.mrb[0].mxu0
      %v2540 = vadd.f32 0.0, %v2539
      %v2541 = vpop.f32.mrb[0].mxu0
      %2542 = vmatprep.mubr.bf16.mxu0 0
      %2543 = vmatmul.mubr.bf16.gmra.mrb[0].mxu0 %v1839
      %v2544 = vpop.f32.mrb[0].mxu0
      %v2545 = vadd.f32 0.0, %v2544
      %v2546 = vpop.f32.mrb[0].mxu0
      %v2547 = vpop.f32.mrb[0].mxu0
      %v2548 = vadd.f32 0.0, %v2547
      %v2549 = vpop.f32.mrb[0].mxu0
      %2550 = vmatprep.mubr.bf16.mxu0 0
      %2551 = vmatmul.mubr.bf16.gmra.mrb[0].mxu0 %v1842
      %v2552 = vpop.f32.mrb[0].mxu0
      %v2553 = vadd.f32 0.0, %v2552
      %v2554 = vpop.f32.mrb[0].mxu0
      %v2555 = vpop.f32.mrb[0].mxu0
      %v2556 = vadd.f32 0.0, %v2555
      %v2557 = vpop.f32.mrb[0].mxu0
      %2558 = vmatprep.mubr.bf16.mxu0 0
      %2559 = vmatmul.mubr.bf16.gmra.mrb[0].mxu0 %v1845
      %v2560 = vpop.f32.mrb[0].mxu0
      %v2561 = vadd.f32 0.0, %v2560
      %v2562 = vpop.f32.mrb[0].mxu0
      %v2563 = vpop.f32.mrb[0].mxu0
      %v2564 = vadd.f32 0.0, %v2563
      %v2565 = vpop.f32.mrb[0].mxu0
      %2566 = vmatprep.mubr.bf16.mxu0 0
      %2567 = vmatmul.mubr.bf16.gmra.mrb[0].mxu0 %v1848
      %v2568 = vpop.f32.mrb[0].mxu0
      %v2569 = vadd.f32 0.0, %v2568
      %v2570 = vpop.f32.mrb[0].mxu0
      %v2571 = vpop.f32.mrb[0].mxu0
      %v2572 = vadd.f32 0.0, %v2571
      %v2573 = vpop.f32.mrb[0].mxu0
      %2574 = vmatprep.mubr.bf16.mxu0 0
      %2575 = vmatmul.mubr.bf16.gmra.mrb[0].mxu0 %v1851
      %v2576 = vpop.f32.mrb[0].mxu0
      %v2577 = vadd.f32 0.0, %v2576
      %v2578 = vpop.f32.mrb[0].mxu0
      %v2579 = vpop.f32.mrb[0].mxu0
      %v2580 = vadd.f32 0.0, %v2579
      %v2581 = vpop.f32.mrb[0].mxu0
      %2582 = vmatprep.mubr.bf16.mxu0 0
      %2583 = vmatmul.mubr.bf16.gmra.mrb[0].mxu0 %v1854
      %v2584 = vpop.f32.mrb[0].mxu0
      %v2585 = vadd.f32 0.0, %v2584
      %v2586 = vpop.f32.mrb[0].mxu0
      %v2587 = vpop.f32.mrb[0].mxu0
      %v2588 = vadd.f32 0.0, %v2587
      %v2589 = vpop.f32.mrb[0].mxu0
      %2590 = vmatprep.mubr.bf16.mxu0 0
      %2591 = vmatmul.mubr.bf16.gmra.mrb[0].mxu0 %v1857
      %v2592 = vpop.f32.mrb[0].mxu0
      %v2593 = vadd.f32 0.0, %v2592
      %v2594 = vpop.f32.mrb[0].mxu0
      %v2595 = vpop.f32.mrb[0].mxu0
      %v2596 = vadd.f32 0.0, %v2595
      %v2597 = vpop.f32.mrb[0].mxu0
      %2598 = vmatprep.mubr.bf16.mxu0 0
      %2599 = vmatmul.mubr.bf16.gmra.mrb[0].mxu0 %v1860
      %v2600 = vpop.f32.mrb[0].mxu0
      %v2601 = vadd.f32 0.0, %v2600
      %v2602 = vpop.f32.mrb[0].mxu0
      %v2603 = vpop.f32.mrb[0].mxu0
      %v2604 = vadd.f32 0.0, %v2603
      %v2605 = vpop.f32.mrb[0].mxu0
      %2606 = vmatprep.mubr.bf16.mxu0 0
      %2607 = vmatmul.mubr.bf16.gmra.mrb[0].mxu0 %v1863
      %v2608 = vpop.f32.mrb[0].mxu0
      %v2609 = vadd.f32 0.0, %v2608
      %v2610 = vpop.f32.mrb[0].mxu0
      %v2611 = vpop.f32.mrb[0].mxu0
      %v2612 = vadd.f32 0.0, %v2611
      %v2613 = vpop.f32.mrb[0].mxu0
      %2614 = vmatprep.mubr.bf16.mxu0 0
      %2615 = vmatmul.mubr.bf16.gmra.mrb[0].mxu0 %v1866
      %v2616 = vpop.f32.mrb[0].mxu0
      %v2617 = vadd.f32 0.0, %v2616
      %v2618 = vpop.f32.mrb[0].mxu0
      %v2619 = vpop.f32.mrb[0].mxu0
      %v2620 = vadd.f32 0.0, %v2619
      %v2621 = vpop.f32.mrb[0].mxu0
      %2622 = vmatprep.mubr.bf16.mxu0 0
      %2623 = vmatmul.mubr.bf16.gmra.mrb[0].mxu0 %v2465
      %v2624 = vpop.f32.mrb[0].mxu0
      %v2625 = vadd.f32 0.0, %v2624
      %v2626 = vpop.f32.mrb[0].mxu0
      %v2627 = vpop.f32.mrb[0].mxu0
      %v2628 = vadd.f32 0.0, %v2627
      %v2629 = vpop.f32.mrb[0].mxu0
      %2630 = vdwg.mxu0
      %v2631 = vadd.f32 %v2425, %v2505
      %v2632 = vadd.f32 %v2426, %v2508
      %v2633 = vadd.f32 %v2427, %v2513
      %v2634 = vadd.f32 %v2428, %v2516
      %v2635 = vadd.f32 %v2429, %v2521
      %v2636 = vadd.f32 %v2430, %v2524
      %v2637 = vadd.f32 %v2431, %v2529
      %v2638 = vadd.f32 %v2432, %v2532
      %v2639 = vadd.f32 %v2433, %v2537
      %v2640 = vadd.f32 %v2434, %v2540
      %v2641 = vadd.f32 %v2435, %v2545
      %v2642 = vadd.f32 %v2436, %v2548
      %v2643 = vadd.f32 %v2437, %v2553
      %v2644 = vadd.f32 %v2438, %v2556
      %v2645 = vadd.f32 %v2439, %v2561
      %v2646 = vadd.f32 %v2440, %v2564
      %v2647 = vadd.f32 %v2441, %v2569
      %v2648 = vadd.f32 %v2442, %v2572
      %v2649 = vadd.f32 %v2443, %v2577
      %v2650 = vadd.f32 %v2444, %v2580
      %v2651 = vadd.f32 %v2445, %v2585
      %v2652 = vadd.f32 %v2446, %v2588
      %v2653 = vadd.f32 %v2447, %v2593
      %v2654 = vadd.f32 %v2448, %v2596
      %v2655 = vadd.f32 %v2449, %v2601
      %v2656 = vadd.f32 %v2450, %v2604
      %v2657 = vadd.f32 %v2451, %v2609
      %v2658 = vadd.f32 %v2452, %v2612
      %v2659 = vadd.f32 %v2453, %v2617
      %v2660 = vadd.f32 %v2454, %v2620
      %v2661 = vadd.f32 %v2455, %v2625
      %v2662 = vadd.f32 %v2456, %v2628
      %v2664 = vshrl.u32 %v1082, 16
      %v2666 = vrot.slane %v2664, 4
      %v2667 = vshll.u32 %v1082, 16
      %v2669 = vrot.slane %v2667, 5
      %v2670 = vor.u32 %v2666, %v2669
      %v2671 = vrot.slane %v2670, 4
      %v2673 = vshll.u32 %v1083, 16
      %v2675 = vrot.slane %v2673, 5
      %v2676 = vsel %vm1091, %v2671, %v2675
      %v2677 = vshrl.u32 %v1083, 16
      %v2679 = vrot.slane %v2677, 4
      %v2680 = vor.u32 %v2679, %v2675
      %v2681 = vrot.slane %v2680, 4
      %v2683 = vshll.u32 %v1084, 16
      %v2685 = vrot.slane %v2683, 5
      %v2686 = vsel %vm1091, %v2681, %v2685
      %s2687 = scalar_lea.vmem %s3, 16
      %v2688 = vld [vmem:[%s2687] sm:$0xf]
      %v2689 = vunpack.c.l.b16 %v2676
      %v2690 = vunpack.c.l.b16 %v2686
      %v2691 = vpack.c.b16 %v2690, %v2689
      %v2693 = vsel %vm1526, %v2691, 0
      %v2696 = vsel %vm1575, %v2688, 0
      %2698 = vmatprep.subr.bf16.mxu0 0
      %2699 = vmatpush1.bf16.msra.mxu0 %v2696
      %2700 = vmatprep.subr.bf16.mxu0 0
      %2701 = vmatpush1.bf16.msra.mxu0 0
      %2702 = vmatprep.subr.bf16.mxu0 0
      %2703 = vmatpush1.bf16.msra.mxu0 0
      %2704 = vmatprep.subr.bf16.mxu0 0
      %2705 = vmatpush1.bf16.msra.mxu0 0
      %2706 = vmatprep.subr.bf16.mxu0 0
      %2707 = vmatpush1.bf16.msra.mxu0 0
      %2708 = vmatprep.subr.bf16.mxu0 0
      %2709 = vmatpush1.bf16.msra.mxu0 0
      %2710 = vmatprep.subr.bf16.mxu0 0
      %2711 = vmatpush1.bf16.msra.mxu0 0
      %2712 = vmatprep.subr.bf16.mxu0 0
      %2713 = vmatpush1.bf16.msra.mxu0 0
      %2714 = vmatprep.subr.bf16.mxu0 0
      %2715 = vmatpush1.bf16.msra.mxu0 0
      %2716 = vmatprep.subr.bf16.mxu0 0
      %2717 = vmatpush1.bf16.msra.mxu0 0
      %2718 = vmatprep.subr.bf16.mxu0 0
      %2719 = vmatpush1.bf16.msra.mxu0 0
      %2720 = vmatprep.subr.bf16.mxu0 0
      %2721 = vmatpush1.bf16.msra.mxu0 0
      %2722 = vmatprep.subr.bf16.mxu0 0
      %2723 = vmatpush1.bf16.msra.mxu0 0
      %2724 = vmatprep.subr.bf16.mxu0 0
      %2725 = vmatpush1.bf16.msra.mxu0 0
      %2726 = vmatprep.subr.bf16.mxu0 0
      %2727 = vmatpush1.bf16.msra.mxu0 0
      %2728 = vmatprep.subr.bf16.mxu0 0
      %2729 = vmatpush1.bf16.msra.mxu0 0
      %2730 = vmatprep.mubr.bf16.mxu0 0
      %2731 = vmatmul.mubr.bf16.gmra.mrb[0].mxu0 %v1531
      %v2732 = vpop.f32.mrb[0].mxu0
      %v2733 = vadd.f32 0.0, %v2732
      %v2734 = vpop.f32.mrb[0].mxu0
      %v2735 = vpop.f32.mrb[0].mxu0
      %v2736 = vadd.f32 0.0, %v2735
      %v2737 = vpop.f32.mrb[0].mxu0
      %2738 = vmatprep.mubr.bf16.mxu0 0
      %2739 = vmatmul.mubr.bf16.gmra.mrb[0].mxu0 %v1534
      %v2740 = vpop.f32.mrb[0].mxu0
      %v2741 = vadd.f32 0.0, %v2740
      %v2742 = vpop.f32.mrb[0].mxu0
      %v2743 = vpop.f32.mrb[0].mxu0
      %v2744 = vadd.f32 0.0, %v2743
      %v2745 = vpop.f32.mrb[0].mxu0
      %2746 = vmatprep.mubr.bf16.mxu0 0
      %2747 = vmatmul.mubr.bf16.gmra.mrb[0].mxu0 %v1537
      %v2748 = vpop.f32.mrb[0].mxu0
      %v2749 = vadd.f32 0.0, %v2748
      %v2750 = vpop.f32.mrb[0].mxu0
      %v2751 = vpop.f32.mrb[0].mxu0
      %v2752 = vadd.f32 0.0, %v2751
      %v2753 = vpop.f32.mrb[0].mxu0
      %2754 = vmatprep.mubr.bf16.mxu0 0
      %2755 = vmatmul.mubr.bf16.gmra.mrb[0].mxu0 %v1540
      %v2756 = vpop.f32.mrb[0].mxu0
      %v2757 = vadd.f32 0.0, %v2756
      %v2758 = vpop.f32.mrb[0].mxu0
      %v2759 = vpop.f32.mrb[0].mxu0
      %v2760 = vadd.f32 0.0, %v2759
      %v2761 = vpop.f32.mrb[0].mxu0
      %2762 = vmatprep.mubr.bf16.mxu0 0
      %2763 = vmatmul.mubr.bf16.gmra.mrb[0].mxu0 %v1543
      %v2764 = vpop.f32.mrb[0].mxu0
      %v2765 = vadd.f32 0.0, %v2764
      %v2766 = vpop.f32.mrb[0].mxu0
      %v2767 = vpop.f32.mrb[0].mxu0
      %v2768 = vadd.f32 0.0, %v2767
      %v2769 = vpop.f32.mrb[0].mxu0
      %2770 = vmatprep.mubr.bf16.mxu0 0
      %2771 = vmatmul.mubr.bf16.gmra.mrb[0].mxu0 %v1546
      %v2772 = vpop.f32.mrb[0].mxu0
      %v2773 = vadd.f32 0.0, %v2772
      %v2774 = vpop.f32.mrb[0].mxu0
      %v2775 = vpop.f32.mrb[0].mxu0
      %v2776 = vadd.f32 0.0, %v2775
      %v2777 = vpop.f32.mrb[0].mxu0
      %2778 = vmatprep.mubr.bf16.mxu0 0
      %2779 = vmatmul.mubr.bf16.gmra.mrb[0].mxu0 %v1549
      %v2780 = vpop.f32.mrb[0].mxu0
      %v2781 = vadd.f32 0.0, %v2780
      %v2782 = vpop.f32.mrb[0].mxu0
      %v2783 = vpop.f32.mrb[0].mxu0
      %v2784 = vadd.f32 0.0, %v2783
      %v2785 = vpop.f32.mrb[0].mxu0
      %2786 = vmatprep.mubr.bf16.mxu0 0
      %2787 = vmatmul.mubr.bf16.gmra.mrb[0].mxu0 %v1552
      %v2788 = vpop.f32.mrb[0].mxu0
      %v2789 = vadd.f32 0.0, %v2788
      %v2790 = vpop.f32.mrb[0].mxu0
      %v2791 = vpop.f32.mrb[0].mxu0
      %v2792 = vadd.f32 0.0, %v2791
      %v2793 = vpop.f32.mrb[0].mxu0
      %2794 = vmatprep.mubr.bf16.mxu0 0
      %2795 = vmatmul.mubr.bf16.gmra.mrb[0].mxu0 %v1555
      %v2796 = vpop.f32.mrb[0].mxu0
      %v2797 = vadd.f32 0.0, %v2796
      %v2798 = vpop.f32.mrb[0].mxu0
      %v2799 = vpop.f32.mrb[0].mxu0
      %v2800 = vadd.f32 0.0, %v2799
      %v2801 = vpop.f32.mrb[0].mxu0
      %2802 = vmatprep.mubr.bf16.mxu0 0
      %2803 = vmatmul.mubr.bf16.gmra.mrb[0].mxu0 %v1558
      %v2804 = vpop.f32.mrb[0].mxu0
      %v2805 = vadd.f32 0.0, %v2804
      %v2806 = vpop.f32.mrb[0].mxu0
      %v2807 = vpop.f32.mrb[0].mxu0
      %v2808 = vadd.f32 0.0, %v2807
      %v2809 = vpop.f32.mrb[0].mxu0
      %2810 = vmatprep.mubr.bf16.mxu0 0
      %2811 = vmatmul.mubr.bf16.gmra.mrb[0].mxu0 %v1561
      %v2812 = vpop.f32.mrb[0].mxu0
      %v2813 = vadd.f32 0.0, %v2812
      %v2814 = vpop.f32.mrb[0].mxu0
      %v2815 = vpop.f32.mrb[0].mxu0
      %v2816 = vadd.f32 0.0, %v2815
      %v2817 = vpop.f32.mrb[0].mxu0
      %2818 = vmatprep.mubr.bf16.mxu0 0
      %2819 = vmatmul.mubr.bf16.gmra.mrb[0].mxu0 %v1564
      %v2820 = vpop.f32.mrb[0].mxu0
      %v2821 = vadd.f32 0.0, %v2820
      %v2822 = vpop.f32.mrb[0].mxu0
      %v2823 = vpop.f32.mrb[0].mxu0
      %v2824 = vadd.f32 0.0, %v2823
      %v2825 = vpop.f32.mrb[0].mxu0
      %2826 = vmatprep.mubr.bf16.mxu0 0
      %2827 = vmatmul.mubr.bf16.gmra.mrb[0].mxu0 %v1567
      %v2828 = vpop.f32.mrb[0].mxu0
      %v2829 = vadd.f32 0.0, %v2828
      %v2830 = vpop.f32.mrb[0].mxu0
      %v2831 = vpop.f32.mrb[0].mxu0
      %v2832 = vadd.f32 0.0, %v2831
      %v2833 = vpop.f32.mrb[0].mxu0
      %2834 = vmatprep.mubr.bf16.mxu0 0
      %2835 = vmatmul.mubr.bf16.gmra.mrb[0].mxu0 %v1570
      %v2836 = vpop.f32.mrb[0].mxu0
      %v2837 = vadd.f32 0.0, %v2836
      %v2838 = vpop.f32.mrb[0].mxu0
      %v2839 = vpop.f32.mrb[0].mxu0
      %v2840 = vadd.f32 0.0, %v2839
      %v2841 = vpop.f32.mrb[0].mxu0
      %2842 = vmatprep.mubr.bf16.mxu0 0
      %2843 = vmatmul.mubr.bf16.gmra.mrb[0].mxu0 %v1573
      %v2844 = vpop.f32.mrb[0].mxu0
      %v2845 = vadd.f32 0.0, %v2844
      %v2846 = vpop.f32.mrb[0].mxu0
      %v2847 = vpop.f32.mrb[0].mxu0
      %v2848 = vadd.f32 0.0, %v2847
      %v2849 = vpop.f32.mrb[0].mxu0
      %2850 = vmatprep.mubr.bf16.mxu0 0
      %2851 = vmatmul.mubr.bf16.gmra.mrb[0].mxu0 %v2693
      %v2852 = vpop.f32.mrb[0].mxu0
      %v2853 = vadd.f32 0.0, %v2852
      %v2854 = vpop.f32.mrb[0].mxu0
      %v2855 = vpop.f32.mrb[0].mxu0
      %v2856 = vadd.f32 0.0, %v2855
      %v2857 = vpop.f32.mrb[0].mxu0
      %2858 = vdwg.mxu0
      %v2859 = vadd.f32 %v2631, %v2733
      %v2860 = vadd.f32 %v2632, %v2736
      %v2861 = vadd.f32 %v2633, %v2741
      %v2862 = vadd.f32 %v2634, %v2744
      %v2863 = vadd.f32 %v2635, %v2749
      %v2864 = vadd.f32 %v2636, %v2752
      %v2865 = vadd.f32 %v2637, %v2757
      %v2866 = vadd.f32 %v2638, %v2760
      %v2867 = vadd.f32 %v2639, %v2765
      %v2868 = vadd.f32 %v2640, %v2768
      %v2869 = vadd.f32 %v2641, %v2773
      %v2870 = vadd.f32 %v2642, %v2776
      %v2871 = vadd.f32 %v2643, %v2781
      %v2872 = vadd.f32 %v2644, %v2784
      %v2873 = vadd.f32 %v2645, %v2789
      %v2874 = vadd.f32 %v2646, %v2792
      %v2875 = vadd.f32 %v2647, %v2797
      %v2876 = vadd.f32 %v2648, %v2800
      %v2877 = vadd.f32 %v2649, %v2805
      %v2878 = vadd.f32 %v2650, %v2808
      %v2879 = vadd.f32 %v2651, %v2813
      %v2880 = vadd.f32 %v2652, %v2816
      %v2881 = vadd.f32 %v2653, %v2821
      %v2882 = vadd.f32 %v2654, %v2824
      %v2883 = vadd.f32 %v2655, %v2829
      %v2884 = vadd.f32 %v2656, %v2832
      %v2885 = vadd.f32 %v2657, %v2837
      %v2886 = vadd.f32 %v2658, %v2840
      %v2887 = vadd.f32 %v2659, %v2845
      %v2888 = vadd.f32 %v2660, %v2848
      %v2889 = vadd.f32 %v2661, %v2853
      %v2890 = vadd.f32 %v2662, %v2856
      %v2892 = vrot.slane %v1082, 5
      %v2893 = vrot.slane %v2892, 4
      %v2894 = vrot.slane %v1083, 5
      %v2895 = vsel %vm2050, %v2893, %v2894
      %v2896 = vrot.slane %v2894, 4
      %v2897 = vrot.slane %v1084, 5
      %v2898 = vsel %vm2050, %v2896, %v2897
      %s2899 = scalar_lea.vmem %s3, 20
      %v2900 = vld [vmem:[%s2899] sm:$0xf]
      %v2901 = vunpack.c.l.b16 %v2895
      %v2902 = vunpack.c.l.b16 %v2898
      %v2903 = vpack.c.b16 %v2902, %v2901
      %v2905 = vsel %vm1526, %v2903, 0
      %v2908 = vsel %vm1575, %v2900, 0
      %2910 = vmatprep.subr.bf16.mxu0 0
      %2911 = vmatpush1.bf16.msra.mxu0 %v2908
      %2912 = vmatprep.subr.bf16.mxu0 0
      %2913 = vmatpush1.bf16.msra.mxu0 0
      %2914 = vmatprep.subr.bf16.mxu0 0
      %2915 = vmatpush1.bf16.msra.mxu0 0
      %2916 = vmatprep.subr.bf16.mxu0 0
      %2917 = vmatpush1.bf16.msra.mxu0 0
      %2918 = vmatprep.subr.bf16.mxu0 0
      %2919 = vmatpush1.bf16.msra.mxu0 0
      %2920 = vmatprep.subr.bf16.mxu0 0
      %2921 = vmatpush1.bf16.msra.mxu0 0
      %2922 = vmatprep.subr.bf16.mxu0 0
      %2923 = vmatpush1.bf16.msra.mxu0 0
      %2924 = vmatprep.subr.bf16.mxu0 0
      %2925 = vmatpush1.bf16.msra.mxu0 0
      %2926 = vmatprep.subr.bf16.mxu0 0
      %2927 = vmatpush1.bf16.msra.mxu0 0
      %2928 = vmatprep.subr.bf16.mxu0 0
      %2929 = vmatpush1.bf16.msra.mxu0 0
      %2930 = vmatprep.subr.bf16.mxu0 0
      %2931 = vmatpush1.bf16.msra.mxu0 0
      %2932 = vmatprep.subr.bf16.mxu0 0
      %2933 = vmatpush1.bf16.msra.mxu0 0
      %2934 = vmatprep.subr.bf16.mxu0 0
      %2935 = vmatpush1.bf16.msra.mxu0 0
      %2936 = vmatprep.subr.bf16.mxu0 0
      %2937 = vmatpush1.bf16.msra.mxu0 0
      %2938 = vmatprep.subr.bf16.mxu0 0
      %2939 = vmatpush1.bf16.msra.mxu0 0
      %2940 = vmatprep.subr.bf16.mxu0 0
      %2941 = vmatpush1.bf16.msra.mxu0 0
      %2942 = vmatprep.mubr.bf16.mxu0 0
      %2943 = vmatmul.mubr.bf16.gmra.mrb[0].mxu0 %v2217
      %v2944 = vpop.f32.mrb[0].mxu0
      %v2945 = vadd.f32 0.0, %v2944
      %v2946 = vpop.f32.mrb[0].mxu0
      %v2947 = vpop.f32.mrb[0].mxu0
      %v2948 = vadd.f32 0.0, %v2947
      %v2949 = vpop.f32.mrb[0].mxu0
      %2950 = vmatprep.mubr.bf16.mxu0 0
      %2951 = vmatmul.mubr.bf16.gmra.mrb[0].mxu0 %v2220
      %v2952 = vpop.f32.mrb[0].mxu0
      %v2953 = vadd.f32 0.0, %v2952
      %v2954 = vpop.f32.mrb[0].mxu0
      %v2955 = vpop.f32.mrb[0].mxu0
      %v2956 = vadd.f32 0.0, %v2955
      %v2957 = vpop.f32.mrb[0].mxu0
      %2958 = vmatprep.mubr.bf16.mxu0 0
      %2959 = vmatmul.mubr.bf16.gmra.mrb[0].mxu0 %v2223
      %v2960 = vpop.f32.mrb[0].mxu0
      %v2961 = vadd.f32 0.0, %v2960
      %v2962 = vpop.f32.mrb[0].mxu0
      %v2963 = vpop.f32.mrb[0].mxu0
      %v2964 = vadd.f32 0.0, %v2963
      %v2965 = vpop.f32.mrb[0].mxu0
      %2966 = vmatprep.mubr.bf16.mxu0 0
      %2967 = vmatmul.mubr.bf16.gmra.mrb[0].mxu0 %v2226
      %v2968 = vpop.f32.mrb[0].mxu0
      %v2969 = vadd.f32 0.0, %v2968
      %v2970 = vpop.f32.mrb[0].mxu0
      %v2971 = vpop.f32.mrb[0].mxu0
      %v2972 = vadd.f32 0.0, %v2971
      %v2973 = vpop.f32.mrb[0].mxu0
      %2974 = vmatprep.mubr.bf16.mxu0 0
      %2975 = vmatmul.mubr.bf16.gmra.mrb[0].mxu0 %v2229
      %v2976 = vpop.f32.mrb[0].mxu0
      %v2977 = vadd.f32 0.0, %v2976
      %v2978 = vpop.f32.mrb[0].mxu0
      %v2979 = vpop.f32.mrb[0].mxu0
      %v2980 = vadd.f32 0.0, %v2979
      %v2981 = vpop.f32.mrb[0].mxu0
      %2982 = vmatprep.mubr.bf16.mxu0 0
      %2983 = vmatmul.mubr.bf16.gmra.mrb[0].mxu0 %v2232
      %v2984 = vpop.f32.mrb[0].mxu0
      %v2985 = vadd.f32 0.0, %v2984
      %v2986 = vpop.f32.mrb[0].mxu0
      %v2987 = vpop.f32.mrb[0].mxu0
      %v2988 = vadd.f32 0.0, %v2987
      %v2989 = vpop.f32.mrb[0].mxu0
      %2990 = vmatprep.mubr.bf16.mxu0 0
      %2991 = vmatmul.mubr.bf16.gmra.mrb[0].mxu0 %v2235
      %v2992 = vpop.f32.mrb[0].mxu0
      %v2993 = vadd.f32 0.0, %v2992
      %v2994 = vpop.f32.mrb[0].mxu0
      %v2995 = vpop.f32.mrb[0].mxu0
      %v2996 = vadd.f32 0.0, %v2995
      %v2997 = vpop.f32.mrb[0].mxu0
      %2998 = vmatprep.mubr.bf16.mxu0 0
      %2999 = vmatmul.mubr.bf16.gmra.mrb[0].mxu0 %v2238
      %v3000 = vpop.f32.mrb[0].mxu0
      %v3001 = vadd.f32 0.0, %v3000
      %v3002 = vpop.f32.mrb[0].mxu0
      %v3003 = vpop.f32.mrb[0].mxu0
      %v3004 = vadd.f32 0.0, %v3003
      %v3005 = vpop.f32.mrb[0].mxu0
      %3006 = vmatprep.mubr.bf16.mxu0 0
      %3007 = vmatmul.mubr.bf16.gmra.mrb[0].mxu0 %v2241
      %v3008 = vpop.f32.mrb[0].mxu0
      %v3009 = vadd.f32 0.0, %v3008
      %v3010 = vpop.f32.mrb[0].mxu0
      %v3011 = vpop.f32.mrb[0].mxu0
      %v3012 = vadd.f32 0.0, %v3011
      %v3013 = vpop.f32.mrb[0].mxu0
      %3014 = vmatprep.mubr.bf16.mxu0 0
      %3015 = vmatmul.mubr.bf16.gmra.mrb[0].mxu0 %v2244
      %v3016 = vpop.f32.mrb[0].mxu0
      %v3017 = vadd.f32 0.0, %v3016
      %v3018 = vpop.f32.mrb[0].mxu0
      %v3019 = vpop.f32.mrb[0].mxu0
      %v3020 = vadd.f32 0.0, %v3019
      %v3021 = vpop.f32.mrb[0].mxu0
      %3022 = vmatprep.mubr.bf16.mxu0 0
      %3023 = vmatmul.mubr.bf16.gmra.mrb[0].mxu0 %v2247
      %v3024 = vpop.f32.mrb[0].mxu0
      %v3025 = vadd.f32 0.0, %v3024
      %v3026 = vpop.f32.mrb[0].mxu0
      %v3027 = vpop.f32.mrb[0].mxu0
      %v3028 = vadd.f32 0.0, %v3027
      %v3029 = vpop.f32.mrb[0].mxu0
      %3030 = vmatprep.mubr.bf16.mxu0 0
      %3031 = vmatmul.mubr.bf16.gmra.mrb[0].mxu0 %v2250
      %v3032 = vpop.f32.mrb[0].mxu0
      %v3033 = vadd.f32 0.0, %v3032
      %v3034 = vpop.f32.mrb[0].mxu0
      %v3035 = vpop.f32.mrb[0].mxu0
      %v3036 = vadd.f32 0.0, %v3035
      %v3037 = vpop.f32.mrb[0].mxu0
      %3038 = vmatprep.mubr.bf16.mxu0 0
      %3039 = vmatmul.mubr.bf16.gmra.mrb[0].mxu0 %v2253
      %v3040 = vpop.f32.mrb[0].mxu0
      %v3041 = vadd.f32 0.0, %v3040
      %v3042 = vpop.f32.mrb[0].mxu0
      %v3043 = vpop.f32.mrb[0].mxu0
      %v3044 = vadd.f32 0.0, %v3043
      %v3045 = vpop.f32.mrb[0].mxu0
      %3046 = vmatprep.mubr.bf16.mxu0 0
      %3047 = vmatmul.mubr.bf16.gmra.mrb[0].mxu0 %v2256
      %v3048 = vpop.f32.mrb[0].mxu0
      %v3049 = vadd.f32 0.0, %v3048
      %v3050 = vpop.f32.mrb[0].mxu0
      %v3051 = vpop.f32.mrb[0].mxu0
      %v3052 = vadd.f32 0.0, %v3051
      %v3053 = vpop.f32.mrb[0].mxu0
      %3054 = vmatprep.mubr.bf16.mxu0 0
      %3055 = vmatmul.mubr.bf16.gmra.mrb[0].mxu0 %v2259
      %v3056 = vpop.f32.mrb[0].mxu0
      %v3057 = vadd.f32 0.0, %v3056
      %v3058 = vpop.f32.mrb[0].mxu0
      %v3059 = vpop.f32.mrb[0].mxu0
      %v3060 = vadd.f32 0.0, %v3059
      %v3061 = vpop.f32.mrb[0].mxu0
      %3062 = vmatprep.mubr.bf16.mxu0 0
      %3063 = vmatmul.mubr.bf16.gmra.mrb[0].mxu0 %v2905
      %v3064 = vpop.f32.mrb[0].mxu0
      %v3065 = vadd.f32 0.0, %v3064
      %v3066 = vpop.f32.mrb[0].mxu0
      %v3067 = vpop.f32.mrb[0].mxu0
      %v3068 = vadd.f32 0.0, %v3067
      %v3069 = vpop.f32.mrb[0].mxu0
      %3070 = vdwg.mxu0
      %v3071 = vadd.f32 %v2859, %v2945
      %v3072 = vadd.f32 %v2860, %v2948
      %v3073 = vadd.f32 %v2861, %v2953
      %v3074 = vadd.f32 %v2862, %v2956
      %v3075 = vadd.f32 %v2863, %v2961
      %v3076 = vadd.f32 %v2864, %v2964
      %v3077 = vadd.f32 %v2865, %v2969
      %v3078 = vadd.f32 %v2866, %v2972
      %v3079 = vadd.f32 %v2867, %v2977
      %v3080 = vadd.f32 %v2868, %v2980
      %v3081 = vadd.f32 %v2869, %v2985
      %v3082 = vadd.f32 %v2870, %v2988
      %v3083 = vadd.f32 %v2871, %v2993
      %v3084 = vadd.f32 %v2872, %v2996
      %v3085 = vadd.f32 %v2873, %v3001
      %v3086 = vadd.f32 %v2874, %v3004
      %v3087 = vadd.f32 %v2875, %v3009
      %v3088 = vadd.f32 %v2876, %v3012
      %v3089 = vadd.f32 %v2877, %v3017
      %v3090 = vadd.f32 %v2878, %v3020
      %v3091 = vadd.f32 %v2879, %v3025
      %v3092 = vadd.f32 %v2880, %v3028
      %v3093 = vadd.f32 %v2881, %v3033
      %v3094 = vadd.f32 %v2882, %v3036
      %v3095 = vadd.f32 %v2883, %v3041
      %v3096 = vadd.f32 %v2884, %v3044
      %v3097 = vadd.f32 %v2885, %v3049
      %v3098 = vadd.f32 %v2886, %v3052
      %v3099 = vadd.f32 %v2887, %v3057
      %v3100 = vadd.f32 %v2888, %v3060
      %v3101 = vadd.f32 %v2889, %v3065
      %v3102 = vadd.f32 %v2890, %v3068
      %s3103 = scalar_lea.vmem %s3, 24
      %v3104 = vld [vmem:[%s3103] sm:$0xf]
      %v3107 = vunpack.c.l.b16 %v1085
      %v3108 = vunpack.c.l.b16 %v1086
      %v3109 = vpack.c.b16 %v3108, %v3107
      %v3111 = vsel %vm1526, %v3109, 0
      %v3114 = vsel %vm1575, %v3104, 0
      %3116 = vmatprep.subr.bf16.mxu0 0
      %3117 = vmatpush1.bf16.msra.mxu0 %v3114
      %3118 = vmatprep.subr.bf16.mxu0 0
      %3119 = vmatpush1.bf16.msra.mxu0 0
      %3120 = vmatprep.subr.bf16.mxu0 0
      %3121 = vmatpush1.bf16.msra.mxu0 0
      %3122 = vmatprep.subr.bf16.mxu0 0
      %3123 = vmatpush1.bf16.msra.mxu0 0
      %3124 = vmatprep.subr.bf16.mxu0 0
      %3125 = vmatpush1.bf16.msra.mxu0 0
      %3126 = vmatprep.subr.bf16.mxu0 0
      %3127 = vmatpush1.bf16.msra.mxu0 0
      %3128 = vmatprep.subr.bf16.mxu0 0
      %3129 = vmatpush1.bf16.msra.mxu0 0
      %3130 = vmatprep.subr.bf16.mxu0 0
      %3131 = vmatpush1.bf16.msra.mxu0 0
      %3132 = vmatprep.subr.bf16.mxu0 0
      %3133 = vmatpush1.bf16.msra.mxu0 0
      %3134 = vmatprep.subr.bf16.mxu0 0
      %3135 = vmatpush1.bf16.msra.mxu0 0
      %3136 = vmatprep.subr.bf16.mxu0 0
      %3137 = vmatpush1.bf16.msra.mxu0 0
      %3138 = vmatprep.subr.bf16.mxu0 0
      %3139 = vmatpush1.bf16.msra.mxu0 0
      %3140 = vmatprep.subr.bf16.mxu0 0
      %3141 = vmatpush1.bf16.msra.mxu0 0
      %3142 = vmatprep.subr.bf16.mxu0 0
      %3143 = vmatpush1.bf16.msra.mxu0 0
      %3144 = vmatprep.subr.bf16.mxu0 0
      %3145 = vmatpush1.bf16.msra.mxu0 0
      %3146 = vmatprep.subr.bf16.mxu0 0
      %3147 = vmatpush1.bf16.msra.mxu0 0
      %3148 = vmatprep.mubr.bf16.mxu0 0
      %3149 = vmatmul.mubr.bf16.gmra.mrb[0].mxu0 %v1827
      %v3150 = vpop.f32.mrb[0].mxu0
      %v3151 = vadd.f32 0.0, %v3150
      %v3152 = vpop.f32.mrb[0].mxu0
      %v3153 = vpop.f32.mrb[0].mxu0
      %v3154 = vadd.f32 0.0, %v3153
      %v3155 = vpop.f32.mrb[0].mxu0
      %3156 = vmatprep.mubr.bf16.mxu0 0
      %3157 = vmatmul.mubr.bf16.gmra.mrb[0].mxu0 %v1830
      %v3158 = vpop.f32.mrb[0].mxu0
      %v3159 = vadd.f32 0.0, %v3158
      %v3160 = vpop.f32.mrb[0].mxu0
      %v3161 = vpop.f32.mrb[0].mxu0
      %v3162 = vadd.f32 0.0, %v3161
      %v3163 = vpop.f32.mrb[0].mxu0
      %3164 = vmatprep.mubr.bf16.mxu0 0
      %3165 = vmatmul.mubr.bf16.gmra.mrb[0].mxu0 %v1833
      %v3166 = vpop.f32.mrb[0].mxu0
      %v3167 = vadd.f32 0.0, %v3166
      %v3168 = vpop.f32.mrb[0].mxu0
      %v3169 = vpop.f32.mrb[0].mxu0
      %v3170 = vadd.f32 0.0, %v3169
      %v3171 = vpop.f32.mrb[0].mxu0
      %3172 = vmatprep.mubr.bf16.mxu0 0
      %3173 = vmatmul.mubr.bf16.gmra.mrb[0].mxu0 %v1836
      %v3174 = vpop.f32.mrb[0].mxu0
      %v3175 = vadd.f32 0.0, %v3174
      %v3176 = vpop.f32.mrb[0].mxu0
      %v3177 = vpop.f32.mrb[0].mxu0
      %v3178 = vadd.f32 0.0, %v3177
      %v3179 = vpop.f32.mrb[0].mxu0
      %3180 = vmatprep.mubr.bf16.mxu0 0
      %3181 = vmatmul.mubr.bf16.gmra.mrb[0].mxu0 %v1839
      %v3182 = vpop.f32.mrb[0].mxu0
      %v3183 = vadd.f32 0.0, %v3182
      %v3184 = vpop.f32.mrb[0].mxu0
      %v3185 = vpop.f32.mrb[0].mxu0
      %v3186 = vadd.f32 0.0, %v3185
      %v3187 = vpop.f32.mrb[0].mxu0
      %3188 = vmatprep.mubr.bf16.mxu0 0
      %3189 = vmatmul.mubr.bf16.gmra.mrb[0].mxu0 %v1842
      %v3190 = vpop.f32.mrb[0].mxu0
      %v3191 = vadd.f32 0.0, %v3190
      %v3192 = vpop.f32.mrb[0].mxu0
      %v3193 = vpop.f32.mrb[0].mxu0
      %v3194 = vadd.f32 0.0, %v3193
      %v3195 = vpop.f32.mrb[0].mxu0
      %3196 = vmatprep.mubr.bf16.mxu0 0
      %3197 = vmatmul.mubr.bf16.gmra.mrb[0].mxu0 %v1845
      %v3198 = vpop.f32.mrb[0].mxu0
      %v3199 = vadd.f32 0.0, %v3198
      %v3200 = vpop.f32.mrb[0].mxu0
      %v3201 = vpop.f32.mrb[0].mxu0
      %v3202 = vadd.f32 0.0, %v3201
      %v3203 = vpop.f32.mrb[0].mxu0
      %3204 = vmatprep.mubr.bf16.mxu0 0
      %3205 = vmatmul.mubr.bf16.gmra.mrb[0].mxu0 %v1848
      %v3206 = vpop.f32.mrb[0].mxu0
      %v3207 = vadd.f32 0.0, %v3206
      %v3208 = vpop.f32.mrb[0].mxu0
      %v3209 = vpop.f32.mrb[0].mxu0
      %v3210 = vadd.f32 0.0, %v3209
      %v3211 = vpop.f32.mrb[0].mxu0
      %3212 = vmatprep.mubr.bf16.mxu0 0
      %3213 = vmatmul.mubr.bf16.gmra.mrb[0].mxu0 %v1851
      %v3214 = vpop.f32.mrb[0].mxu0
      %v3215 = vadd.f32 0.0, %v3214
      %v3216 = vpop.f32.mrb[0].mxu0
      %v3217 = vpop.f32.mrb[0].mxu0
      %v3218 = vadd.f32 0.0, %v3217
      %v3219 = vpop.f32.mrb[0].mxu0
      %3220 = vmatprep.mubr.bf16.mxu0 0
      %3221 = vmatmul.mubr.bf16.gmra.mrb[0].mxu0 %v1854
      %v3222 = vpop.f32.mrb[0].mxu0
      %v3223 = vadd.f32 0.0, %v3222
      %v3224 = vpop.f32.mrb[0].mxu0
      %v3225 = vpop.f32.mrb[0].mxu0
      %v3226 = vadd.f32 0.0, %v3225
      %v3227 = vpop.f32.mrb[0].mxu0
      %3228 = vmatprep.mubr.bf16.mxu0 0
      %3229 = vmatmul.mubr.bf16.gmra.mrb[0].mxu0 %v1857
      %v3230 = vpop.f32.mrb[0].mxu0
      %v3231 = vadd.f32 0.0, %v3230
      %v3232 = vpop.f32.mrb[0].mxu0
      %v3233 = vpop.f32.mrb[0].mxu0
      %v3234 = vadd.f32 0.0, %v3233
      %v3235 = vpop.f32.mrb[0].mxu0
      %3236 = vmatprep.mubr.bf16.mxu0 0
      %3237 = vmatmul.mubr.bf16.gmra.mrb[0].mxu0 %v1860
      %v3238 = vpop.f32.mrb[0].mxu0
      %v3239 = vadd.f32 0.0, %v3238
      %v3240 = vpop.f32.mrb[0].mxu0
      %v3241 = vpop.f32.mrb[0].mxu0
      %v3242 = vadd.f32 0.0, %v3241
      %v3243 = vpop.f32.mrb[0].mxu0
      %3244 = vmatprep.mubr.bf16.mxu0 0
      %3245 = vmatmul.mubr.bf16.gmra.mrb[0].mxu0 %v1863
      %v3246 = vpop.f32.mrb[0].mxu0
      %v3247 = vadd.f32 0.0, %v3246
      %v3248 = vpop.f32.mrb[0].mxu0
      %v3249 = vpop.f32.mrb[0].mxu0
      %v3250 = vadd.f32 0.0, %v3249
      %v3251 = vpop.f32.mrb[0].mxu0
      %3252 = vmatprep.mubr.bf16.mxu0 0
      %3253 = vmatmul.mubr.bf16.gmra.mrb[0].mxu0 %v1866
      %v3254 = vpop.f32.mrb[0].mxu0
      %v3255 = vadd.f32 0.0, %v3254
      %v3256 = vpop.f32.mrb[0].mxu0
      %v3257 = vpop.f32.mrb[0].mxu0
      %v3258 = vadd.f32 0.0, %v3257
      %v3259 = vpop.f32.mrb[0].mxu0
      %3260 = vmatprep.mubr.bf16.mxu0 0
      %3261 = vmatmul.mubr.bf16.gmra.mrb[0].mxu0 %v2465
      %v3262 = vpop.f32.mrb[0].mxu0
      %v3263 = vadd.f32 0.0, %v3262
      %v3264 = vpop.f32.mrb[0].mxu0
      %v3265 = vpop.f32.mrb[0].mxu0
      %v3266 = vadd.f32 0.0, %v3265
      %v3267 = vpop.f32.mrb[0].mxu0
      %3268 = vmatprep.mubr.bf16.mxu0 0
      %3269 = vmatmul.mubr.bf16.gmra.mrb[0].mxu0 %v3111
      %v3270 = vpop.f32.mrb[0].mxu0
      %v3271 = vadd.f32 0.0, %v3270
      %v3272 = vpop.f32.mrb[0].mxu0
      %v3273 = vpop.f32.mrb[0].mxu0
      %v3274 = vadd.f32 0.0, %v3273
      %v3275 = vpop.f32.mrb[0].mxu0
      %3276 = vdwg.mxu0
      %v3277 = vadd.f32 %v3071, %v3151
      %v3278 = vadd.f32 %v3072, %v3154
      %v3279 = vadd.f32 %v3073, %v3159
      %v3280 = vadd.f32 %v3074, %v3162
      %v3281 = vadd.f32 %v3075, %v3167
      %v3282 = vadd.f32 %v3076, %v3170
      %v3283 = vadd.f32 %v3077, %v3175
      %v3284 = vadd.f32 %v3078, %v3178
      %v3285 = vadd.f32 %v3079, %v3183
      %v3286 = vadd.f32 %v3080, %v3186
      %v3287 = vadd.f32 %v3081, %v3191
      %v3288 = vadd.f32 %v3082, %v3194
      %v3289 = vadd.f32 %v3083, %v3199
      %v3290 = vadd.f32 %v3084, %v3202
      %v3291 = vadd.f32 %v3085, %v3207
      %v3292 = vadd.f32 %v3086, %v3210
      %v3293 = vadd.f32 %v3087, %v3215
      %v3294 = vadd.f32 %v3088, %v3218
      %v3295 = vadd.f32 %v3089, %v3223
      %v3296 = vadd.f32 %v3090, %v3226
      %v3297 = vadd.f32 %v3091, %v3231
      %v3298 = vadd.f32 %v3092, %v3234
      %v3299 = vadd.f32 %v3093, %v3239
      %v3300 = vadd.f32 %v3094, %v3242
      %v3301 = vadd.f32 %v3095, %v3247
      %v3302 = vadd.f32 %v3096, %v3250
      %v3303 = vadd.f32 %v3097, %v3255
      %v3304 = vadd.f32 %v3098, %v3258
      %v3305 = vadd.f32 %v3099, %v3263
      %v3306 = vadd.f32 %v3100, %v3266
      %v3307 = vadd.f32 %v3101, %v3271
      %v3308 = vadd.f32 %v3102, %v3274
      %v3310 = vshrl.u32 %v1085, 16
      %v3312 = vrot.slane %v3310, 4
      %v3313 = vshll.u32 %v1085, 16
      %v3315 = vrot.slane %v3313, 5
      %v3316 = vor.u32 %v3312, %v3315
      %v3317 = vrot.slane %v3316, 4
      %v3319 = vshll.u32 %v1086, 16
      %v3321 = vrot.slane %v3319, 5
      %v3322 = vsel %vm1091, %v3317, %v3321
      %v3323 = vshrl.u32 %v1086, 16
      %v3325 = vrot.slane %v3323, 4
      %v3326 = vor.u32 %v3325, %v3321
      %v3327 = vrot.slane %v3326, 4
      %v3329 = vshll.u32 %v1087, 16
      %v3331 = vrot.slane %v3329, 5
      %v3332 = vsel %vm1091, %v3327, %v3331
      %s3333 = scalar_lea.vmem %s3, 28
      %v3334 = vld [vmem:[%s3333] sm:$0xf]
      %v3335 = vunpack.c.l.b16 %v3322
      %v3336 = vunpack.c.l.b16 %v3332
      %v3337 = vpack.c.b16 %v3336, %v3335
      %v3339 = vsel %vm1526, %v3337, 0
      %v3342 = vsel %vm1575, %v3334, 0
      %3344 = vmatprep.subr.bf16.mxu0 0
      %3345 = vmatpush1.bf16.msra.mxu0 %v3342
      %3346 = vmatprep.subr.bf16.mxu0 0
      %3347 = vmatpush1.bf16.msra.mxu0 0
      %3348 = vmatprep.subr.bf16.mxu0 0
      %3349 = vmatpush1.bf16.msra.mxu0 0
      %3350 = vmatprep.subr.bf16.mxu0 0
      %3351 = vmatpush1.bf16.msra.mxu0 0
      %3352 = vmatprep.subr.bf16.mxu0 0
      %3353 = vmatpush1.bf16.msra.mxu0 0
      %3354 = vmatprep.subr.bf16.mxu0 0
      %3355 = vmatpush1.bf16.msra.mxu0 0
      %3356 = vmatprep.subr.bf16.mxu0 0
      %3357 = vmatpush1.bf16.msra.mxu0 0
      %3358 = vmatprep.subr.bf16.mxu0 0
      %3359 = vmatpush1.bf16.msra.mxu0 0
      %3360 = vmatprep.subr.bf16.mxu0 0
      %3361 = vmatpush1.bf16.msra.mxu0 0
      %3362 = vmatprep.subr.bf16.mxu0 0
      %3363 = vmatpush1.bf16.msra.mxu0 0
      %3364 = vmatprep.subr.bf16.mxu0 0
      %3365 = vmatpush1.bf16.msra.mxu0 0
      %3366 = vmatprep.subr.bf16.mxu0 0
      %3367 = vmatpush1.bf16.msra.mxu0 0
      %3368 = vmatprep.subr.bf16.mxu0 0
      %3369 = vmatpush1.bf16.msra.mxu0 0
      %3370 = vmatprep.subr.bf16.mxu0 0
      %3371 = vmatpush1.bf16.msra.mxu0 0
      %3372 = vmatprep.subr.bf16.mxu0 0
      %3373 = vmatpush1.bf16.msra.mxu0 0
      %3374 = vmatprep.subr.bf16.mxu0 0
      %3375 = vmatpush1.bf16.msra.mxu0 0
      %3376 = vmatprep.mubr.bf16.mxu0 0
      %3377 = vmatmul.mubr.bf16.gmra.mrb[0].mxu0 %v1534
      %v3378 = vpop.f32.mrb[0].mxu0
      %v3379 = vadd.f32 0.0, %v3378
      %v3380 = vpop.f32.mrb[0].mxu0
      %v3381 = vpop.f32.mrb[0].mxu0
      %v3382 = vadd.f32 0.0, %v3381
      %v3383 = vpop.f32.mrb[0].mxu0
      %3384 = vmatprep.mubr.bf16.mxu0 0
      %3385 = vmatmul.mubr.bf16.gmra.mrb[0].mxu0 %v1537
      %v3386 = vpop.f32.mrb[0].mxu0
      %v3387 = vadd.f32 0.0, %v3386
      %v3388 = vpop.f32.mrb[0].mxu0
      %v3389 = vpop.f32.mrb[0].mxu0
      %v3390 = vadd.f32 0.0, %v3389
      %v3391 = vpop.f32.mrb[0].mxu0
      %3392 = vmatprep.mubr.bf16.mxu0 0
      %3393 = vmatmul.mubr.bf16.gmra.mrb[0].mxu0 %v1540
      %v3394 = vpop.f32.mrb[0].mxu0
      %v3395 = vadd.f32 0.0, %v3394
      %v3396 = vpop.f32.mrb[0].mxu0
      %v3397 = vpop.f32.mrb[0].mxu0
      %v3398 = vadd.f32 0.0, %v3397
      %v3399 = vpop.f32.mrb[0].mxu0
      %3400 = vmatprep.mubr.bf16.mxu0 0
      %3401 = vmatmul.mubr.bf16.gmra.mrb[0].mxu0 %v1543
      %v3402 = vpop.f32.mrb[0].mxu0
      %v3403 = vadd.f32 0.0, %v3402
      %v3404 = vpop.f32.mrb[0].mxu0
      %v3405 = vpop.f32.mrb[0].mxu0
      %v3406 = vadd.f32 0.0, %v3405
      %v3407 = vpop.f32.mrb[0].mxu0
      %3408 = vmatprep.mubr.bf16.mxu0 0
      %3409 = vmatmul.mubr.bf16.gmra.mrb[0].mxu0 %v1546
      %v3410 = vpop.f32.mrb[0].mxu0
      %v3411 = vadd.f32 0.0, %v3410
      %v3412 = vpop.f32.mrb[0].mxu0
      %v3413 = vpop.f32.mrb[0].mxu0
      %v3414 = vadd.f32 0.0, %v3413
      %v3415 = vpop.f32.mrb[0].mxu0
      %3416 = vmatprep.mubr.bf16.mxu0 0
      %3417 = vmatmul.mubr.bf16.gmra.mrb[0].mxu0 %v1549
      %v3418 = vpop.f32.mrb[0].mxu0
      %v3419 = vadd.f32 0.0, %v3418
      %v3420 = vpop.f32.mrb[0].mxu0
      %v3421 = vpop.f32.mrb[0].mxu0
      %v3422 = vadd.f32 0.0, %v3421
      %v3423 = vpop.f32.mrb[0].mxu0
      %3424 = vmatprep.mubr.bf16.mxu0 0
      %3425 = vmatmul.mubr.bf16.gmra.mrb[0].mxu0 %v1552
      %v3426 = vpop.f32.mrb[0].mxu0
      %v3427 = vadd.f32 0.0, %v3426
      %v3428 = vpop.f32.mrb[0].mxu0
      %v3429 = vpop.f32.mrb[0].mxu0
      %v3430 = vadd.f32 0.0, %v3429
      %v3431 = vpop.f32.mrb[0].mxu0
      %3432 = vmatprep.mubr.bf16.mxu0 0
      %3433 = vmatmul.mubr.bf16.gmra.mrb[0].mxu0 %v1555
      %v3434 = vpop.f32.mrb[0].mxu0
      %v3435 = vadd.f32 0.0, %v3434
      %v3436 = vpop.f32.mrb[0].mxu0
      %v3437 = vpop.f32.mrb[0].mxu0
      %v3438 = vadd.f32 0.0, %v3437
      %v3439 = vpop.f32.mrb[0].mxu0
      %3440 = vmatprep.mubr.bf16.mxu0 0
      %3441 = vmatmul.mubr.bf16.gmra.mrb[0].mxu0 %v1558
      %v3442 = vpop.f32.mrb[0].mxu0
      %v3443 = vadd.f32 0.0, %v3442
      %v3444 = vpop.f32.mrb[0].mxu0
      %v3445 = vpop.f32.mrb[0].mxu0
      %v3446 = vadd.f32 0.0, %v3445
      %v3447 = vpop.f32.mrb[0].mxu0
      %3448 = vmatprep.mubr.bf16.mxu0 0
      %3449 = vmatmul.mubr.bf16.gmra.mrb[0].mxu0 %v1561
      %v3450 = vpop.f32.mrb[0].mxu0
      %v3451 = vadd.f32 0.0, %v3450
      %v3452 = vpop.f32.mrb[0].mxu0
      %v3453 = vpop.f32.mrb[0].mxu0
      %v3454 = vadd.f32 0.0, %v3453
      %v3455 = vpop.f32.mrb[0].mxu0
      %3456 = vmatprep.mubr.bf16.mxu0 0
      %3457 = vmatmul.mubr.bf16.gmra.mrb[0].mxu0 %v1564
      %v3458 = vpop.f32.mrb[0].mxu0
      %v3459 = vadd.f32 0.0, %v3458
      %v3460 = vpop.f32.mrb[0].mxu0
      %v3461 = vpop.f32.mrb[0].mxu0
      %v3462 = vadd.f32 0.0, %v3461
      %v3463 = vpop.f32.mrb[0].mxu0
      %3464 = vmatprep.mubr.bf16.mxu0 0
      %3465 = vmatmul.mubr.bf16.gmra.mrb[0].mxu0 %v1567
      %v3466 = vpop.f32.mrb[0].mxu0
      %v3467 = vadd.f32 0.0, %v3466
      %v3468 = vpop.f32.mrb[0].mxu0
      %v3469 = vpop.f32.mrb[0].mxu0
      %v3470 = vadd.f32 0.0, %v3469
      %v3471 = vpop.f32.mrb[0].mxu0
      %3472 = vmatprep.mubr.bf16.mxu0 0
      %3473 = vmatmul.mubr.bf16.gmra.mrb[0].mxu0 %v1570
      %v3474 = vpop.f32.mrb[0].mxu0
      %v3475 = vadd.f32 0.0, %v3474
      %v3476 = vpop.f32.mrb[0].mxu0
      %v3477 = vpop.f32.mrb[0].mxu0
      %v3478 = vadd.f32 0.0, %v3477
      %v3479 = vpop.f32.mrb[0].mxu0
      %3480 = vmatprep.mubr.bf16.mxu0 0
      %3481 = vmatmul.mubr.bf16.gmra.mrb[0].mxu0 %v1573
      %v3482 = vpop.f32.mrb[0].mxu0
      %v3483 = vadd.f32 0.0, %v3482
      %v3484 = vpop.f32.mrb[0].mxu0
      %v3485 = vpop.f32.mrb[0].mxu0
      %v3486 = vadd.f32 0.0, %v3485
      %v3487 = vpop.f32.mrb[0].mxu0
      %3488 = vmatprep.mubr.bf16.mxu0 0
      %3489 = vmatmul.mubr.bf16.gmra.mrb[0].mxu0 %v2693
      %v3490 = vpop.f32.mrb[0].mxu0
      %v3491 = vadd.f32 0.0, %v3490
      %v3492 = vpop.f32.mrb[0].mxu0
      %v3493 = vpop.f32.mrb[0].mxu0
      %v3494 = vadd.f32 0.0, %v3493
      %v3495 = vpop.f32.mrb[0].mxu0
      %3496 = vmatprep.mubr.bf16.mxu0 0
      %3497 = vmatmul.mubr.bf16.gmra.mrb[0].mxu0 %v3339
      %v3498 = vpop.f32.mrb[0].mxu0
      %v3499 = vadd.f32 0.0, %v3498
      %v3500 = vpop.f32.mrb[0].mxu0
      %v3501 = vpop.f32.mrb[0].mxu0
      %v3502 = vadd.f32 0.0, %v3501
      %v3503 = vpop.f32.mrb[0].mxu0
      %3504 = vdwg.mxu0
      %v3505 = vadd.f32 %v3277, %v3379
      %v3506 = vadd.f32 %v3278, %v3382
      %v3507 = vadd.f32 %v3279, %v3387
      %v3508 = vadd.f32 %v3280, %v3390
      %v3509 = vadd.f32 %v3281, %v3395
      %v3510 = vadd.f32 %v3282, %v3398
      %v3511 = vadd.f32 %v3283, %v3403
      %v3512 = vadd.f32 %v3284, %v3406
      %v3513 = vadd.f32 %v3285, %v3411
      %v3514 = vadd.f32 %v3286, %v3414
      %v3515 = vadd.f32 %v3287, %v3419
      %v3516 = vadd.f32 %v3288, %v3422
      %v3517 = vadd.f32 %v3289, %v3427
      %v3518 = vadd.f32 %v3290, %v3430
      %v3519 = vadd.f32 %v3291, %v3435
      %v3520 = vadd.f32 %v3292, %v3438
      %v3521 = vadd.f32 %v3293, %v3443
      %v3522 = vadd.f32 %v3294, %v3446
      %v3523 = vadd.f32 %v3295, %v3451
      %v3524 = vadd.f32 %v3296, %v3454
      %v3525 = vadd.f32 %v3297, %v3459
      %v3526 = vadd.f32 %v3298, %v3462
      %v3527 = vadd.f32 %v3299, %v3467
      %v3528 = vadd.f32 %v3300, %v3470
      %v3529 = vadd.f32 %v3301, %v3475
      %v3530 = vadd.f32 %v3302, %v3478
      %v3531 = vadd.f32 %v3303, %v3483
      %v3532 = vadd.f32 %v3304, %v3486
      %v3533 = vadd.f32 %v3305, %v3491
      %v3534 = vadd.f32 %v3306, %v3494
      %v3535 = vadd.f32 %v3307, %v3499
      %v3536 = vadd.f32 %v3308, %v3502
      %v3538 = vrot.slane %v1085, 5
      %v3539 = vrot.slane %v3538, 4
      %v3540 = vrot.slane %v1086, 5
      %v3541 = vsel %vm2050, %v3539, %v3540
      %v3542 = vrot.slane %v3540, 4
      %v3543 = vrot.slane %v1087, 5
      %v3544 = vsel %vm2050, %v3542, %v3543
      %s3545 = scalar_lea.vmem %s3, 32
      %v3546 = vld [vmem:[%s3545] sm:$0xf]
      %v3547 = vunpack.c.l.b16 %v3541
      %v3548 = vunpack.c.l.b16 %v3544
      %v3549 = vpack.c.b16 %v3548, %v3547
      %v3551 = vsel %vm1526, %v3549, 0
      %v3554 = vsel %vm1575, %v3546, 0
      %3556 = vmatprep.subr.bf16.mxu0 0
      %3557 = vmatpush1.bf16.msra.mxu0 %v3554
      %3558 = vmatprep.subr.bf16.mxu0 0
      %3559 = vmatpush1.bf16.msra.mxu0 0
      %3560 = vmatprep.subr.bf16.mxu0 0
      %3561 = vmatpush1.bf16.msra.mxu0 0
      %3562 = vmatprep.subr.bf16.mxu0 0
      %3563 = vmatpush1.bf16.msra.mxu0 0
      %3564 = vmatprep.subr.bf16.mxu0 0
      %3565 = vmatpush1.bf16.msra.mxu0 0
      %3566 = vmatprep.subr.bf16.mxu0 0
      %3567 = vmatpush1.bf16.msra.mxu0 0
      %3568 = vmatprep.subr.bf16.mxu0 0
      %3569 = vmatpush1.bf16.msra.mxu0 0
      %3570 = vmatprep.subr.bf16.mxu0 0
      %3571 = vmatpush1.bf16.msra.mxu0 0
      %3572 = vmatprep.subr.bf16.mxu0 0
      %3573 = vmatpush1.bf16.msra.mxu0 0
      %3574 = vmatprep.subr.bf16.mxu0 0
      %3575 = vmatpush1.bf16.msra.mxu0 0
      %3576 = vmatprep.subr.bf16.mxu0 0
      %3577 = vmatpush1.bf16.msra.mxu0 0
      %3578 = vmatprep.subr.bf16.mxu0 0
      %3579 = vmatpush1.bf16.msra.mxu0 0
      %3580 = vmatprep.subr.bf16.mxu0 0
      %3581 = vmatpush1.bf16.msra.mxu0 0
      %3582 = vmatprep.subr.bf16.mxu0 0
      %3583 = vmatpush1.bf16.msra.mxu0 0
      %3584 = vmatprep.subr.bf16.mxu0 0
      %3585 = vmatpush1.bf16.msra.mxu0 0
      %3586 = vmatprep.subr.bf16.mxu0 0
      %3587 = vmatpush1.bf16.msra.mxu0 0
      %3588 = vmatprep.mubr.bf16.mxu0 0
      %3589 = vmatmul.mubr.bf16.gmra.mrb[0].mxu0 %v2220
      %v3590 = vpop.f32.mrb[0].mxu0
      %v3591 = vadd.f32 0.0, %v3590
      %v3592 = vpop.f32.mrb[0].mxu0
      %v3593 = vpop.f32.mrb[0].mxu0
      %v3594 = vadd.f32 0.0, %v3593
      %v3595 = vpop.f32.mrb[0].mxu0
      %3596 = vmatprep.mubr.bf16.mxu0 0
      %3597 = vmatmul.mubr.bf16.gmra.mrb[0].mxu0 %v2223
      %v3598 = vpop.f32.mrb[0].mxu0
      %v3599 = vadd.f32 0.0, %v3598
      %v3600 = vpop.f32.mrb[0].mxu0
      %v3601 = vpop.f32.mrb[0].mxu0
      %v3602 = vadd.f32 0.0, %v3601
      %v3603 = vpop.f32.mrb[0].mxu0
      %3604 = vmatprep.mubr.bf16.mxu0 0
      %3605 = vmatmul.mubr.bf16.gmra.mrb[0].mxu0 %v2226
      %v3606 = vpop.f32.mrb[0].mxu0
      %v3607 = vadd.f32 0.0, %v3606
      %v3608 = vpop.f32.mrb[0].mxu0
      %v3609 = vpop.f32.mrb[0].mxu0
      %v3610 = vadd.f32 0.0, %v3609
      %v3611 = vpop.f32.mrb[0].mxu0
      %3612 = vmatprep.mubr.bf16.mxu0 0
      %3613 = vmatmul.mubr.bf16.gmra.mrb[0].mxu0 %v2229
      %v3614 = vpop.f32.mrb[0].mxu0
      %v3615 = vadd.f32 0.0, %v3614
      %v3616 = vpop.f32.mrb[0].mxu0
      %v3617 = vpop.f32.mrb[0].mxu0
      %v3618 = vadd.f32 0.0, %v3617
      %v3619 = vpop.f32.mrb[0].mxu0
      %3620 = vmatprep.mubr.bf16.mxu0 0
      %3621 = vmatmul.mubr.bf16.gmra.mrb[0].mxu0 %v2232
      %v3622 = vpop.f32.mrb[0].mxu0
      %v3623 = vadd.f32 0.0, %v3622
      %v3624 = vpop.f32.mrb[0].mxu0
      %v3625 = vpop.f32.mrb[0].mxu0
      %v3626 = vadd.f32 0.0, %v3625
      %v3627 = vpop.f32.mrb[0].mxu0
      %3628 = vmatprep.mubr.bf16.mxu0 0
      %3629 = vmatmul.mubr.bf16.gmra.mrb[0].mxu0 %v2235
      %v3630 = vpop.f32.mrb[0].mxu0
      %v3631 = vadd.f32 0.0, %v3630
      %v3632 = vpop.f32.mrb[0].mxu0
      %v3633 = vpop.f32.mrb[0].mxu0
      %v3634 = vadd.f32 0.0, %v3633
      %v3635 = vpop.f32.mrb[0].mxu0
      %3636 = vmatprep.mubr.bf16.mxu0 0
      %3637 = vmatmul.mubr.bf16.gmra.mrb[0].mxu0 %v2238
      %v3638 = vpop.f32.mrb[0].mxu0
      %v3639 = vadd.f32 0.0, %v3638
      %v3640 = vpop.f32.mrb[0].mxu0
      %v3641 = vpop.f32.mrb[0].mxu0
      %v3642 = vadd.f32 0.0, %v3641
      %v3643 = vpop.f32.mrb[0].mxu0
      %3644 = vmatprep.mubr.bf16.mxu0 0
      %3645 = vmatmul.mubr.bf16.gmra.mrb[0].mxu0 %v2241
      %v3646 = vpop.f32.mrb[0].mxu0
      %v3647 = vadd.f32 0.0, %v3646
      %v3648 = vpop.f32.mrb[0].mxu0
      %v3649 = vpop.f32.mrb[0].mxu0
      %v3650 = vadd.f32 0.0, %v3649
      %v3651 = vpop.f32.mrb[0].mxu0
      %3652 = vmatprep.mubr.bf16.mxu0 0
      %3653 = vmatmul.mubr.bf16.gmra.mrb[0].mxu0 %v2244
      %v3654 = vpop.f32.mrb[0].mxu0
      %v3655 = vadd.f32 0.0, %v3654
      %v3656 = vpop.f32.mrb[0].mxu0
      %v3657 = vpop.f32.mrb[0].mxu0
      %v3658 = vadd.f32 0.0, %v3657
      %v3659 = vpop.f32.mrb[0].mxu0
      %3660 = vmatprep.mubr.bf16.mxu0 0
      %3661 = vmatmul.mubr.bf16.gmra.mrb[0].mxu0 %v2247
      %v3662 = vpop.f32.mrb[0].mxu0
      %v3663 = vadd.f32 0.0, %v3662
      %v3664 = vpop.f32.mrb[0].mxu0
      %v3665 = vpop.f32.mrb[0].mxu0
      %v3666 = vadd.f32 0.0, %v3665
      %v3667 = vpop.f32.mrb[0].mxu0
      %3668 = vmatprep.mubr.bf16.mxu0 0
      %3669 = vmatmul.mubr.bf16.gmra.mrb[0].mxu0 %v2250
      %v3670 = vpop.f32.mrb[0].mxu0
      %v3671 = vadd.f32 0.0, %v3670
      %v3672 = vpop.f32.mrb[0].mxu0
      %v3673 = vpop.f32.mrb[0].mxu0
      %v3674 = vadd.f32 0.0, %v3673
      %v3675 = vpop.f32.mrb[0].mxu0
      %3676 = vmatprep.mubr.bf16.mxu0 0
      %3677 = vmatmul.mubr.bf16.gmra.mrb[0].mxu0 %v2253
      %v3678 = vpop.f32.mrb[0].mxu0
      %v3679 = vadd.f32 0.0, %v3678
      %v3680 = vpop.f32.mrb[0].mxu0
      %v3681 = vpop.f32.mrb[0].mxu0
      %v3682 = vadd.f32 0.0, %v3681
      %v3683 = vpop.f32.mrb[0].mxu0
      %3684 = vmatprep.mubr.bf16.mxu0 0
      %3685 = vmatmul.mubr.bf16.gmra.mrb[0].mxu0 %v2256
      %v3686 = vpop.f32.mrb[0].mxu0
      %v3687 = vadd.f32 0.0, %v3686
      %v3688 = vpop.f32.mrb[0].mxu0
      %v3689 = vpop.f32.mrb[0].mxu0
      %v3690 = vadd.f32 0.0, %v3689
      %v3691 = vpop.f32.mrb[0].mxu0
      %3692 = vmatprep.mubr.bf16.mxu0 0
      %3693 = vmatmul.mubr.bf16.gmra.mrb[0].mxu0 %v2259
      %v3694 = vpop.f32.mrb[0].mxu0
      %v3695 = vadd.f32 0.0, %v3694
      %v3696 = vpop.f32.mrb[0].mxu0
      %v3697 = vpop.f32.mrb[0].mxu0
      %v3698 = vadd.f32 0.0, %v3697
      %v3699 = vpop.f32.mrb[0].mxu0
      %3700 = vmatprep.mubr.bf16.mxu0 0
      %3701 = vmatmul.mubr.bf16.gmra.mrb[0].mxu0 %v2905
      %v3702 = vpop.f32.mrb[0].mxu0
      %v3703 = vadd.f32 0.0, %v3702
      %v3704 = vpop.f32.mrb[0].mxu0
      %v3705 = vpop.f32.mrb[0].mxu0
      %v3706 = vadd.f32 0.0, %v3705
      %v3707 = vpop.f32.mrb[0].mxu0
      %3708 = vmatprep.mubr.bf16.mxu0 0
      %3709 = vmatmul.mubr.bf16.gmra.mrb[0].mxu0 %v3551
      %v3710 = vpop.f32.mrb[0].mxu0
      %v3711 = vadd.f32 0.0, %v3710
      %v3712 = vpop.f32.mrb[0].mxu0
      %v3713 = vpop.f32.mrb[0].mxu0
      %v3714 = vadd.f32 0.0, %v3713
      %v3715 = vpop.f32.mrb[0].mxu0
      %3716 = vdwg.mxu0
      %v3717 = vadd.f32 %v3505, %v3591
      %v3718 = vadd.f32 %v3506, %v3594
      %v3719 = vadd.f32 %v3507, %v3599
      %v3720 = vadd.f32 %v3508, %v3602
      %v3721 = vadd.f32 %v3509, %v3607
      %v3722 = vadd.f32 %v3510, %v3610
      %v3723 = vadd.f32 %v3511, %v3615
      %v3724 = vadd.f32 %v3512, %v3618
      %v3725 = vadd.f32 %v3513, %v3623
      %v3726 = vadd.f32 %v3514, %v3626
      %v3727 = vadd.f32 %v3515, %v3631
      %v3728 = vadd.f32 %v3516, %v3634
      %v3729 = vadd.f32 %v3517, %v3639
      %v3730 = vadd.f32 %v3518, %v3642
      %v3731 = vadd.f32 %v3519, %v3647
      %v3732 = vadd.f32 %v3520, %v3650
      %v3733 = vadd.f32 %v3521, %v3655
      %v3734 = vadd.f32 %v3522, %v3658
      %v3735 = vadd.f32 %v3523, %v3663
      %v3736 = vadd.f32 %v3524, %v3666
      %v3737 = vadd.f32 %v3525, %v3671
      %v3738 = vadd.f32 %v3526, %v3674
      %v3739 = vadd.f32 %v3527, %v3679
      %v3740 = vadd.f32 %v3528, %v3682
      %v3741 = vadd.f32 %v3529, %v3687
      %v3742 = vadd.f32 %v3530, %v3690
      %v3743 = vadd.f32 %v3531, %v3695
      %v3744 = vadd.f32 %v3532, %v3698
      %v3745 = vadd.f32 %v3533, %v3703
      %v3746 = vadd.f32 %v3534, %v3706
      %v3747 = vadd.f32 %v3535, %v3711
      %v3748 = vadd.f32 %v3536, %v3714
      %3749 = vst.msk [vmem:[%s231] sm:$0xff] %vm1526, %v3717
      %3750 = vst.msk [vmem:[%s231 + $0x8] sm:$0xff] %vm1526, %v3718
      %3751 = vst.msk [vmem:[%s231 + $0x10] sm:$0xff] %vm1526, %v3719
      %3752 = vst.msk [vmem:[%s231 + $0x18] sm:$0xff] %vm1526, %v3720
      %3753 = vst.msk [vmem:[%s231 + $0x20] sm:$0xff] %vm1526, %v3721
      %3754 = vst.msk [vmem:[%s231 + $0x28] sm:$0xff] %vm1526, %v3722
      %3755 = vst.msk [vmem:[%s231 + $0x30] sm:$0xff] %vm1526, %v3723
      %3756 = vst.msk [vmem:[%s231 + $0x38] sm:$0xff] %vm1526, %v3724
      %3757 = vst.msk [vmem:[%s231 + $0x40] sm:$0xff] %vm1526, %v3725
      %3758 = vst.msk [vmem:[%s231 + $0x48] sm:$0xff] %vm1526, %v3726
      %3759 = vst.msk [vmem:[%s231 + $0x50] sm:$0xff] %vm1526, %v3727
      %3760 = vst.msk [vmem:[%s231 + $0x58] sm:$0xff] %vm1526, %v3728
      %3761 = vst.msk [vmem:[%s231 + $0x60] sm:$0xff] %vm1526, %v3729
      %3762 = vst.msk [vmem:[%s231 + $0x68] sm:$0xff] %vm1526, %v3730
      %3763 = vst.msk [vmem:[%s231 + $0x70] sm:$0xff] %vm1526, %v3731
      %3764 = vst.msk [vmem:[%s231 + $0x78] sm:$0xff] %vm1526, %v3732
      %3765 = vst.msk [vmem:[%s231 + $0x80] sm:$0xff] %vm1526, %v3733
      %3766 = vst.msk [vmem:[%s231 + $0x88] sm:$0xff] %vm1526, %v3734
      %3767 = vst.msk [vmem:[%s231 + $0x90] sm:$0xff] %vm1526, %v3735
      %3768 = vst.msk [vmem:[%s231 + $0x98] sm:$0xff] %vm1526, %v3736
      %3769 = vst.msk [vmem:[%s231 + $0xa0] sm:$0xff] %vm1526, %v3737
      %3770 = vst.msk [vmem:[%s231 + $0xa8] sm:$0xff] %vm1526, %v3738
      %3771 = vst.msk [vmem:[%s231 + $0xb0] sm:$0xff] %vm1526, %v3739
      %3772 = vst.msk [vmem:[%s231 + $0xb8] sm:$0xff] %vm1526, %v3740
      %3773 = vst.msk [vmem:[%s231 + $0xc0] sm:$0xff] %vm1526, %v3741
      %3774 = vst.msk [vmem:[%s231 + $0xc8] sm:$0xff] %vm1526, %v3742
      %3775 = vst.msk [vmem:[%s231 + $0xd0] sm:$0xff] %vm1526, %v3743
      %3776 = vst.msk [vmem:[%s231 + $0xd8] sm:$0xff] %vm1526, %v3744
      %3777 = vst.msk [vmem:[%s231 + $0xe0] sm:$0xff] %vm1526, %v3745
      %3778 = vst.msk [vmem:[%s231 + $0xe8] sm:$0xff] %vm1526, %v3746
      %3779 = vst.msk [vmem:[%s231 + $0xf0] sm:$0xff] %vm1526, %v3747
      %3780 = vst.msk [vmem:[%s231 + $0xf8] sm:$0xff] %vm1526, %v3748
      %v3781 = vsel %vm1526, %v3717, 0.0
      %v3782 = vsel %vm1526, %v3718, 0.0
      %v3783 = vadd.f32 %v3781, %v3782
      %v3784 = vsel %vm1526, %v3719, 0.0
      %v3785 = vadd.f32 %v3783, %v3784
      %v3786 = vsel %vm1526, %v3720, 0.0
      %v3787 = vadd.f32 %v3785, %v3786
      %v3788 = vsel %vm1526, %v3721, 0.0
      %v3789 = vadd.f32 %v3787, %v3788
      %v3790 = vsel %vm1526, %v3722, 0.0
      %v3791 = vadd.f32 %v3789, %v3790
      %v3792 = vsel %vm1526, %v3723, 0.0
      %v3793 = vadd.f32 %v3791, %v3792
      %v3794 = vsel %vm1526, %v3724, 0.0
      %v3795 = vadd.f32 %v3793, %v3794
      %v3796 = vsel %vm1526, %v3725, 0.0
      %v3797 = vadd.f32 %v3795, %v3796
      %v3798 = vsel %vm1526, %v3726, 0.0
      %v3799 = vadd.f32 %v3797, %v3798
      %v3800 = vsel %vm1526, %v3727, 0.0
      %v3801 = vadd.f32 %v3799, %v3800
      %v3802 = vsel %vm1526, %v3728, 0.0
      %v3803 = vadd.f32 %v3801, %v3802
      %v3804 = vsel %vm1526, %v3729, 0.0
      %v3805 = vadd.f32 %v3803, %v3804
      %v3806 = vsel %vm1526, %v3730, 0.0
      %v3807 = vadd.f32 %v3805, %v3806
      %v3808 = vsel %vm1526, %v3731, 0.0
      %v3809 = vadd.f32 %v3807, %v3808
      %v3810 = vsel %vm1526, %v3732, 0.0
      %v3811 = vadd.f32 %v3809, %v3810
      %v3812 = vsel %vm1526, %v3733, 0.0
      %v3813 = vadd.f32 %v3811, %v3812
      %v3814 = vsel %vm1526, %v3734, 0.0
      %v3815 = vadd.f32 %v3813, %v3814
      %v3816 = vsel %vm1526, %v3735, 0.0
      %v3817 = vadd.f32 %v3815, %v3816
      %v3818 = vsel %vm1526, %v3736, 0.0
      %v3819 = vadd.f32 %v3817, %v3818
      %v3820 = vsel %vm1526, %v3737, 0.0
      %v3821 = vadd.f32 %v3819, %v3820
      %v3822 = vsel %vm1526, %v3738, 0.0
      %v3823 = vadd.f32 %v3821, %v3822
      %v3824 = vsel %vm1526, %v3739, 0.0
      %v3825 = vadd.f32 %v3823, %v3824
      %v3826 = vsel %vm1526, %v3740, 0.0
      %v3827 = vadd.f32 %v3825, %v3826
      %v3828 = vsel %vm1526, %v3741, 0.0
      %v3829 = vadd.f32 %v3827, %v3828
      %v3830 = vsel %vm1526, %v3742, 0.0
      %v3831 = vadd.f32 %v3829, %v3830
      %v3832 = vsel %vm1526, %v3743, 0.0
      %v3833 = vadd.f32 %v3831, %v3832
      %v3834 = vsel %vm1526, %v3744, 0.0
      %v3835 = vadd.f32 %v3833, %v3834
      %v3836 = vsel %vm1526, %v3745, 0.0
      %v3837 = vadd.f32 %v3835, %v3836
      %v3838 = vsel %vm1526, %v3746, 0.0
      %v3839 = vadd.f32 %v3837, %v3838
      %v3840 = vsel %vm1526, %v3747, 0.0
      %v3841 = vadd.f32 %v3839, %v3840
      %v3842 = vsel %vm1526, %v3748, 0.0
      %v3843 = vadd.f32 %v3841, %v3842
      %v3844 = vrot.slane %v3843, 4
      %v3845 = vadd.f32 %v3843, %v3844
      %v3846 = vrot.slane %v3845, 2
      %v3847 = vadd.f32 %v3845, %v3846
      %v3848 = vrot.slane %v3847, 1
      %v3849 = vadd.f32 %v3847, %v3848
      %3850 = vst.msk [vmem:[%s235] sm:$0x1] %vm240, %v3849
      %v3851 = vmul.f32 %v3717, %v3717
      %v3852 = vmul.f32 %v3718, %v3718
      %v3853 = vmul.f32 %v3719, %v3719
      %v3854 = vmul.f32 %v3720, %v3720
      %v3855 = vmul.f32 %v3721, %v3721
      %v3856 = vmul.f32 %v3722, %v3722
      %v3857 = vmul.f32 %v3723, %v3723
      %v3858 = vmul.f32 %v3724, %v3724
      %v3859 = vmul.f32 %v3725, %v3725
      %v3860 = vmul.f32 %v3726, %v3726
      %v3861 = vmul.f32 %v3727, %v3727
      %v3862 = vmul.f32 %v3728, %v3728
      %v3863 = vmul.f32 %v3729, %v3729
      %v3864 = vmul.f32 %v3730, %v3730
      %v3865 = vmul.f32 %v3731, %v3731
      %v3866 = vmul.f32 %v3732, %v3732
      %v3867 = vmul.f32 %v3733, %v3733
      %v3868 = vmul.f32 %v3734, %v3734
      %v3869 = vmul.f32 %v3735, %v3735
      %v3870 = vmul.f32 %v3736, %v3736
      %v3871 = vmul.f32 %v3737, %v3737
      %v3872 = vmul.f32 %v3738, %v3738
      %v3873 = vmul.f32 %v3739, %v3739
      %v3874 = vmul.f32 %v3740, %v3740
      %v3875 = vmul.f32 %v3741, %v3741
      %v3876 = vmul.f32 %v3742, %v3742
      %v3877 = vmul.f32 %v3743, %v3743
      %v3878 = vmul.f32 %v3744, %v3744
      %v3879 = vmul.f32 %v3745, %v3745
      %v3880 = vmul.f32 %v3746, %v3746
      %v3881 = vmul.f32 %v3747, %v3747
      %v3882 = vmul.f32 %v3748, %v3748
      %v3883 = vsel %vm1526, %v3851, 0.0
      %v3884 = vsel %vm1526, %v3852, 0.0
      %v3885 = vadd.f32 %v3883, %v3884
      %v3886 = vsel %vm1526, %v3853, 0.0
      %v3887 = vadd.f32 %v3885, %v3886
      %v3888 = vsel %vm1526, %v3854, 0.0
      %v3889 = vadd.f32 %v3887, %v3888
      %v3890 = vsel %vm1526, %v3855, 0.0
      %v3891 = vadd.f32 %v3889, %v3890
      %v3892 = vsel %vm1526, %v3856, 0.0
      %v3893 = vadd.f32 %v3891, %v3892
      %v3894 = vsel %vm1526, %v3857, 0.0
      %v3895 = vadd.f32 %v3893, %v3894
      %v3896 = vsel %vm1526, %v3858, 0.0
      %v3897 = vadd.f32 %v3895, %v3896
      %v3898 = vsel %vm1526, %v3859, 0.0
      %v3899 = vadd.f32 %v3897, %v3898
      %v3900 = vsel %vm1526, %v3860, 0.0
      %v3901 = vadd.f32 %v3899, %v3900
      %v3902 = vsel %vm1526, %v3861, 0.0
      %v3903 = vadd.f32 %v3901, %v3902
      %v3904 = vsel %vm1526, %v3862, 0.0
      %v3905 = vadd.f32 %v3903, %v3904
      %v3906 = vsel %vm1526, %v3863, 0.0
      %v3907 = vadd.f32 %v3905, %v3906
      %v3908 = vsel %vm1526, %v3864, 0.0
      %v3909 = vadd.f32 %v3907, %v3908
      %v3910 = vsel %vm1526, %v3865, 0.0
      %v3911 = vadd.f32 %v3909, %v3910
      %v3912 = vsel %vm1526, %v3866, 0.0
      %v3913 = vadd.f32 %v3911, %v3912
      %v3914 = vsel %vm1526, %v3867, 0.0
      %v3915 = vadd.f32 %v3913, %v3914
      %v3916 = vsel %vm1526, %v3868, 0.0
      %v3917 = vadd.f32 %v3915, %v3916
      %v3918 = vsel %vm1526, %v3869, 0.0
      %v3919 = vadd.f32 %v3917, %v3918
      %v3920 = vsel %vm1526, %v3870, 0.0
      %v3921 = vadd.f32 %v3919, %v3920
      %v3922 = vsel %vm1526, %v3871, 0.0
      %v3923 = vadd.f32 %v3921, %v3922
      %v3924 = vsel %vm1526, %v3872, 0.0
      %v3925 = vadd.f32 %v3923, %v3924
      %v3926 = vsel %vm1526, %v3873, 0.0
      %v3927 = vadd.f32 %v3925, %v3926
      %v3928 = vsel %vm1526, %v3874, 0.0
      %v3929 = vadd.f32 %v3927, %v3928
      %v3930 = vsel %vm1526, %v3875, 0.0
      %v3931 = vadd.f32 %v3929, %v3930
      %v3932 = vsel %vm1526, %v3876, 0.0
      %v3933 = vadd.f32 %v3931, %v3932
      %v3934 = vsel %vm1526, %v3877, 0.0
      %v3935 = vadd.f32 %v3933, %v3934
      %v3936 = vsel %vm1526, %v3878, 0.0
      %v3937 = vadd.f32 %v3935, %v3936
      %v3938 = vsel %vm1526, %v3879, 0.0
      %v3939 = vadd.f32 %v3937, %v3938
      %v3940 = vsel %vm1526, %v3880, 0.0
      %v3941 = vadd.f32 %v3939, %v3940
      %v3942 = vsel %vm1526, %v3881, 0.0
      %v3943 = vadd.f32 %v3941, %v3942
      %v3944 = vsel %vm1526, %v3882, 0.0
      %v3945 = vadd.f32 %v3943, %v3944
      %v3946 = vrot.slane %v3945, 4
      %v3947 = vadd.f32 %v3945, %v3946
      %v3948 = vrot.slane %v3947, 2
      %v3949 = vadd.f32 %v3947, %v3948
      %v3950 = vrot.slane %v3949, 1
      %v3951 = vadd.f32 %v3949, %v3950
      %3952 = vst.msk [vmem:[%s235 + $0x1] sm:$0x1] %vm240, %v3951
      %p3953 = scmp.lt.s32.totalorder %s17, 1
      %s3954 = scalar_select %p3953, %s17, 1
      %s3955 = smul.addr %s3954, 32
      %s3956 = smul.addr %s3955, 8
      %s3957 = scalar_lea.vmem %s4, %s3956
      %p3958 = scmp.lt.s32.totalorder %s17, 1
      %s3959 = scalar_select %p3958, %s17, 1
      %s3960 = smul.addr %s3959, 2
      %s3961 = scalar_lea.vmem %s5, %s3960
      // Predicated region
      $region37: #{residual_block_pallas.4} parent=35 // pred_check
        %p3962 = pneg %p124
      $region38: #{residual_block_pallas.4} parent=35 // pred_check_branch
        %3964 = sbr.rel (%p3962) target = $region40
      $region39: #{residual_block_pallas.4} parent=35 // pred_region
        _
      $region40: #{residual_block_pallas.4} parent=35 // pred_fallthru
        _
      // Predicated region
      $region41: #{residual_block_pallas.4} parent=35 // pred_check
        %p3965 = pneg %p150
      $region42: #{residual_block_pallas.4} parent=35 // pred_check_branch
        %3967 = sbr.rel (%p3965) target = $region44
      $region43: #{residual_block_pallas.4} parent=35 // pred_region
        _
      $region44: #{residual_block_pallas.4} parent=35 // pred_fallthru
        _
    $region36: #{residual_block_pallas.4} parent=5 // pred_fallthru
      _
    %p3968 = scmp.le.s32.totalorder 2, %s12
    // Predicated region
    $region45: #{residual_block_pallas.4} parent=5 // pred_check
      %p3969 = pneg %p3968
    $region46: #{residual_block_pallas.4} parent=5 // pred_check_branch
      %3971 = sbr.rel (%p3969) target = $region48
    $region47: #{residual_block_pallas.4} parent=5 // pred_region
      %s3972 = ssub.s32 %s12, 2
      // Predicated region
      $region49: #{residual_block_pallas.4} parent=47 // pred_check
        %p3973 = pneg %p130
      $region50: #{residual_block_pallas.4} parent=47 // pred_check_branch
        %3975 = sbr.rel (%p3973) target = $region52
      $region51: #{residual_block_pallas.4} parent=47 // pred_region
        %p3976 = scmp.lt.s32.totalorder %s18, 1
        %s3977 = scalar_select %p3976, %s18, 1
        %s3978 = smul.addr %s3977, 32
        %s3979 = smul.addr %s3978, 8
        %s3980 = scalar_lea.vmem %s4, %s3979
      $region52: #{residual_block_pallas.4} parent=47 // pred_fallthru
        _
      // Predicated region
      $region53: #{residual_block_pallas.4} parent=47 // pred_check
        %p3981 = pneg %p156
      $region54: #{residual_block_pallas.4} parent=47 // pred_check_branch
        %3983 = sbr.rel (%p3981) target = $region56
      $region55: #{residual_block_pallas.4} parent=47 // pred_region
        %p3984 = scmp.lt.s32.totalorder %s18, 1
        %s3985 = scalar_select %p3984, %s18, 1
        %s3986 = smul.addr %s3985, 2
        %s3987 = scalar_lea.vmem %s5, %s3986
      $region56: #{residual_block_pallas.4} parent=47 // pred_fallthru
        _
    $region48: #{residual_block_pallas.4} parent=5 // pred_fallthru
      _
  $region6: #{residual_block_pallas.4} parent=0 // loop_footer
    %s16 = sadd.s32 1, %s12
  $region7: #{residual_block_pallas.4} parent=0 // loop_footer_branch
    %11 = sbr.rel target = $region3
  $region8: #{residual_block_pallas.4} parent=0 // loop_exit
    _

// kernel: residual_block_pallas.3
$region0: #{residual_block_pallas.3}
  #allocation0 [shape = 'u32[]', space=smem, size = 0x4, offset = 0x4, fixed_abs, tag = 'smem constant byte address 0x4 - core index']
  #allocation1 [shape = 'u32[144,128]{1,0:T(1,128)}', space=vmem, size = 0x12000, scoped, tag = 'internal scratch']
  #allocation2 [shape = 'bf16[1,18,18,4]{3,2,1,0:T(8,128)(2,1)}', space=vmem, size = 0x1b000, scoped, tag = 'scratch operand']
  %s0 = inlined_call_operand.vmem [shape: f32[2,16,16,4], index: 0, kind: input, shape index: {}]
  %s1 = inlined_call_operand.vmem [shape: bf16[3,3,4,8], index: 1, kind: input, shape index: {}]
  %s2 = inlined_call_operand.vmem [shape: bf16[4,8], index: 2, kind: input, shape index: {}]
  %s3 = inlined_call_operand.vmem [shape: f32[2,16,16,8], index: 3, kind: output, shape index: {0}]
  %s4 = inlined_call_operand.vmem [shape: f32[2,2,8], index: 4, kind: output, shape index: {1}]
  %s5 = inlined_call_operand.vmem [shape: f32[2,16,16,8], index: 5, kind: output, shape index: {2}]
  %s6 = inlined_call_operand.vmem [shape: f32[2,2,8], index: 6, kind: output, shape index: {3}]
  %7 = xla_tuple %s3, %s4, %s5, %s6
  %s8 = sld [smem:[#allocation0]]
  $region69: #{residual_block_pallas.3} parent=0
    _
  %s10 = ssub.s32 1, %s8
  %s11 = scalar_select 0, %s10, %s8
  loop: start=0, step=1, limit=4
  $region2: #{residual_block_pallas.3} parent=0 // loop_pre_header
    _
  $region3: #{residual_block_pallas.3} parent=0 // loop_header
    %s13 = sphi 0, %s17
    %p14 = scmp.ge.s32.totalorder %s13, 4
    %s23 = sphi 0, %s25
    %s26 = sphi 0, %s23
    %s27 = sphi 0, %s26
    %s43 = sphi 0, %s27
    %s47 = sphi 0, %s47
    %s49 = sphi 0, %s47
    %s50 = sphi 0, %s49
    %s64 = sphi 0, %s50
    %s68 = sphi 0, %s68
    %s70 = sphi 0, %s68
    %s71 = sphi 0, %s70
    %s85 = sphi 0, %s71
    %s91 = sphi 0, %s93
    %s94 = sphi 0, %s91
    %s95 = sphi 0, %s94
    %s111 = sphi 0, %s95
    %s117 = sphi 0, %s119
    %s120 = sphi 0, %s117
    %s121 = sphi 0, %s120
    %s137 = sphi 0, %s121
    %s143 = sphi 0, %s145
    %s146 = sphi 0, %s143
    %s147 = sphi 0, %s146
    %s163 = sphi 0, %s147
    %s169 = sphi 0, %s171
    %s172 = sphi 0, %s169
    %s173 = sphi 0, %s172
    %s189 = sphi 0, %s173
  $region4: #{residual_block_pallas.3} parent=0 // loop_header_branch
    %16 = sbr.rel (%p14) target = $region8
  $region5: #{residual_block_pallas.3} parent=0 // loop_body
    %s18 = ssub.s32 %s13, 1
    %s19 = ssub.s32 %s13, 2
    %s20 = sadd.s32 %s13, 1
    %s21 = ssub.s32 %s13, %s20
    %p22 = scmp.eq.s32.totalorder %s21, 0
    %s24 = sadd.s32 %s23, 1
    %s25 = scalar_select %p22, %s23, %s24
    %p28 = pneg %p22
    %p29 = scmp.eq.s32.totalorder %s13, 1
    %p30 = por %p28, %p29
    %p31 = scmp.ne.s32.totalorder %s23, %s26
    %p32 = scmp.eq.s32.totalorder %s13, 0
    %p33 = por %p31, %p32
    %p34 = scmp.ne.s32.totalorder %s23, %s26
    %p35 = scmp.eq.s32.totalorder %s18, 1
    %p36 = por %p34, %p35
    %p37 = scmp.ne.s32.totalorder %s26, %s27
    %p38 = scmp.eq.s32.totalorder %s18, 0
    %p39 = por %p37, %p38
    %p40 = scmp.ne.s32.totalorder %s26, %s27
    %p41 = scmp.eq.s32.totalorder %s19, 1
    %p42 = por %p40, %p41
    %p44 = scmp.ne.s32.totalorder %s27, %s43
    %p45 = scmp.eq.s32.totalorder %s19, 0
    %p46 = por %p44, %p45
    %s48 = sadd.s32 %s47, 1
    %p51 = scmp.eq.s32.totalorder %s13, 1
    %p52 = scmp.ne.s32.totalorder %s47, %s49
    %p53 = scmp.eq.s32.totalorder %s13, 0
    %p54 = por %p52, %p53
    %p55 = scmp.ne.s32.totalorder %s47, %s49
    %p56 = scmp.eq.s32.totalorder %s18, 1
    %p57 = por %p55, %p56
    %p58 = scmp.ne.s32.totalorder %s49, %s50
    %p59 = scmp.eq.s32.totalorder %s18, 0
    %p60 = por %p58, %p59
    %p61 = scmp.ne.s32.totalorder %s49, %s50
    %p62 = scmp.eq.s32.totalorder %s19, 1
    %p63 = por %p61, %p62
    %p65 = scmp.ne.s32.totalorder %s50, %s64
    %p66 = scmp.eq.s32.totalorder %s19, 0
    %p67 = por %p65, %p66
    %s69 = sadd.s32 %s68, 1
    %p72 = scmp.eq.s32.totalorder %s13, 1
    %p73 = scmp.ne.s32.totalorder %s68, %s70
    %p74 = scmp.eq.s32.totalorder %s13, 0
    %p75 = por %p73, %p74
    %p76 = scmp.ne.s32.totalorder %s68, %s70
    %p77 = scmp.eq.s32.totalorder %s18, 1
    %p78 = por %p76, %p77
    %p79 = scmp.ne.s32.totalorder %s70, %s71
    %p80 = scmp.eq.s32.totalorder %s18, 0
    %p81 = por %p79, %p80
    %p82 = scmp.ne.s32.totalorder %s70, %s71
    %p83 = scmp.eq.s32.totalorder %s19, 1
    %p84 = por %p82, %p83
    %p86 = scmp.ne.s32.totalorder %s71, %s85
    %p87 = scmp.eq.s32.totalorder %s19, 0
    %p88 = por %p86, %p87
    %s89 = ssub.s32 %s13, %s20
    %p90 = scmp.eq.s32.totalorder %s89, 0
    %s92 = sadd.s32 %s91, 1
    %s93 = scalar_select %p90, %s91, %s92
    %p96 = pneg %p90
    %p97 = scmp.eq.s32.totalorder %s13, 1
    %p98 = por %p96, %p97
    %p99 = scmp.ne.s32.totalorder %s91, %s94
    %p100 = scmp.eq.s32.totalorder %s13, 0
    %p101 = por %p99, %p100
    %p102 = scmp.ne.s32.totalorder %s91, %s94
    %p103 = scmp.eq.s32.totalorder %s18, 1
    %p104 = por %p102, %p103
    %p105 = scmp.ne.s32.totalorder %s94, %s95
    %p106 = scmp.eq.s32.totalorder %s18, 0
    %p107 = por %p105, %p106
    %p108 = scmp.ne.s32.totalorder %s94, %s95
    %p109 = scmp.eq.s32.totalorder %s19, 1
    %p110 = por %p108, %p109
    %p112 = scmp.ne.s32.totalorder %s95, %s111
    %p113 = scmp.eq.s32.totalorder %s19, 0
    %p114 = por %p112, %p113
    %s115 = ssub.s32 %s13, %s20
    %p116 = scmp.eq.s32.totalorder %s115, 0
    %s118 = sadd.s32 %s117, 1
    %s119 = scalar_select %p116, %s117, %s118
    %p122 = pneg %p116
    %p123 = scmp.eq.s32.totalorder %s13, 1
    %p124 = por %p122, %p123
    %p125 = scmp.ne.s32.totalorder %s117, %s120
    %p126 = scmp.eq.s32.totalorder %s13, 0
    %p127 = por %p125, %p126
    %p128 = scmp.ne.s32.totalorder %s117, %s120
    %p129 = scmp.eq.s32.totalorder %s18, 1
    %p130 = por %p128, %p129
    %p131 = scmp.ne.s32.totalorder %s120, %s121
    %p132 = scmp.eq.s32.totalorder %s18, 0
    %p133 = por %p131, %p132
    %p134 = scmp.ne.s32.totalorder %s120, %s121
    %p135 = scmp.eq.s32.totalorder %s19, 1
    %p136 = por %p134, %p135
    %p138 = scmp.ne.s32.totalorder %s121, %s137
    %p139 = scmp.eq.s32.totalorder %s19, 0
    %p140 = por %p138, %p139
    %s141 = ssub.s32 %s13, %s20
    %p142 = scmp.eq.s32.totalorder %s141, 0
    %s144 = sadd.s32 %s143, 1
    %s145 = scalar_select %p142, %s143, %s144
    %p148 = pneg %p142
    %p149 = scmp.eq.s32.totalorder %s13, 1
    %p150 = por %p148, %p149
    %p151 = scmp.ne.s32.totalorder %s143, %s146
    %p152 = scmp.eq.s32.totalorder %s13, 0
    %p153 = por %p151, %p152
    %p154 = scmp.ne.s32.totalorder %s143, %s146
    %p155 = scmp.eq.s32.totalorder %s18, 1
    %p156 = por %p154, %p155
    %p157 = scmp.ne.s32.totalorder %s146, %s147
    %p158 = scmp.eq.s32.totalorder %s18, 0
    %p159 = por %p157, %p158
    %p160 = scmp.ne.s32.totalorder %s146, %s147
    %p161 = scmp.eq.s32.totalorder %s19, 1
    %p162 = por %p160, %p161
    %p164 = scmp.ne.s32.totalorder %s147, %s163
    %p165 = scmp.eq.s32.totalorder %s19, 0
    %p166 = por %p164, %p165
    %s167 = ssub.s32 %s13, %s20
    %p168 = scmp.eq.s32.totalorder %s167, 0
    %s170 = sadd.s32 %s169, 1
    %s171 = scalar_select %p168, %s169, %s170
    %p174 = pneg %p168
    %p175 = scmp.eq.s32.totalorder %s13, 1
    %p176 = por %p174, %p175
    %p177 = scmp.ne.s32.totalorder %s169, %s172
    %p178 = scmp.eq.s32.totalorder %s13, 0
    %p179 = por %p177, %p178
    %p180 = scmp.ne.s32.totalorder %s169, %s172
    %p181 = scmp.eq.s32.totalorder %s18, 1
    %p182 = por %p180, %p181
    %p183 = scmp.ne.s32.totalorder %s172, %s173
    %p184 = scmp.eq.s32.totalorder %s18, 0
    %p185 = por %p183, %p184
    %p186 = scmp.ne.s32.totalorder %s172, %s173
    %p187 = scmp.eq.s32.totalorder %s19, 1
    %p188 = por %p186, %p187
    %p190 = scmp.ne.s32.totalorder %s173, %s189
    %p191 = scmp.eq.s32.totalorder %s19, 0
    %p192 = por %p190, %p191
    %p193 = scmp.le.s32.totalorder 1, %s13
    %p194 = scmp.lt.s32.totalorder %s13, 3
    %p195 = pnand %p193, %p194
    %p196 = pneg %p195
    // Predicated region
    $region9: #{residual_block_pallas.3} parent=5 // pred_check
      _
    $region10: #{residual_block_pallas.3} parent=5 // pred_check_branch
      %198 = sbr.rel (%p195) target = $region12
    $region11: #{residual_block_pallas.3} parent=5 // pred_region
      %s199 = ssub.s32 %s13, 1
      // Predicated region
      $region13: #{residual_block_pallas.3} parent=11 // pred_check
        %p200 = pneg %p60
      $region14: #{residual_block_pallas.3} parent=11 // pred_check_branch
        %202 = sbr.rel (%p200) target = $region16
      $region15: #{residual_block_pallas.3} parent=11 // pred_region
        _
      $region16: #{residual_block_pallas.3} parent=11 // pred_fallthru
        _
      // Predicated region
      $region17: #{residual_block_pallas.3} parent=11 // pred_check
        %p203 = pneg %p81
      $region18: #{residual_block_pallas.3} parent=11 // pred_check_branch
        %205 = sbr.rel (%p203) target = $region20
      $region19: #{residual_block_pallas.3} parent=11 // pred_region
        _
      $region20: #{residual_block_pallas.3} parent=11 // pred_fallthru
        _
    $region12: #{residual_block_pallas.3} parent=5 // pred_fallthru
      _
    %p206 = scmp.lt.s32.totalorder %s13, 2
    // Predicated region
    $region21: #{residual_block_pallas.3} parent=5 // pred_check
      %p207 = pneg %p206
    $region22: #{residual_block_pallas.3} parent=5 // pred_check_branch
      %209 = sbr.rel (%p207) target = $region24
    $region23: #{residual_block_pallas.3} parent=5 // pred_region
      // Predicated region
      $region25: #{residual_block_pallas.3} parent=23 // pred_check
        %p210 = pneg %p33
      $region26: #{residual_block_pallas.3} parent=23 // pred_check_branch
        %212 = sbr.rel (%p210) target = $region28
      $region27: #{residual_block_pallas.3} parent=23 // pred_region
        %p213 = scmp.lt.s32.totalorder %s13, 1
        %s214 = scalar_select %p213, %s13, 1
        %s215 = smul.addr %s214, 32
        %s216 = smul.addr %s215, 8
        %s217 = scalar_lea.vmem %s0, %s216
      $region28: #{residual_block_pallas.3} parent=23 // pred_fallthru
        _
    $region24: #{residual_block_pallas.3} parent=5 // pred_fallthru
      _
    %p218 = scmp.le.s32.totalorder 1, %s13
    %p219 = scmp.lt.s32.totalorder %s13, 3
    %p220 = pnand %p218, %p219
    %p221 = pneg %p220
    // Predicated region
    $region29: #{residual_block_pallas.3} parent=5 // pred_check
      _
    $region30: #{residual_block_pallas.3} parent=5 // pred_check_branch
      %223 = sbr.rel (%p220) target = $region32
    $region31: #{residual_block_pallas.3} parent=5 // pred_region
      %s224 = ssub.s32 %s13, 1
      %p225 = scmp.lt.s32.totalorder %s18, 1
      %s226 = scalar_select %p225, %s18, 1
      %s227 = smul.addr %s226, 32
      %s228 = smul.addr %s227, 8
      %s229 = scalar_lea.vmem %s0, %s228
      %p230 = pneg %p39
      %p231 = pneg %p36
      %p232 = pneg %p60
      %p233 = pneg %p57
      %p234 = pneg %p81
      %p235 = pneg %p78
      %p236 = pneg %p107
      %p237 = pneg %p104
      %p238 = scmp.lt.s32.totalorder %s18, 1
      %s239 = scalar_select %p238, %s18, 1
      %s240 = smul.addr %s239, 32
      %s241 = smul.addr %s240, 8
      %s242 = scalar_lea.vmem %s3, %s241
      %p243 = pneg %p133
      %p244 = pneg %p130
      %p245 = scmp.lt.s32.totalorder %s18, 1
      %s246 = scalar_select %p245, %s18, 1
      %s247 = smul.addr %s246, 2
      %s248 = scalar_lea.vmem %s4, %s247
      %p249 = pneg %p159
      %p250 = pneg %p156
      %p251 = scmp.lt.s32.totalorder %s18, 1
      %s252 = scalar_select %p251, %s18, 1
      %s253 = smul.addr %s252, 32
      %s254 = smul.addr %s253, 8
      %s255 = scalar_lea.vmem %s5, %s254
      %p256 = pneg %p185
      %p257 = pneg %p182
      %p258 = scmp.lt.s32.totalorder %s18, 1
      %s259 = scalar_select %p258, %s18, 1
      %s260 = smul.addr %s259, 2
      %s261 = scalar_lea.vmem %s6, %s260
      %p262 = scmp.lt.s32.totalorder %s18, 1
      %s263 = scalar_select %p262, %s18, 1
      %s264 = smul.addr %s263, 32
      %s265 = smul.addr %s264, 8
      %s266 = scalar_lea.vmem %s0, %s265
      %p267 = scmp.lt.s32.totalorder %s18, 1
      %s268 = scalar_select %p267, %s18, 1
      %s269 = smul.addr %s268, 32
      %s270 = smul.addr %s269, 8
      %s271 = scalar_lea.vmem %s3, %s270
      %p272 = scmp.lt.s32.totalorder %s18, 1
      %s273 = scalar_select %p272, %s18, 1
      %s274 = smul.addr %s273, 2
      %s275 = scalar_lea.vmem %s4, %s274
      %p276 = scmp.lt.s32.totalorder %s18, 1
      %s277 = scalar_select %p276, %s18, 1
      %s278 = smul.addr %s277, 32
      %s279 = smul.addr %s278, 8
      %s280 = scalar_lea.vmem %s5, %s279
      %p281 = scmp.lt.s32.totalorder %s18, 1
      %s282 = scalar_select %p281, %s18, 1
      %s283 = smul.addr %s282, 2
      %s284 = scalar_lea.vmem %s6, %s283
      %vm286 = vcmask 27648
      %287 = vst.msk [vmem:[#allocation2] sm:$0xf] %vm286, 0
      %288 = vst.msk [vmem:[#allocation2 + $0x4] sm:$0xf] %vm286, 0
      %vm289 = vcmask 24576
      %290 = vst.msk [vmem:[#allocation2 + $0x8] sm:$0x1] %vm289, 0
      %s291 = scalar_lea.vmem [#allocation2], 204
      %292 = vst.msk [vmem:[%s291] sm:$0xf] %vm286, 0
      %293 = vst.msk [vmem:[%s291 + $0x4] sm:$0xf] %vm286, 0
      %294 = vst.msk [vmem:[%s291 + $0x8] sm:$0x1] %vm289, 0
      %vm295 = vcmask 24576
      %vm296 = vsmask.f32 256
      %vm297 = vmand %vm295, %vm296
      %v298 = vld [vmem:[#allocation2] sm:$0x1]
      %v299 = vsel %vm297, 0, %v298
      %300 = vst [vmem:[#allocation2] sm:$0x1] %v299
      %v301 = vld [vmem:[#allocation2 + $0xc] sm:$0x1]
      %v302 = vsel %vm297, 0, %v301
      %303 = vst [vmem:[#allocation2 + $0xc] sm:$0x1] %v302
      %v304 = vld [vmem:[#allocation2 + $0x18] sm:$0x1]
      %v305 = vsel %vm297, 0, %v304
      %306 = vst [vmem:[#allocation2 + $0x18] sm:$0x1] %v305
      %v307 = vld [vmem:[#allocation2 + $0x24] sm:$0x1]
      %v308 = vsel %vm297, 0, %v307
      %309 = vst [vmem:[#allocation2 + $0x24] sm:$0x1] %v308
      %v310 = vld [vmem:[#allocation2 + $0x30] sm:$0x1]
      %v311 = vsel %vm297, 0, %v310
      %312 = vst [vmem:[#allocation2 + $0x30] sm:$0x1] %v311
      %v313 = vld [vmem:[#allocation2 + $0x3c] sm:$0x1]
      %v314 = vsel %vm297, 0, %v313
      %315 = vst [vmem:[#allocation2 + $0x3c] sm:$0x1] %v314
      %v316 = vld [vmem:[#allocation2 + $0x48] sm:$0x1]
      %v317 = vsel %vm297, 0, %v316
      %318 = vst [vmem:[#allocation2 + $0x48] sm:$0x1] %v317
      %v319 = vld [vmem:[#allocation2 + $0x54] sm:$0x1]
      %v320 = vsel %vm297, 0, %v319
      %321 = vst [vmem:[#allocation2 + $0x54] sm:$0x1] %v320
      %v322 = vld [vmem:[#allocation2 + $0x60] sm:$0x1]
      %v323 = vsel %vm297, 0, %v322
      %324 = vst [vmem:[#allocation2 + $0x60] sm:$0x1] %v323
      %v325 = vld [vmem:[#allocation2 + $0x6c] sm:$0x1]
      %v326 = vsel %vm297, 0, %v325
      %327 = vst [vmem:[#allocation2 + $0x6c] sm:$0x1] %v326
      %v328 = vld [vmem:[#allocation2 + $0x78] sm:$0x1]
      %v329 = vsel %vm297, 0, %v328
      %330 = vst [vmem:[#allocation2 + $0x78] sm:$0x1] %v329
      %v331 = vld [vmem:[#allocation2 + $0x84] sm:$0x1]
      %v332 = vsel %vm297, 0, %v331
      %333 = vst [vmem:[#allocation2 + $0x84] sm:$0x1] %v332
      %v334 = vld [vmem:[#allocation2 + $0x90] sm:$0x1]
      %v335 = vsel %vm297, 0, %v334
      %336 = vst [vmem:[#allocation2 + $0x90] sm:$0x1] %v335
      %v337 = vld [vmem:[#allocation2 + $0x9c] sm:$0x1]
      %v338 = vsel %vm297, 0, %v337
      %339 = vst [vmem:[#allocation2 + $0x9c] sm:$0x1] %v338
      %v340 = vld [vmem:[#allocation2 + $0xa8] sm:$0x1]
      %v341 = vsel %vm297, 0, %v340
      %342 = vst [vmem:[#allocation2 + $0xa8] sm:$0x1] %v341
      %v343 = vld [vmem:[#allocation2 + $0xb4] sm:$0x1]
      %v344 = vsel %vm297, 0, %v343
      %345 = vst [vmem:[#allocation2 + $0xb4] sm:$0x1] %v344
      %v346 = vld [vmem:[#allocation2 + $0xc0] sm:$0x1]
      %v347 = vsel %vm297, 0, %v346
      %348 = vst [vmem:[#allocation2 + $0xc0] sm:$0x1] %v347
      %v349 = vld [vmem:[#allocation2 + $0xcc] sm:$0x1]
      %v350 = vsel %vm297, 0, %v349
      %351 = vst [vmem:[#allocation2 + $0xcc] sm:$0x1] %v350
      %vm352 = vsmask.f32 7938
      %vm353 = vmand %vm295, %vm352
      %v354 = vld [vmem:[#allocation2 + $0x8] sm:$0x1]
      %v355 = vsel %vm353, 0, %v354
      %356 = vst [vmem:[#allocation2 + $0x8] sm:$0x1] %v355
      %v357 = vld [vmem:[#allocation2 + $0x14] sm:$0x1]
      %v358 = vsel %vm353, 0, %v357
      %359 = vst [vmem:[#allocation2 + $0x14] sm:$0x1] %v358
      %v360 = vld [vmem:[#allocation2 + $0x20] sm:$0x1]
      %v361 = vsel %vm353, 0, %v360
      %362 = vst [vmem:[#allocation2 + $0x20] sm:$0x1] %v361
      %v363 = vld [vmem:[#allocation2 + $0x2c] sm:$0x1]
      %v364 = vsel %vm353, 0, %v363
      %365 = vst [vmem:[#allocation2 + $0x2c] sm:$0x1] %v364
      %v366 = vld [vmem:[#allocation2 + $0x38] sm:$0x1]
      %v367 = vsel %vm353, 0, %v366
      %368 = vst [vmem:[#allocation2 + $0x38] sm:$0x1] %v367
      %v369 = vld [vmem:[#allocation2 + $0x44] sm:$0x1]
      %v370 = vsel %vm353, 0, %v369
      %371 = vst [vmem:[#allocation2 + $0x44] sm:$0x1] %v370
      %v372 = vld [vmem:[#allocation2 + $0x50] sm:$0x1]
      %v373 = vsel %vm353, 0, %v372
      %374 = vst [vmem:[#allocation2 + $0x50] sm:$0x1] %v373
      %v375 = vld [vmem:[#allocation2 + $0x5c] sm:$0x1]
      %v376 = vsel %vm353, 0, %v375
      %377 = vst [vmem:[#allocation2 + $0x5c] sm:$0x1] %v376
      %v378 = vld [vmem:[#allocation2 + $0x68] sm:$0x1]
      %v379 = vsel %vm353, 0, %v378
      %380 = vst [vmem:[#allocation2 + $0x68] sm:$0x1] %v379
      %v381 = vld [vmem:[#allocation2 + $0x74] sm:$0x1]
      %v382 = vsel %vm353, 0, %v381
      %383 = vst [vmem:[#allocation2 + $0x74] sm:$0x1] %v382
      %v384 = vld [vmem:[#allocation2 + $0x80] sm:$0x1]
      %v385 = vsel %vm353, 0, %v384
      %386 = vst [vmem:[#allocation2 + $0x80] sm:$0x1] %v385
      %v387 = vld [vmem:[#allocation2 + $0x8c] sm:$0x1]
      %v388 = vsel %vm353, 0, %v387
      %389 = vst [vmem:[#allocation2 + $0x8c] sm:$0x1] %v388
      %v390 = vld [vmem:[#allocation2 + $0x98] sm:$0x1]
      %v391 = vsel %vm353, 0, %v390
      %392 = vst [vmem:[#allocation2 + $0x98] sm:$0x1] %v391
      %v393 = vld [vmem:[#allocation2 + $0xa4] sm:$0x1]
      %v394 = vsel %vm353, 0, %v393
      %395 = vst [vmem:[#allocation2 + $0xa4] sm:$0x1] %v394
      %v396 = vld [vmem:[#allocation2 + $0xb0] sm:$0x1]
      %v397 = vsel %vm353, 0, %v396
      %398 = vst [vmem:[#allocation2 + $0xb0] sm:$0x1] %v397
      %v399 = vld [vmem:[#allocation2 + $0xbc] sm:$0x1]
      %v400 = vsel %vm353, 0, %v399
      %401 = vst [vmem:[#allocation2 + $0xbc] sm:$0x1] %v400
      %v402 = vld [vmem:[#allocation2 + $0xc8] sm:$0x1]
      %v403 = vsel %vm353, 0, %v402
      %404 = vst [vmem:[#allocation2 + $0xc8] sm:$0x1] %v403
      %v405 = vld [vmem:[#allocation2 + $0xd4] sm:$0x1]
      %v406 = vsel %vm353, 0, %v405
      %407 = vst [vmem:[#allocation2 + $0xd4] sm:$0x1] %v406
      %v408 = vld [vmem:[%s266] sm:$0xff]
      %v409 = vld [vmem:[%s266 + $0x8] sm:$0xff]
      %v410 = vld [vmem:[%s266 + $0x10] sm:$0xff]
      %v411 = vld [vmem:[%s266 + $0x18] sm:$0xff]
      %v412 = vld [vmem:[%s266 + $0x20] sm:$0xff]
      %v413 = vld [vmem:[%s266 + $0x28] sm:$0xff]
      %v414 = vld [vmem:[%s266 + $0x30] sm:$0xff]
      %v415 = vld [vmem:[%s266 + $0x38] sm:$0xff]
      %v416 = vld [vmem:[%s266 + $0x40] sm:$0xff]
      %v417 = vld [vmem:[%s266 + $0x48] sm:$0xff]
      %v418 = vld [vmem:[%s266 + $0x50] sm:$0xff]
      %v419 = vld [vmem:[%s266 + $0x58] sm:$0xff]
      %v420 = vld [vmem:[%s266 + $0x60] sm:$0xff]
      %v421 = vld [vmem:[%s266 + $0x68] sm:$0xff]
      %v422 = vld [vmem:[%s266 + $0x70] sm:$0xff]
      %v423 = vld [vmem:[%s266 + $0x78] sm:$0xff]
      %v424 = vld [vmem:[%s266 + $0x80] sm:$0xff]
      %v425 = vld [vmem:[%s266 + $0x88] sm:$0xff]
      %v426 = vld [vmem:[%s266 + $0x90] sm:$0xff]
      %v427 = vld [vmem:[%s266 + $0x98] sm:$0xff]
      %v428 = vld [vmem:[%s266 + $0xa0] sm:$0xff]
      %v429 = vld [vmem:[%s266 + $0xa8] sm:$0xff]
      %v430 = vld [vmem:[%s266 + $0xb0] sm:$0xff]
      %v431 = vld [vmem:[%s266 + $0xb8] sm:$0xff]
      %v432 = vld [vmem:[%s266 + $0xc0] sm:$0xff]
      %v433 = vld [vmem:[%s266 + $0xc8] sm:$0xff]
      %v434 = vld [vmem:[%s266 + $0xd0] sm:$0xff]
      %v435 = vld [vmem:[%s266 + $0xd8] sm:$0xff]
      %v436 = vld [vmem:[%s266 + $0xe0] sm:$0xff]
      %v437 = vld [vmem:[%s266 + $0xe8] sm:$0xff]
      %v438 = vld [vmem:[%s266 + $0xf0] sm:$0xff]
      %v439 = vld [vmem:[%s266 + $0xf8] sm:$0xff]
      %v440 = vpack.c.bf16 %v409, %v408
      %v441 = vpack.c.bf16 %v411, %v410
      %v442 = vpack.c.bf16 %v413, %v412
      %v443 = vpack.c.bf16 %v415, %v414
      %v444 = vpack.c.bf16 %v417, %v416
      %v445 = vpack.c.bf16 %v419, %v418
      %v446 = vpack.c.bf16 %v421, %v420
      %v447 = vpack.c.bf16 %v423, %v422
      %v448 = vpack.c.bf16 %v425, %v424
      %v449 = vpack.c.bf16 %v427, %v426
      %v450 = vpack.c.bf16 %v429, %v428
      %v451 = vpack.c.bf16 %v431, %v430
      %v452 = vpack.c.bf16 %v433, %v432
      %v453 = vpack.c.bf16 %v435, %v434
      %v454 = vpack.c.bf16 %v437, %v436
      %v455 = vpack.c.bf16 %v439, %v438
      %v472 = vunpack.c.l.b16 %v440
      %v473 = vunpack.c.h.b16 %v440
      %v474 = vunpack.c.l.b16 %v441
      %v475 = vunpack.c.h.b16 %v441
      %v476 = vunpack.c.l.b16 %v442
      %v477 = vunpack.c.h.b16 %v442
      %v478 = vunpack.c.l.b16 %v443
      %v479 = vunpack.c.h.b16 %v443
      %v480 = vunpack.c.l.b16 %v444
      %v481 = vunpack.c.h.b16 %v444
      %v482 = vunpack.c.l.b16 %v445
      %v483 = vunpack.c.h.b16 %v445
      %v484 = vunpack.c.l.b16 %v446
      %v485 = vunpack.c.h.b16 %v446
      %v486 = vunpack.c.l.b16 %v447
      %v487 = vunpack.c.h.b16 %v447
      %v488 = vunpack.c.l.b16 %v448
      %v489 = vunpack.c.h.b16 %v448
      %v490 = vunpack.c.l.b16 %v449
      %v491 = vunpack.c.h.b16 %v449
      %v492 = vunpack.c.l.b16 %v450
      %v493 = vunpack.c.h.b16 %v450
      %v494 = vunpack.c.l.b16 %v451
      %v495 = vunpack.c.h.b16 %v451
      %v496 = vunpack.c.l.b16 %v452
      %v497 = vunpack.c.h.b16 %v452
      %v498 = vunpack.c.l.b16 %v453
      %v499 = vunpack.c.h.b16 %v453
      %v500 = vunpack.c.l.b16 %v454
      %v501 = vunpack.c.h.b16 %v454
      %v502 = vunpack.c.l.b16 %v455
      %v503 = vunpack.c.h.b16 %v455
      %v504 = vpack.c.b16 %v472, %v472
      %v505 = vpack.c.b16 %v473, %v473
      %v506 = vpack.c.b16 %v474, %v474
      %v507 = vpack.c.b16 %v475, %v475
      %v508 = vpack.c.b16 %v476, %v476
      %v509 = vpack.c.b16 %v477, %v477
      %v510 = vpack.c.b16 %v478, %v478
      %v511 = vpack.c.b16 %v479, %v479
      %v512 = vpack.c.b16 %v480, %v480
      %v513 = vpack.c.b16 %v481, %v481
      %v514 = vpack.c.b16 %v482, %v482
      %v515 = vpack.c.b16 %v483, %v483
      %v516 = vpack.c.b16 %v484, %v484
      %v517 = vpack.c.b16 %v485, %v485
      %v518 = vpack.c.b16 %v486, %v486
      %v519 = vpack.c.b16 %v487, %v487
      %v520 = vpack.c.b16 %v488, %v488
      %v521 = vpack.c.b16 %v489, %v489
      %v522 = vpack.c.b16 %v490, %v490
      %v523 = vpack.c.b16 %v491, %v491
      %v524 = vpack.c.b16 %v492, %v492
      %v525 = vpack.c.b16 %v493, %v493
      %v526 = vpack.c.b16 %v494, %v494
      %v527 = vpack.c.b16 %v495, %v495
      %v528 = vpack.c.b16 %v496, %v496
      %v529 = vpack.c.b16 %v497, %v497
      %v530 = vpack.c.b16 %v498, %v498
      %v531 = vpack.c.b16 %v499, %v499
      %v532 = vpack.c.b16 %v500, %v500
      %v533 = vpack.c.b16 %v501, %v501
      %v534 = vpack.c.b16 %v502, %v502
      %v535 = vpack.c.b16 %v503, %v503
      %vm536 = vsmask.f32 4368
      %vm537 = vmor %vm296, %vm536
      %v539 = vshrl.u32 %v504, 16
      %v541 = vrot.slane %v539, 7
      %v542 = vshll.u32 %v504, 16
      %v544 = vor.u32 %v541, %v542
      %v545 = vrot.slane %v541, 4
      %v547 = vshrl.u32 %v505, 16
      %v549 = vrot.slane %v547, 7
      %v550 = vshll.u32 %v505, 16
      %v552 = vor.u32 %v549, %v550
      %v553 = vsel %vm537, %v545, %v552
      %v554 = vrot.slane %v549, 4
      %v556 = vshrl.u32 %v506, 16
      %v558 = vrot.slane %v556, 7
      %v559 = vshll.u32 %v506, 16
      %v561 = vor.u32 %v558, %v559
      %v562 = vrot.slane %v558, 4
      %v564 = vshrl.u32 %v507, 16
      %v566 = vrot.slane %v564, 7
      %v567 = vshll.u32 %v507, 16
      %v569 = vor.u32 %v566, %v567
      %v570 = vsel %vm537, %v562, %v569
      %v571 = vrot.slane %v566, 4
      %v573 = vshrl.u32 %v508, 16
      %v575 = vrot.slane %v573, 7
      %v576 = vshll.u32 %v508, 16
      %v578 = vor.u32 %v575, %v576
      %v579 = vrot.slane %v575, 4
      %v581 = vshrl.u32 %v509, 16
      %v583 = vrot.slane %v581, 7
      %v584 = vshll.u32 %v509, 16
      %v586 = vor.u32 %v583, %v584
      %v587 = vsel %vm537, %v579, %v586
      %v588 = vrot.slane %v583, 4
      %v590 = vshrl.u32 %v510, 16
      %v592 = vrot.slane %v590, 7
      %v593 = vshll.u32 %v510, 16
      %v595 = vor.u32 %v592, %v593
      %v596 = vrot.slane %v592, 4
      %v598 = vshrl.u32 %v511, 16
      %v600 = vrot.slane %v598, 7
      %v601 = vshll.u32 %v511, 16
      %v603 = vor.u32 %v600, %v601
      %v604 = vsel %vm537, %v596, %v603
      %v605 = vrot.slane %v600, 4
      %v607 = vshrl.u32 %v512, 16
      %v609 = vrot.slane %v607, 7
      %v610 = vshll.u32 %v512, 16
      %v612 = vor.u32 %v609, %v610
      %v613 = vrot.slane %v609, 4
      %v615 = vshrl.u32 %v513, 16
      %v617 = vrot.slane %v615, 7
      %v618 = vshll.u32 %v513, 16
      %v620 = vor.u32 %v617, %v618
      %v621 = vsel %vm537, %v613, %v620
      %v622 = vrot.slane %v617, 4
      %v624 = vshrl.u32 %v514, 16
      %v626 = vrot.slane %v624, 7
      %v627 = vshll.u32 %v514, 16
      %v629 = vor.u32 %v626, %v627
      %v630 = vrot.slane %v626, 4
      %v632 = vshrl.u32 %v515, 16
      %v634 = vrot.slane %v632, 7
      %v635 = vshll.u32 %v515, 16
      %v637 = vor.u32 %v634, %v635
      %v638 = vsel %vm537, %v630, %v637
      %v639 = vrot.slane %v634, 4
      %v641 = vshrl.u32 %v516, 16
      %v643 = vrot.slane %v641, 7
      %v644 = vshll.u32 %v516, 16
      %v646 = vor.u32 %v643, %v644
      %v647 = vrot.slane %v643, 4
      %v649 = vshrl.u32 %v517, 16
      %v651 = vrot.slane %v649, 7
      %v652 = vshll.u32 %v517, 16
      %v654 = vor.u32 %v651, %v652
      %v655 = vsel %vm537, %v647, %v654
      %v656 = vrot.slane %v651, 4
      %v658 = vshrl.u32 %v518, 16
      %v660 = vrot.slane %v658, 7
      %v661 = vshll.u32 %v518, 16
      %v663 = vor.u32 %v660, %v661
      %v664 = vrot.slane %v660, 4
      %v666 = vshrl.u32 %v519, 16
      %v668 = vrot.slane %v666, 7
      %v669 = vshll.u32 %v519, 16
      %v671 = vor.u32 %v668, %v669
      %v672 = vsel %vm537, %v664, %v671
      %v673 = vrot.slane %v668, 4
      %v675 = vshrl.u32 %v520, 16
      %v677 = vrot.slane %v675, 7
      %v678 = vshll.u32 %v520, 16
      %v680 = vor.u32 %v677, %v678
      %v681 = vrot.slane %v677, 4
      %v683 = vshrl.u32 %v521, 16
      %v685 = vrot.slane %v683, 7
      %v686 = vshll.u32 %v521, 16
      %v688 = vor.u32 %v685, %v686
      %v689 = vsel %vm537, %v681, %v688
      %v690 = vrot.slane %v685, 4
      %v692 = vshrl.u32 %v522, 16
      %v694 = vrot.slane %v692, 7
      %v695 = vshll.u32 %v522, 16
      %v697 = vor.u32 %v694, %v695
      %v698 = vrot.slane %v694, 4
      %v700 = vshrl.u32 %v523, 16
      %v702 = vrot.slane %v700, 7
      %v703 = vshll.u32 %v523, 16
      %v705 = vor.u32 %v702, %v703
      %v706 = vsel %vm537, %v698, %v705
      %v707 = vrot.slane %v702, 4
      %v709 = vshrl.u32 %v524, 16
      %v711 = vrot.slane %v709, 7
      %v712 = vshll.u32 %v524, 16
      %v714 = vor.u32 %v711, %v712
      %v715 = vrot.slane %v711, 4
      %v717 = vshrl.u32 %v525, 16
      %v719 = vrot.slane %v717, 7
      %v720 = vshll.u32 %v525, 16
      %v722 = vor.u32 %v719, %v720
      %v723 = vsel %vm537, %v715, %v722
      %v724 = vrot.slane %v719, 4
      %v726 = vshrl.u32 %v526, 16
      %v728 = vrot.slane %v726, 7
      %v729 = vshll.u32 %v526, 16
      %v731 = vor.u32 %v728, %v729
      %v732 = vrot.slane %v728, 4
      %v734 = vshrl.u32 %v527, 16
      %v736 = vrot.slane %v734, 7
      %v737 = vshll.u32 %v527, 16
      %v739 = vor.u32 %v736, %v737
      %v740 = vsel %vm537, %v732, %v739
      %v741 = vrot.slane %v736, 4
      %v743 = vshrl.u32 %v528, 16
      %v745 = vrot.slane %v743, 7
      %v746 = vshll.u32 %v528, 16
      %v748 = vor.u32 %v745, %v746
      %v749 = vrot.slane %v745, 4
      %v751 = vshrl.u32 %v529, 16
      %v753 = vrot.slane %v751, 7
      %v754 = vshll.u32 %v529, 16
      %v756 = vor.u32 %v753, %v754
      %v757 = vsel %vm537, %v749, %v756
      %v758 = vrot.slane %v753, 4
      %v760 = vshrl.u32 %v530, 16
      %v762 = vrot.slane %v760, 7
      %v763 = vshll.u32 %v530, 16
      %v765 = vor.u32 %v762, %v763
      %v766 = vrot.slane %v762, 4
      %v768 = vshrl.u32 %v531, 16
      %v770 = vrot.slane %v768, 7
      %v771 = vshll.u32 %v531, 16
      %v773 = vor.u32 %v770, %v771
      %v774 = vsel %vm537, %v766, %v773
      %v775 = vrot.slane %v770, 4
      %v777 = vshrl.u32 %v532, 16
      %v779 = vrot.slane %v777, 7
      %v780 = vshll.u32 %v532, 16
      %v782 = vor.u32 %v779, %v780
      %v783 = vrot.slane %v779, 4
      %v785 = vshrl.u32 %v533, 16
      %v787 = vrot.slane %v785, 7
      %v788 = vshll.u32 %v533, 16
      %v790 = vor.u32 %v787, %v788
      %v791 = vsel %vm537, %v783, %v790
      %v792 = vrot.slane %v787, 4
      %v794 = vshrl.u32 %v534, 16
      %v796 = vrot.slane %v794, 7
      %v797 = vshll.u32 %v534, 16
      %v799 = vor.u32 %v796, %v797
      %v800 = vrot.slane %v796, 4
      %v802 = vshrl.u32 %v535, 16
      %v804 = vrot.slane %v802, 7
      %v805 = vshll.u32 %v535, 16
      %v807 = vor.u32 %v804, %v805
      %v808 = vsel %vm537, %v800, %v807
      %v809 = vrot.slane %v804, 4
      %s858 = scalar_lea.vmem [#allocation2], 12
      %vm859 = vcmask 27648
      %vm860 = vmand %vm859, %vm352
      %v861 = vld [vmem:[%s858] sm:$0xf]
      %v862 = vsel %vm860, %v544, %v861
      %863 = vst [vmem:[%s858] sm:$0xf] %v862
      %864 = vst.msk [vmem:[%s858 + $0x4] sm:$0xf] %vm286, %v553
      %v865 = vld [vmem:[%s858 + $0x8] sm:$0x1]
      %v866 = vsel %vm297, %v554, %v865
      %867 = vst [vmem:[%s858 + $0x8] sm:$0x1] %v866
      %v868 = vld [vmem:[%s858 + $0xc] sm:$0xf]
      %v869 = vsel %vm860, %v561, %v868
      %870 = vst [vmem:[%s858 + $0xc] sm:$0xf] %v869
      %871 = vst.msk [vmem:[%s858 + $0x10] sm:$0xf] %vm286, %v570
      %v872 = vld [vmem:[%s858 + $0x14] sm:$0x1]
      %v873 = vsel %vm297, %v571, %v872
      %874 = vst [vmem:[%s858 + $0x14] sm:$0x1] %v873
      %v875 = vld [vmem:[%s858 + $0x18] sm:$0xf]
      %v876 = vsel %vm860, %v578, %v875
      %877 = vst [vmem:[%s858 + $0x18] sm:$0xf] %v876
      %878 = vst.msk [vmem:[%s858 + $0x1c] sm:$0xf] %vm286, %v587
      %v879 = vld [vmem:[%s858 + $0x20] sm:$0x1]
      %v880 = vsel %vm297, %v588, %v879
      %881 = vst [vmem:[%s858 + $0x20] sm:$0x1] %v880
      %v882 = vld [vmem:[%s858 + $0x24] sm:$0xf]
      %v883 = vsel %vm860, %v595, %v882
      %884 = vst [vmem:[%s858 + $0x24] sm:$0xf] %v883
      %885 = vst.msk [vmem:[%s858 + $0x28] sm:$0xf] %vm286, %v604
      %v886 = vld [vmem:[%s858 + $0x2c] sm:$0x1]
      %v887 = vsel %vm297, %v605, %v886
      %888 = vst [vmem:[%s858 + $0x2c] sm:$0x1] %v887
      %v889 = vld [vmem:[%s858 + $0x30] sm:$0xf]
      %v890 = vsel %vm860, %v612, %v889
      %891 = vst [vmem:[%s858 + $0x30] sm:$0xf] %v890
      %892 = vst.msk [vmem:[%s858 + $0x34] sm:$0xf] %vm286, %v621
      %v893 = vld [vmem:[%s858 + $0x38] sm:$0x1]
      %v894 = vsel %vm297, %v622, %v893
      %895 = vst [vmem:[%s858 + $0x38] sm:$0x1] %v894
      %v896 = vld [vmem:[%s858 + $0x3c] sm:$0xf]
      %v897 = vsel %vm860, %v629, %v896
      %898 = vst [vmem:[%s858 + $0x3c] sm:$0xf] %v897
      %899 = vst.msk [vmem:[%s858 + $0x40] sm:$0xf] %vm286, %v638
      %v900 = vld [vmem:[%s858 + $0x44] sm:$0x1]
      %v901 = vsel %vm297, %v639, %v900
      %902 = vst [vmem:[%s858 + $0x44] sm:$0x1] %v901
      %v903 = vld [vmem:[%s858 + $0x48] sm:$0xf]
      %v904 = vsel %vm860, %v646, %v903
      %905 = vst [vmem:[%s858 + $0x48] sm:$0xf] %v904
      %906 = vst.msk [vmem:[%s858 + $0x4c] sm:$0xf] %vm286, %v655
      %v907 = vld [vmem:[%s858 + $0x50] sm:$0x1]
      %v908 = vsel %vm297, %v656, %v907
      %909 = vst [vmem:[%s858 + $0x50] sm:$0x1] %v908
      %v910 = vld [vmem:[%s858 + $0x54] sm:$0xf]
      %v911 = vsel %vm860, %v663, %v910
      %912 = vst [vmem:[%s858 + $0x54] sm:$0xf] %v911
      %913 = vst.msk [vmem:[%s858 + $0x58] sm:$0xf] %vm286, %v672
      %v914 = vld [vmem:[%s858 + $0x5c] sm:$0x1]
      %v915 = vsel %vm297, %v673, %v914
      %916 = vst [vmem:[%s858 + $0x5c] sm:$0x1] %v915
      %v917 = vld [vmem:[%s858 + $0x60] sm:$0xf]
      %v918 = vsel %vm860, %v680, %v917
      %919 = vst [vmem:[%s858 + $0x60] sm:$0xf] %v918
      %920 = vst.msk [vmem:[%s858 + $0x64] sm:$0xf] %vm286, %v689
      %v921 = vld [vmem:[%s858 + $0x68] sm:$0x1]
      %v922 = vsel %vm297, %v690, %v921
      %923 = vst [vmem:[%s858 + $0x68] sm:$0x1] %v922
      %v924 = vld [vmem:[%s858 + $0x6c] sm:$0xf]
      %v925 = vsel %vm860, %v697, %v924
      %926 = vst [vmem:[%s858 + $0x6c] sm:$0xf] %v925
      %927 = vst.msk [vmem:[%s858 + $0x70] sm:$0xf] %vm286, %v706
      %v928 = vld [vmem:[%s858 + $0x74] sm:$0x1]
      %v929 = vsel %vm297, %v707, %v928
      %930 = vst [vmem:[%s858 + $0x74] sm:$0x1] %v929
      %v931 = vld [vmem:[%s858 + $0x78] sm:$0xf]
      %v932 = vsel %vm860, %v714, %v931
      %933 = vst [vmem:[%s858 + $0x78] sm:$0xf] %v932
      %934 = vst.msk [vmem:[%s858 + $0x7c] sm:$0xf] %vm286, %v723
      %v935 = vld [vmem:[%s858 + $0x80] sm:$0x1]
      %v936 = vsel %vm297, %v724, %v935
      %937 = vst [vmem:[%s858 + $0x80] sm:$0x1] %v936
      %v938 = vld [vmem:[%s858 + $0x84] sm:$0xf]
      %v939 = vsel %vm860, %v731, %v938
      %940 = vst [vmem:[%s858 + $0x84] sm:$0xf] %v939
      %941 = vst.msk [vmem:[%s858 + $0x88] sm:$0xf] %vm286, %v740
      %v942 = vld [vmem:[%s858 + $0x8c] sm:$0x1]
      %v943 = vsel %vm297, %v741, %v942
      %944 = vst [vmem:[%s858 + $0x8c] sm:$0x1] %v943
      %v945 = vld [vmem:[%s858 + $0x90] sm:$0xf]
      %v946 = vsel %vm860, %v748, %v945
      %947 = vst [vmem:[%s858 + $0x90] sm:$0xf] %v946
      %948 = vst.msk [vmem:[%s858 + $0x94] sm:$0xf] %vm286, %v757
      %v949 = vld [vmem:[%s858 + $0x98] sm:$0x1]
      %v950 = vsel %vm297, %v758, %v949
      %951 = vst [vmem:[%s858 + $0x98] sm:$0x1] %v950
      %v952 = vld [vmem:[%s858 + $0x9c] sm:$0xf]
      %v953 = vsel %vm860, %v765, %v952
      %954 = vst [vmem:[%s858 + $0x9c] sm:$0xf] %v953
      %955 = vst.msk [vmem:[%s858 + $0xa0] sm:$0xf] %vm286, %v774
      %v956 = vld [vmem:[%s858 + $0xa4] sm:$0x1]
      %v957 = vsel %vm297, %v775, %v956
      %958 = vst [vmem:[%s858 + $0xa4] sm:$0x1] %v957
      %v959 = vld [vmem:[%s858 + $0xa8] sm:$0xf]
      %v960 = vsel %vm860, %v782, %v959
      %961 = vst [vmem:[%s858 + $0xa8] sm:$0xf] %v960
      %962 = vst.msk [vmem:[%s858 + $0xac] sm:$0xf] %vm286, %v791
      %v963 = vld [vmem:[%s858 + $0xb0] sm:$0x1]
      %v964 = vsel %vm297, %v792, %v963
      %965 = vst [vmem:[%s858 + $0xb0] sm:$0x1] %v964
      %v966 = vld [vmem:[%s858 + $0xb4] sm:$0xf]
      %v967 = vsel %vm860, %v799, %v966
      %968 = vst [vmem:[%s858 + $0xb4] sm:$0xf] %v967
      %969 = vst.msk [vmem:[%s858 + $0xb8] sm:$0xf] %vm286, %v808
      %v970 = vld [vmem:[%s858 + $0xbc] sm:$0x1]
      %v971 = vsel %vm297, %v809, %v970
      %972 = vst [vmem:[%s858 + $0xbc] sm:$0x1] %v971
      %v973 = vld [vmem:[#allocation2] sm:$0xf]
      %v974 = vld [vmem:[#allocation2 + $0x4] sm:$0xf]
      %v975 = vld [vmem:[#allocation2 + $0x8] sm:$0x1]
      %v976 = vld [vmem:[#allocation2 + $0xc] sm:$0xf]
      %v977 = vld [vmem:[#allocation2 + $0x10] sm:$0xf]
      %v978 = vld [vmem:[#allocation2 + $0x14] sm:$0x1]
      %v979 = vld [vmem:[#allocation2 + $0x18] sm:$0xf]
      %v980 = vld [vmem:[#allocation2 + $0x1c] sm:$0xf]
      %v981 = vld [vmem:[#allocation2 + $0x20] sm:$0x1]
      %v982 = vld [vmem:[#allocation2 + $0x24] sm:$0xf]
      %v983 = vld [vmem:[#allocation2 + $0x28] sm:$0xf]
      %v984 = vld [vmem:[#allocation2 + $0x2c] sm:$0x1]
      %v985 = vld [vmem:[#allocation2 + $0x30] sm:$0xf]
      %v986 = vld [vmem:[#allocation2 + $0x34] sm:$0xf]
      %v987 = vld [vmem:[#allocation2 + $0x38] sm:$0x1]
      %v988 = vld [vmem:[#allocation2 + $0x3c] sm:$0xf]
      %v989 = vld [vmem:[#allocation2 + $0x40] sm:$0xf]
      %v990 = vld [vmem:[#allocation2 + $0x44] sm:$0x1]
      %v991 = vld [vmem:[#allocation2 + $0x48] sm:$0xf]
      %v992 = vld [vmem:[#allocation2 + $0x4c] sm:$0xf]
      %v993 = vld [vmem:[#allocation2 + $0x50] sm:$0x1]
      %v994 = vld [vmem:[#allocation2 + $0x54] sm:$0xf]
      %v995 = vld [vmem:[#allocation2 + $0x58] sm:$0xf]
      %v996 = vld [vmem:[#allocation2 + $0x5c] sm:$0x1]
      %v997 = vld [vmem:[#allocation2 + $0x60] sm:$0xf]
      %v998 = vld [vmem:[#allocation2 + $0x64] sm:$0xf]
      %v999 = vld [vmem:[#allocation2 + $0x68] sm:$0x1]
      %v1000 = vld [vmem:[#allocation2 + $0x6c] sm:$0xf]
      %v1001 = vld [vmem:[#allocation2 + $0x70] sm:$0xf]
      %v1002 = vld [vmem:[#allocation2 + $0x74] sm:$0x1]
      %v1003 = vld [vmem:[#allocation2 + $0x78] sm:$0xf]
      %v1004 = vld [vmem:[#allocation2 + $0x7c] sm:$0xf]
      %v1005 = vld [vmem:[#allocation2 + $0x80] sm:$0x1]
      %v1006 = vld [vmem:[#allocation2 + $0x84] sm:$0xf]
      %v1007 = vld [vmem:[#allocation2 + $0x88] sm:$0xf]
      %v1008 = vld [vmem:[#allocation2 + $0x8c] sm:$0x1]
      %v1009 = vld [vmem:[#allocation2 + $0x90] sm:$0xf]
      %v1010 = vld [vmem:[#allocation2 + $0x94] sm:$0xf]
      %v1011 = vld [vmem:[#allocation2 + $0x98] sm:$0x1]
      %v1012 = vld [vmem:[#allocation2 + $0x9c] sm:$0xf]
      %v1013 = vld [vmem:[#allocation2 + $0xa0] sm:$0xf]
      %v1014 = vld [vmem:[#allocation2 + $0xa4] sm:$0x1]
      %v1015 = vld [vmem:[#allocation2 + $0xa8] sm:$0xf]
      %v1016 = vld [vmem:[#allocation2 + $0xac] sm:$0xf]
      %v1017 = vld [vmem:[#allocation2 + $0xb0] sm:$0x1]
      %v1018 = vld [vmem:[#allocation2 + $0xb4] sm:$0xf]
      %v1019 = vld [vmem:[#allocation2 + $0xb8] sm:$0xf]
      %v1020 = vld [vmem:[#allocation2 + $0xbc] sm:$0x1]
      %v1021 = vld [vmem:[#allocation2 + $0xc0] sm:$0xf]
      %v1022 = vld [vmem:[#allocation2 + $0xc4] sm:$0xf]
      %v1023 = vld [vmem:[#allocation2 + $0xc8] sm:$0x1]
      %v1024 = vld [vmem:[#allocation2 + $0xcc] sm:$0xf]
      %v1025 = vld [vmem:[#allocation2 + $0xd0] sm:$0xf]
      %v1026 = vld [vmem:[#allocation2 + $0xd4] sm:$0x1]
      %v1027 = vld [vmem:[%s1] sm:$0x3]
      %vm1028 = vsmask.f32 3328
      %vm1029 = vsmask.f32 7440
      %vm1030 = vmor %vm1028, %vm1029
      %v1032 = vshrl.u32 %v973, 16
      %v1034 = vrot.slane %v1032, 4
      %v1035 = vshll.u32 %v973, 16
      %v1037 = vrot.slane %v1035, 5
      %v1038 = vor.u32 %v1034, %v1037
      %v1039 = vrot.slane %v1038, 4
      %v1041 = vshll.u32 %v974, 16
      %v1043 = vrot.slane %v1041, 5
      %v1044 = vsel %vm1030, %v1039, %v1043
      %v1045 = vshrl.u32 %v974, 16
      %v1047 = vrot.slane %v1045, 4
      %v1048 = vor.u32 %v1047, %v1043
      %v1049 = vrot.slane %v1048, 4
      %v1051 = vshll.u32 %v975, 16
      %v1053 = vrot.slane %v1051, 5
      %v1054 = vsel %vm1030, %v1049, %v1053
      %v1056 = vshrl.u32 %v976, 16
      %v1058 = vrot.slane %v1056, 4
      %v1059 = vshll.u32 %v976, 16
      %v1061 = vrot.slane %v1059, 5
      %v1062 = vor.u32 %v1058, %v1061
      %v1063 = vrot.slane %v1062, 4
      %v1065 = vshll.u32 %v977, 16
      %v1067 = vrot.slane %v1065, 5
      %v1068 = vsel %vm1030, %v1063, %v1067
      %v1069 = vshrl.u32 %v977, 16
      %v1071 = vrot.slane %v1069, 4
      %v1072 = vor.u32 %v1071, %v1067
      %v1073 = vrot.slane %v1072, 4
      %v1075 = vshll.u32 %v978, 16
      %v1077 = vrot.slane %v1075, 5
      %v1078 = vsel %vm1030, %v1073, %v1077
      %v1080 = vshrl.u32 %v979, 16
      %v1082 = vrot.slane %v1080, 4
      %v1083 = vshll.u32 %v979, 16
      %v1085 = vrot.slane %v1083, 5
      %v1086 = vor.u32 %v1082, %v1085
      %v1087 = vrot.slane %v1086, 4
      %v1089 = vshll.u32 %v980, 16
      %v1091 = vrot.slane %v1089, 5
      %v1092 = vsel %vm1030, %v1087, %v1091
      %v1093 = vshrl.u32 %v980, 16
      %v1095 = vrot.slane %v1093, 4
      %v1096 = vor.u32 %v1095, %v1091
      %v1097 = vrot.slane %v1096, 4
      %v1099 = vshll.u32 %v981, 16
      %v1101 = vrot.slane %v1099, 5
      %v1102 = vsel %vm1030, %v1097, %v1101
      %v1104 = vshrl.u32 %v982, 16
      %v1106 = vrot.slane %v1104, 4
      %v1107 = vshll.u32 %v982, 16
      %v1109 = vrot.slane %v1107, 5
      %v1110 = vor.u32 %v1106, %v1109
      %v1111 = vrot.slane %v1110, 4
      %v1113 = vshll.u32 %v983, 16
      %v1115 = vrot.slane %v1113, 5
      %v1116 = vsel %vm1030, %v1111, %v1115
      %v1117 = vshrl.u32 %v983, 16
      %v1119 = vrot.slane %v1117, 4
      %v1120 = vor.u32 %v1119, %v1115
      %v1121 = vrot.slane %v1120, 4
      %v1123 = vshll.u32 %v984, 16
      %v1125 = vrot.slane %v1123, 5
      %v1126 = vsel %vm1030, %v1121, %v1125
      %v1128 = vshrl.u32 %v985, 16
      %v1130 = vrot.slane %v1128, 4
      %v1131 = vshll.u32 %v985, 16
      %v1133 = vrot.slane %v1131, 5
      %v1134 = vor.u32 %v1130, %v1133
      %v1135 = vrot.slane %v1134, 4
      %v1137 = vshll.u32 %v986, 16
      %v1139 = vrot.slane %v1137, 5
      %v1140 = vsel %vm1030, %v1135, %v1139
      %v1141 = vshrl.u32 %v986, 16
      %v1143 = vrot.slane %v1141, 4
      %v1144 = vor.u32 %v1143, %v1139
      %v1145 = vrot.slane %v1144, 4
      %v1147 = vshll.u32 %v987, 16
      %v1149 = vrot.slane %v1147, 5
      %v1150 = vsel %vm1030, %v1145, %v1149
      %v1152 = vshrl.u32 %v988, 16
      %v1154 = vrot.slane %v1152, 4
      %v1155 = vshll.u32 %v988, 16
      %v1157 = vrot.slane %v1155, 5
      %v1158 = vor.u32 %v1154, %v1157
      %v1159 = vrot.slane %v1158, 4
      %v1161 = vshll.u32 %v989, 16
      %v1163 = vrot.slane %v1161, 5
      %v1164 = vsel %vm1030, %v1159, %v1163
      %v1165 = vshrl.u32 %v989, 16
      %v1167 = vrot.slane %v1165, 4
      %v1168 = vor.u32 %v1167, %v1163
      %v1169 = vrot.slane %v1168, 4
      %v1171 = vshll.u32 %v990, 16
      %v1173 = vrot.slane %v1171, 5
      %v1174 = vsel %vm1030, %v1169, %v1173
      %v1176 = vshrl.u32 %v991, 16
      %v1178 = vrot.slane %v1176, 4
      %v1179 = vshll.u32 %v991, 16
      %v1181 = vrot.slane %v1179, 5
      %v1182 = vor.u32 %v1178, %v1181
      %v1183 = vrot.slane %v1182, 4
      %v1185 = vshll.u32 %v992, 16
      %v1187 = vrot.slane %v1185, 5
      %v1188 = vsel %vm1030, %v1183, %v1187
      %v1189 = vshrl.u32 %v992, 16
      %v1191 = vrot.slane %v1189, 4
      %v1192 = vor.u32 %v1191, %v1187
      %v1193 = vrot.slane %v1192, 4
      %v1195 = vshll.u32 %v993, 16
      %v1197 = vrot.slane %v1195, 5
      %v1198 = vsel %vm1030, %v1193, %v1197
      %v1200 = vshrl.u32 %v994, 16
      %v1202 = vrot.slane %v1200, 4
      %v1203 = vshll.u32 %v994, 16
      %v1205 = vrot.slane %v1203, 5
      %v1206 = vor.u32 %v1202, %v1205
      %v1207 = vrot.slane %v1206, 4
      %v1209 = vshll.u32 %v995, 16
      %v1211 = vrot.slane %v1209, 5
      %v1212 = vsel %vm1030, %v1207, %v1211
      %v1213 = vshrl.u32 %v995, 16
      %v1215 = vrot.slane %v1213, 4
      %v1216 = vor.u32 %v1215, %v1211
      %v1217 = vrot.slane %v1216, 4
      %v1219 = vshll.u32 %v996, 16
      %v1221 = vrot.slane %v1219, 5
      %v1222 = vsel %vm1030, %v1217, %v1221
      %v1224 = vshrl.u32 %v997, 16
      %v1226 = vrot.slane %v1224, 4
      %v1227 = vshll.u32 %v997, 16
      %v1229 = vrot.slane %v1227, 5
      %v1230 = vor.u32 %v1226, %v1229
      %v1231 = vrot.slane %v1230, 4
      %v1233 = vshll.u32 %v998, 16
      %v1235 = vrot.slane %v1233, 5
      %v1236 = vsel %vm1030, %v1231, %v1235
      %v1237 = vshrl.u32 %v998, 16
      %v1239 = vrot.slane %v1237, 4
      %v1240 = vor.u32 %v1239, %v1235
      %v1241 = vrot.slane %v1240, 4
      %v1243 = vshll.u32 %v999, 16
      %v1245 = vrot.slane %v1243, 5
      %v1246 = vsel %vm1030, %v1241, %v1245
      %v1248 = vshrl.u32 %v1000, 16
      %v1250 = vrot.slane %v1248, 4
      %v1251 = vshll.u32 %v1000, 16
      %v1253 = vrot.slane %v1251, 5
      %v1254 = vor.u32 %v1250, %v1253
      %v1255 = vrot.slane %v1254, 4
      %v1257 = vshll.u32 %v1001, 16
      %v1259 = vrot.slane %v1257, 5
      %v1260 = vsel %vm1030, %v1255, %v1259
      %v1261 = vshrl.u32 %v1001, 16
      %v1263 = vrot.slane %v1261, 4
      %v1264 = vor.u32 %v1263, %v1259
      %v1265 = vrot.slane %v1264, 4
      %v1267 = vshll.u32 %v1002, 16
      %v1269 = vrot.slane %v1267, 5
      %v1270 = vsel %vm1030, %v1265, %v1269
      %v1272 = vshrl.u32 %v1003, 16
      %v1274 = vrot.slane %v1272, 4
      %v1275 = vshll.u32 %v1003, 16
      %v1277 = vrot.slane %v1275, 5
      %v1278 = vor.u32 %v1274, %v1277
      %v1279 = vrot.slane %v1278, 4
      %v1281 = vshll.u32 %v1004, 16
      %v1283 = vrot.slane %v1281, 5
      %v1284 = vsel %vm1030, %v1279, %v1283
      %v1285 = vshrl.u32 %v1004, 16
      %v1287 = vrot.slane %v1285, 4
      %v1288 = vor.u32 %v1287, %v1283
      %v1289 = vrot.slane %v1288, 4
      %v1291 = vshll.u32 %v1005, 16
      %v1293 = vrot.slane %v1291, 5
      %v1294 = vsel %vm1030, %v1289, %v1293
      %v1296 = vshrl.u32 %v1006, 16
      %v1298 = vrot.slane %v1296, 4
      %v1299 = vshll.u32 %v1006, 16
      %v1301 = vrot.slane %v1299, 5
      %v1302 = vor.u32 %v1298, %v1301
      %v1303 = vrot.slane %v1302, 4
      %v1305 = vshll.u32 %v1007, 16
      %v1307 = vrot.slane %v1305, 5
      %v1308 = vsel %vm1030, %v1303, %v1307
      %v1309 = vshrl.u32 %v1007, 16
      %v1311 = vrot.slane %v1309, 4
      %v1312 = vor.u32 %v1311, %v1307
      %v1313 = vrot.slane %v1312, 4
      %v1315 = vshll.u32 %v1008, 16
      %v1317 = vrot.slane %v1315, 5
      %v1318 = vsel %vm1030, %v1313, %v1317
      %v1320 = vshrl.u32 %v1009, 16
      %v1322 = vrot.slane %v1320, 4
      %v1323 = vshll.u32 %v1009, 16
      %v1325 = vrot.slane %v1323, 5
      %v1326 = vor.u32 %v1322, %v1325
      %v1327 = vrot.slane %v1326, 4
      %v1329 = vshll.u32 %v1010, 16
      %v1331 = vrot.slane %v1329, 5
      %v1332 = vsel %vm1030, %v1327, %v1331
      %v1333 = vshrl.u32 %v1010, 16
      %v1335 = vrot.slane %v1333, 4
      %v1336 = vor.u32 %v1335, %v1331
      %v1337 = vrot.slane %v1336, 4
      %v1339 = vshll.u32 %v1011, 16
      %v1341 = vrot.slane %v1339, 5
      %v1342 = vsel %vm1030, %v1337, %v1341
      %v1344 = vshrl.u32 %v1012, 16
      %v1346 = vrot.slane %v1344, 4
      %v1347 = vshll.u32 %v1012, 16
      %v1349 = vrot.slane %v1347, 5
      %v1350 = vor.u32 %v1346, %v1349
      %v1351 = vrot.slane %v1350, 4
      %v1353 = vshll.u32 %v1013, 16
      %v1355 = vrot.slane %v1353, 5
      %v1356 = vsel %vm1030, %v1351, %v1355
      %v1357 = vshrl.u32 %v1013, 16
      %v1359 = vrot.slane %v1357, 4
      %v1360 = vor.u32 %v1359, %v1355
      %v1361 = vrot.slane %v1360, 4
      %v1363 = vshll.u32 %v1014, 16
      %v1365 = vrot.slane %v1363, 5
      %v1366 = vsel %vm1030, %v1361, %v1365
      %v1368 = vshrl.u32 %v1015, 16
      %v1370 = vrot.slane %v1368, 4
      %v1371 = vshll.u32 %v1015, 16
      %v1373 = vrot.slane %v1371, 5
      %v1374 = vor.u32 %v1370, %v1373
      %v1375 = vrot.slane %v1374, 4
      %v1377 = vshll.u32 %v1016, 16
      %v1379 = vrot.slane %v1377, 5
      %v1380 = vsel %vm1030, %v1375, %v1379
      %v1381 = vshrl.u32 %v1016, 16
      %v1383 = vrot.slane %v1381, 4
      %v1384 = vor.u32 %v1383, %v1379
      %v1385 = vrot.slane %v1384, 4
      %v1387 = vshll.u32 %v1017, 16
      %v1389 = vrot.slane %v1387, 5
      %v1390 = vsel %vm1030, %v1385, %v1389
      %v1392 = vshrl.u32 %v1018, 16
      %v1394 = vrot.slane %v1392, 4
      %v1395 = vshll.u32 %v1018, 16
      %v1397 = vrot.slane %v1395, 5
      %v1398 = vor.u32 %v1394, %v1397
      %v1399 = vrot.slane %v1398, 4
      %v1401 = vshll.u32 %v1019, 16
      %v1403 = vrot.slane %v1401, 5
      %v1404 = vsel %vm1030, %v1399, %v1403
      %v1405 = vshrl.u32 %v1019, 16
      %v1407 = vrot.slane %v1405, 4
      %v1408 = vor.u32 %v1407, %v1403
      %v1409 = vrot.slane %v1408, 4
      %v1411 = vshll.u32 %v1020, 16
      %v1413 = vrot.slane %v1411, 5
      %v1414 = vsel %vm1030, %v1409, %v1413
      %s1415 = scalar_lea.vmem %s1, 2
      %v1416 = vld [vmem:[%s1415] sm:$0x3]
      %v1417 = vunpack.c.l.b16 %v1044
      %v1418 = vunpack.c.l.b16 %v1054
      %v1419 = vunpack.c.l.b16 %v1068
      %v1420 = vunpack.c.l.b16 %v1078
      %v1421 = vunpack.c.l.b16 %v1092
      %v1422 = vunpack.c.l.b16 %v1102
      %v1423 = vunpack.c.l.b16 %v1116
      %v1424 = vunpack.c.l.b16 %v1126
      %v1425 = vunpack.c.l.b16 %v1140
      %v1426 = vunpack.c.l.b16 %v1150
      %v1427 = vunpack.c.l.b16 %v1164
      %v1428 = vunpack.c.l.b16 %v1174
      %v1429 = vunpack.c.l.b16 %v1188
      %v1430 = vunpack.c.l.b16 %v1198
      %v1431 = vunpack.c.l.b16 %v1212
      %v1432 = vunpack.c.l.b16 %v1222
      %v1433 = vunpack.c.l.b16 %v1236
      %v1434 = vunpack.c.l.b16 %v1246
      %v1435 = vunpack.c.l.b16 %v1260
      %v1436 = vunpack.c.l.b16 %v1270
      %v1437 = vunpack.c.l.b16 %v1284
      %v1438 = vunpack.c.l.b16 %v1294
      %v1439 = vunpack.c.l.b16 %v1308
      %v1440 = vunpack.c.l.b16 %v1318
      %v1441 = vunpack.c.l.b16 %v1332
      %v1442 = vunpack.c.l.b16 %v1342
      %v1443 = vunpack.c.l.b16 %v1356
      %v1444 = vunpack.c.l.b16 %v1366
      %v1445 = vunpack.c.l.b16 %v1380
      %v1446 = vunpack.c.l.b16 %v1390
      %v1447 = vunpack.c.l.b16 %v1404
      %v1448 = vunpack.c.l.b16 %v1414
      %v1449 = vpack.c.b16 %v1418, %v1417
      %v1450 = vpack.c.b16 %v1420, %v1419
      %v1451 = vpack.c.b16 %v1422, %v1421
      %v1452 = vpack.c.b16 %v1424, %v1423
      %v1453 = vpack.c.b16 %v1426, %v1425
      %v1454 = vpack.c.b16 %v1428, %v1427
      %v1455 = vpack.c.b16 %v1430, %v1429
      %v1456 = vpack.c.b16 %v1432, %v1431
      %v1457 = vpack.c.b16 %v1434, %v1433
      %v1458 = vpack.c.b16 %v1436, %v1435
      %v1459 = vpack.c.b16 %v1438, %v1437
      %v1460 = vpack.c.b16 %v1440, %v1439
      %v1461 = vpack.c.b16 %v1442, %v1441
      %v1462 = vpack.c.b16 %v1444, %v1443
      %v1463 = vpack.c.b16 %v1446, %v1445
      %v1464 = vpack.c.b16 %v1448, %v1447
      %vm1465 = vcmask 31744
      %v1467 = vsel %vm1465, %v1449, 0
      %v1470 = vsel %vm1465, %v1450, 0
      %v1473 = vsel %vm1465, %v1451, 0
      %v1476 = vsel %vm1465, %v1452, 0
      %v1479 = vsel %vm1465, %v1453, 0
      %v1482 = vsel %vm1465, %v1454, 0
      %v1485 = vsel %vm1465, %v1455, 0
      %v1488 = vsel %vm1465, %v1456, 0
      %v1491 = vsel %vm1465, %v1457, 0
      %v1494 = vsel %vm1465, %v1458, 0
      %v1497 = vsel %vm1465, %v1459, 0
      %v1500 = vsel %vm1465, %v1460, 0
      %v1503 = vsel %vm1465, %v1461, 0
      %v1506 = vsel %vm1465, %v1462, 0
      %v1509 = vsel %vm1465, %v1463, 0
      %v1512 = vsel %vm1465, %v1464, 0
      %vm1514 = vcmask 1041408
      %v1516 = vsel %vm1514, %v1416, 0
      %1518 = vmatprep.subr.bf16.mxu0 0
      %1519 = vmatpush1.bf16.msra.mxu0 %v1516
      %1520 = vmatprep.subr.bf16.mxu0 0
      %1521 = vmatpush1.bf16.msra.mxu0 0
      %1522 = vmatprep.subr.bf16.mxu0 0
      %1523 = vmatpush1.bf16.msra.mxu0 0
      %1524 = vmatprep.subr.bf16.mxu0 0
      %1525 = vmatpush1.bf16.msra.mxu0 0
      %1526 = vmatprep.subr.bf16.mxu0 0
      %1527 = vmatpush1.bf16.msra.mxu0 0
      %1528 = vmatprep.subr.bf16.mxu0 0
      %1529 = vmatpush1.bf16.msra.mxu0 0
      %1530 = vmatprep.subr.bf16.mxu0 0
      %1531 = vmatpush1.bf16.msra.mxu0 0
      %1532 = vmatprep.subr.bf16.mxu0 0
      %1533 = vmatpush1.bf16.msra.mxu0 0
      %1534 = vmatprep.subr.bf16.mxu0 0
      %1535 = vmatpush1.bf16.msra.mxu0 0
      %1536 = vmatprep.subr.bf16.mxu0 0
      %1537 = vmatpush1.bf16.msra.mxu0 0
      %1538 = vmatprep.subr.bf16.mxu0 0
      %1539 = vmatpush1.bf16.msra.mxu0 0
      %1540 = vmatprep.subr.bf16.mxu0 0
      %1541 = vmatpush1.bf16.msra.mxu0 0
      %1542 = vmatprep.subr.bf16.mxu0 0
      %1543 = vmatpush1.bf16.msra.mxu0 0
      %1544 = vmatprep.subr.bf16.mxu0 0
      %1545 = vmatpush1.bf16.msra.mxu0 0
      %1546 = vmatprep.subr.bf16.mxu0 0
      %1547 = vmatpush1.bf16.msra.mxu0 0
      %1548 = vmatprep.subr.bf16.mxu0 0
      %1549 = vmatpush1.bf16.msra.mxu0 0
      %1550 = vmatprep.mubr.bf16.mxu0 0
      %1551 = vmatmul.mubr.bf16.gmra.mrb[0].mxu0 %v1467
      %v1552 = vpop.f32.mrb[0].mxu0
      %v1553 = vadd.f32 0.0, %v1552
      %v1554 = vpop.f32.mrb[0].mxu0
      %v1555 = vpop.f32.mrb[0].mxu0
      %v1556 = vadd.f32 0.0, %v1555
      %v1557 = vpop.f32.mrb[0].mxu0
      %1558 = vmatprep.mubr.bf16.mxu0 0
      %1559 = vmatmul.mubr.bf16.gmra.mrb[0].mxu0 %v1470
      %v1560 = vpop.f32.mrb[0].mxu0
      %v1561 = vadd.f32 0.0, %v1560
      %v1562 = vpop.f32.mrb[0].mxu0
      %v1563 = vpop.f32.mrb[0].mxu0
      %v1564 = vadd.f32 0.0, %v1563
      %v1565 = vpop.f32.mrb[0].mxu0
      %1566 = vmatprep.mubr.bf16.mxu0 0
      %1567 = vmatmul.mubr.bf16.gmra.mrb[0].mxu0 %v1473
      %v1568 = vpop.f32.mrb[0].mxu0
      %v1569 = vadd.f32 0.0, %v1568
      %v1570 = vpop.f32.mrb[0].mxu0
      %v1571 = vpop.f32.mrb[0].mxu0
      %v1572 = vadd.f32 0.0, %v1571
      %v1573 = vpop.f32.mrb[0].mxu0
      %1574 = vmatprep.mubr.bf16.mxu0 0
      %1575 = vmatmul.mubr.bf16.gmra.mrb[0].mxu0 %v1476
      %v1576 = vpop.f32.mrb[0].mxu0
      %v1577 = vadd.f32 0.0, %v1576
      %v1578 = vpop.f32.mrb[0].mxu0
      %v1579 = vpop.f32.mrb[0].mxu0
      %v1580 = vadd.f32 0.0, %v1579
      %v1581 = vpop.f32.mrb[0].mxu0
      %1582 = vmatprep.mubr.bf16.mxu0 0
      %1583 = vmatmul.mubr.bf16.gmra.mrb[0].mxu0 %v1479
      %v1584 = vpop.f32.mrb[0].mxu0
      %v1585 = vadd.f32 0.0, %v1584
      %v1586 = vpop.f32.mrb[0].mxu0
      %v1587 = vpop.f32.mrb[0].mxu0
      %v1588 = vadd.f32 0.0, %v1587
      %v1589 = vpop.f32.mrb[0].mxu0
      %1590 = vmatprep.mubr.bf16.mxu0 0
      %1591 = vmatmul.mubr.bf16.gmra.mrb[0].mxu0 %v1482
      %v1592 = vpop.f32.mrb[0].mxu0
      %v1593 = vadd.f32 0.0, %v1592
      %v1594 = vpop.f32.mrb[0].mxu0
      %v1595 = vpop.f32.mrb[0].mxu0
      %v1596 = vadd.f32 0.0, %v1595
      %v1597 = vpop.f32.mrb[0].mxu0
      %1598 = vmatprep.mubr.bf16.mxu0 0
      %1599 = vmatmul.mubr.bf16.gmra.mrb[0].mxu0 %v1485
      %v1600 = vpop.f32.mrb[0].mxu0
      %v1601 = vadd.f32 0.0, %v1600
      %v1602 = vpop.f32.mrb[0].mxu0
      %v1603 = vpop.f32.mrb[0].mxu0
      %v1604 = vadd.f32 0.0, %v1603
      %v1605 = vpop.f32.mrb[0].mxu0
      %1606 = vmatprep.mubr.bf16.mxu0 0
      %1607 = vmatmul.mubr.bf16.gmra.mrb[0].mxu0 %v1488
      %v1608 = vpop.f32.mrb[0].mxu0
      %v1609 = vadd.f32 0.0, %v1608
      %v1610 = vpop.f32.mrb[0].mxu0
      %v1611 = vpop.f32.mrb[0].mxu0
      %v1612 = vadd.f32 0.0, %v1611
      %v1613 = vpop.f32.mrb[0].mxu0
      %1614 = vmatprep.mubr.bf16.mxu0 0
      %1615 = vmatmul.mubr.bf16.gmra.mrb[0].mxu0 %v1491
      %v1616 = vpop.f32.mrb[0].mxu0
      %v1617 = vadd.f32 0.0, %v1616
      %v1618 = vpop.f32.mrb[0].mxu0
      %v1619 = vpop.f32.mrb[0].mxu0
      %v1620 = vadd.f32 0.0, %v1619
      %v1621 = vpop.f32.mrb[0].mxu0
      %1622 = vmatprep.mubr.bf16.mxu0 0
      %1623 = vmatmul.mubr.bf16.gmra.mrb[0].mxu0 %v1494
      %v1624 = vpop.f32.mrb[0].mxu0
      %v1625 = vadd.f32 0.0, %v1624
      %v1626 = vpop.f32.mrb[0].mxu0
      %v1627 = vpop.f32.mrb[0].mxu0
      %v1628 = vadd.f32 0.0, %v1627
      %v1629 = vpop.f32.mrb[0].mxu0
      %1630 = vmatprep.mubr.bf16.mxu0 0
      %1631 = vmatmul.mubr.bf16.gmra.mrb[0].mxu0 %v1497
      %v1632 = vpop.f32.mrb[0].mxu0
      %v1633 = vadd.f32 0.0, %v1632
      %v1634 = vpop.f32.mrb[0].mxu0
      %v1635 = vpop.f32.mrb[0].mxu0
      %v1636 = vadd.f32 0.0, %v1635
      %v1637 = vpop.f32.mrb[0].mxu0
      %1638 = vmatprep.mubr.bf16.mxu0 0
      %1639 = vmatmul.mubr.bf16.gmra.mrb[0].mxu0 %v1500
      %v1640 = vpop.f32.mrb[0].mxu0
      %v1641 = vadd.f32 0.0, %v1640
      %v1642 = vpop.f32.mrb[0].mxu0
      %v1643 = vpop.f32.mrb[0].mxu0
      %v1644 = vadd.f32 0.0, %v1643
      %v1645 = vpop.f32.mrb[0].mxu0
      %1646 = vmatprep.mubr.bf16.mxu0 0
      %1647 = vmatmul.mubr.bf16.gmra.mrb[0].mxu0 %v1503
      %v1648 = vpop.f32.mrb[0].mxu0
      %v1649 = vadd.f32 0.0, %v1648
      %v1650 = vpop.f32.mrb[0].mxu0
      %v1651 = vpop.f32.mrb[0].mxu0
      %v1652 = vadd.f32 0.0, %v1651
      %v1653 = vpop.f32.mrb[0].mxu0
      %1654 = vmatprep.mubr.bf16.mxu0 0
      %1655 = vmatmul.mubr.bf16.gmra.mrb[0].mxu0 %v1506
      %v1656 = vpop.f32.mrb[0].mxu0
      %v1657 = vadd.f32 0.0, %v1656
      %v1658 = vpop.f32.mrb[0].mxu0
      %v1659 = vpop.f32.mrb[0].mxu0
      %v1660 = vadd.f32 0.0, %v1659
      %v1661 = vpop.f32.mrb[0].mxu0
      %1662 = vmatprep.mubr.bf16.mxu0 0
      %1663 = vmatmul.mubr.bf16.gmra.mrb[0].mxu0 %v1509
      %v1664 = vpop.f32.mrb[0].mxu0
      %v1665 = vadd.f32 0.0, %v1664
      %v1666 = vpop.f32.mrb[0].mxu0
      %v1667 = vpop.f32.mrb[0].mxu0
      %v1668 = vadd.f32 0.0, %v1667
      %v1669 = vpop.f32.mrb[0].mxu0
      %1670 = vmatprep.mubr.bf16.mxu0 0
      %1671 = vmatmul.mubr.bf16.gmra.mrb[0].mxu0 %v1512
      %v1672 = vpop.f32.mrb[0].mxu0
      %v1673 = vadd.f32 0.0, %v1672
      %v1674 = vpop.f32.mrb[0].mxu0
      %v1675 = vpop.f32.mrb[0].mxu0
      %v1676 = vadd.f32 0.0, %v1675
      %v1677 = vpop.f32.mrb[0].mxu0
      %1678 = vdwg.mxu0
      %v1711 = vunpack.c.l.b16 %v973
      %v1712 = vunpack.c.l.b16 %v974
      %v1713 = vunpack.c.l.b16 %v976
      %v1714 = vunpack.c.l.b16 %v977
      %v1715 = vunpack.c.l.b16 %v979
      %v1716 = vunpack.c.l.b16 %v980
      %v1717 = vunpack.c.l.b16 %v982
      %v1718 = vunpack.c.l.b16 %v983
      %v1719 = vunpack.c.l.b16 %v985
      %v1720 = vunpack.c.l.b16 %v986
      %v1721 = vunpack.c.l.b16 %v988
      %v1722 = vunpack.c.l.b16 %v989
      %v1723 = vunpack.c.l.b16 %v991
      %v1724 = vunpack.c.l.b16 %v992
      %v1725 = vunpack.c.l.b16 %v994
      %v1726 = vunpack.c.l.b16 %v995
      %v1727 = vunpack.c.l.b16 %v997
      %v1728 = vunpack.c.l.b16 %v998
      %v1729 = vunpack.c.l.b16 %v1000
      %v1730 = vunpack.c.l.b16 %v1001
      %v1731 = vunpack.c.l.b16 %v1003
      %v1732 = vunpack.c.l.b16 %v1004
      %v1733 = vunpack.c.l.b16 %v1006
      %v1734 = vunpack.c.l.b16 %v1007
      %v1735 = vunpack.c.l.b16 %v1009
      %v1736 = vunpack.c.l.b16 %v1010
      %v1737 = vunpack.c.l.b16 %v1012
      %v1738 = vunpack.c.l.b16 %v1013
      %v1739 = vunpack.c.l.b16 %v1015
      %v1740 = vunpack.c.l.b16 %v1016
      %v1741 = vunpack.c.l.b16 %v1018
      %v1742 = vunpack.c.l.b16 %v1019
      %v1743 = vpack.c.b16 %v1712, %v1711
      %v1744 = vpack.c.b16 %v1714, %v1713
      %v1745 = vpack.c.b16 %v1716, %v1715
      %v1746 = vpack.c.b16 %v1718, %v1717
      %v1747 = vpack.c.b16 %v1720, %v1719
      %v1748 = vpack.c.b16 %v1722, %v1721
      %v1749 = vpack.c.b16 %v1724, %v1723
      %v1750 = vpack.c.b16 %v1726, %v1725
      %v1751 = vpack.c.b16 %v1728, %v1727
      %v1752 = vpack.c.b16 %v1730, %v1729
      %v1753 = vpack.c.b16 %v1732, %v1731
      %v1754 = vpack.c.b16 %v1734, %v1733
      %v1755 = vpack.c.b16 %v1736, %v1735
      %v1756 = vpack.c.b16 %v1738, %v1737
      %v1757 = vpack.c.b16 %v1740, %v1739
      %v1758 = vpack.c.b16 %v1742, %v1741
      %v1760 = vsel %vm1465, %v1743, 0
      %v1763 = vsel %vm1465, %v1744, 0
      %v1766 = vsel %vm1465, %v1745, 0
      %v1769 = vsel %vm1465, %v1746, 0
      %v1772 = vsel %vm1465, %v1747, 0
      %v1775 = vsel %vm1465, %v1748, 0
      %v1778 = vsel %vm1465, %v1749, 0
      %v1781 = vsel %vm1465, %v1750, 0
      %v1784 = vsel %vm1465, %v1751, 0
      %v1787 = vsel %vm1465, %v1752, 0
      %v1790 = vsel %vm1465, %v1753, 0
      %v1793 = vsel %vm1465, %v1754, 0
      %v1796 = vsel %vm1465, %v1755, 0
      %v1799 = vsel %vm1465, %v1756, 0
      %v1802 = vsel %vm1465, %v1757, 0
      %v1805 = vsel %vm1465, %v1758, 0
      %v1808 = vsel %vm1514, %v1027, 0
      %1810 = vmatprep.subr.bf16.mxu0 0
      %1811 = vmatpush1.bf16.msra.mxu0 %v1808
      %1812 = vmatprep.subr.bf16.mxu0 0
      %1813 = vmatpush1.bf16.msra.mxu0 0
      %1814 = vmatprep.subr.bf16.mxu0 0
      %1815 = vmatpush1.bf16.msra.mxu0 0
      %1816 = vmatprep.subr.bf16.mxu0 0
      %1817 = vmatpush1.bf16.msra.mxu0 0
      %1818 = vmatprep.subr.bf16.mxu0 0
      %1819 = vmatpush1.bf16.msra.mxu0 0
      %1820 = vmatprep.subr.bf16.mxu0 0
      %1821 = vmatpush1.bf16.msra.mxu0 0
      %1822 = vmatprep.subr.bf16.mxu0 0
      %1823 = vmatpush1.bf16.msra.mxu0 0
      %1824 = vmatprep.subr.bf16.mxu0 0
      %1825 = vmatpush1.bf16.msra.mxu0 0
      %1826 = vmatprep.subr.bf16.mxu0 0
      %1827 = vmatpush1.bf16.msra.mxu0 0
      %1828 = vmatprep.subr.bf16.mxu0 0
      %1829 = vmatpush1.bf16.msra.mxu0 0
      %1830 = vmatprep.subr.bf16.mxu0 0
      %1831 = vmatpush1.bf16.msra.mxu0 0
      %1832 = vmatprep.subr.bf16.mxu0 0
      %1833 = vmatpush1.bf16.msra.mxu0 0
      %1834 = vmatprep.subr.bf16.mxu0 0
      %1835 = vmatpush1.bf16.msra.mxu0 0
      %1836 = vmatprep.subr.bf16.mxu0 0
      %1837 = vmatpush1.bf16.msra.mxu0 0
      %1838 = vmatprep.subr.bf16.mxu0 0
      %1839 = vmatpush1.bf16.msra.mxu0 0
      %1840 = vmatprep.subr.bf16.mxu0 0
      %1841 = vmatpush1.bf16.msra.mxu0 0
      %1842 = vmatprep.mubr.bf16.mxu0 0
      %1843 = vmatmul.mubr.bf16.gmra.mrb[0].mxu0 %v1760
      %v1844 = vpop.f32.mrb[0].mxu0
      %v1845 = vadd.f32 %v1553, %v1844
      %v1846 = vpop.f32.mrb[0].mxu0
      %v1847 = vpop.f32.mrb[0].mxu0
      %v1848 = vadd.f32 %v1556, %v1847
      %v1849 = vpop.f32.mrb[0].mxu0
      %1850 = vmatprep.mubr.bf16.mxu0 0
      %1851 = vmatmul.mubr.bf16.gmra.mrb[0].mxu0 %v1763
      %v1852 = vpop.f32.mrb[0].mxu0
      %v1853 = vadd.f32 %v1561, %v1852
      %v1854 = vpop.f32.mrb[0].mxu0
      %v1855 = vpop.f32.mrb[0].mxu0
      %v1856 = vadd.f32 %v1564, %v1855
      %v1857 = vpop.f32.mrb[0].mxu0
      %1858 = vmatprep.mubr.bf16.mxu0 0
      %1859 = vmatmul.mubr.bf16.gmra.mrb[0].mxu0 %v1766
      %v1860 = vpop.f32.mrb[0].mxu0
      %v1861 = vadd.f32 %v1569, %v1860
      %v1862 = vpop.f32.mrb[0].mxu0
      %v1863 = vpop.f32.mrb[0].mxu0
      %v1864 = vadd.f32 %v1572, %v1863
      %v1865 = vpop.f32.mrb[0].mxu0
      %1866 = vmatprep.mubr.bf16.mxu0 0
      %1867 = vmatmul.mubr.bf16.gmra.mrb[0].mxu0 %v1769
      %v1868 = vpop.f32.mrb[0].mxu0
      %v1869 = vadd.f32 %v1577, %v1868
      %v1870 = vpop.f32.mrb[0].mxu0
      %v1871 = vpop.f32.mrb[0].mxu0
      %v1872 = vadd.f32 %v1580, %v1871
      %v1873 = vpop.f32.mrb[0].mxu0
      %1874 = vmatprep.mubr.bf16.mxu0 0
      %1875 = vmatmul.mubr.bf16.gmra.mrb[0].mxu0 %v1772
      %v1876 = vpop.f32.mrb[0].mxu0
      %v1877 = vadd.f32 %v1585, %v1876
      %v1878 = vpop.f32.mrb[0].mxu0
      %v1879 = vpop.f32.mrb[0].mxu0
      %v1880 = vadd.f32 %v1588, %v1879
      %v1881 = vpop.f32.mrb[0].mxu0
      %1882 = vmatprep.mubr.bf16.mxu0 0
      %1883 = vmatmul.mubr.bf16.gmra.mrb[0].mxu0 %v1775
      %v1884 = vpop.f32.mrb[0].mxu0
      %v1885 = vadd.f32 %v1593, %v1884
      %v1886 = vpop.f32.mrb[0].mxu0
      %v1887 = vpop.f32.mrb[0].mxu0
      %v1888 = vadd.f32 %v1596, %v1887
      %v1889 = vpop.f32.mrb[0].mxu0
      %1890 = vmatprep.mubr.bf16.mxu0 0
      %1891 = vmatmul.mubr.bf16.gmra.mrb[0].mxu0 %v1778
      %v1892 = vpop.f32.mrb[0].mxu0
      %v1893 = vadd.f32 %v1601, %v1892
      %v1894 = vpop.f32.mrb[0].mxu0
      %v1895 = vpop.f32.mrb[0].mxu0
      %v1896 = vadd.f32 %v1604, %v1895
      %v1897 = vpop.f32.mrb[0].mxu0
      %1898 = vmatprep.mubr.bf16.mxu0 0
      %1899 = vmatmul.mubr.bf16.gmra.mrb[0].mxu0 %v1781
      %v1900 = vpop.f32.mrb[0].mxu0
      %v1901 = vadd.f32 %v1609, %v1900
      %v1902 = vpop.f32.mrb[0].mxu0
      %v1903 = vpop.f32.mrb[0].mxu0
      %v1904 = vadd.f32 %v1612, %v1903
      %v1905 = vpop.f32.mrb[0].mxu0
      %1906 = vmatprep.mubr.bf16.mxu0 0
      %1907 = vmatmul.mubr.bf16.gmra.mrb[0].mxu0 %v1784
      %v1908 = vpop.f32.mrb[0].mxu0
      %v1909 = vadd.f32 %v1617, %v1908
      %v1910 = vpop.f32.mrb[0].mxu0
      %v1911 = vpop.f32.mrb[0].mxu0
      %v1912 = vadd.f32 %v1620, %v1911
      %v1913 = vpop.f32.mrb[0].mxu0
      %1914 = vmatprep.mubr.bf16.mxu0 0
      %1915 = vmatmul.mubr.bf16.gmra.mrb[0].mxu0 %v1787
      %v1916 = vpop.f32.mrb[0].mxu0
      %v1917 = vadd.f32 %v1625, %v1916
      %v1918 = vpop.f32.mrb[0].mxu0
      %v1919 = vpop.f32.mrb[0].mxu0
      %v1920 = vadd.f32 %v1628, %v1919
      %v1921 = vpop.f32.mrb[0].mxu0
      %1922 = vmatprep.mubr.bf16.mxu0 0
      %1923 = vmatmul.mubr.bf16.gmra.mrb[0].mxu0 %v1790
      %v1924 = vpop.f32.mrb[0].mxu0
      %v1925 = vadd.f32 %v1633, %v1924
      %v1926 = vpop.f32.mrb[0].mxu0
      %v1927 = vpop.f32.mrb[0].mxu0
      %v1928 = vadd.f32 %v1636, %v1927
      %v1929 = vpop.f32.mrb[0].mxu0
      %1930 = vmatprep.mubr.bf16.mxu0 0
      %1931 = vmatmul.mubr.bf16.gmra.mrb[0].mxu0 %v1793
      %v1932 = vpop.f32.mrb[0].mxu0
      %v1933 = vadd.f32 %v1641, %v1932
      %v1934 = vpop.f32.mrb[0].mxu0
      %v1935 = vpop.f32.mrb[0].mxu0
      %v1936 = vadd.f32 %v1644, %v1935
      %v1937 = vpop.f32.mrb[0].mxu0
      %1938 = vmatprep.mubr.bf16.mxu0 0
      %1939 = vmatmul.mubr.bf16.gmra.mrb[0].mxu0 %v1796
      %v1940 = vpop.f32.mrb[0].mxu0
      %v1941 = vadd.f32 %v1649, %v1940
      %v1942 = vpop.f32.mrb[0].mxu0
      %v1943 = vpop.f32.mrb[0].mxu0
      %v1944 = vadd.f32 %v1652, %v1943
      %v1945 = vpop.f32.mrb[0].mxu0
      %1946 = vmatprep.mubr.bf16.mxu0 0
      %1947 = vmatmul.mubr.bf16.gmra.mrb[0].mxu0 %v1799
      %v1948 = vpop.f32.mrb[0].mxu0
      %v1949 = vadd.f32 %v1657, %v1948
      %v1950 = vpop.f32.mrb[0].mxu0
      %v1951 = vpop.f32.mrb[0].mxu0
      %v1952 = vadd.f32 %v1660, %v1951
      %v1953 = vpop.f32.mrb[0].mxu0
      %1954 = vmatprep.mubr.bf16.mxu0 0
      %1955 = vmatmul.mubr.bf16.gmra.mrb[0].mxu0 %v1802
      %v1956 = vpop.f32.mrb[0].mxu0
      %v1957 = vadd.f32 %v1665, %v1956
      %v1958 = vpop.f32.mrb[0].mxu0
      %v1959 = vpop.f32.mrb[0].mxu0
      %v1960 = vadd.f32 %v1668, %v1959
      %v1961 = vpop.f32.mrb[0].mxu0
      %1962 = vmatprep.mubr.bf16.mxu0 0
      %1963 = vmatmul.mubr.bf16.gmra.mrb[0].mxu0 %v1805
      %v1964 = vpop.f32.mrb[0].mxu0
      %v1965 = vadd.f32 %v1673, %v1964
      %v1966 = vpop.f32.mrb[0].mxu0
      %v1967 = vpop.f32.mrb[0].mxu0
      %v1968 = vadd.f32 %v1676, %v1967
      %v1969 = vpop.f32.mrb[0].mxu0
      %1970 = vdwg.mxu0
      %vm1987 = vcmask 1042432
      %vm1988 = vcmask 1046532
      %vm1989 = vmor %vm1987, %vm1988
      %v1990 = vrot.slane %v973, 5
      %v1991 = vrot.slane %v1990, 4
      %v1992 = vrot.slane %v974, 5
      %v1993 = vsel %vm1989, %v1991, %v1992
      %v1994 = vrot.slane %v1992, 4
      %v1995 = vrot.slane %v975, 5
      %v1996 = vsel %vm1989, %v1994, %v1995
      %v1997 = vrot.slane %v976, 5
      %v1998 = vrot.slane %v1997, 4
      %v1999 = vrot.slane %v977, 5
      %v2000 = vsel %vm1989, %v1998, %v1999
      %v2001 = vrot.slane %v1999, 4
      %v2002 = vrot.slane %v978, 5
      %v2003 = vsel %vm1989, %v2001, %v2002
      %v2004 = vrot.slane %v979, 5
      %v2005 = vrot.slane %v2004, 4
      %v2006 = vrot.slane %v980, 5
      %v2007 = vsel %vm1989, %v2005, %v2006
      %v2008 = vrot.slane %v2006, 4
      %v2009 = vrot.slane %v981, 5
      %v2010 = vsel %vm1989, %v2008, %v2009
      %v2011 = vrot.slane %v982, 5
      %v2012 = vrot.slane %v2011, 4
      %v2013 = vrot.slane %v983, 5
      %v2014 = vsel %vm1989, %v2012, %v2013
      %v2015 = vrot.slane %v2013, 4
      %v2016 = vrot.slane %v984, 5
      %v2017 = vsel %vm1989, %v2015, %v2016
      %v2018 = vrot.slane %v985, 5
      %v2019 = vrot.slane %v2018, 4
      %v2020 = vrot.slane %v986, 5
      %v2021 = vsel %vm1989, %v2019, %v2020
      %v2022 = vrot.slane %v2020, 4
      %v2023 = vrot.slane %v987, 5
      %v2024 = vsel %vm1989, %v2022, %v2023
      %v2025 = vrot.slane %v988, 5
      %v2026 = vrot.slane %v2025, 4
      %v2027 = vrot.slane %v989, 5
      %v2028 = vsel %vm1989, %v2026, %v2027
      %v2029 = vrot.slane %v2027, 4
      %v2030 = vrot.slane %v990, 5
      %v2031 = vsel %vm1989, %v2029, %v2030
      %v2032 = vrot.slane %v991, 5
      %v2033 = vrot.slane %v2032, 4
      %v2034 = vrot.slane %v992, 5
      %v2035 = vsel %vm1989, %v2033, %v2034
      %v2036 = vrot.slane %v2034, 4
      %v2037 = vrot.slane %v993, 5
      %v2038 = vsel %vm1989, %v2036, %v2037
      %v2039 = vrot.slane %v994, 5
      %v2040 = vrot.slane %v2039, 4
      %v2041 = vrot.slane %v995, 5
      %v2042 = vsel %vm1989, %v2040, %v2041
      %v2043 = vrot.slane %v2041, 4
      %v2044 = vrot.slane %v996, 5
      %v2045 = vsel %vm1989, %v2043, %v2044
      %v2046 = vrot.slane %v997, 5
      %v2047 = vrot.slane %v2046, 4
      %v2048 = vrot.slane %v998, 5
      %v2049 = vsel %vm1989, %v2047, %v2048
      %v2050 = vrot.slane %v2048, 4
      %v2051 = vrot.slane %v999, 5
      %v2052 = vsel %vm1989, %v2050, %v2051
      %v2053 = vrot.slane %v1000, 5
      %v2054 = vrot.slane %v2053, 4
      %v2055 = vrot.slane %v1001, 5
      %v2056 = vsel %vm1989, %v2054, %v2055
      %v2057 = vrot.slane %v2055, 4
      %v2058 = vrot.slane %v1002, 5
      %v2059 = vsel %vm1989, %v2057, %v2058
      %v2060 = vrot.slane %v1003, 5
      %v2061 = vrot.slane %v2060, 4
      %v2062 = vrot.slane %v1004, 5
      %v2063 = vsel %vm1989, %v2061, %v2062
      %v2064 = vrot.slane %v2062, 4
      %v2065 = vrot.slane %v1005, 5
      %v2066 = vsel %vm1989, %v2064, %v2065
      %v2067 = vrot.slane %v1006, 5
      %v2068 = vrot.slane %v2067, 4
      %v2069 = vrot.slane %v1007, 5
      %v2070 = vsel %vm1989, %v2068, %v2069
      %v2071 = vrot.slane %v2069, 4
      %v2072 = vrot.slane %v1008, 5
      %v2073 = vsel %vm1989, %v2071, %v2072
      %v2074 = vrot.slane %v1009, 5
      %v2075 = vrot.slane %v2074, 4
      %v2076 = vrot.slane %v1010, 5
      %v2077 = vsel %vm1989, %v2075, %v2076
      %v2078 = vrot.slane %v2076, 4
      %v2079 = vrot.slane %v1011, 5
      %v2080 = vsel %vm1989, %v2078, %v2079
      %v2081 = vrot.slane %v1012, 5
      %v2082 = vrot.slane %v2081, 4
      %v2083 = vrot.slane %v1013, 5
      %v2084 = vsel %vm1989, %v2082, %v2083
      %v2085 = vrot.slane %v2083, 4
      %v2086 = vrot.slane %v1014, 5
      %v2087 = vsel %vm1989, %v2085, %v2086
      %v2088 = vrot.slane %v1015, 5
      %v2089 = vrot.slane %v2088, 4
      %v2090 = vrot.slane %v1016, 5
      %v2091 = vsel %vm1989, %v2089, %v2090
      %v2092 = vrot.slane %v2090, 4
      %v2093 = vrot.slane %v1017, 5
      %v2094 = vsel %vm1989, %v2092, %v2093
      %v2095 = vrot.slane %v1018, 5
      %v2096 = vrot.slane %v2095, 4
      %v2097 = vrot.slane %v1019, 5
      %v2098 = vsel %vm1989, %v2096, %v2097
      %v2099 = vrot.slane %v2097, 4
      %v2100 = vrot.slane %v1020, 5
      %v2101 = vsel %vm1989, %v2099, %v2100
      %s2102 = scalar_lea.vmem %s1, 4
      %v2103 = vld [vmem:[%s2102] sm:$0x3]
      %v2104 = vunpack.c.l.b16 %v1993
      %v2105 = vunpack.c.l.b16 %v1996
      %v2106 = vunpack.c.l.b16 %v2000
      %v2107 = vunpack.c.l.b16 %v2003
      %v2108 = vunpack.c.l.b16 %v2007
      %v2109 = vunpack.c.l.b16 %v2010
      %v2110 = vunpack.c.l.b16 %v2014
      %v2111 = vunpack.c.l.b16 %v2017
      %v2112 = vunpack.c.l.b16 %v2021
      %v2113 = vunpack.c.l.b16 %v2024
      %v2114 = vunpack.c.l.b16 %v2028
      %v2115 = vunpack.c.l.b16 %v2031
      %v2116 = vunpack.c.l.b16 %v2035
      %v2117 = vunpack.c.l.b16 %v2038
      %v2118 = vunpack.c.l.b16 %v2042
      %v2119 = vunpack.c.l.b16 %v2045
      %v2120 = vunpack.c.l.b16 %v2049
      %v2121 = vunpack.c.l.b16 %v2052
      %v2122 = vunpack.c.l.b16 %v2056
      %v2123 = vunpack.c.l.b16 %v2059
      %v2124 = vunpack.c.l.b16 %v2063
      %v2125 = vunpack.c.l.b16 %v2066
      %v2126 = vunpack.c.l.b16 %v2070
      %v2127 = vunpack.c.l.b16 %v2073
      %v2128 = vunpack.c.l.b16 %v2077
      %v2129 = vunpack.c.l.b16 %v2080
      %v2130 = vunpack.c.l.b16 %v2084
      %v2131 = vunpack.c.l.b16 %v2087
      %v2132 = vunpack.c.l.b16 %v2091
      %v2133 = vunpack.c.l.b16 %v2094
      %v2134 = vunpack.c.l.b16 %v2098
      %v2135 = vunpack.c.l.b16 %v2101
      %v2136 = vpack.c.b16 %v2105, %v2104
      %v2137 = vpack.c.b16 %v2107, %v2106
      %v2138 = vpack.c.b16 %v2109, %v2108
      %v2139 = vpack.c.b16 %v2111, %v2110
      %v2140 = vpack.c.b16 %v2113, %v2112
      %v2141 = vpack.c.b16 %v2115, %v2114
      %v2142 = vpack.c.b16 %v2117, %v2116
      %v2143 = vpack.c.b16 %v2119, %v2118
      %v2144 = vpack.c.b16 %v2121, %v2120
      %v2145 = vpack.c.b16 %v2123, %v2122
      %v2146 = vpack.c.b16 %v2125, %v2124
      %v2147 = vpack.c.b16 %v2127, %v2126
      %v2148 = vpack.c.b16 %v2129, %v2128
      %v2149 = vpack.c.b16 %v2131, %v2130
      %v2150 = vpack.c.b16 %v2133, %v2132
      %v2151 = vpack.c.b16 %v2135, %v2134
      %v2153 = vsel %vm1465, %v2136, 0
      %v2156 = vsel %vm1465, %v2137, 0
      %v2159 = vsel %vm1465, %v2138, 0
      %v2162 = vsel %vm1465, %v2139, 0
      %v2165 = vsel %vm1465, %v2140, 0
      %v2168 = vsel %vm1465, %v2141, 0
      %v2171 = vsel %vm1465, %v2142, 0
      %v2174 = vsel %vm1465, %v2143, 0
      %v2177 = vsel %vm1465, %v2144, 0
      %v2180 = vsel %vm1465, %v2145, 0
      %v2183 = vsel %vm1465, %v2146, 0
      %v2186 = vsel %vm1465, %v2147, 0
      %v2189 = vsel %vm1465, %v2148, 0
      %v2192 = vsel %vm1465, %v2149, 0
      %v2195 = vsel %vm1465, %v2150, 0
      %v2198 = vsel %vm1465, %v2151, 0
      %v2201 = vsel %vm1514, %v2103, 0
      %2203 = vmatprep.subr.bf16.mxu0 0
      %2204 = vmatpush1.bf16.msra.mxu0 %v2201
      %2205 = vmatprep.subr.bf16.mxu0 0
      %2206 = vmatpush1.bf16.msra.mxu0 0
      %2207 = vmatprep.subr.bf16.mxu0 0
      %2208 = vmatpush1.bf16.msra.mxu0 0
      %2209 = vmatprep.subr.bf16.mxu0 0
      %2210 = vmatpush1.bf16.msra.mxu0 0
      %2211 = vmatprep.subr.bf16.mxu0 0
      %2212 = vmatpush1.bf16.msra.mxu0 0
      %2213 = vmatprep.subr.bf16.mxu0 0
      %2214 = vmatpush1.bf16.msra.mxu0 0
      %2215 = vmatprep.subr.bf16.mxu0 0
      %2216 = vmatpush1.bf16.msra.mxu0 0
      %2217 = vmatprep.subr.bf16.mxu0 0
      %2218 = vmatpush1.bf16.msra.mxu0 0
      %2219 = vmatprep.subr.bf16.mxu0 0
      %2220 = vmatpush1.bf16.msra.mxu0 0
      %2221 = vmatprep.subr.bf16.mxu0 0
      %2222 = vmatpush1.bf16.msra.mxu0 0
      %2223 = vmatprep.subr.bf16.mxu0 0
      %2224 = vmatpush1.bf16.msra.mxu0 0
      %2225 = vmatprep.subr.bf16.mxu0 0
      %2226 = vmatpush1.bf16.msra.mxu0 0
      %2227 = vmatprep.subr.bf16.mxu0 0
      %2228 = vmatpush1.bf16.msra.mxu0 0
      %2229 = vmatprep.subr.bf16.mxu0 0
      %2230 = vmatpush1.bf16.msra.mxu0 0
      %2231 = vmatprep.subr.bf16.mxu0 0
      %2232 = vmatpush1.bf16.msra.mxu0 0
      %2233 = vmatprep.subr.bf16.mxu0 0
      %2234 = vmatpush1.bf16.msra.mxu0 0
      %2235 = vmatprep.mubr.bf16.mxu0 0
      %2236 = vmatmul.mubr.bf16.gmra.mrb[0].mxu0 %v2153
      %v2237 = vpop.f32.mrb[0].mxu0
      %v2238 = vadd.f32 0.0, %v2237
      %v2239 = vpop.f32.mrb[0].mxu0
      %v2240 = vpop.f32.mrb[0].mxu0
      %v2241 = vadd.f32 0.0, %v2240
      %v2242 = vpop.f32.mrb[0].mxu0
      %2243 = vmatprep.mubr.bf16.mxu0 0
      %2244 = vmatmul.mubr.bf16.gmra.mrb[0].mxu0 %v2156
      %v2245 = vpop.f32.mrb[0].mxu0
      %v2246 = vadd.f32 0.0, %v2245
      %v2247 = vpop.f32.mrb[0].mxu0
      %v2248 = vpop.f32.mrb[0].mxu0
      %v2249 = vadd.f32 0.0, %v2248
      %v2250 = vpop.f32.mrb[0].mxu0
      %2251 = vmatprep.mubr.bf16.mxu0 0
      %2252 = vmatmul.mubr.bf16.gmra.mrb[0].mxu0 %v2159
      %v2253 = vpop.f32.mrb[0].mxu0
      %v2254 = vadd.f32 0.0, %v2253
      %v2255 = vpop.f32.mrb[0].mxu0
      %v2256 = vpop.f32.mrb[0].mxu0
      %v2257 = vadd.f32 0.0, %v2256
      %v2258 = vpop.f32.mrb[0].mxu0
      %2259 = vmatprep.mubr.bf16.mxu0 0
      %2260 = vmatmul.mubr.bf16.gmra.mrb[0].mxu0 %v2162
      %v2261 = vpop.f32.mrb[0].mxu0
      %v2262 = vadd.f32 0.0, %v2261
      %v2263 = vpop.f32.mrb[0].mxu0
      %v2264 = vpop.f32.mrb[0].mxu0
      %v2265 = vadd.f32 0.0, %v2264
      %v2266 = vpop.f32.mrb[0].mxu0
      %2267 = vmatprep.mubr.bf16.mxu0 0
      %2268 = vmatmul.mubr.bf16.gmra.mrb[0].mxu0 %v2165
      %v2269 = vpop.f32.mrb[0].mxu0
      %v2270 = vadd.f32 0.0, %v2269
      %v2271 = vpop.f32.mrb[0].mxu0
      %v2272 = vpop.f32.mrb[0].mxu0
      %v2273 = vadd.f32 0.0, %v2272
      %v2274 = vpop.f32.mrb[0].mxu0
      %2275 = vmatprep.mubr.bf16.mxu0 0
      %2276 = vmatmul.mubr.bf16.gmra.mrb[0].mxu0 %v2168
      %v2277 = vpop.f32.mrb[0].mxu0
      %v2278 = vadd.f32 0.0, %v2277
      %v2279 = vpop.f32.mrb[0].mxu0
      %v2280 = vpop.f32.mrb[0].mxu0
      %v2281 = vadd.f32 0.0, %v2280
      %v2282 = vpop.f32.mrb[0].mxu0
      %2283 = vmatprep.mubr.bf16.mxu0 0
      %2284 = vmatmul.mubr.bf16.gmra.mrb[0].mxu0 %v2171
      %v2285 = vpop.f32.mrb[0].mxu0
      %v2286 = vadd.f32 0.0, %v2285
      %v2287 = vpop.f32.mrb[0].mxu0
      %v2288 = vpop.f32.mrb[0].mxu0
      %v2289 = vadd.f32 0.0, %v2288
      %v2290 = vpop.f32.mrb[0].mxu0
      %2291 = vmatprep.mubr.bf16.mxu0 0
      %2292 = vmatmul.mubr.bf16.gmra.mrb[0].mxu0 %v2174
      %v2293 = vpop.f32.mrb[0].mxu0
      %v2294 = vadd.f32 0.0, %v2293
      %v2295 = vpop.f32.mrb[0].mxu0
      %v2296 = vpop.f32.mrb[0].mxu0
      %v2297 = vadd.f32 0.0, %v2296
      %v2298 = vpop.f32.mrb[0].mxu0
      %2299 = vmatprep.mubr.bf16.mxu0 0
      %2300 = vmatmul.mubr.bf16.gmra.mrb[0].mxu0 %v2177
      %v2301 = vpop.f32.mrb[0].mxu0
      %v2302 = vadd.f32 0.0, %v2301
      %v2303 = vpop.f32.mrb[0].mxu0
      %v2304 = vpop.f32.mrb[0].mxu0
      %v2305 = vadd.f32 0.0, %v2304
      %v2306 = vpop.f32.mrb[0].mxu0
      %2307 = vmatprep.mubr.bf16.mxu0 0
      %2308 = vmatmul.mubr.bf16.gmra.mrb[0].mxu0 %v2180
      %v2309 = vpop.f32.mrb[0].mxu0
      %v2310 = vadd.f32 0.0, %v2309
      %v2311 = vpop.f32.mrb[0].mxu0
      %v2312 = vpop.f32.mrb[0].mxu0
      %v2313 = vadd.f32 0.0, %v2312
      %v2314 = vpop.f32.mrb[0].mxu0
      %2315 = vmatprep.mubr.bf16.mxu0 0
      %2316 = vmatmul.mubr.bf16.gmra.mrb[0].mxu0 %v2183
      %v2317 = vpop.f32.mrb[0].mxu0
      %v2318 = vadd.f32 0.0, %v2317
      %v2319 = vpop.f32.mrb[0].mxu0
      %v2320 = vpop.f32.mrb[0].mxu0
      %v2321 = vadd.f32 0.0, %v2320
      %v2322 = vpop.f32.mrb[0].mxu0
      %2323 = vmatprep.mubr.bf16.mxu0 0
      %2324 = vmatmul.mubr.bf16.gmra.mrb[0].mxu0 %v2186
      %v2325 = vpop.f32.mrb[0].mxu0
      %v2326 = vadd.f32 0.0, %v2325
      %v2327 = vpop.f32.mrb[0].mxu0
      %v2328 = vpop.f32.mrb[0].mxu0
      %v2329 = vadd.f32 0.0, %v2328
      %v2330 = vpop.f32.mrb[0].mxu0
      %2331 = vmatprep.mubr.bf16.mxu0 0
      %2332 = vmatmul.mubr.bf16.gmra.mrb[0].mxu0 %v2189
      %v2333 = vpop.f32.mrb[0].mxu0
      %v2334 = vadd.f32 0.0, %v2333
      %v2335 = vpop.f32.mrb[0].mxu0
      %v2336 = vpop.f32.mrb[0].mxu0
      %v2337 = vadd.f32 0.0, %v2336
      %v2338 = vpop.f32.mrb[0].mxu0
      %2339 = vmatprep.mubr.bf16.mxu0 0
      %2340 = vmatmul.mubr.bf16.gmra.mrb[0].mxu0 %v2192
      %v2341 = vpop.f32.mrb[0].mxu0
      %v2342 = vadd.f32 0.0, %v2341
      %v2343 = vpop.f32.mrb[0].mxu0
      %v2344 = vpop.f32.mrb[0].mxu0
      %v2345 = vadd.f32 0.0, %v2344
      %v2346 = vpop.f32.mrb[0].mxu0
      %2347 = vmatprep.mubr.bf16.mxu0 0
      %2348 = vmatmul.mubr.bf16.gmra.mrb[0].mxu0 %v2195
      %v2349 = vpop.f32.mrb[0].mxu0
      %v2350 = vadd.f32 0.0, %v2349
      %v2351 = vpop.f32.mrb[0].mxu0
      %v2352 = vpop.f32.mrb[0].mxu0
      %v2353 = vadd.f32 0.0, %v2352
      %v2354 = vpop.f32.mrb[0].mxu0
      %2355 = vmatprep.mubr.bf16.mxu0 0
      %2356 = vmatmul.mubr.bf16.gmra.mrb[0].mxu0 %v2198
      %v2357 = vpop.f32.mrb[0].mxu0
      %v2358 = vadd.f32 0.0, %v2357
      %v2359 = vpop.f32.mrb[0].mxu0
      %v2360 = vpop.f32.mrb[0].mxu0
      %v2361 = vadd.f32 0.0, %v2360
      %v2362 = vpop.f32.mrb[0].mxu0
      %2363 = vdwg.mxu0
      %v2364 = vadd.f32 %v1845, %v2238
      %v2365 = vadd.f32 %v1848, %v2241
      %v2366 = vadd.f32 %v1853, %v2246
      %v2367 = vadd.f32 %v1856, %v2249
      %v2368 = vadd.f32 %v1861, %v2254
      %v2369 = vadd.f32 %v1864, %v2257
      %v2370 = vadd.f32 %v1869, %v2262
      %v2371 = vadd.f32 %v1872, %v2265
      %v2372 = vadd.f32 %v1877, %v2270
      %v2373 = vadd.f32 %v1880, %v2273
      %v2374 = vadd.f32 %v1885, %v2278
      %v2375 = vadd.f32 %v1888, %v2281
      %v2376 = vadd.f32 %v1893, %v2286
      %v2377 = vadd.f32 %v1896, %v2289
      %v2378 = vadd.f32 %v1901, %v2294
      %v2379 = vadd.f32 %v1904, %v2297
      %v2380 = vadd.f32 %v1909, %v2302
      %v2381 = vadd.f32 %v1912, %v2305
      %v2382 = vadd.f32 %v1917, %v2310
      %v2383 = vadd.f32 %v1920, %v2313
      %v2384 = vadd.f32 %v1925, %v2318
      %v2385 = vadd.f32 %v1928, %v2321
      %v2386 = vadd.f32 %v1933, %v2326
      %v2387 = vadd.f32 %v1936, %v2329
      %v2388 = vadd.f32 %v1941, %v2334
      %v2389 = vadd.f32 %v1944, %v2337
      %v2390 = vadd.f32 %v1949, %v2342
      %v2391 = vadd.f32 %v1952, %v2345
      %v2392 = vadd.f32 %v1957, %v2350
      %v2393 = vadd.f32 %v1960, %v2353
      %v2394 = vadd.f32 %v1965, %v2358
      %v2395 = vadd.f32 %v1968, %v2361
      %s2396 = scalar_lea.vmem %s1, 6
      %v2397 = vld [vmem:[%s2396] sm:$0x3]
      %v2400 = vunpack.c.l.b16 %v1021
      %v2401 = vunpack.c.l.b16 %v1022
      %v2402 = vpack.c.b16 %v2401, %v2400
      %v2404 = vsel %vm1465, %v2402, 0
      %v2407 = vsel %vm1514, %v2397, 0
      %2409 = vmatprep.subr.bf16.mxu0 0
      %2410 = vmatpush1.bf16.msra.mxu0 %v2407
      %2411 = vmatprep.subr.bf16.mxu0 0
      %2412 = vmatpush1.bf16.msra.mxu0 0
      %2413 = vmatprep.subr.bf16.mxu0 0
      %2414 = vmatpush1.bf16.msra.mxu0 0
      %2415 = vmatprep.subr.bf16.mxu0 0
      %2416 = vmatpush1.bf16.msra.mxu0 0
      %2417 = vmatprep.subr.bf16.mxu0 0
      %2418 = vmatpush1.bf16.msra.mxu0 0
      %2419 = vmatprep.subr.bf16.mxu0 0
      %2420 = vmatpush1.bf16.msra.mxu0 0
      %2421 = vmatprep.subr.bf16.mxu0 0
      %2422 = vmatpush1.bf16.msra.mxu0 0
      %2423 = vmatprep.subr.bf16.mxu0 0
      %2424 = vmatpush1.bf16.msra.mxu0 0
      %2425 = vmatprep.subr.bf16.mxu0 0
      %2426 = vmatpush1.bf16.msra.mxu0 0
      %2427 = vmatprep.subr.bf16.mxu0 0
      %2428 = vmatpush1.bf16.msra.mxu0 0
      %2429 = vmatprep.subr.bf16.mxu0 0
      %2430 = vmatpush1.bf16.msra.mxu0 0
      %2431 = vmatprep.subr.bf16.mxu0 0
      %2432 = vmatpush1.bf16.msra.mxu0 0
      %2433 = vmatprep.subr.bf16.mxu0 0
      %2434 = vmatpush1.bf16.msra.mxu0 0
      %2435 = vmatprep.subr.bf16.mxu0 0
      %2436 = vmatpush1.bf16.msra.mxu0 0
      %2437 = vmatprep.subr.bf16.mxu0 0
      %2438 = vmatpush1.bf16.msra.mxu0 0
      %2439 = vmatprep.subr.bf16.mxu0 0
      %2440 = vmatpush1.bf16.msra.mxu0 0
      %2441 = vmatprep.mubr.bf16.mxu0 0
      %2442 = vmatmul.mubr.bf16.gmra.mrb[0].mxu0 %v1763
      %v2443 = vpop.f32.mrb[0].mxu0
      %v2444 = vadd.f32 0.0, %v2443
      %v2445 = vpop.f32.mrb[0].mxu0
      %v2446 = vpop.f32.mrb[0].mxu0
      %v2447 = vadd.f32 0.0, %v2446
      %v2448 = vpop.f32.mrb[0].mxu0
      %2449 = vmatprep.mubr.bf16.mxu0 0
      %2450 = vmatmul.mubr.bf16.gmra.mrb[0].mxu0 %v1766
      %v2451 = vpop.f32.mrb[0].mxu0
      %v2452 = vadd.f32 0.0, %v2451
      %v2453 = vpop.f32.mrb[0].mxu0
      %v2454 = vpop.f32.mrb[0].mxu0
      %v2455 = vadd.f32 0.0, %v2454
      %v2456 = vpop.f32.mrb[0].mxu0
      %2457 = vmatprep.mubr.bf16.mxu0 0
      %2458 = vmatmul.mubr.bf16.gmra.mrb[0].mxu0 %v1769
      %v2459 = vpop.f32.mrb[0].mxu0
      %v2460 = vadd.f32 0.0, %v2459
      %v2461 = vpop.f32.mrb[0].mxu0
      %v2462 = vpop.f32.mrb[0].mxu0
      %v2463 = vadd.f32 0.0, %v2462
      %v2464 = vpop.f32.mrb[0].mxu0
      %2465 = vmatprep.mubr.bf16.mxu0 0
      %2466 = vmatmul.mubr.bf16.gmra.mrb[0].mxu0 %v1772
      %v2467 = vpop.f32.mrb[0].mxu0
      %v2468 = vadd.f32 0.0, %v2467
      %v2469 = vpop.f32.mrb[0].mxu0
      %v2470 = vpop.f32.mrb[0].mxu0
      %v2471 = vadd.f32 0.0, %v2470
      %v2472 = vpop.f32.mrb[0].mxu0
      %2473 = vmatprep.mubr.bf16.mxu0 0
      %2474 = vmatmul.mubr.bf16.gmra.mrb[0].mxu0 %v1775
      %v2475 = vpop.f32.mrb[0].mxu0
      %v2476 = vadd.f32 0.0, %v2475
      %v2477 = vpop.f32.mrb[0].mxu0
      %v2478 = vpop.f32.mrb[0].mxu0
      %v2479 = vadd.f32 0.0, %v2478
      %v2480 = vpop.f32.mrb[0].mxu0
      %2481 = vmatprep.mubr.bf16.mxu0 0
      %2482 = vmatmul.mubr.bf16.gmra.mrb[0].mxu0 %v1778
      %v2483 = vpop.f32.mrb[0].mxu0
      %v2484 = vadd.f32 0.0, %v2483
      %v2485 = vpop.f32.mrb[0].mxu0
      %v2486 = vpop.f32.mrb[0].mxu0
      %v2487 = vadd.f32 0.0, %v2486
      %v2488 = vpop.f32.mrb[0].mxu0
      %2489 = vmatprep.mubr.bf16.mxu0 0
      %2490 = vmatmul.mubr.bf16.gmra.mrb[0].mxu0 %v1781
      %v2491 = vpop.f32.mrb[0].mxu0
      %v2492 = vadd.f32 0.0, %v2491
      %v2493 = vpop.f32.mrb[0].mxu0
      %v2494 = vpop.f32.mrb[0].mxu0
      %v2495 = vadd.f32 0.0, %v2494
      %v2496 = vpop.f32.mrb[0].mxu0
      %2497 = vmatprep.mubr.bf16.mxu0 0
      %2498 = vmatmul.mubr.bf16.gmra.mrb[0].mxu0 %v1784
      %v2499 = vpop.f32.mrb[0].mxu0
      %v2500 = vadd.f32 0.0, %v2499
      %v2501 = vpop.f32.mrb[0].mxu0
      %v2502 = vpop.f32.mrb[0].mxu0
      %v2503 = vadd.f32 0.0, %v2502
      %v2504 = vpop.f32.mrb[0].mxu0
      %2505 = vmatprep.mubr.bf16.mxu0 0
      %2506 = vmatmul.mubr.bf16.gmra.mrb[0].mxu0 %v1787
      %v2507 = vpop.f32.mrb[0].mxu0
      %v2508 = vadd.f32 0.0, %v2507
      %v2509 = vpop.f32.mrb[0].mxu0
      %v2510 = vpop.f32.mrb[0].mxu0
      %v2511 = vadd.f32 0.0, %v2510
      %v2512 = vpop.f32.mrb[0].mxu0
      %2513 = vmatprep.mubr.bf16.mxu0 0
      %2514 = vmatmul.mubr.bf16.gmra.mrb[0].mxu0 %v1790
      %v2515 = vpop.f32.mrb[0].mxu0
      %v2516 = vadd.f32 0.0, %v2515
      %v2517 = vpop.f32.mrb[0].mxu0
      %v2518 = vpop.f32.mrb[0].mxu0
      %v2519 = vadd.f32 0.0, %v2518
      %v2520 = vpop.f32.mrb[0].mxu0
      %2521 = vmatprep.mubr.bf16.mxu0 0
      %2522 = vmatmul.mubr.bf16.gmra.mrb[0].mxu0 %v1793
      %v2523 = vpop.f32.mrb[0].mxu0
      %v2524 = vadd.f32 0.0, %v2523
      %v2525 = vpop.f32.mrb[0].mxu0
      %v2526 = vpop.f32.mrb[0].mxu0
      %v2527 = vadd.f32 0.0, %v2526
      %v2528 = vpop.f32.mrb[0].mxu0
      %2529 = vmatprep.mubr.bf16.mxu0 0
      %2530 = vmatmul.mubr.bf16.gmra.mrb[0].mxu0 %v1796
      %v2531 = vpop.f32.mrb[0].mxu0
      %v2532 = vadd.f32 0.0, %v2531
      %v2533 = vpop.f32.mrb[0].mxu0
      %v2534 = vpop.f32.mrb[0].mxu0
      %v2535 = vadd.f32 0.0, %v2534
      %v2536 = vpop.f32.mrb[0].mxu0
      %2537 = vmatprep.mubr.bf16.mxu0 0
      %2538 = vmatmul.mubr.bf16.gmra.mrb[0].mxu0 %v1799
      %v2539 = vpop.f32.mrb[0].mxu0
      %v2540 = vadd.f32 0.0, %v2539
      %v2541 = vpop.f32.mrb[0].mxu0
      %v2542 = vpop.f32.mrb[0].mxu0
      %v2543 = vadd.f32 0.0, %v2542
      %v2544 = vpop.f32.mrb[0].mxu0
      %2545 = vmatprep.mubr.bf16.mxu0 0
      %2546 = vmatmul.mubr.bf16.gmra.mrb[0].mxu0 %v1802
      %v2547 = vpop.f32.mrb[0].mxu0
      %v2548 = vadd.f32 0.0, %v2547
      %v2549 = vpop.f32.mrb[0].mxu0
      %v2550 = vpop.f32.mrb[0].mxu0
      %v2551 = vadd.f32 0.0, %v2550
      %v2552 = vpop.f32.mrb[0].mxu0
      %2553 = vmatprep.mubr.bf16.mxu0 0
      %2554 = vmatmul.mubr.bf16.gmra.mrb[0].mxu0 %v1805
      %v2555 = vpop.f32.mrb[0].mxu0
      %v2556 = vadd.f32 0.0, %v2555
      %v2557 = vpop.f32.mrb[0].mxu0
      %v2558 = vpop.f32.mrb[0].mxu0
      %v2559 = vadd.f32 0.0, %v2558
      %v2560 = vpop.f32.mrb[0].mxu0
      %2561 = vmatprep.mubr.bf16.mxu0 0
      %2562 = vmatmul.mubr.bf16.gmra.mrb[0].mxu0 %v2404
      %v2563 = vpop.f32.mrb[0].mxu0
      %v2564 = vadd.f32 0.0, %v2563
      %v2565 = vpop.f32.mrb[0].mxu0
      %v2566 = vpop.f32.mrb[0].mxu0
      %v2567 = vadd.f32 0.0, %v2566
      %v2568 = vpop.f32.mrb[0].mxu0
      %2569 = vdwg.mxu0
      %v2570 = vadd.f32 %v2364, %v2444
      %v2571 = vadd.f32 %v2365, %v2447
      %v2572 = vadd.f32 %v2366, %v2452
      %v2573 = vadd.f32 %v2367, %v2455
      %v2574 = vadd.f32 %v2368, %v2460
      %v2575 = vadd.f32 %v2369, %v2463
      %v2576 = vadd.f32 %v2370, %v2468
      %v2577 = vadd.f32 %v2371, %v2471
      %v2578 = vadd.f32 %v2372, %v2476
      %v2579 = vadd.f32 %v2373, %v2479
      %v2580 = vadd.f32 %v2374, %v2484
      %v2581 = vadd.f32 %v2375, %v2487
      %v2582 = vadd.f32 %v2376, %v2492
      %v2583 = vadd.f32 %v2377, %v2495
      %v2584 = vadd.f32 %v2378, %v2500
      %v2585 = vadd.f32 %v2379, %v2503
      %v2586 = vadd.f32 %v2380, %v2508
      %v2587 = vadd.f32 %v2381, %v2511
      %v2588 = vadd.f32 %v2382, %v2516
      %v2589 = vadd.f32 %v2383, %v2519
      %v2590 = vadd.f32 %v2384, %v2524
      %v2591 = vadd.f32 %v2385, %v2527
      %v2592 = vadd.f32 %v2386, %v2532
      %v2593 = vadd.f32 %v2387, %v2535
      %v2594 = vadd.f32 %v2388, %v2540
      %v2595 = vadd.f32 %v2389, %v2543
      %v2596 = vadd.f32 %v2390, %v2548
      %v2597 = vadd.f32 %v2391, %v2551
      %v2598 = vadd.f32 %v2392, %v2556
      %v2599 = vadd.f32 %v2393, %v2559
      %v2600 = vadd.f32 %v2394, %v2564
      %v2601 = vadd.f32 %v2395, %v2567
      %v2603 = vshrl.u32 %v1021, 16
      %v2605 = vrot.slane %v2603, 4
      %v2606 = vshll.u32 %v1021, 16
      %v2608 = vrot.slane %v2606, 5
      %v2609 = vor.u32 %v2605, %v2608
      %v2610 = vrot.slane %v2609, 4
      %v2612 = vshll.u32 %v1022, 16
      %v2614 = vrot.slane %v2612, 5
      %v2615 = vsel %vm1030, %v2610, %v2614
      %v2616 = vshrl.u32 %v1022, 16
      %v2618 = vrot.slane %v2616, 4
      %v2619 = vor.u32 %v2618, %v2614
      %v2620 = vrot.slane %v2619, 4
      %v2622 = vshll.u32 %v1023, 16
      %v2624 = vrot.slane %v2622, 5
      %v2625 = vsel %vm1030, %v2620, %v2624
      %s2626 = scalar_lea.vmem %s1, 8
      %v2627 = vld [vmem:[%s2626] sm:$0x3]
      %v2628 = vunpack.c.l.b16 %v2615
      %v2629 = vunpack.c.l.b16 %v2625
      %v2630 = vpack.c.b16 %v2629, %v2628
      %v2632 = vsel %vm1465, %v2630, 0
      %v2635 = vsel %vm1514, %v2627, 0
      %2637 = vmatprep.subr.bf16.mxu0 0
      %2638 = vmatpush1.bf16.msra.mxu0 %v2635
      %2639 = vmatprep.subr.bf16.mxu0 0
      %2640 = vmatpush1.bf16.msra.mxu0 0
      %2641 = vmatprep.subr.bf16.mxu0 0
      %2642 = vmatpush1.bf16.msra.mxu0 0
      %2643 = vmatprep.subr.bf16.mxu0 0
      %2644 = vmatpush1.bf16.msra.mxu0 0
      %2645 = vmatprep.subr.bf16.mxu0 0
      %2646 = vmatpush1.bf16.msra.mxu0 0
      %2647 = vmatprep.subr.bf16.mxu0 0
      %2648 = vmatpush1.bf16.msra.mxu0 0
      %2649 = vmatprep.subr.bf16.mxu0 0
      %2650 = vmatpush1.bf16.msra.mxu0 0
      %2651 = vmatprep.subr.bf16.mxu0 0
      %2652 = vmatpush1.bf16.msra.mxu0 0
      %2653 = vmatprep.subr.bf16.mxu0 0
      %2654 = vmatpush1.bf16.msra.mxu0 0
      %2655 = vmatprep.subr.bf16.mxu0 0
      %2656 = vmatpush1.bf16.msra.mxu0 0
      %2657 = vmatprep.subr.bf16.mxu0 0
      %2658 = vmatpush1.bf16.msra.mxu0 0
      %2659 = vmatprep.subr.bf16.mxu0 0
      %2660 = vmatpush1.bf16.msra.mxu0 0
      %2661 = vmatprep.subr.bf16.mxu0 0
      %2662 = vmatpush1.bf16.msra.mxu0 0
      %2663 = vmatprep.subr.bf16.mxu0 0
      %2664 = vmatpush1.bf16.msra.mxu0 0
      %2665 = vmatprep.subr.bf16.mxu0 0
      %2666 = vmatpush1.bf16.msra.mxu0 0
      %2667 = vmatprep.subr.bf16.mxu0 0
      %2668 = vmatpush1.bf16.msra.mxu0 0
      %2669 = vmatprep.mubr.bf16.mxu0 0
      %2670 = vmatmul.mubr.bf16.gmra.mrb[0].mxu0 %v1470
      %v2671 = vpop.f32.mrb[0].mxu0
      %v2672 = vadd.f32 0.0, %v2671
      %v2673 = vpop.f32.mrb[0].mxu0
      %v2674 = vpop.f32.mrb[0].mxu0
      %v2675 = vadd.f32 0.0, %v2674
      %v2676 = vpop.f32.mrb[0].mxu0
      %2677 = vmatprep.mubr.bf16.mxu0 0
      %2678 = vmatmul.mubr.bf16.gmra.mrb[0].mxu0 %v1473
      %v2679 = vpop.f32.mrb[0].mxu0
      %v2680 = vadd.f32 0.0, %v2679
      %v2681 = vpop.f32.mrb[0].mxu0
      %v2682 = vpop.f32.mrb[0].mxu0
      %v2683 = vadd.f32 0.0, %v2682
      %v2684 = vpop.f32.mrb[0].mxu0
      %2685 = vmatprep.mubr.bf16.mxu0 0
      %2686 = vmatmul.mubr.bf16.gmra.mrb[0].mxu0 %v1476
      %v2687 = vpop.f32.mrb[0].mxu0
      %v2688 = vadd.f32 0.0, %v2687
      %v2689 = vpop.f32.mrb[0].mxu0
      %v2690 = vpop.f32.mrb[0].mxu0
      %v2691 = vadd.f32 0.0, %v2690
      %v2692 = vpop.f32.mrb[0].mxu0
      %2693 = vmatprep.mubr.bf16.mxu0 0
      %2694 = vmatmul.mubr.bf16.gmra.mrb[0].mxu0 %v1479
      %v2695 = vpop.f32.mrb[0].mxu0
      %v2696 = vadd.f32 0.0, %v2695
      %v2697 = vpop.f32.mrb[0].mxu0
      %v2698 = vpop.f32.mrb[0].mxu0
      %v2699 = vadd.f32 0.0, %v2698
      %v2700 = vpop.f32.mrb[0].mxu0
      %2701 = vmatprep.mubr.bf16.mxu0 0
      %2702 = vmatmul.mubr.bf16.gmra.mrb[0].mxu0 %v1482
      %v2703 = vpop.f32.mrb[0].mxu0
      %v2704 = vadd.f32 0.0, %v2703
      %v2705 = vpop.f32.mrb[0].mxu0
      %v2706 = vpop.f32.mrb[0].mxu0
      %v2707 = vadd.f32 0.0, %v2706
      %v2708 = vpop.f32.mrb[0].mxu0
      %2709 = vmatprep.mubr.bf16.mxu0 0
      %2710 = vmatmul.mubr.bf16.gmra.mrb[0].mxu0 %v1485
      %v2711 = vpop.f32.mrb[0].mxu0
      %v2712 = vadd.f32 0.0, %v2711
      %v2713 = vpop.f32.mrb[0].mxu0
      %v2714 = vpop.f32.mrb[0].mxu0
      %v2715 = vadd.f32 0.0, %v2714
      %v2716 = vpop.f32.mrb[0].mxu0
      %2717 = vmatprep.mubr.bf16.mxu0 0
      %2718 = vmatmul.mubr.bf16.gmra.mrb[0].mxu0 %v1488
      %v2719 = vpop.f32.mrb[0].mxu0
      %v2720 = vadd.f32 0.0, %v2719
      %v2721 = vpop.f32.mrb[0].mxu0
      %v2722 = vpop.f32.mrb[0].mxu0
      %v2723 = vadd.f32 0.0, %v2722
      %v2724 = vpop.f32.mrb[0].mxu0
      %2725 = vmatprep.mubr.bf16.mxu0 0
      %2726 = vmatmul.mubr.bf16.gmra.mrb[0].mxu0 %v1491
      %v2727 = vpop.f32.mrb[0].mxu0
      %v2728 = vadd.f32 0.0, %v2727
      %v2729 = vpop.f32.mrb[0].mxu0
      %v2730 = vpop.f32.mrb[0].mxu0
      %v2731 = vadd.f32 0.0, %v2730
      %v2732 = vpop.f32.mrb[0].mxu0
      %2733 = vmatprep.mubr.bf16.mxu0 0
      %2734 = vmatmul.mubr.bf16.gmra.mrb[0].mxu0 %v1494
      %v2735 = vpop.f32.mrb[0].mxu0
      %v2736 = vadd.f32 0.0, %v2735
      %v2737 = vpop.f32.mrb[0].mxu0
      %v2738 = vpop.f32.mrb[0].mxu0
      %v2739 = vadd.f32 0.0, %v2738
      %v2740 = vpop.f32.mrb[0].mxu0
      %2741 = vmatprep.mubr.bf16.mxu0 0
      %2742 = vmatmul.mubr.bf16.gmra.mrb[0].mxu0 %v1497
      %v2743 = vpop.f32.mrb[0].mxu0
      %v2744 = vadd.f32 0.0, %v2743
      %v2745 = vpop.f32.mrb[0].mxu0
      %v2746 = vpop.f32.mrb[0].mxu0
      %v2747 = vadd.f32 0.0, %v2746
      %v2748 = vpop.f32.mrb[0].mxu0
      %2749 = vmatprep.mubr.bf16.mxu0 0
      %2750 = vmatmul.mubr.bf16.gmra.mrb[0].mxu0 %v1500
      %v2751 = vpop.f32.mrb[0].mxu0
      %v2752 = vadd.f32 0.0, %v2751
      %v2753 = vpop.f32.mrb[0].mxu0
      %v2754 = vpop.f32.mrb[0].mxu0
      %v2755 = vadd.f32 0.0, %v2754
      %v2756 = vpop.f32.mrb[0].mxu0
      %2757 = vmatprep.mubr.bf16.mxu0 0
      %2758 = vmatmul.mubr.bf16.gmra.mrb[0].mxu0 %v1503
      %v2759 = vpop.f32.mrb[0].mxu0
      %v2760 = vadd.f32 0.0, %v2759
      %v2761 = vpop.f32.mrb[0].mxu0
      %v2762 = vpop.f32.mrb[0].mxu0
      %v2763 = vadd.f32 0.0, %v2762
      %v2764 = vpop.f32.mrb[0].mxu0
      %2765 = vmatprep.mubr.bf16.mxu0 0
      %2766 = vmatmul.mubr.bf16.gmra.mrb[0].mxu0 %v1506
      %v2767 = vpop.f32.mrb[0].mxu0
      %v2768 = vadd.f32 0.0, %v2767
      %v2769 = vpop.f32.mrb[0].mxu0
      %v2770 = vpop.f32.mrb[0].mxu0
      %v2771 = vadd.f32 0.0, %v2770
      %v2772 = vpop.f32.mrb[0].mxu0
      %2773 = vmatprep.mubr.bf16.mxu0 0
      %2774 = vmatmul.mubr.bf16.gmra.mrb[0].mxu0 %v1509
      %v2775 = vpop.f32.mrb[0].mxu0
      %v2776 = vadd.f32 0.0, %v2775
      %v2777 = vpop.f32.mrb[0].mxu0
      %v2778 = vpop.f32.mrb[0].mxu0
      %v2779 = vadd.f32 0.0, %v2778
      %v2780 = vpop.f32.mrb[0].mxu0
      %2781 = vmatprep.mubr.bf16.mxu0 0
      %2782 = vmatmul.mubr.bf16.gmra.mrb[0].mxu0 %v1512
      %v2783 = vpop.f32.mrb[0].mxu0
      %v2784 = vadd.f32 0.0, %v2783
      %v2785 = vpop.f32.mrb[0].mxu0
      %v2786 = vpop.f32.mrb[0].mxu0
      %v2787 = vadd.f32 0.0, %v2786
      %v2788 = vpop.f32.mrb[0].mxu0
      %2789 = vmatprep.mubr.bf16.mxu0 0
      %2790 = vmatmul.mubr.bf16.gmra.mrb[0].mxu0 %v2632
      %v2791 = vpop.f32.mrb[0].mxu0
      %v2792 = vadd.f32 0.0, %v2791
      %v2793 = vpop.f32.mrb[0].mxu0
      %v2794 = vpop.f32.mrb[0].mxu0
      %v2795 = vadd.f32 0.0, %v2794
      %v2796 = vpop.f32.mrb[0].mxu0
      %2797 = vdwg.mxu0
      %v2798 = vadd.f32 %v2570, %v2672
      %v2799 = vadd.f32 %v2571, %v2675
      %v2800 = vadd.f32 %v2572, %v2680
      %v2801 = vadd.f32 %v2573, %v2683
      %v2802 = vadd.f32 %v2574, %v2688
      %v2803 = vadd.f32 %v2575, %v2691
      %v2804 = vadd.f32 %v2576, %v2696
      %v2805 = vadd.f32 %v2577, %v2699
      %v2806 = vadd.f32 %v2578, %v2704
      %v2807 = vadd.f32 %v2579, %v2707
      %v2808 = vadd.f32 %v2580, %v2712
      %v2809 = vadd.f32 %v2581, %v2715
      %v2810 = vadd.f32 %v2582, %v2720
      %v2811 = vadd.f32 %v2583, %v2723
      %v2812 = vadd.f32 %v2584, %v2728
      %v2813 = vadd.f32 %v2585, %v2731
      %v2814 = vadd.f32 %v2586, %v2736
      %v2815 = vadd.f32 %v2587, %v2739
      %v2816 = vadd.f32 %v2588, %v2744
      %v2817 = vadd.f32 %v2589, %v2747
      %v2818 = vadd.f32 %v2590, %v2752
      %v2819 = vadd.f32 %v2591, %v2755
      %v2820 = vadd.f32 %v2592, %v2760
      %v2821 = vadd.f32 %v2593, %v2763
      %v2822 = vadd.f32 %v2594, %v2768
      %v2823 = vadd.f32 %v2595, %v2771
      %v2824 = vadd.f32 %v2596, %v2776
      %v2825 = vadd.f32 %v2597, %v2779
      %v2826 = vadd.f32 %v2598, %v2784
      %v2827 = vadd.f32 %v2599, %v2787
      %v2828 = vadd.f32 %v2600, %v2792
      %v2829 = vadd.f32 %v2601, %v2795
      %v2831 = vrot.slane %v1021, 5
      %v2832 = vrot.slane %v2831, 4
      %v2833 = vrot.slane %v1022, 5
      %v2834 = vsel %vm1989, %v2832, %v2833
      %v2835 = vrot.slane %v2833, 4
      %v2836 = vrot.slane %v1023, 5
      %v2837 = vsel %vm1989, %v2835, %v2836
      %s2838 = scalar_lea.vmem %s1, 10
      %v2839 = vld [vmem:[%s2838] sm:$0x3]
      %v2840 = vunpack.c.l.b16 %v2834
      %v2841 = vunpack.c.l.b16 %v2837
      %v2842 = vpack.c.b16 %v2841, %v2840
      %v2844 = vsel %vm1465, %v2842, 0
      %v2847 = vsel %vm1514, %v2839, 0
      %2849 = vmatprep.subr.bf16.mxu0 0
      %2850 = vmatpush1.bf16.msra.mxu0 %v2847
      %2851 = vmatprep.subr.bf16.mxu0 0
      %2852 = vmatpush1.bf16.msra.mxu0 0
      %2853 = vmatprep.subr.bf16.mxu0 0
      %2854 = vmatpush1.bf16.msra.mxu0 0
      %2855 = vmatprep.subr.bf16.mxu0 0
      %2856 = vmatpush1.bf16.msra.mxu0 0
      %2857 = vmatprep.subr.bf16.mxu0 0
      %2858 = vmatpush1.bf16.msra.mxu0 0
      %2859 = vmatprep.subr.bf16.mxu0 0
      %2860 = vmatpush1.bf16.msra.mxu0 0
      %2861 = vmatprep.subr.bf16.mxu0 0
      %2862 = vmatpush1.bf16.msra.mxu0 0
      %2863 = vmatprep.subr.bf16.mxu0 0
      %2864 = vmatpush1.bf16.msra.mxu0 0
      %2865 = vmatprep.subr.bf16.mxu0 0
      %2866 = vmatpush1.bf16.msra.mxu0 0
      %2867 = vmatprep.subr.bf16.mxu0 0
      %2868 = vmatpush1.bf16.msra.mxu0 0
      %2869 = vmatprep.subr.bf16.mxu0 0
      %2870 = vmatpush1.bf16.msra.mxu0 0
      %2871 = vmatprep.subr.bf16.mxu0 0
      %2872 = vmatpush1.bf16.msra.mxu0 0
      %2873 = vmatprep.subr.bf16.mxu0 0
      %2874 = vmatpush1.bf16.msra.mxu0 0
      %2875 = vmatprep.subr.bf16.mxu0 0
      %2876 = vmatpush1.bf16.msra.mxu0 0
      %2877 = vmatprep.subr.bf16.mxu0 0
      %2878 = vmatpush1.bf16.msra.mxu0 0
      %2879 = vmatprep.subr.bf16.mxu0 0
      %2880 = vmatpush1.bf16.msra.mxu0 0
      %2881 = vmatprep.mubr.bf16.mxu0 0
      %2882 = vmatmul.mubr.bf16.gmra.mrb[0].mxu0 %v2156
      %v2883 = vpop.f32.mrb[0].mxu0
      %v2884 = vadd.f32 0.0, %v2883
      %v2885 = vpop.f32.mrb[0].mxu0
      %v2886 = vpop.f32.mrb[0].mxu0
      %v2887 = vadd.f32 0.0, %v2886
      %v2888 = vpop.f32.mrb[0].mxu0
      %2889 = vmatprep.mubr.bf16.mxu0 0
      %2890 = vmatmul.mubr.bf16.gmra.mrb[0].mxu0 %v2159
      %v2891 = vpop.f32.mrb[0].mxu0
      %v2892 = vadd.f32 0.0, %v2891
      %v2893 = vpop.f32.mrb[0].mxu0
      %v2894 = vpop.f32.mrb[0].mxu0
      %v2895 = vadd.f32 0.0, %v2894
      %v2896 = vpop.f32.mrb[0].mxu0
      %2897 = vmatprep.mubr.bf16.mxu0 0
      %2898 = vmatmul.mubr.bf16.gmra.mrb[0].mxu0 %v2162
      %v2899 = vpop.f32.mrb[0].mxu0
      %v2900 = vadd.f32 0.0, %v2899
      %v2901 = vpop.f32.mrb[0].mxu0
      %v2902 = vpop.f32.mrb[0].mxu0
      %v2903 = vadd.f32 0.0, %v2902
      %v2904 = vpop.f32.mrb[0].mxu0
      %2905 = vmatprep.mubr.bf16.mxu0 0
      %2906 = vmatmul.mubr.bf16.gmra.mrb[0].mxu0 %v2165
      %v2907 = vpop.f32.mrb[0].mxu0
      %v2908 = vadd.f32 0.0, %v2907
      %v2909 = vpop.f32.mrb[0].mxu0
      %v2910 = vpop.f32.mrb[0].mxu0
      %v2911 = vadd.f32 0.0, %v2910
      %v2912 = vpop.f32.mrb[0].mxu0
      %2913 = vmatprep.mubr.bf16.mxu0 0
      %2914 = vmatmul.mubr.bf16.gmra.mrb[0].mxu0 %v2168
      %v2915 = vpop.f32.mrb[0].mxu0
      %v2916 = vadd.f32 0.0, %v2915
      %v2917 = vpop.f32.mrb[0].mxu0
      %v2918 = vpop.f32.mrb[0].mxu0
      %v2919 = vadd.f32 0.0, %v2918
      %v2920 = vpop.f32.mrb[0].mxu0
      %2921 = vmatprep.mubr.bf16.mxu0 0
      %2922 = vmatmul.mubr.bf16.gmra.mrb[0].mxu0 %v2171
      %v2923 = vpop.f32.mrb[0].mxu0
      %v2924 = vadd.f32 0.0, %v2923
      %v2925 = vpop.f32.mrb[0].mxu0
      %v2926 = vpop.f32.mrb[0].mxu0
      %v2927 = vadd.f32 0.0, %v2926
      %v2928 = vpop.f32.mrb[0].mxu0
      %2929 = vmatprep.mubr.bf16.mxu0 0
      %2930 = vmatmul.mubr.bf16.gmra.mrb[0].mxu0 %v2174
      %v2931 = vpop.f32.mrb[0].mxu0
      %v2932 = vadd.f32 0.0, %v2931
      %v2933 = vpop.f32.mrb[0].mxu0
      %v2934 = vpop.f32.mrb[0].mxu0
      %v2935 = vadd.f32 0.0, %v2934
      %v2936 = vpop.f32.mrb[0].mxu0
      %2937 = vmatprep.mubr.bf16.mxu0 0
      %2938 = vmatmul.mubr.bf16.gmra.mrb[0].mxu0 %v2177
      %v2939 = vpop.f32.mrb[0].mxu0
      %v2940 = vadd.f32 0.0, %v2939
      %v2941 = vpop.f32.mrb[0].mxu0
      %v2942 = vpop.f32.mrb[0].mxu0
      %v2943 = vadd.f32 0.0, %v2942
      %v2944 = vpop.f32.mrb[0].mxu0
      %2945 = vmatprep.mubr.bf16.mxu0 0
      %2946 = vmatmul.mubr.bf16.gmra.mrb[0].mxu0 %v2180
      %v2947 = vpop.f32.mrb[0].mxu0
      %v2948 = vadd.f32 0.0, %v2947
      %v2949 = vpop.f32.mrb[0].mxu0
      %v2950 = vpop.f32.mrb[0].mxu0
      %v2951 = vadd.f32 0.0, %v2950
      %v2952 = vpop.f32.mrb[0].mxu0
      %2953 = vmatprep.mubr.bf16.mxu0 0
      %2954 = vmatmul.mubr.bf16.gmra.mrb[0].mxu0 %v2183
      %v2955 = vpop.f32.mrb[0].mxu0
      %v2956 = vadd.f32 0.0, %v2955
      %v2957 = vpop.f32.mrb[0].mxu0
      %v2958 = vpop.f32.mrb[0].mxu0
      %v2959 = vadd.f32 0.0, %v2958
      %v2960 = vpop.f32.mrb[0].mxu0
      %2961 = vmatprep.mubr.bf16.mxu0 0
      %2962 = vmatmul.mubr.bf16.gmra.mrb[0].mxu0 %v2186
      %v2963 = vpop.f32.mrb[0].mxu0
      %v2964 = vadd.f32 0.0, %v2963
      %v2965 = vpop.f32.mrb[0].mxu0
      %v2966 = vpop.f32.mrb[0].mxu0
      %v2967 = vadd.f32 0.0, %v2966
      %v2968 = vpop.f32.mrb[0].mxu0
      %2969 = vmatprep.mubr.bf16.mxu0 0
      %2970 = vmatmul.mubr.bf16.gmra.mrb[0].mxu0 %v2189
      %v2971 = vpop.f32.mrb[0].mxu0
      %v2972 = vadd.f32 0.0, %v2971
      %v2973 = vpop.f32.mrb[0].mxu0
      %v2974 = vpop.f32.mrb[0].mxu0
      %v2975 = vadd.f32 0.0, %v2974
      %v2976 = vpop.f32.mrb[0].mxu0
      %2977 = vmatprep.mubr.bf16.mxu0 0
      %2978 = vmatmul.mubr.bf16.gmra.mrb[0].mxu0 %v2192
      %v2979 = vpop.f32.mrb[0].mxu0
      %v2980 = vadd.f32 0.0, %v2979
      %v2981 = vpop.f32.mrb[0].mxu0
      %v2982 = vpop.f32.mrb[0].mxu0
      %v2983 = vadd.f32 0.0, %v2982
      %v2984 = vpop.f32.mrb[0].mxu0
      %2985 = vmatprep.mubr.bf16.mxu0 0
      %2986 = vmatmul.mubr.bf16.gmra.mrb[0].mxu0 %v2195
      %v2987 = vpop.f32.mrb[0].mxu0
      %v2988 = vadd.f32 0.0, %v2987
      %v2989 = vpop.f32.mrb[0].mxu0
      %v2990 = vpop.f32.mrb[0].mxu0
      %v2991 = vadd.f32 0.0, %v2990
      %v2992 = vpop.f32.mrb[0].mxu0
      %2993 = vmatprep.mubr.bf16.mxu0 0
      %2994 = vmatmul.mubr.bf16.gmra.mrb[0].mxu0 %v2198
      %v2995 = vpop.f32.mrb[0].mxu0
      %v2996 = vadd.f32 0.0, %v2995
      %v2997 = vpop.f32.mrb[0].mxu0
      %v2998 = vpop.f32.mrb[0].mxu0
      %v2999 = vadd.f32 0.0, %v2998
      %v3000 = vpop.f32.mrb[0].mxu0
      %3001 = vmatprep.mubr.bf16.mxu0 0
      %3002 = vmatmul.mubr.bf16.gmra.mrb[0].mxu0 %v2844
      %v3003 = vpop.f32.mrb[0].mxu0
      %v3004 = vadd.f32 0.0, %v3003
      %v3005 = vpop.f32.mrb[0].mxu0
      %v3006 = vpop.f32.mrb[0].mxu0
      %v3007 = vadd.f32 0.0, %v3006
      %v3008 = vpop.f32.mrb[0].mxu0
      %3009 = vdwg.mxu0
      %v3010 = vadd.f32 %v2798, %v2884
      %v3011 = vadd.f32 %v2799, %v2887
      %v3012 = vadd.f32 %v2800, %v2892
      %v3013 = vadd.f32 %v2801, %v2895
      %v3014 = vadd.f32 %v2802, %v2900
      %v3015 = vadd.f32 %v2803, %v2903
      %v3016 = vadd.f32 %v2804, %v2908
      %v3017 = vadd.f32 %v2805, %v2911
      %v3018 = vadd.f32 %v2806, %v2916
      %v3019 = vadd.f32 %v2807, %v2919
      %v3020 = vadd.f32 %v2808, %v2924
      %v3021 = vadd.f32 %v2809, %v2927
      %v3022 = vadd.f32 %v2810, %v2932
      %v3023 = vadd.f32 %v2811, %v2935
      %v3024 = vadd.f32 %v2812, %v2940
      %v3025 = vadd.f32 %v2813, %v2943
      %v3026 = vadd.f32 %v2814, %v2948
      %v3027 = vadd.f32 %v2815, %v2951
      %v3028 = vadd.f32 %v2816, %v2956
      %v3029 = vadd.f32 %v2817, %v2959
      %v3030 = vadd.f32 %v2818, %v2964
      %v3031 = vadd.f32 %v2819, %v2967
      %v3032 = vadd.f32 %v2820, %v2972
      %v3033 = vadd.f32 %v2821, %v2975
      %v3034 = vadd.f32 %v2822, %v2980
      %v3035 = vadd.f32 %v2823, %v2983
      %v3036 = vadd.f32 %v2824, %v2988
      %v3037 = vadd.f32 %v2825, %v2991
      %v3038 = vadd.f32 %v2826, %v2996
      %v3039 = vadd.f32 %v2827, %v2999
      %v3040 = vadd.f32 %v2828, %v3004
      %v3041 = vadd.f32 %v2829, %v3007
      %s3042 = scalar_lea.vmem %s1, 12
      %v3043 = vld [vmem:[%s3042] sm:$0x3]
      %v3046 = vunpack.c.l.b16 %v1024
      %v3047 = vunpack.c.l.b16 %v1025
      %v3048 = vpack.c.b16 %v3047, %v3046
      %v3050 = vsel %vm1465, %v3048, 0
      %v3053 = vsel %vm1514, %v3043, 0
      %3055 = vmatprep.subr.bf16.mxu0 0
      %3056 = vmatpush1.bf16.msra.mxu0 %v3053
      %3057 = vmatprep.subr.bf16.mxu0 0
      %3058 = vmatpush1.bf16.msra.mxu0 0
      %3059 = vmatprep.subr.bf16.mxu0 0
      %3060 = vmatpush1.bf16.msra.mxu0 0
      %3061 = vmatprep.subr.bf16.mxu0 0
      %3062 = vmatpush1.bf16.msra.mxu0 0
      %3063 = vmatprep.subr.bf16.mxu0 0
      %3064 = vmatpush1.bf16.msra.mxu0 0
      %3065 = vmatprep.subr.bf16.mxu0 0
      %3066 = vmatpush1.bf16.msra.mxu0 0
      %3067 = vmatprep.subr.bf16.mxu0 0
      %3068 = vmatpush1.bf16.msra.mxu0 0
      %3069 = vmatprep.subr.bf16.mxu0 0
      %3070 = vmatpush1.bf16.msra.mxu0 0
      %3071 = vmatprep.subr.bf16.mxu0 0
      %3072 = vmatpush1.bf16.msra.mxu0 0
      %3073 = vmatprep.subr.bf16.mxu0 0
      %3074 = vmatpush1.bf16.msra.mxu0 0
      %3075 = vmatprep.subr.bf16.mxu0 0
      %3076 = vmatpush1.bf16.msra.mxu0 0
      %3077 = vmatprep.subr.bf16.mxu0 0
      %3078 = vmatpush1.bf16.msra.mxu0 0
      %3079 = vmatprep.subr.bf16.mxu0 0
      %3080 = vmatpush1.bf16.msra.mxu0 0
      %3081 = vmatprep.subr.bf16.mxu0 0
      %3082 = vmatpush1.bf16.msra.mxu0 0
      %3083 = vmatprep.subr.bf16.mxu0 0
      %3084 = vmatpush1.bf16.msra.mxu0 0
      %3085 = vmatprep.subr.bf16.mxu0 0
      %3086 = vmatpush1.bf16.msra.mxu0 0
      %3087 = vmatprep.mubr.bf16.mxu0 0
      %3088 = vmatmul.mubr.bf16.gmra.mrb[0].mxu0 %v1766
      %v3089 = vpop.f32.mrb[0].mxu0
      %v3090 = vadd.f32 0.0, %v3089
      %v3091 = vpop.f32.mrb[0].mxu0
      %v3092 = vpop.f32.mrb[0].mxu0
      %v3093 = vadd.f32 0.0, %v3092
      %v3094 = vpop.f32.mrb[0].mxu0
      %3095 = vmatprep.mubr.bf16.mxu0 0
      %3096 = vmatmul.mubr.bf16.gmra.mrb[0].mxu0 %v1769
      %v3097 = vpop.f32.mrb[0].mxu0
      %v3098 = vadd.f32 0.0, %v3097
      %v3099 = vpop.f32.mrb[0].mxu0
      %v3100 = vpop.f32.mrb[0].mxu0
      %v3101 = vadd.f32 0.0, %v3100
      %v3102 = vpop.f32.mrb[0].mxu0
      %3103 = vmatprep.mubr.bf16.mxu0 0
      %3104 = vmatmul.mubr.bf16.gmra.mrb[0].mxu0 %v1772
      %v3105 = vpop.f32.mrb[0].mxu0
      %v3106 = vadd.f32 0.0, %v3105
      %v3107 = vpop.f32.mrb[0].mxu0
      %v3108 = vpop.f32.mrb[0].mxu0
      %v3109 = vadd.f32 0.0, %v3108
      %v3110 = vpop.f32.mrb[0].mxu0
      %3111 = vmatprep.mubr.bf16.mxu0 0
      %3112 = vmatmul.mubr.bf16.gmra.mrb[0].mxu0 %v1775
      %v3113 = vpop.f32.mrb[0].mxu0
      %v3114 = vadd.f32 0.0, %v3113
      %v3115 = vpop.f32.mrb[0].mxu0
      %v3116 = vpop.f32.mrb[0].mxu0
      %v3117 = vadd.f32 0.0, %v3116
      %v3118 = vpop.f32.mrb[0].mxu0
      %3119 = vmatprep.mubr.bf16.mxu0 0
      %3120 = vmatmul.mubr.bf16.gmra.mrb[0].mxu0 %v1778
      %v3121 = vpop.f32.mrb[0].mxu0
      %v3122 = vadd.f32 0.0, %v3121
      %v3123 = vpop.f32.mrb[0].mxu0
      %v3124 = vpop.f32.mrb[0].mxu0
      %v3125 = vadd.f32 0.0, %v3124
      %v3126 = vpop.f32.mrb[0].mxu0
      %3127 = vmatprep.mubr.bf16.mxu0 0
      %3128 = vmatmul.mubr.bf16.gmra.mrb[0].mxu0 %v1781
      %v3129 = vpop.f32.mrb[0].mxu0
      %v3130 = vadd.f32 0.0, %v3129
      %v3131 = vpop.f32.mrb[0].mxu0
      %v3132 = vpop.f32.mrb[0].mxu0
      %v3133 = vadd.f32 0.0, %v3132
      %v3134 = vpop.f32.mrb[0].mxu0
      %3135 = vmatprep.mubr.bf16.mxu0 0
      %3136 = vmatmul.mubr.bf16.gmra.mrb[0].mxu0 %v1784
      %v3137 = vpop.f32.mrb[0].mxu0
      %v3138 = vadd.f32 0.0, %v3137
      %v3139 = vpop.f32.mrb[0].mxu0
      %v3140 = vpop.f32.mrb[0].mxu0
      %v3141 = vadd.f32 0.0, %v3140
      %v3142 = vpop.f32.mrb[0].mxu0
      %3143 = vmatprep.mubr.bf16.mxu0 0
      %3144 = vmatmul.mubr.bf16.gmra.mrb[0].mxu0 %v1787
      %v3145 = vpop.f32.mrb[0].mxu0
      %v3146 = vadd.f32 0.0, %v3145
      %v3147 = vpop.f32.mrb[0].mxu0
      %v3148 = vpop.f32.mrb[0].mxu0
      %v3149 = vadd.f32 0.0, %v3148
      %v3150 = vpop.f32.mrb[0].mxu0
      %3151 = vmatprep.mubr.bf16.mxu0 0
      %3152 = vmatmul.mubr.bf16.gmra.mrb[0].mxu0 %v1790
      %v3153 = vpop.f32.mrb[0].mxu0
      %v3154 = vadd.f32 0.0, %v3153
      %v3155 = vpop.f32.mrb[0].mxu0
      %v3156 = vpop.f32.mrb[0].mxu0
      %v3157 = vadd.f32 0.0, %v3156
      %v3158 = vpop.f32.mrb[0].mxu0
      %3159 = vmatprep.mubr.bf16.mxu0 0
      %3160 = vmatmul.mubr.bf16.gmra.mrb[0].mxu0 %v1793
      %v3161 = vpop.f32.mrb[0].mxu0
      %v3162 = vadd.f32 0.0, %v3161
      %v3163 = vpop.f32.mrb[0].mxu0
      %v3164 = vpop.f32.mrb[0].mxu0
      %v3165 = vadd.f32 0.0, %v3164
      %v3166 = vpop.f32.mrb[0].mxu0
      %3167 = vmatprep.mubr.bf16.mxu0 0
      %3168 = vmatmul.mubr.bf16.gmra.mrb[0].mxu0 %v1796
      %v3169 = vpop.f32.mrb[0].mxu0
      %v3170 = vadd.f32 0.0, %v3169
      %v3171 = vpop.f32.mrb[0].mxu0
      %v3172 = vpop.f32.mrb[0].mxu0
      %v3173 = vadd.f32 0.0, %v3172
      %v3174 = vpop.f32.mrb[0].mxu0
      %3175 = vmatprep.mubr.bf16.mxu0 0
      %3176 = vmatmul.mubr.bf16.gmra.mrb[0].mxu0 %v1799
      %v3177 = vpop.f32.mrb[0].mxu0
      %v3178 = vadd.f32 0.0, %v3177
      %v3179 = vpop.f32.mrb[0].mxu0
      %v3180 = vpop.f32.mrb[0].mxu0
      %v3181 = vadd.f32 0.0, %v3180
      %v3182 = vpop.f32.mrb[0].mxu0
      %3183 = vmatprep.mubr.bf16.mxu0 0
      %3184 = vmatmul.mubr.bf16.gmra.mrb[0].mxu0 %v1802
      %v3185 = vpop.f32.mrb[0].mxu0
      %v3186 = vadd.f32 0.0, %v3185
      %v3187 = vpop.f32.mrb[0].mxu0
      %v3188 = vpop.f32.mrb[0].mxu0
      %v3189 = vadd.f32 0.0, %v3188
      %v3190 = vpop.f32.mrb[0].mxu0
      %3191 = vmatprep.mubr.bf16.mxu0 0
      %3192 = vmatmul.mubr.bf16.gmra.mrb[0].mxu0 %v1805
      %v3193 = vpop.f32.mrb[0].mxu0
      %v3194 = vadd.f32 0.0, %v3193
      %v3195 = vpop.f32.mrb[0].mxu0
      %v3196 = vpop.f32.mrb[0].mxu0
      %v3197 = vadd.f32 0.0, %v3196
      %v3198 = vpop.f32.mrb[0].mxu0
      %3199 = vmatprep.mubr.bf16.mxu0 0
      %3200 = vmatmul.mubr.bf16.gmra.mrb[0].mxu0 %v2404
      %v3201 = vpop.f32.mrb[0].mxu0
      %v3202 = vadd.f32 0.0, %v3201
      %v3203 = vpop.f32.mrb[0].mxu0
      %v3204 = vpop.f32.mrb[0].mxu0
      %v3205 = vadd.f32 0.0, %v3204
      %v3206 = vpop.f32.mrb[0].mxu0
      %3207 = vmatprep.mubr.bf16.mxu0 0
      %3208 = vmatmul.mubr.bf16.gmra.mrb[0].mxu0 %v3050
      %v3209 = vpop.f32.mrb[0].mxu0
      %v3210 = vadd.f32 0.0, %v3209
      %v3211 = vpop.f32.mrb[0].mxu0
      %v3212 = vpop.f32.mrb[0].mxu0
      %v3213 = vadd.f32 0.0, %v3212
      %v3214 = vpop.f32.mrb[0].mxu0
      %3215 = vdwg.mxu0
      %v3216 = vadd.f32 %v3010, %v3090
      %v3217 = vadd.f32 %v3011, %v3093
      %v3218 = vadd.f32 %v3012, %v3098
      %v3219 = vadd.f32 %v3013, %v3101
      %v3220 = vadd.f32 %v3014, %v3106
      %v3221 = vadd.f32 %v3015, %v3109
      %v3222 = vadd.f32 %v3016, %v3114
      %v3223 = vadd.f32 %v3017, %v3117
      %v3224 = vadd.f32 %v3018, %v3122
      %v3225 = vadd.f32 %v3019, %v3125
      %v3226 = vadd.f32 %v3020, %v3130
      %v3227 = vadd.f32 %v3021, %v3133
      %v3228 = vadd.f32 %v3022, %v3138
      %v3229 = vadd.f32 %v3023, %v3141
      %v3230 = vadd.f32 %v3024, %v3146
      %v3231 = vadd.f32 %v3025, %v3149
      %v3232 = vadd.f32 %v3026, %v3154
      %v3233 = vadd.f32 %v3027, %v3157
      %v3234 = vadd.f32 %v3028, %v3162
      %v3235 = vadd.f32 %v3029, %v3165
      %v3236 = vadd.f32 %v3030, %v3170
      %v3237 = vadd.f32 %v3031, %v3173
      %v3238 = vadd.f32 %v3032, %v3178
      %v3239 = vadd.f32 %v3033, %v3181
      %v3240 = vadd.f32 %v3034, %v3186
      %v3241 = vadd.f32 %v3035, %v3189
      %v3242 = vadd.f32 %v3036, %v3194
      %v3243 = vadd.f32 %v3037, %v3197
      %v3244 = vadd.f32 %v3038, %v3202
      %v3245 = vadd.f32 %v3039, %v3205
      %v3246 = vadd.f32 %v3040, %v3210
      %v3247 = vadd.f32 %v3041, %v3213
      %v3249 = vshrl.u32 %v1024, 16
      %v3251 = vrot.slane %v3249, 4
      %v3252 = vshll.u32 %v1024, 16
      %v3254 = vrot.slane %v3252, 5
      %v3255 = vor.u32 %v3251, %v3254
      %v3256 = vrot.slane %v3255, 4
      %v3258 = vshll.u32 %v1025, 16
      %v3260 = vrot.slane %v3258, 5
      %v3261 = vsel %vm1030, %v3256, %v3260
      %v3262 = vshrl.u32 %v1025, 16
      %v3264 = vrot.slane %v3262, 4
      %v3265 = vor.u32 %v3264, %v3260
      %v3266 = vrot.slane %v3265, 4
      %v3268 = vshll.u32 %v1026, 16
      %v3270 = vrot.slane %v3268, 5
      %v3271 = vsel %vm1030, %v3266, %v3270
      %s3272 = scalar_lea.vmem %s1, 14
      %v3273 = vld [vmem:[%s3272] sm:$0x3]
      %v3274 = vunpack.c.l.b16 %v3261
      %v3275 = vunpack.c.l.b16 %v3271
      %v3276 = vpack.c.b16 %v3275, %v3274
      %v3278 = vsel %vm1465, %v3276, 0
      %v3281 = vsel %vm1514, %v3273, 0
      %3283 = vmatprep.subr.bf16.mxu0 0
      %3284 = vmatpush1.bf16.msra.mxu0 %v3281
      %3285 = vmatprep.subr.bf16.mxu0 0
      %3286 = vmatpush1.bf16.msra.mxu0 0
      %3287 = vmatprep.subr.bf16.mxu0 0
      %3288 = vmatpush1.bf16.msra.mxu0 0
      %3289 = vmatprep.subr.bf16.mxu0 0
      %3290 = vmatpush1.bf16.msra.mxu0 0
      %3291 = vmatprep.subr.bf16.mxu0 0
      %3292 = vmatpush1.bf16.msra.mxu0 0
      %3293 = vmatprep.subr.bf16.mxu0 0
      %3294 = vmatpush1.bf16.msra.mxu0 0
      %3295 = vmatprep.subr.bf16.mxu0 0
      %3296 = vmatpush1.bf16.msra.mxu0 0
      %3297 = vmatprep.subr.bf16.mxu0 0
      %3298 = vmatpush1.bf16.msra.mxu0 0
      %3299 = vmatprep.subr.bf16.mxu0 0
      %3300 = vmatpush1.bf16.msra.mxu0 0
      %3301 = vmatprep.subr.bf16.mxu0 0
      %3302 = vmatpush1.bf16.msra.mxu0 0
      %3303 = vmatprep.subr.bf16.mxu0 0
      %3304 = vmatpush1.bf16.msra.mxu0 0
      %3305 = vmatprep.subr.bf16.mxu0 0
      %3306 = vmatpush1.bf16.msra.mxu0 0
      %3307 = vmatprep.subr.bf16.mxu0 0
      %3308 = vmatpush1.bf16.msra.mxu0 0
      %3309 = vmatprep.subr.bf16.mxu0 0
      %3310 = vmatpush1.bf16.msra.mxu0 0
      %3311 = vmatprep.subr.bf16.mxu0 0
      %3312 = vmatpush1.bf16.msra.mxu0 0
      %3313 = vmatprep.subr.bf16.mxu0 0
      %3314 = vmatpush1.bf16.msra.mxu0 0
      %3315 = vmatprep.mubr.bf16.mxu0 0
      %3316 = vmatmul.mubr.bf16.gmra.mrb[0].mxu0 %v1473
      %v3317 = vpop.f32.mrb[0].mxu0
      %v3318 = vadd.f32 0.0, %v3317
      %v3319 = vpop.f32.mrb[0].mxu0
      %v3320 = vpop.f32.mrb[0].mxu0
      %v3321 = vadd.f32 0.0, %v3320
      %v3322 = vpop.f32.mrb[0].mxu0
      %3323 = vmatprep.mubr.bf16.mxu0 0
      %3324 = vmatmul.mubr.bf16.gmra.mrb[0].mxu0 %v1476
      %v3325 = vpop.f32.mrb[0].mxu0
      %v3326 = vadd.f32 0.0, %v3325
      %v3327 = vpop.f32.mrb[0].mxu0
      %v3328 = vpop.f32.mrb[0].mxu0
      %v3329 = vadd.f32 0.0, %v3328
      %v3330 = vpop.f32.mrb[0].mxu0
      %3331 = vmatprep.mubr.bf16.mxu0 0
      %3332 = vmatmul.mubr.bf16.gmra.mrb[0].mxu0 %v1479
      %v3333 = vpop.f32.mrb[0].mxu0
      %v3334 = vadd.f32 0.0, %v3333
      %v3335 = vpop.f32.mrb[0].mxu0
      %v3336 = vpop.f32.mrb[0].mxu0
      %v3337 = vadd.f32 0.0, %v3336
      %v3338 = vpop.f32.mrb[0].mxu0
      %3339 = vmatprep.mubr.bf16.mxu0 0
      %3340 = vmatmul.mubr.bf16.gmra.mrb[0].mxu0 %v1482
      %v3341 = vpop.f32.mrb[0].mxu0
      %v3342 = vadd.f32 0.0, %v3341
      %v3343 = vpop.f32.mrb[0].mxu0
      %v3344 = vpop.f32.mrb[0].mxu0
      %v3345 = vadd.f32 0.0, %v3344
      %v3346 = vpop.f32.mrb[0].mxu0
      %3347 = vmatprep.mubr.bf16.mxu0 0
      %3348 = vmatmul.mubr.bf16.gmra.mrb[0].mxu0 %v1485
      %v3349 = vpop.f32.mrb[0].mxu0
      %v3350 = vadd.f32 0.0, %v3349
      %v3351 = vpop.f32.mrb[0].mxu0
      %v3352 = vpop.f32.mrb[0].mxu0
      %v3353 = vadd.f32 0.0, %v3352
      %v3354 = vpop.f32.mrb[0].mxu0
      %3355 = vmatprep.mubr.bf16.mxu0 0
      %3356 = vmatmul.mubr.bf16.gmra.mrb[0].mxu0 %v1488
      %v3357 = vpop.f32.mrb[0].mxu0
      %v3358 = vadd.f32 0.0, %v3357
      %v3359 = vpop.f32.mrb[0].mxu0
      %v3360 = vpop.f32.mrb[0].mxu0
      %v3361 = vadd.f32 0.0, %v3360
      %v3362 = vpop.f32.mrb[0].mxu0
      %3363 = vmatprep.mubr.bf16.mxu0 0
      %3364 = vmatmul.mubr.bf16.gmra.mrb[0].mxu0 %v1491
      %v3365 = vpop.f32.mrb[0].mxu0
      %v3366 = vadd.f32 0.0, %v3365
      %v3367 = vpop.f32.mrb[0].mxu0
      %v3368 = vpop.f32.mrb[0].mxu0
      %v3369 = vadd.f32 0.0, %v3368
      %v3370 = vpop.f32.mrb[0].mxu0
      %3371 = vmatprep.mubr.bf16.mxu0 0
      %3372 = vmatmul.mubr.bf16.gmra.mrb[0].mxu0 %v1494
      %v3373 = vpop.f32.mrb[0].mxu0
      %v3374 = vadd.f32 0.0, %v3373
      %v3375 = vpop.f32.mrb[0].mxu0
      %v3376 = vpop.f32.mrb[0].mxu0
      %v3377 = vadd.f32 0.0, %v3376
      %v3378 = vpop.f32.mrb[0].mxu0
      %3379 = vmatprep.mubr.bf16.mxu0 0
      %3380 = vmatmul.mubr.bf16.gmra.mrb[0].mxu0 %v1497
      %v3381 = vpop.f32.mrb[0].mxu0
      %v3382 = vadd.f32 0.0, %v3381
      %v3383 = vpop.f32.mrb[0].mxu0
      %v3384 = vpop.f32.mrb[0].mxu0
      %v3385 = vadd.f32 0.0, %v3384
      %v3386 = vpop.f32.mrb[0].mxu0
      %3387 = vmatprep.mubr.bf16.mxu0 0
      %3388 = vmatmul.mubr.bf16.gmra.mrb[0].mxu0 %v1500
      %v3389 = vpop.f32.mrb[0].mxu0
      %v3390 = vadd.f32 0.0, %v3389
      %v3391 = vpop.f32.mrb[0].mxu0
      %v3392 = vpop.f32.mrb[0].mxu0
      %v3393 = vadd.f32 0.0, %v3392
      %v3394 = vpop.f32.mrb[0].mxu0
      %3395 = vmatprep.mubr.bf16.mxu0 0
      %3396 = vmatmul.mubr.bf16.gmra.mrb[0].mxu0 %v1503
      %v3397 = vpop.f32.mrb[0].mxu0
      %v3398 = vadd.f32 0.0, %v3397
      %v3399 = vpop.f32.mrb[0].mxu0
      %v3400 = vpop.f32.mrb[0].mxu0
      %v3401 = vadd.f32 0.0, %v3400
      %v3402 = vpop.f32.mrb[0].mxu0
      %3403 = vmatprep.mubr.bf16.mxu0 0
      %3404 = vmatmul.mubr.bf16.gmra.mrb[0].mxu0 %v1506
      %v3405 = vpop.f32.mrb[0].mxu0
      %v3406 = vadd.f32 0.0, %v3405
      %v3407 = vpop.f32.mrb[0].mxu0
      %v3408 = vpop.f32.mrb[0].mxu0
      %v3409 = vadd.f32 0.0, %v3408
      %v3410 = vpop.f32.mrb[0].mxu0
      %3411 = vmatprep.mubr.bf16.mxu0 0
      %3412 = vmatmul.mubr.bf16.gmra.mrb[0].mxu0 %v1509
      %v3413 = vpop.f32.mrb[0].mxu0
      %v3414 = vadd.f32 0.0, %v3413
      %v3415 = vpop.f32.mrb[0].mxu0
      %v3416 = vpop.f32.mrb[0].mxu0
      %v3417 = vadd.f32 0.0, %v3416
      %v3418 = vpop.f32.mrb[0].mxu0
      %3419 = vmatprep.mubr.bf16.mxu0 0
      %3420 = vmatmul.mubr.bf16.gmra.mrb[0].mxu0 %v1512
      %v3421 = vpop.f32.mrb[0].mxu0
      %v3422 = vadd.f32 0.0, %v3421
      %v3423 = vpop.f32.mrb[0].mxu0
      %v3424 = vpop.f32.mrb[0].mxu0
      %v3425 = vadd.f32 0.0, %v3424
      %v3426 = vpop.f32.mrb[0].mxu0
      %3427 = vmatprep.mubr.bf16.mxu0 0
      %3428 = vmatmul.mubr.bf16.gmra.mrb[0].mxu0 %v2632
      %v3429 = vpop.f32.mrb[0].mxu0
      %v3430 = vadd.f32 0.0, %v3429
      %v3431 = vpop.f32.mrb[0].mxu0
      %v3432 = vpop.f32.mrb[0].mxu0
      %v3433 = vadd.f32 0.0, %v3432
      %v3434 = vpop.f32.mrb[0].mxu0
      %3435 = vmatprep.mubr.bf16.mxu0 0
      %3436 = vmatmul.mubr.bf16.gmra.mrb[0].mxu0 %v3278
      %v3437 = vpop.f32.mrb[0].mxu0
      %v3438 = vadd.f32 0.0, %v3437
      %v3439 = vpop.f32.mrb[0].mxu0
      %v3440 = vpop.f32.mrb[0].mxu0
      %v3441 = vadd.f32 0.0, %v3440
      %v3442 = vpop.f32.mrb[0].mxu0
      %3443 = vdwg.mxu0
      %v3444 = vadd.f32 %v3216, %v3318
      %v3445 = vadd.f32 %v3217, %v3321
      %v3446 = vadd.f32 %v3218, %v3326
      %v3447 = vadd.f32 %v3219, %v3329
      %v3448 = vadd.f32 %v3220, %v3334
      %v3449 = vadd.f32 %v3221, %v3337
      %v3450 = vadd.f32 %v3222, %v3342
      %v3451 = vadd.f32 %v3223, %v3345
      %v3452 = vadd.f32 %v3224, %v3350
      %v3453 = vadd.f32 %v3225, %v3353
      %v3454 = vadd.f32 %v3226, %v3358
      %v3455 = vadd.f32 %v3227, %v3361
      %v3456 = vadd.f32 %v3228, %v3366
      %v3457 = vadd.f32 %v3229, %v3369
      %v3458 = vadd.f32 %v3230, %v3374
      %v3459 = vadd.f32 %v3231, %v3377
      %v3460 = vadd.f32 %v3232, %v3382
      %v3461 = vadd.f32 %v3233, %v3385
      %v3462 = vadd.f32 %v3234, %v3390
      %v3463 = vadd.f32 %v3235, %v3393
      %v3464 = vadd.f32 %v3236, %v3398
      %v3465 = vadd.f32 %v3237, %v3401
      %v3466 = vadd.f32 %v3238, %v3406
      %v3467 = vadd.f32 %v3239, %v3409
      %v3468 = vadd.f32 %v3240, %v3414
      %v3469 = vadd.f32 %v3241, %v3417
      %v3470 = vadd.f32 %v3242, %v3422
      %v3471 = vadd.f32 %v3243, %v3425
      %v3472 = vadd.f32 %v3244, %v3430
      %v3473 = vadd.f32 %v3245, %v3433
      %v3474 = vadd.f32 %v3246, %v3438
      %v3475 = vadd.f32 %v3247, %v3441
      %v3477 = vrot.slane %v1024, 5
      %v3478 = vrot.slane %v3477, 4
      %v3479 = vrot.slane %v1025, 5
      %v3480 = vsel %vm1989, %v3478, %v3479
      %v3481 = vrot.slane %v3479, 4
      %v3482 = vrot.slane %v1026, 5
      %v3483 = vsel %vm1989, %v3481, %v3482
      %s3484 = scalar_lea.vmem %s1, 16
      %v3485 = vld [vmem:[%s3484] sm:$0x3]
      %v3486 = vunpack.c.l.b16 %v3480
      %v3487 = vunpack.c.l.b16 %v3483
      %v3488 = vpack.c.b16 %v3487, %v3486
      %v3490 = vsel %vm1465, %v3488, 0
      %v3493 = vsel %vm1514, %v3485, 0
      %3495 = vmatprep.subr.bf16.mxu0 0
      %3496 = vmatpush1.bf16.msra.mxu0 %v3493
      %3497 = vmatprep.subr.bf16.mxu0 0
      %3498 = vmatpush1.bf16.msra.mxu0 0
      %3499 = vmatprep.subr.bf16.mxu0 0
      %3500 = vmatpush1.bf16.msra.mxu0 0
      %3501 = vmatprep.subr.bf16.mxu0 0
      %3502 = vmatpush1.bf16.msra.mxu0 0
      %3503 = vmatprep.subr.bf16.mxu0 0
      %3504 = vmatpush1.bf16.msra.mxu0 0
      %3505 = vmatprep.subr.bf16.mxu0 0
      %3506 = vmatpush1.bf16.msra.mxu0 0
      %3507 = vmatprep.subr.bf16.mxu0 0
      %3508 = vmatpush1.bf16.msra.mxu0 0
      %3509 = vmatprep.subr.bf16.mxu0 0
      %3510 = vmatpush1.bf16.msra.mxu0 0
      %3511 = vmatprep.subr.bf16.mxu0 0
      %3512 = vmatpush1.bf16.msra.mxu0 0
      %3513 = vmatprep.subr.bf16.mxu0 0
      %3514 = vmatpush1.bf16.msra.mxu0 0
      %3515 = vmatprep.subr.bf16.mxu0 0
      %3516 = vmatpush1.bf16.msra.mxu0 0
      %3517 = vmatprep.subr.bf16.mxu0 0
      %3518 = vmatpush1.bf16.msra.mxu0 0
      %3519 = vmatprep.subr.bf16.mxu0 0
      %3520 = vmatpush1.bf16.msra.mxu0 0
      %3521 = vmatprep.subr.bf16.mxu0 0
      %3522 = vmatpush1.bf16.msra.mxu0 0
      %3523 = vmatprep.subr.bf16.mxu0 0
      %3524 = vmatpush1.bf16.msra.mxu0 0
      %3525 = vmatprep.subr.bf16.mxu0 0
      %3526 = vmatpush1.bf16.msra.mxu0 0
      %3527 = vmatprep.mubr.bf16.mxu0 0
      %3528 = vmatmul.mubr.bf16.gmra.mrb[0].mxu0 %v2159
      %v3529 = vpop.f32.mrb[0].mxu0
      %v3530 = vadd.f32 0.0, %v3529
      %v3531 = vpop.f32.mrb[0].mxu0
      %v3532 = vpop.f32.mrb[0].mxu0
      %v3533 = vadd.f32 0.0, %v3532
      %v3534 = vpop.f32.mrb[0].mxu0
      %3535 = vmatprep.mubr.bf16.mxu0 0
      %3536 = vmatmul.mubr.bf16.gmra.mrb[0].mxu0 %v2162
      %v3537 = vpop.f32.mrb[0].mxu0
      %v3538 = vadd.f32 0.0, %v3537
      %v3539 = vpop.f32.mrb[0].mxu0
      %v3540 = vpop.f32.mrb[0].mxu0
      %v3541 = vadd.f32 0.0, %v3540
      %v3542 = vpop.f32.mrb[0].mxu0
      %3543 = vmatprep.mubr.bf16.mxu0 0
      %3544 = vmatmul.mubr.bf16.gmra.mrb[0].mxu0 %v2165
      %v3545 = vpop.f32.mrb[0].mxu0
      %v3546 = vadd.f32 0.0, %v3545
      %v3547 = vpop.f32.mrb[0].mxu0
      %v3548 = vpop.f32.mrb[0].mxu0
      %v3549 = vadd.f32 0.0, %v3548
      %v3550 = vpop.f32.mrb[0].mxu0
      %3551 = vmatprep.mubr.bf16.mxu0 0
      %3552 = vmatmul.mubr.bf16.gmra.mrb[0].mxu0 %v2168
      %v3553 = vpop.f32.mrb[0].mxu0
      %v3554 = vadd.f32 0.0, %v3553
      %v3555 = vpop.f32.mrb[0].mxu0
      %v3556 = vpop.f32.mrb[0].mxu0
      %v3557 = vadd.f32 0.0, %v3556
      %v3558 = vpop.f32.mrb[0].mxu0
      %3559 = vmatprep.mubr.bf16.mxu0 0
      %3560 = vmatmul.mubr.bf16.gmra.mrb[0].mxu0 %v2171
      %v3561 = vpop.f32.mrb[0].mxu0
      %v3562 = vadd.f32 0.0, %v3561
      %v3563 = vpop.f32.mrb[0].mxu0
      %v3564 = vpop.f32.mrb[0].mxu0
      %v3565 = vadd.f32 0.0, %v3564
      %v3566 = vpop.f32.mrb[0].mxu0
      %3567 = vmatprep.mubr.bf16.mxu0 0
      %3568 = vmatmul.mubr.bf16.gmra.mrb[0].mxu0 %v2174
      %v3569 = vpop.f32.mrb[0].mxu0
      %v3570 = vadd.f32 0.0, %v3569
      %v3571 = vpop.f32.mrb[0].mxu0
      %v3572 = vpop.f32.mrb[0].mxu0
      %v3573 = vadd.f32 0.0, %v3572
      %v3574 = vpop.f32.mrb[0].mxu0
      %3575 = vmatprep.mubr.bf16.mxu0 0
      %3576 = vmatmul.mubr.bf16.gmra.mrb[0].mxu0 %v2177
      %v3577 = vpop.f32.mrb[0].mxu0
      %v3578 = vadd.f32 0.0, %v3577
      %v3579 = vpop.f32.mrb[0].mxu0
      %v3580 = vpop.f32.mrb[0].mxu0
      %v3581 = vadd.f32 0.0, %v3580
      %v3582 = vpop.f32.mrb[0].mxu0
      %3583 = vmatprep.mubr.bf16.mxu0 0
      %3584 = vmatmul.mubr.bf16.gmra.mrb[0].mxu0 %v2180
      %v3585 = vpop.f32.mrb[0].mxu0
      %v3586 = vadd.f32 0.0, %v3585
      %v3587 = vpop.f32.mrb[0].mxu0
      %v3588 = vpop.f32.mrb[0].mxu0
      %v3589 = vadd.f32 0.0, %v3588
      %v3590 = vpop.f32.mrb[0].mxu0
      %3591 = vmatprep.mubr.bf16.mxu0 0
      %3592 = vmatmul.mubr.bf16.gmra.mrb[0].mxu0 %v2183
      %v3593 = vpop.f32.mrb[0].mxu0
      %v3594 = vadd.f32 0.0, %v3593
      %v3595 = vpop.f32.mrb[0].mxu0
      %v3596 = vpop.f32.mrb[0].mxu0
      %v3597 = vadd.f32 0.0, %v3596
      %v3598 = vpop.f32.mrb[0].mxu0
      %3599 = vmatprep.mubr.bf16.mxu0 0
      %3600 = vmatmul.mubr.bf16.gmra.mrb[0].mxu0 %v2186
      %v3601 = vpop.f32.mrb[0].mxu0
      %v3602 = vadd.f32 0.0, %v3601
      %v3603 = vpop.f32.mrb[0].mxu0
      %v3604 = vpop.f32.mrb[0].mxu0
      %v3605 = vadd.f32 0.0, %v3604
      %v3606 = vpop.f32.mrb[0].mxu0
      %3607 = vmatprep.mubr.bf16.mxu0 0
      %3608 = vmatmul.mubr.bf16.gmra.mrb[0].mxu0 %v2189
      %v3609 = vpop.f32.mrb[0].mxu0
      %v3610 = vadd.f32 0.0, %v3609
      %v3611 = vpop.f32.mrb[0].mxu0
      %v3612 = vpop.f32.mrb[0].mxu0
      %v3613 = vadd.f32 0.0, %v3612
      %v3614 = vpop.f32.mrb[0].mxu0
      %3615 = vmatprep.mubr.bf16.mxu0 0
      %3616 = vmatmul.mubr.bf16.gmra.mrb[0].mxu0 %v2192
      %v3617 = vpop.f32.mrb[0].mxu0
      %v3618 = vadd.f32 0.0, %v3617
      %v3619 = vpop.f32.mrb[0].mxu0
      %v3620 = vpop.f32.mrb[0].mxu0
      %v3621 = vadd.f32 0.0, %v3620
      %v3622 = vpop.f32.mrb[0].mxu0
      %3623 = vmatprep.mubr.bf16.mxu0 0
      %3624 = vmatmul.mubr.bf16.gmra.mrb[0].mxu0 %v2195
      %v3625 = vpop.f32.mrb[0].mxu0
      %v3626 = vadd.f32 0.0, %v3625
      %v3627 = vpop.f32.mrb[0].mxu0
      %v3628 = vpop.f32.mrb[0].mxu0
      %v3629 = vadd.f32 0.0, %v3628
      %v3630 = vpop.f32.mrb[0].mxu0
      %3631 = vmatprep.mubr.bf16.mxu0 0
      %3632 = vmatmul.mubr.bf16.gmra.mrb[0].mxu0 %v2198
      %v3633 = vpop.f32.mrb[0].mxu0
      %v3634 = vadd.f32 0.0, %v3633
      %v3635 = vpop.f32.mrb[0].mxu0
      %v3636 = vpop.f32.mrb[0].mxu0
      %v3637 = vadd.f32 0.0, %v3636
      %v3638 = vpop.f32.mrb[0].mxu0
      %3639 = vmatprep.mubr.bf16.mxu0 0
      %3640 = vmatmul.mubr.bf16.gmra.mrb[0].mxu0 %v2844
      %v3641 = vpop.f32.mrb[0].mxu0
      %v3642 = vadd.f32 0.0, %v3641
      %v3643 = vpop.f32.mrb[0].mxu0
      %v3644 = vpop.f32.mrb[0].mxu0
      %v3645 = vadd.f32 0.0, %v3644
      %v3646 = vpop.f32.mrb[0].mxu0
      %3647 = vmatprep.mubr.bf16.mxu0 0
      %3648 = vmatmul.mubr.bf16.gmra.mrb[0].mxu0 %v3490
      %v3649 = vpop.f32.mrb[0].mxu0
      %v3650 = vadd.f32 0.0, %v3649
      %v3651 = vpop.f32.mrb[0].mxu0
      %v3652 = vpop.f32.mrb[0].mxu0
      %v3653 = vadd.f32 0.0, %v3652
      %v3654 = vpop.f32.mrb[0].mxu0
      %3655 = vdwg.mxu0
      %v3656 = vadd.f32 %v3444, %v3530
      %v3657 = vadd.f32 %v3445, %v3533
      %v3658 = vadd.f32 %v3446, %v3538
      %v3659 = vadd.f32 %v3447, %v3541
      %v3660 = vadd.f32 %v3448, %v3546
      %v3661 = vadd.f32 %v3449, %v3549
      %v3662 = vadd.f32 %v3450, %v3554
      %v3663 = vadd.f32 %v3451, %v3557
      %v3664 = vadd.f32 %v3452, %v3562
      %v3665 = vadd.f32 %v3453, %v3565
      %v3666 = vadd.f32 %v3454, %v3570
      %v3667 = vadd.f32 %v3455, %v3573
      %v3668 = vadd.f32 %v3456, %v3578
      %v3669 = vadd.f32 %v3457, %v3581
      %v3670 = vadd.f32 %v3458, %v3586
      %v3671 = vadd.f32 %v3459, %v3589
      %v3672 = vadd.f32 %v3460, %v3594
      %v3673 = vadd.f32 %v3461, %v3597
      %v3674 = vadd.f32 %v3462, %v3602
      %v3675 = vadd.f32 %v3463, %v3605
      %v3676 = vadd.f32 %v3464, %v3610
      %v3677 = vadd.f32 %v3465, %v3613
      %v3678 = vadd.f32 %v3466, %v3618
      %v3679 = vadd.f32 %v3467, %v3621
      %v3680 = vadd.f32 %v3468, %v3626
      %v3681 = vadd.f32 %v3469, %v3629
      %v3682 = vadd.f32 %v3470, %v3634
      %v3683 = vadd.f32 %v3471, %v3637
      %v3684 = vadd.f32 %v3472, %v3642
      %v3685 = vadd.f32 %v3473, %v3645
      %v3686 = vadd.f32 %v3474, %v3650
      %v3687 = vadd.f32 %v3475, %v3653
      %vm3688 = vcmask 64512
      %3689 = vst.msk [vmem:[%s271] sm:$0xff] %vm3688, %v3656
      %3690 = vst.msk [vmem:[%s271 + $0x8] sm:$0xff] %vm3688, %v3657
      %3691 = vst.msk [vmem:[%s271 + $0x10] sm:$0xff] %vm3688, %v3658
      %3692 = vst.msk [vmem:[%s271 + $0x18] sm:$0xff] %vm3688, %v3659
      %3693 = vst.msk [vmem:[%s271 + $0x20] sm:$0xff] %vm3688, %v3660
      %3694 = vst.msk [vmem:[%s271 + $0x28] sm:$0xff] %vm3688, %v3661
      %3695 = vst.msk [vmem:[%s271 + $0x30] sm:$0xff] %vm3688, %v3662
      %3696 = vst.msk [vmem:[%s271 + $0x38] sm:$0xff] %vm3688, %v3663
      %3697 = vst.msk [vmem:[%s271 + $0x40] sm:$0xff] %vm3688, %v3664
      %3698 = vst.msk [vmem:[%s271 + $0x48] sm:$0xff] %vm3688, %v3665
      %3699 = vst.msk [vmem:[%s271 + $0x50] sm:$0xff] %vm3688, %v3666
      %3700 = vst.msk [vmem:[%s271 + $0x58] sm:$0xff] %vm3688, %v3667
      %3701 = vst.msk [vmem:[%s271 + $0x60] sm:$0xff] %vm3688, %v3668
      %3702 = vst.msk [vmem:[%s271 + $0x68] sm:$0xff] %vm3688, %v3669
      %3703 = vst.msk [vmem:[%s271 + $0x70] sm:$0xff] %vm3688, %v3670
      %3704 = vst.msk [vmem:[%s271 + $0x78] sm:$0xff] %vm3688, %v3671
      %3705 = vst.msk [vmem:[%s271 + $0x80] sm:$0xff] %vm3688, %v3672
      %3706 = vst.msk [vmem:[%s271 + $0x88] sm:$0xff] %vm3688, %v3673
      %3707 = vst.msk [vmem:[%s271 + $0x90] sm:$0xff] %vm3688, %v3674
      %3708 = vst.msk [vmem:[%s271 + $0x98] sm:$0xff] %vm3688, %v3675
      %3709 = vst.msk [vmem:[%s271 + $0xa0] sm:$0xff] %vm3688, %v3676
      %3710 = vst.msk [vmem:[%s271 + $0xa8] sm:$0xff] %vm3688, %v3677
      %3711 = vst.msk [vmem:[%s271 + $0xb0] sm:$0xff] %vm3688, %v3678
      %3712 = vst.msk [vmem:[%s271 + $0xb8] sm:$0xff] %vm3688, %v3679
      %3713 = vst.msk [vmem:[%s271 + $0xc0] sm:$0xff] %vm3688, %v3680
      %3714 = vst.msk [vmem:[%s271 + $0xc8] sm:$0xff] %vm3688, %v3681
      %3715 = vst.msk [vmem:[%s271 + $0xd0] sm:$0xff] %vm3688, %v3682
      %3716 = vst.msk [vmem:[%s271 + $0xd8] sm:$0xff] %vm3688, %v3683
      %3717 = vst.msk [vmem:[%s271 + $0xe0] sm:$0xff] %vm3688, %v3684
      %3718 = vst.msk [vmem:[%s271 + $0xe8] sm:$0xff] %vm3688, %v3685
      %3719 = vst.msk [vmem:[%s271 + $0xf0] sm:$0xff] %vm3688, %v3686
      %3720 = vst.msk [vmem:[%s271 + $0xf8] sm:$0xff] %vm3688, %v3687
      %v3721 = vsel %vm3688, %v3656, 0.0
      %v3722 = vsel %vm3688, %v3657, 0.0
      %v3723 = vadd.f32 %v3721, %v3722
      %v3724 = vsel %vm3688, %v3658, 0.0
      %v3725 = vadd.f32 %v3723, %v3724
      %v3726 = vsel %vm3688, %v3659, 0.0
      %v3727 = vadd.f32 %v3725, %v3726
      %v3728 = vsel %vm3688, %v3660, 0.0
      %v3729 = vadd.f32 %v3727, %v3728
      %v3730 = vsel %vm3688, %v3661, 0.0
      %v3731 = vadd.f32 %v3729, %v3730
      %v3732 = vsel %vm3688, %v3662, 0.0
      %v3733 = vadd.f32 %v3731, %v3732
      %v3734 = vsel %vm3688, %v3663, 0.0
      %v3735 = vadd.f32 %v3733, %v3734
      %v3736 = vsel %vm3688, %v3664, 0.0
      %v3737 = vadd.f32 %v3735, %v3736
      %v3738 = vsel %vm3688, %v3665, 0.0
      %v3739 = vadd.f32 %v3737, %v3738
      %v3740 = vsel %vm3688, %v3666, 0.0
      %v3741 = vadd.f32 %v3739, %v3740
      %v3742 = vsel %vm3688, %v3667, 0.0
      %v3743 = vadd.f32 %v3741, %v3742
      %v3744 = vsel %vm3688, %v3668, 0.0
      %v3745 = vadd.f32 %v3743, %v3744
      %v3746 = vsel %vm3688, %v3669, 0.0
      %v3747 = vadd.f32 %v3745, %v3746
      %v3748 = vsel %vm3688, %v3670, 0.0
      %v3749 = vadd.f32 %v3747, %v3748
      %v3750 = vsel %vm3688, %v3671, 0.0
      %v3751 = vadd.f32 %v3749, %v3750
      %v3752 = vsel %vm3688, %v3672, 0.0
      %v3753 = vadd.f32 %v3751, %v3752
      %v3754 = vsel %vm3688, %v3673, 0.0
      %v3755 = vadd.f32 %v3753, %v3754
      %v3756 = vsel %vm3688, %v3674, 0.0
      %v3757 = vadd.f32 %v3755, %v3756
      %v3758 = vsel %vm3688, %v3675, 0.0
      %v3759 = vadd.f32 %v3757, %v3758
      %v3760 = vsel %vm3688, %v3676, 0.0
      %v3761 = vadd.f32 %v3759, %v3760
      %v3762 = vsel %vm3688, %v3677, 0.0
      %v3763 = vadd.f32 %v3761, %v3762
      %v3764 = vsel %vm3688, %v3678, 0.0
      %v3765 = vadd.f32 %v3763, %v3764
      %v3766 = vsel %vm3688, %v3679, 0.0
      %v3767 = vadd.f32 %v3765, %v3766
      %v3768 = vsel %vm3688, %v3680, 0.0
      %v3769 = vadd.f32 %v3767, %v3768
      %v3770 = vsel %vm3688, %v3681, 0.0
      %v3771 = vadd.f32 %v3769, %v3770
      %v3772 = vsel %vm3688, %v3682, 0.0
      %v3773 = vadd.f32 %v3771, %v3772
      %v3774 = vsel %vm3688, %v3683, 0.0
      %v3775 = vadd.f32 %v3773, %v3774
      %v3776 = vsel %vm3688, %v3684, 0.0
      %v3777 = vadd.f32 %v3775, %v3776
      %v3778 = vsel %vm3688, %v3685, 0.0
      %v3779 = vadd.f32 %v3777, %v3778
      %v3780 = vsel %vm3688, %v3686, 0.0
      %v3781 = vadd.f32 %v3779, %v3780
      %v3782 = vsel %vm3688, %v3687, 0.0
      %v3783 = vadd.f32 %v3781, %v3782
      %v3784 = vrot.slane %v3783, 4
      %v3785 = vadd.f32 %v3783, %v3784
      %v3786 = vrot.slane %v3785, 2
      %v3787 = vadd.f32 %v3785, %v3786
      %v3788 = vrot.slane %v3787, 1
      %v3789 = vadd.f32 %v3787, %v3788
      %vm3790 = vcmask 57344
      %3791 = vst.msk [vmem:[%s275] sm:$0x1] %vm3790, %v3789
      %v3792 = vmul.f32 %v3656, %v3656
      %v3793 = vmul.f32 %v3657, %v3657
      %v3794 = vmul.f32 %v3658, %v3658
      %v3795 = vmul.f32 %v3659, %v3659
      %v3796 = vmul.f32 %v3660, %v3660
      %v3797 = vmul.f32 %v3661, %v3661
      %v3798 = vmul.f32 %v3662, %v3662
      %v3799 = vmul.f32 %v3663, %v3663
      %v3800 = vmul.f32 %v3664, %v3664
      %v3801 = vmul.f32 %v3665, %v3665
      %v3802 = vmul.f32 %v3666, %v3666
      %v3803 = vmul.f32 %v3667, %v3667
      %v3804 = vmul.f32 %v3668, %v3668
      %v3805 = vmul.f32 %v3669, %v3669
      %v3806 = vmul.f32 %v3670, %v3670
      %v3807 = vmul.f32 %v3671, %v3671
      %v3808 = vmul.f32 %v3672, %v3672
      %v3809 = vmul.f32 %v3673, %v3673
      %v3810 = vmul.f32 %v3674, %v3674
      %v3811 = vmul.f32 %v3675, %v3675
      %v3812 = vmul.f32 %v3676, %v3676
      %v3813 = vmul.f32 %v3677, %v3677
      %v3814 = vmul.f32 %v3678, %v3678
      %v3815 = vmul.f32 %v3679, %v3679
      %v3816 = vmul.f32 %v3680, %v3680
      %v3817 = vmul.f32 %v3681, %v3681
      %v3818 = vmul.f32 %v3682, %v3682
      %v3819 = vmul.f32 %v3683, %v3683
      %v3820 = vmul.f32 %v3684, %v3684
      %v3821 = vmul.f32 %v3685, %v3685
      %v3822 = vmul.f32 %v3686, %v3686
      %v3823 = vmul.f32 %v3687, %v3687
      %v3824 = vsel %vm3688, %v3792, 0.0
      %v3825 = vsel %vm3688, %v3793, 0.0
      %v3826 = vadd.f32 %v3824, %v3825
      %v3827 = vsel %vm3688, %v3794, 0.0
      %v3828 = vadd.f32 %v3826, %v3827
      %v3829 = vsel %vm3688, %v3795, 0.0
      %v3830 = vadd.f32 %v3828, %v3829
      %v3831 = vsel %vm3688, %v3796, 0.0
      %v3832 = vadd.f32 %v3830, %v3831
      %v3833 = vsel %vm3688, %v3797, 0.0
      %v3834 = vadd.f32 %v3832, %v3833
      %v3835 = vsel %vm3688, %v3798, 0.0
      %v3836 = vadd.f32 %v3834, %v3835
      %v3837 = vsel %vm3688, %v3799, 0.0
      %v3838 = vadd.f32 %v3836, %v3837
      %v3839 = vsel %vm3688, %v3800, 0.0
      %v3840 = vadd.f32 %v3838, %v3839
      %v3841 = vsel %vm3688, %v3801, 0.0
      %v3842 = vadd.f32 %v3840, %v3841
      %v3843 = vsel %vm3688, %v3802, 0.0
      %v3844 = vadd.f32 %v3842, %v3843
      %v3845 = vsel %vm3688, %v3803, 0.0
      %v3846 = vadd.f32 %v3844, %v3845
      %v3847 = vsel %vm3688, %v3804, 0.0
      %v3848 = vadd.f32 %v3846, %v3847
      %v3849 = vsel %vm3688, %v3805, 0.0
      %v3850 = vadd.f32 %v3848, %v3849
      %v3851 = vsel %vm3688, %v3806, 0.0
      %v3852 = vadd.f32 %v3850, %v3851
      %v3853 = vsel %vm3688, %v3807, 0.0
      %v3854 = vadd.f32 %v3852, %v3853
      %v3855 = vsel %vm3688, %v3808, 0.0
      %v3856 = vadd.f32 %v3854, %v3855
      %v3857 = vsel %vm3688, %v3809, 0.0
      %v3858 = vadd.f32 %v3856, %v3857
      %v3859 = vsel %vm3688, %v3810, 0.0
      %v3860 = vadd.f32 %v3858, %v3859
      %v3861 = vsel %vm3688, %v3811, 0.0
      %v3862 = vadd.f32 %v3860, %v3861
      %v3863 = vsel %vm3688, %v3812, 0.0
      %v3864 = vadd.f32 %v3862, %v3863
      %v3865 = vsel %vm3688, %v3813, 0.0
      %v3866 = vadd.f32 %v3864, %v3865
      %v3867 = vsel %vm3688, %v3814, 0.0
      %v3868 = vadd.f32 %v3866, %v3867
      %v3869 = vsel %vm3688, %v3815, 0.0
      %v3870 = vadd.f32 %v3868, %v3869
      %v3871 = vsel %vm3688, %v3816, 0.0
      %v3872 = vadd.f32 %v3870, %v3871
      %v3873 = vsel %vm3688, %v3817, 0.0
      %v3874 = vadd.f32 %v3872, %v3873
      %v3875 = vsel %vm3688, %v3818, 0.0
      %v3876 = vadd.f32 %v3874, %v3875
      %v3877 = vsel %vm3688, %v3819, 0.0
      %v3878 = vadd.f32 %v3876, %v3877
      %v3879 = vsel %vm3688, %v3820, 0.0
      %v3880 = vadd.f32 %v3878, %v3879
      %v3881 = vsel %vm3688, %v3821, 0.0
      %v3882 = vadd.f32 %v3880, %v3881
      %v3883 = vsel %vm3688, %v3822, 0.0
      %v3884 = vadd.f32 %v3882, %v3883
      %v3885 = vsel %vm3688, %v3823, 0.0
      %v3886 = vadd.f32 %v3884, %v3885
      %v3887 = vrot.slane %v3886, 4
      %v3888 = vadd.f32 %v3886, %v3887
      %v3889 = vrot.slane %v3888, 2
      %v3890 = vadd.f32 %v3888, %v3889
      %v3891 = vrot.slane %v3890, 1
      %v3892 = vadd.f32 %v3890, %v3891
      %3893 = vst.msk [vmem:[%s275 + $0x1] sm:$0x1] %vm3790, %v3892
      %v3894 = vld [vmem:[%s2] sm:$0x3]
      %v3896 = vsel %vm1465, %v440, 0
      %v3899 = vsel %vm1465, %v441, 0
      %v3902 = vsel %vm1465, %v442, 0
      %v3905 = vsel %vm1465, %v443, 0
      %v3908 = vsel %vm1465, %v444, 0
      %v3911 = vsel %vm1465, %v445, 0
      %v3914 = vsel %vm1465, %v446, 0
      %v3917 = vsel %vm1465, %v447, 0
      %v3920 = vsel %vm1465, %v448, 0
      %v3923 = vsel %vm1465, %v449, 0
      %v3926 = vsel %vm1465, %v450, 0
      %v3929 = vsel %vm1465, %v451, 0
      %v3932 = vsel %vm1465, %v452, 0
      %v3935 = vsel %vm1465, %v453, 0
      %v3938 = vsel %vm1465, %v454, 0
      %v3941 = vsel %vm1465, %v455, 0
      %v3944 = vsel %vm1514, %v3894, 0
      %3946 = vmatprep.subr.bf16.mxu0 0
      %3947 = vmatpush1.bf16.msra.mxu0 %v3944
      %3948 = vmatprep.subr.bf16.mxu0 0
      %3949 = vmatpush1.bf16.msra.mxu0 0
      %3950 = vmatprep.subr.bf16.mxu0 0
      %3951 = vmatpush1.bf16.msra.mxu0 0
      %3952 = vmatprep.subr.bf16.mxu0 0
      %3953 = vmatpush1.bf16.msra.mxu0 0
      %3954 = vmatprep.subr.bf16.mxu0 0
      %3955 = vmatpush1.bf16.msra.mxu0 0
      %3956 = vmatprep.subr.bf16.mxu0 0
      %3957 = vmatpush1.bf16.msra.mxu0 0
      %3958 = vmatprep.subr.bf16.mxu0 0
      %3959 = vmatpush1.bf16.msra.mxu0 0
      %3960 = vmatprep.subr.bf16.mxu0 0
      %3961 = vmatpush1.bf16.msra.mxu0 0
      %3962 = vmatprep.subr.bf16.mxu0 0
      %3963 = vmatpush1.bf16.msra.mxu0 0
      %3964 = vmatprep.subr.bf16.mxu0 0
      %3965 = vmatpush1.bf16.msra.mxu0 0
      %3966 = vmatprep.subr.bf16.mxu0 0
      %3967 = vmatpush1.bf16.msra.mxu0 0
      %3968 = vmatprep.subr.bf16.mxu0 0
      %3969 = vmatpush1.bf16.msra.mxu0 0
      %3970 = vmatprep.subr.bf16.mxu0 0
      %3971 = vmatpush1.bf16.msra.mxu0 0
      %3972 = vmatprep.subr.bf16.mxu0 0
      %3973 = vmatpush1.bf16.msra.mxu0 0
      %3974 = vmatprep.subr.bf16.mxu0 0
      %3975 = vmatpush1.bf16.msra.mxu0 0
      %3976 = vmatprep.subr.bf16.mxu0 0
      %3977 = vmatpush1.bf16.msra.mxu0 0
      %3978 = vmatprep.mubr.bf16.mxu0 0
      %3979 = vmatmul.mubr.bf16.gmra.mrb[0].mxu0 %v3896
      %v3980 = vpop.f32.mrb[0].mxu0
      %v3981 = vadd.f32 0.0, %v3980
      %v3982 = vpop.f32.mrb[0].mxu0
      %v3983 = vpop.f32.mrb[0].mxu0
      %v3984 = vadd.f32 0.0, %v3983
      %v3985 = vpop.f32.mrb[0].mxu0
      %3986 = vmatprep.mubr.bf16.mxu0 0
      %3987 = vmatmul.mubr.bf16.gmra.mrb[0].mxu0 %v3899
      %v3988 = vpop.f32.mrb[0].mxu0
      %v3989 = vadd.f32 0.0, %v3988
      %v3990 = vpop.f32.mrb[0].mxu0
      %v3991 = vpop.f32.mrb[0].mxu0
      %v3992 = vadd.f32 0.0, %v3991
      %v3993 = vpop.f32.mrb[0].mxu0
      %3994 = vmatprep.mubr.bf16.mxu0 0
      %3995 = vmatmul.mubr.bf16.gmra.mrb[0].mxu0 %v3902
      %v3996 = vpop.f32.mrb[0].mxu0
      %v3997 = vadd.f32 0.0, %v3996
      %v3998 = vpop.f32.mrb[0].mxu0
      %v3999 = vpop.f32.mrb[0].mxu0
      %v4000 = vadd.f32 0.0, %v3999
      %v4001 = vpop.f32.mrb[0].mxu0
      %4002 = vmatprep.mubr.bf16.mxu0 0
      %4003 = vmatmul.mubr.bf16.gmra.mrb[0].mxu0 %v3905
      %v4004 = vpop.f32.mrb[0].mxu0
      %v4005 = vadd.f32 0.0, %v4004
      %v4006 = vpop.f32.mrb[0].mxu0
      %v4007 = vpop.f32.mrb[0].mxu0
      %v4008 = vadd.f32 0.0, %v4007
      %v4009 = vpop.f32.mrb[0].mxu0
      %4010 = vmatprep.mubr.bf16.mxu0 0
      %4011 = vmatmul.mubr.bf16.gmra.mrb[0].mxu0 %v3908
      %v4012 = vpop.f32.mrb[0].mxu0
      %v4013 = vadd.f32 0.0, %v4012
      %v4014 = vpop.f32.mrb[0].mxu0
      %v4015 = vpop.f32.mrb[0].mxu0
      %v4016 = vadd.f32 0.0, %v4015
      %v4017 = vpop.f32.mrb[0].mxu0
      %4018 = vmatprep.mubr.bf16.mxu0 0
      %4019 = vmatmul.mubr.bf16.gmra.mrb[0].mxu0 %v3911
      %v4020 = vpop.f32.mrb[0].mxu0
      %v4021 = vadd.f32 0.0, %v4020
      %v4022 = vpop.f32.mrb[0].mxu0
      %v4023 = vpop.f32.mrb[0].mxu0
      %v4024 = vadd.f32 0.0, %v4023
      %v4025 = vpop.f32.mrb[0].mxu0
      %4026 = vmatprep.mubr.bf16.mxu0 0
      %4027 = vmatmul.mubr.bf16.gmra.mrb[0].mxu0 %v3914
      %v4028 = vpop.f32.mrb[0].mxu0
      %v4029 = vadd.f32 0.0, %v4028
      %v4030 = vpop.f32.mrb[0].mxu0
      %v4031 = vpop.f32.mrb[0].mxu0
      %v4032 = vadd.f32 0.0, %v4031
      %v4033 = vpop.f32.mrb[0].mxu0
      %4034 = vmatprep.mubr.bf16.mxu0 0
      %4035 = vmatmul.mubr.bf16.gmra.mrb[0].mxu0 %v3917
      %v4036 = vpop.f32.mrb[0].mxu0
      %v4037 = vadd.f32 0.0, %v4036
      %v4038 = vpop.f32.mrb[0].mxu0
      %v4039 = vpop.f32.mrb[0].mxu0
      %v4040 = vadd.f32 0.0, %v4039
      %v4041 = vpop.f32.mrb[0].mxu0
      %4042 = vmatprep.mubr.bf16.mxu0 0
      %4043 = vmatmul.mubr.bf16.gmra.mrb[0].mxu0 %v3920
      %v4044 = vpop.f32.mrb[0].mxu0
      %v4045 = vadd.f32 0.0, %v4044
      %v4046 = vpop.f32.mrb[0].mxu0
      %v4047 = vpop.f32.mrb[0].mxu0
      %v4048 = vadd.f32 0.0, %v4047
      %v4049 = vpop.f32.mrb[0].mxu0
      %4050 = vmatprep.mubr.bf16.mxu0 0
      %4051 = vmatmul.mubr.bf16.gmra.mrb[0].mxu0 %v3923
      %v4052 = vpop.f32.mrb[0].mxu0
      %v4053 = vadd.f32 0.0, %v4052
      %v4054 = vpop.f32.mrb[0].mxu0
      %v4055 = vpop.f32.mrb[0].mxu0
      %v4056 = vadd.f32 0.0, %v4055
      %v4057 = vpop.f32.mrb[0].mxu0
      %4058 = vmatprep.mubr.bf16.mxu0 0
      %4059 = vmatmul.mubr.bf16.gmra.mrb[0].mxu0 %v3926
      %v4060 = vpop.f32.mrb[0].mxu0
      %v4061 = vadd.f32 0.0, %v4060
      %v4062 = vpop.f32.mrb[0].mxu0
      %v4063 = vpop.f32.mrb[0].mxu0
      %v4064 = vadd.f32 0.0, %v4063
      %v4065 = vpop.f32.mrb[0].mxu0
      %4066 = vmatprep.mubr.bf16.mxu0 0
      %4067 = vmatmul.mubr.bf16.gmra.mrb[0].mxu0 %v3929
      %v4068 = vpop.f32.mrb[0].mxu0
      %v4069 = vadd.f32 0.0, %v4068
      %v4070 = vpop.f32.mrb[0].mxu0
      %v4071 = vpop.f32.mrb[0].mxu0
      %v4072 = vadd.f32 0.0, %v4071
      %v4073 = vpop.f32.mrb[0].mxu0
      %4074 = vmatprep.mubr.bf16.mxu0 0
      %4075 = vmatmul.mubr.bf16.gmra.mrb[0].mxu0 %v3932
      %v4076 = vpop.f32.mrb[0].mxu0
      %v4077 = vadd.f32 0.0, %v4076
      %v4078 = vpop.f32.mrb[0].mxu0
      %v4079 = vpop.f32.mrb[0].mxu0
      %v4080 = vadd.f32 0.0, %v4079
      %v4081 = vpop.f32.mrb[0].mxu0
      %4082 = vmatprep.mubr.bf16.mxu0 0
      %4083 = vmatmul.mubr.bf16.gmra.mrb[0].mxu0 %v3935
      %v4084 = vpop.f32.mrb[0].mxu0
      %v4085 = vadd.f32 0.0, %v4084
      %v4086 = vpop.f32.mrb[0].mxu0
      %v4087 = vpop.f32.mrb[0].mxu0
      %v4088 = vadd.f32 0.0, %v4087
      %v4089 = vpop.f32.mrb[0].mxu0
      %4090 = vmatprep.mubr.bf16.mxu0 0
      %4091 = vmatmul.mubr.bf16.gmra.mrb[0].mxu0 %v3938
      %v4092 = vpop.f32.mrb[0].mxu0
      %v4093 = vadd.f32 0.0, %v4092
      %v4094 = vpop.f32.mrb[0].mxu0
      %v4095 = vpop.f32.mrb[0].mxu0
      %v4096 = vadd.f32 0.0, %v4095
      %v4097 = vpop.f32.mrb[0].mxu0
      %4098 = vmatprep.mubr.bf16.mxu0 0
      %4099 = vmatmul.mubr.bf16.gmra.mrb[0].mxu0 %v3941
      %v4100 = vpop.f32.mrb[0].mxu0
      %v4101 = vadd.f32 0.0, %v4100
      %v4102 = vpop.f32.mrb[0].mxu0
      %v4103 = vpop.f32.mrb[0].mxu0
      %v4104 = vadd.f32 0.0, %v4103
      %v4105 = vpop.f32.mrb[0].mxu0
      %4106 = vdwg.mxu0
      %4107 = vst.msk [vmem:[%s280] sm:$0xff] %vm3688, %v3981
      %4108 = vst.msk [vmem:[%s280 + $0x8] sm:$0xff] %vm3688, %v3984
      %4109 = vst.msk [vmem:[%s280 + $0x10] sm:$0xff] %vm3688, %v3989
      %4110 = vst.msk [vmem:[%s280 + $0x18] sm:$0xff] %vm3688, %v3992
      %4111 = vst.msk [vmem:[%s280 + $0x20] sm:$0xff] %vm3688, %v3997
      %4112 = vst.msk [vmem:[%s280 + $0x28] sm:$0xff] %vm3688, %v4000
      %4113 = vst.msk [vmem:[%s280 + $0x30] sm:$0xff] %vm3688, %v4005
      %4114 = vst.msk [vmem:[%s280 + $0x38] sm:$0xff] %vm3688, %v4008
      %4115 = vst.msk [vmem:[%s280 + $0x40] sm:$0xff] %vm3688, %v4013
      %4116 = vst.msk [vmem:[%s280 + $0x48] sm:$0xff] %vm3688, %v4016
      %4117 = vst.msk [vmem:[%s280 + $0x50] sm:$0xff] %vm3688, %v4021
      %4118 = vst.msk [vmem:[%s280 + $0x58] sm:$0xff] %vm3688, %v4024
      %4119 = vst.msk [vmem:[%s280 + $0x60] sm:$0xff] %vm3688, %v4029
      %4120 = vst.msk [vmem:[%s280 + $0x68] sm:$0xff] %vm3688, %v4032
      %4121 = vst.msk [vmem:[%s280 + $0x70] sm:$0xff] %vm3688, %v4037
      %4122 = vst.msk [vmem:[%s280 + $0x78] sm:$0xff] %vm3688, %v4040
      %4123 = vst.msk [vmem:[%s280 + $0x80] sm:$0xff] %vm3688, %v4045
      %4124 = vst.msk [vmem:[%s280 + $0x88] sm:$0xff] %vm3688, %v4048
      %4125 = vst.msk [vmem:[%s280 + $0x90] sm:$0xff] %vm3688, %v4053
      %4126 = vst.msk [vmem:[%s280 + $0x98] sm:$0xff] %vm3688, %v4056
      %4127 = vst.msk [vmem:[%s280 + $0xa0] sm:$0xff] %vm3688, %v4061
      %4128 = vst.msk [vmem:[%s280 + $0xa8] sm:$0xff] %vm3688, %v4064
      %4129 = vst.msk [vmem:[%s280 + $0xb0] sm:$0xff] %vm3688, %v4069
      %4130 = vst.msk [vmem:[%s280 + $0xb8] sm:$0xff] %vm3688, %v4072
      %4131 = vst.msk [vmem:[%s280 + $0xc0] sm:$0xff] %vm3688, %v4077
      %4132 = vst.msk [vmem:[%s280 + $0xc8] sm:$0xff] %vm3688, %v4080
      %4133 = vst.msk [vmem:[%s280 + $0xd0] sm:$0xff] %vm3688, %v4085
      %4134 = vst.msk [vmem:[%s280 + $0xd8] sm:$0xff] %vm3688, %v4088
      %4135 = vst.msk [vmem:[%s280 + $0xe0] sm:$0xff] %vm3688, %v4093
      %4136 = vst.msk [vmem:[%s280 + $0xe8] sm:$0xff] %vm3688, %v4096
      %4137 = vst.msk [vmem:[%s280 + $0xf0] sm:$0xff] %vm3688, %v4101
      %4138 = vst.msk [vmem:[%s280 + $0xf8] sm:$0xff] %vm3688, %v4104
      %v4139 = vsel %vm3688, %v3981, 0.0
      %v4140 = vsel %vm3688, %v3984, 0.0
      %v4141 = vadd.f32 %v4139, %v4140
      %v4142 = vsel %vm3688, %v3989, 0.0
      %v4143 = vadd.f32 %v4141, %v4142
      %v4144 = vsel %vm3688, %v3992, 0.0
      %v4145 = vadd.f32 %v4143, %v4144
      %v4146 = vsel %vm3688, %v3997, 0.0
      %v4147 = vadd.f32 %v4145, %v4146
      %v4148 = vsel %vm3688, %v4000, 0.0
      %v4149 = vadd.f32 %v4147, %v4148
      %v4150 = vsel %vm3688, %v4005, 0.0
      %v4151 = vadd.f32 %v4149, %v4150
      %v4152 = vsel %vm3688, %v4008, 0.0
      %v4153 = vadd.f32 %v4151, %v4152
      %v4154 = vsel %vm3688, %v4013, 0.0
      %v4155 = vadd.f32 %v4153, %v4154
      %v4156 = vsel %vm3688, %v4016, 0.0
      %v4157 = vadd.f32 %v4155, %v4156
      %v4158 = vsel %vm3688, %v4021, 0.0
      %v4159 = vadd.f32 %v4157, %v4158
      %v4160 = vsel %vm3688, %v4024, 0.0
      %v4161 = vadd.f32 %v4159, %v4160
      %v4162 = vsel %vm3688, %v4029, 0.0
      %v4163 = vadd.f32 %v4161, %v4162
      %v4164 = vsel %vm3688, %v4032, 0.0
      %v4165 = vadd.f32 %v4163, %v4164
      %v4166 = vsel %vm3688, %v4037, 0.0
      %v4167 = vadd.f32 %v4165, %v4166
      %v4168 = vsel %vm3688, %v4040, 0.0
      %v4169 = vadd.f32 %v4167, %v4168
      %v4170 = vsel %vm3688, %v4045, 0.0
      %v4171 = vadd.f32 %v4169, %v4170
      %v4172 = vsel %vm3688, %v4048, 0.0
      %v4173 = vadd.f32 %v4171, %v4172
      %v4174 = vsel %vm3688, %v4053, 0.0
      %v4175 = vadd.f32 %v4173, %v4174
      %v4176 = vsel %vm3688, %v4056, 0.0
      %v4177 = vadd.f32 %v4175, %v4176
      %v4178 = vsel %vm3688, %v4061, 0.0
      %v4179 = vadd.f32 %v4177, %v4178
      %v4180 = vsel %vm3688, %v4064, 0.0
      %v4181 = vadd.f32 %v4179, %v4180
      %v4182 = vsel %vm3688, %v4069, 0.0
      %v4183 = vadd.f32 %v4181, %v4182
      %v4184 = vsel %vm3688, %v4072, 0.0
      %v4185 = vadd.f32 %v4183, %v4184
      %v4186 = vsel %vm3688, %v4077, 0.0
      %v4187 = vadd.f32 %v4185, %v4186
      %v4188 = vsel %vm3688, %v4080, 0.0
      %v4189 = vadd.f32 %v4187, %v4188
      %v4190 = vsel %vm3688, %v4085, 0.0
      %v4191 = vadd.f32 %v4189, %v4190
      %v4192 = vsel %vm3688, %v4088, 0.0
      %v4193 = vadd.f32 %v4191, %v4192
      %v4194 = vsel %vm3688, %v4093, 0.0
      %v4195 = vadd.f32 %v4193, %v4194
      %v4196 = vsel %vm3688, %v4096, 0.0
      %v4197 = vadd.f32 %v4195, %v4196
      %v4198 = vsel %vm3688, %v4101, 0.0
      %v4199 = vadd.f32 %v4197, %v4198
      %v4200 = vsel %vm3688, %v4104, 0.0
      %v4201 = vadd.f32 %v4199, %v4200
      %v4202 = vrot.slane %v4201, 4
      %v4203 = vadd.f32 %v4201, %v4202
      %v4204 = vrot.slane %v4203, 2
      %v4205 = vadd.f32 %v4203, %v4204
      %v4206 = vrot.slane %v4205, 1
      %v4207 = vadd.f32 %v4205, %v4206
      %4208 = vst.msk [vmem:[%s284] sm:$0x1] %vm3790, %v4207
      %v4209 = vmul.f32 %v3981, %v3981
      %v4210 = vmul.f32 %v3984, %v3984
      %v4211 = vmul.f32 %v3989, %v3989
      %v4212 = vmul.f32 %v3992, %v3992
      %v4213 = vmul.f32 %v3997, %v3997
      %v4214 = vmul.f32 %v4000, %v4000
      %v4215 = vmul.f32 %v4005, %v4005
      %v4216 = vmul.f32 %v4008, %v4008
      %v4217 = vmul.f32 %v4013, %v4013
      %v4218 = vmul.f32 %v4016, %v4016
      %v4219 = vmul.f32 %v4021, %v4021
      %v4220 = vmul.f32 %v4024, %v4024
      %v4221 = vmul.f32 %v4029, %v4029
      %v4222 = vmul.f32 %v4032, %v4032
      %v4223 = vmul.f32 %v4037, %v4037
      %v4224 = vmul.f32 %v4040, %v4040
      %v4225 = vmul.f32 %v4045, %v4045
      %v4226 = vmul.f32 %v4048, %v4048
      %v4227 = vmul.f32 %v4053, %v4053
      %v4228 = vmul.f32 %v4056, %v4056
      %v4229 = vmul.f32 %v4061, %v4061
      %v4230 = vmul.f32 %v4064, %v4064
      %v4231 = vmul.f32 %v4069, %v4069
      %v4232 = vmul.f32 %v4072, %v4072
      %v4233 = vmul.f32 %v4077, %v4077
      %v4234 = vmul.f32 %v4080, %v4080
      %v4235 = vmul.f32 %v4085, %v4085
      %v4236 = vmul.f32 %v4088, %v4088
      %v4237 = vmul.f32 %v4093, %v4093
      %v4238 = vmul.f32 %v4096, %v4096
      %v4239 = vmul.f32 %v4101, %v4101
      %v4240 = vmul.f32 %v4104, %v4104
      %v4241 = vsel %vm3688, %v4209, 0.0
      %v4242 = vsel %vm3688, %v4210, 0.0
      %v4243 = vadd.f32 %v4241, %v4242
      %v4244 = vsel %vm3688, %v4211, 0.0
      %v4245 = vadd.f32 %v4243, %v4244
      %v4246 = vsel %vm3688, %v4212, 0.0
      %v4247 = vadd.f32 %v4245, %v4246
      %v4248 = vsel %vm3688, %v4213, 0.0
      %v4249 = vadd.f32 %v4247, %v4248
      %v4250 = vsel %vm3688, %v4214, 0.0
      %v4251 = vadd.f32 %v4249, %v4250
      %v4252 = vsel %vm3688, %v4215, 0.0
      %v4253 = vadd.f32 %v4251, %v4252
      %v4254 = vsel %vm3688, %v4216, 0.0
      %v4255 = vadd.f32 %v4253, %v4254
      %v4256 = vsel %vm3688, %v4217, 0.0
      %v4257 = vadd.f32 %v4255, %v4256
      %v4258 = vsel %vm3688, %v4218, 0.0
      %v4259 = vadd.f32 %v4257, %v4258
      %v4260 = vsel %vm3688, %v4219, 0.0
      %v4261 = vadd.f32 %v4259, %v4260
      %v4262 = vsel %vm3688, %v4220, 0.0
      %v4263 = vadd.f32 %v4261, %v4262
      %v4264 = vsel %vm3688, %v4221, 0.0
      %v4265 = vadd.f32 %v4263, %v4264
      %v4266 = vsel %vm3688, %v4222, 0.0
      %v4267 = vadd.f32 %v4265, %v4266
      %v4268 = vsel %vm3688, %v4223, 0.0
      %v4269 = vadd.f32 %v4267, %v4268
      %v4270 = vsel %vm3688, %v4224, 0.0
      %v4271 = vadd.f32 %v4269, %v4270
      %v4272 = vsel %vm3688, %v4225, 0.0
      %v4273 = vadd.f32 %v4271, %v4272
      %v4274 = vsel %vm3688, %v4226, 0.0
      %v4275 = vadd.f32 %v4273, %v4274
      %v4276 = vsel %vm3688, %v4227, 0.0
      %v4277 = vadd.f32 %v4275, %v4276
      %v4278 = vsel %vm3688, %v4228, 0.0
      %v4279 = vadd.f32 %v4277, %v4278
      %v4280 = vsel %vm3688, %v4229, 0.0
      %v4281 = vadd.f32 %v4279, %v4280
      %v4282 = vsel %vm3688, %v4230, 0.0
      %v4283 = vadd.f32 %v4281, %v4282
      %v4284 = vsel %vm3688, %v4231, 0.0
      %v4285 = vadd.f32 %v4283, %v4284
      %v4286 = vsel %vm3688, %v4232, 0.0
      %v4287 = vadd.f32 %v4285, %v4286
      %v4288 = vsel %vm3688, %v4233, 0.0
      %v4289 = vadd.f32 %v4287, %v4288
      %v4290 = vsel %vm3688, %v4234, 0.0
      %v4291 = vadd.f32 %v4289, %v4290
      %v4292 = vsel %vm3688, %v4235, 0.0
      %v4293 = vadd.f32 %v4291, %v4292
      %v4294 = vsel %vm3688, %v4236, 0.0
      %v4295 = vadd.f32 %v4293, %v4294
      %v4296 = vsel %vm3688, %v4237, 0.0
      %v4297 = vadd.f32 %v4295, %v4296
      %v4298 = vsel %vm3688, %v4238, 0.0
      %v4299 = vadd.f32 %v4297, %v4298
      %v4300 = vsel %vm3688, %v4239, 0.0
      %v4301 = vadd.f32 %v4299, %v4300
      %v4302 = vsel %vm3688, %v4240, 0.0
      %v4303 = vadd.f32 %v4301, %v4302
      %v4304 = vrot.slane %v4303, 4
      %v4305 = vadd.f32 %v4303, %v4304
      %v4306 = vrot.slane %v4305, 2
      %v4307 = vadd.f32 %v4305, %v4306
      %v4308 = vrot.slane %v4307, 1
      %v4309 = vadd.f32 %v4307, %v4308
      %4310 = vst.msk [vmem:[%s284 + $0x1] sm:$0x1] %vm3790, %v4309
      %p4311 = scmp.lt.s32.totalorder %s18, 1
      %s4312 = scalar_select %p4311, %s18, 1
      %s4313 = smul.addr %s4312, 32
      %s4314 = smul.addr %s4313, 8
      %s4315 = scalar_lea.vmem %s3, %s4314
      %p4316 = scmp.lt.s32.totalorder %s18, 1
      %s4317 = scalar_select %p4316, %s18, 1
      %s4318 = smul.addr %s4317, 2
      %s4319 = scalar_lea.vmem %s4, %s4318
      %p4320 = scmp.lt.s32.totalorder %s18, 1
      %s4321 = scalar_select %p4320, %s18, 1
      %s4322 = smul.addr %s4321, 32
      %s4323 = smul.addr %s4322, 8
      %s4324 = scalar_lea.vmem %s5, %s4323
      %p4325 = scmp.lt.s32.totalorder %s18, 1
      %s4326 = scalar_select %p4325, %s18, 1
      %s4327 = smul.addr %s4326, 2
      %s4328 = scalar_lea.vmem %s6, %s4327
      // Predicated region
      $region33: #{residual_block_pallas.3} parent=31 // pred_check
        %p4329 = pneg %p104
      $region34: #{residual_block_pallas.3} parent=31 // pred_check_branch
        %4331 = sbr.rel (%p4329) target = $region36
      $region35: #{residual_block_pallas.3} parent=31 // pred_region
        _
      $region36: #{residual_block_pallas.3} parent=31 // pred_fallthru
        _
      // Predicated region
      $region37: #{residual_block_pallas.3} parent=31 // pred_check
        %p4332 = pneg %p130
      $region38: #{residual_block_pallas.3} parent=31 // pred_check_branch
        %4334 = sbr.rel (%p4332) target = $region40
      $region39: #{residual_block_pallas.3} parent=31 // pred_region
        _
      $region40: #{residual_block_pallas.3} parent=31 // pred_fallthru
        _
      // Predicated region
      $region41: #{residual_block_pallas.3} parent=31 // pred_check
        %p4335 = pneg %p156
      $region42: #{residual_block_pallas.3} parent=31 // pred_check_branch
        %4337 = sbr.rel (%p4335) target = $region44
      $region43: #{residual_block_pallas.3} parent=31 // pred_region
        _
      $region44: #{residual_block_pallas.3} parent=31 // pred_fallthru
        _
      // Predicated region
      $region45: #{residual_block_pallas.3} parent=31 // pred_check
        %p4338 = pneg %p182
      $region46: #{residual_block_pallas.3} parent=31 // pred_check_branch
        %4340 = sbr.rel (%p4338) target = $region48
      $region47: #{residual_block_pallas.3} parent=31 // pred_region
        _
      $region48: #{residual_block_pallas.3} parent=31 // pred_fallthru
        _
    $region32: #{residual_block_pallas.3} parent=5 // pred_fallthru
      _
    %p4341 = scmp.le.s32.totalorder 2, %s13
    // Predicated region
    $region49: #{residual_block_pallas.3} parent=5 // pred_check
      %p4342 = pneg %p4341
    $region50: #{residual_block_pallas.3} parent=5 // pred_check_branch
      %4344 = sbr.rel (%p4342) target = $region52
    $region51: #{residual_block_pallas.3} parent=5 // pred_region
      %s4345 = ssub.s32 %s13, 2
      // Predicated region
      $region53: #{residual_block_pallas.3} parent=51 // pred_check
        %p4346 = pneg %p110
      $region54: #{residual_block_pallas.3} parent=51 // pred_check_branch
        %4348 = sbr.rel (%p4346) target = $region56
      $region55: #{residual_block_pallas.3} parent=51 // pred_region
        %p4349 = scmp.lt.s32.totalorder %s19, 1
        %s4350 = scalar_select %p4349, %s19, 1
        %s4351 = smul.addr %s4350, 32
        %s4352 = smul.addr %s4351, 8
        %s4353 = scalar_lea.vmem %s3, %s4352
      $region56: #{residual_block_pallas.3} parent=51 // pred_fallthru
        _
      // Predicated region
      $region57: #{residual_block_pallas.3} parent=51 // pred_check
        %p4354 = pneg %p136
      $region58: #{residual_block_pallas.3} parent=51 // pred_check_branch
        %4356 = sbr.rel (%p4354) target = $region60
      $region59: #{residual_block_pallas.3} parent=51 // pred_region
        %p4357 = scmp.lt.s32.totalorder %s19, 1
        %s4358 = scalar_select %p4357, %s19, 1
        %s4359 = smul.addr %s4358, 2
        %s4360 = scalar_lea.vmem %s4, %s4359
      $region60: #{residual_block_pallas.3} parent=51 // pred_fallthru
        _
      // Predicated region
      $region61: #{residual_block_pallas.3} parent=51 // pred_check
        %p4361 = pneg %p162
      $region62: #{residual_block_pallas.3} parent=51 // pred_check_branch
        %4363 = sbr.rel (%p4361) target = $region64
      $region63: #{residual_block_pallas.3} parent=51 // pred_region
        %p4364 = scmp.lt.s32.totalorder %s19, 1
        %s4365 = scalar_select %p4364, %s19, 1
        %s4366 = smul.addr %s4365, 32
        %s4367 = smul.addr %s4366, 8
        %s4368 = scalar_lea.vmem %s5, %s4367
      $region64: #{residual_block_pallas.3} parent=51 // pred_fallthru
        _
      // Predicated region
      $region65: #{residual_block_pallas.3} parent=51 // pred_check
        %p4369 = pneg %p188
      $region66: #{residual_block_pallas.3} parent=51 // pred_check_branch
        %4371 = sbr.rel (%p4369) target = $region68
      $region67: #{residual_block_pallas.3} parent=51 // pred_region
        %p4372 = scmp.lt.s32.totalorder %s19, 1
        %s4373 = scalar_select %p4372, %s19, 1
        %s4374 = smul.addr %s4373, 2
        %s4375 = scalar_lea.vmem %s6, %s4374
      $region68: #{residual_block_pallas.3} parent=51 // pred_fallthru
        _
    $region52: #{residual_block_pallas.3} parent=5 // pred_fallthru
      _
  $region6: #{residual_block_pallas.3} parent=0 // loop_footer
    %s17 = sadd.s32 1, %s13
  $region7: #{residual_block_pallas.3} parent=0 // loop_footer_branch
    %12 = sbr.rel target = $region3
  $region8: #{residual_block_pallas.3} parent=0 // loop_exit
    _

</llo_original>
